<compile_context>
chip_gen: v5e
topology: v5e:2x2
jax: 0.10.0
libtpu: 0.0.40
codegen_flags: <defaults>
</compile_context>

<pallas_src>
import functools

import jax
import jax.numpy as jnp
from jax import lax
from jax.experimental import pallas as pl
from jax.experimental.pallas import tpu as pltpu


# ----------------------------------------------------------------------------
# small helpers
# ----------------------------------------------------------------------------
def _rup(x, m=128):
    return ((x + m - 1) // m) * m


@functools.lru_cache()
def _vmem_limit():
    cap = 64 * 1024 * 1024
    try:
        info = pltpu.get_tpu_info()
        cap = int(getattr(info, "vmem_capacity_bytes", cap))
    except Exception:
        pass
    # ~7/8 of physical, capped at 100 MiB -> ~100 MiB on v5e/v6e, ~56 MiB on v7x.
    return int(min(cap - cap // 8, 100 * 1024 * 1024))


def _tci_cap():
    return 512 if _vmem_limit() >= 80 * 1024 * 1024 else 256


def _pick_chan_tile(c, cap):
    # c is a multiple of 128; return the largest multiple-of-128 divisor <= cap.
    t = max(128, min(c, (cap // 128) * 128))
    while c % t != 0:
        t -= 128
    return max(t, 128)


def _pick_divisor(n, cap):
    t = max(1, min(n, cap))
    while n % t != 0:
        t -= 1
    return t


def _pick_row_tile(m, cap=4096):
    t = min(m, cap)
    if m % 8 == 0:
        t -= t % 8
        while m % t != 0:
            t -= 8
        return max(t, 8)
    return _pick_divisor(m, cap)


def _pick_h_tile(h, cap=64):
    return _pick_divisor(h, cap)


# ----------------------------------------------------------------------------
# Pallas kernels
# ----------------------------------------------------------------------------
def _convT_kernel(x_ref, w_ref, b_ref, o_ref, *, Cop):
    # ConvTranspose2d(k=2, s=2): out[r,2j+dj? ...] -- one matmul per row tile:
    #   y[(r,j), (di*2+dj)*Cop+co] = sum_ci x[r,j,ci] * w[ci,(di*2+dj)*Cop+co] + b
    tr, W, Cip = x_ref.shape
    x = x_ref[...].reshape(tr * W, Cip)                           # bf16
    y = jnp.dot(x, w_ref[...], preferred_element_type=jnp.float32) + b_ref[...]
    y = y.reshape(tr, W, 4 * Cop)
    # interleaved (row, di, w, dj*Cop+co) layout -> free reshape to (N,2H,2W,Cop) outside
    o_ref[:, 0, :, :] = y[:, :, : 2 * Cop].astype(o_ref.dtype)
    o_ref[:, 1, :, :] = y[:, :, 2 * Cop:].astype(o_ref.dtype)


def _conv3x3_kernel(*refs, th, W, apply_input_affine):
    # Fused: [optional BN affine + ReLU + border mask on input] -> 3x3 conv (kw folded into K)
    #        -> +bias -> BN sum / sum-of-squares epilogue.  ci (Cin tiles) is the innermost axis.
    if apply_input_affine:
        x_ref, w_ref, b_ref, sc_ref, sh_ref, m_ref, o_ref, st_ref, acc_ref = refs
    else:
        x_ref, w_ref, b_ref, o_ref, st_ref, acc_ref = refs

    ci = pl.program_id(2)
    n_ci = pl.num_programs(2)
    tci = x_ref.shape[-1]
    tco = o_ref.shape[-1]

    @pl.when(ci == 0)
    def _():
        acc_ref[...] = jnp.zeros_like(acc_ref)

    x = x_ref[0]                                                  # (th+2, W+2, tci) bf16
    if apply_input_affine:
        v = jnp.maximum(x.astype(jnp.float32) * sc_ref[...] + sh_ref[...], 0.0)
        # conv zero-padding must stay zero *after* affine+ReLU -> precomputed 0/1 border mask
        x = (v * m_ref[0]).astype(jnp.bfloat16)

    # Fold kw into the contraction: one lane-concat (3 sublane-shift copies) -> 3 dots, K=3*tci.
    xk = jnp.concatenate([x[:, 0:W, :], x[:, 1:W + 1, :], x[:, 2:W + 2, :]], axis=-1)
    xk = xk.reshape((th + 2) * W, 3 * tci)

    partial = jnp.zeros((th * W, tco), jnp.float32)
    for kh in range(3):
        wk = w_ref[kh].reshape(3 * tci, tco)                      # (kw, ci) flattened, bf16
        patch = xk[kh * W:kh * W + th * W, :]                     # aligned sublane slice
        partial = partial + jnp.dot(patch, wk, preferred_element_type=jnp.float32)

    acc = acc_ref[...] + partial

    @pl.when(ci < n_ci - 1)
    def _():
        acc_ref[...] = acc                                        # skip write-back on last step

    @pl.when(ci == n_ci - 1)
    def _():
        y = acc + b_ref[...]                                      # bias once, on the last K step
        # BN statistics while the tile is still in VMEM (f32)
        st_ref[0] = jnp.concatenate(
            [jnp.sum(y, axis=0, keepdims=True),
             jnp.sum(y * y, axis=0, keepdims=True)], axis=0)
        o_ref[0] = y.reshape(th, W, tco).astype(o_ref.dtype)      # single aligned full store


def _affine_relu_kernel(y_ref, sc_ref, sh_ref, o_ref):
    o_ref[...] = jnp.maximum(
        y_ref[...].astype(jnp.float32) * sc_ref[...] + sh_ref[...], 0.0)


# ----------------------------------------------------------------------------
# Pallas wrappers
# ----------------------------------------------------------------------------
def conv_transpose_2x2_s2(x_nhwc, w2, b4):
    """x: (N,H,W,Cip) bf16; w2: (Cip, 4*Cop) bf16, col=(di*2+dj)*Cop+co; b4: (4*Cop,) f32."""
    N, H, W, Cip = x_nhwc.shape
    Cop4 = w2.shape[1]
    Cop = Cop4 // 4
    NR = N * H
    x_rows = x_nhwc.reshape(NR, W, Cip)                           # fold batch+rows into M
    tr = _pick_divisor(NR, max(1, 2048 // max(W, 1)))
    # TODO(synk): tile the (Cip, 4*Cop) weight over Cout (and K) for very deep decoder levels.
    kernel = functools.partial(_convT_kernel, Cop=Cop)
    y = pl.pallas_call(
        kernel,
        out_shape=jax.ShapeDtypeStruct((NR, 2, W, 2 * Cop), jnp.bfloat16),
        grid=(NR // tr,),
        in_specs=[
            pl.BlockSpec((tr, W, Cip), lambda r: (r, 0, 0)),
            pl.BlockSpec((Cip, Cop4), lambda r: (0, 0)),
            pl.BlockSpec((1, Cop4), lambda r: (0, 0)),
        ],
        out_specs=pl.BlockSpec((tr, 2, W, 2 * Cop), lambda r: (r, 0, 0, 0)),
        compiler_params=pltpu.CompilerParams(
            dimension_semantics=("parallel",),
            vmem_limit_bytes=_vmem_limit()),
    )(x_rows, w2, b4.reshape(1, -1))
    # (N*H, 2, W, 2*Cop) is bit-identical to (N, 2H, 2W, Cop): free reshape, no transpose pass.
    return y.reshape(N, 2 * H, 2 * W, Cop)


def conv3x3_bn(x_strips, w, b, *, th, W, in_scale=None, in_shift=None, mask=None):
    """Fused Conv2d(3x3, pad=1) + BN-stats (+ optional fused input-side BN affine + ReLU).

    x_strips: (N*n_h, th+2, W+2, Cin_p) bf16 halo row strips (zero spatial padding baked in).
    w: (3, 3, Cin_p, Cout_p) bf16; b: (1, Cout_p) f32; mask: (N*n_h, th+2, W+2, 1) f32.
    Returns y (N*n_h, th, W, Cout_p) bf16 pre-BN conv output and stats (N*n_h, 2, Cout_p) f32.
    """
    NH, Hs, Wp, Cin_p = x_strips.shape
    assert Hs == th + 2 and Wp == W + 2
    Cout_p = w.shape[-1]
    tci = _pick_chan_tile(Cin_p, _tci_cap())
    tco = _pick_chan_tile(Cout_p, 256)
    n_ci = Cin_p // tci
    n_co = Cout_p // tco
    apply_affine = in_scale is not None

    kernel = functools.partial(_conv3x3_kernel, th=th, W=W,
                               apply_input_affine=apply_affine)

    in_specs = [
        pl.BlockSpec((1, Hs, Wp, tci), lambda nh, co, ci: (nh, 0, 0, ci)),
        pl.BlockSpec((3, 3, tci, tco), lambda nh, co, ci: (0, 0, ci, co)),
        pl.BlockSpec((1, tco), lambda nh, co, ci: (0, co)),
    ]
    args = [x_strips, w, b]
    if apply_affine:
        in_specs += [
            pl.BlockSpec((1, 1, tci), lambda nh, co, ci: (0, 0, ci)),
            pl.BlockSpec((1, 1, tci), lambda nh, co, ci: (0, 0, ci)),
            pl.BlockSpec((1, Hs, Wp, 1), lambda nh, co, ci: (nh, 0, 0, 0)),
        ]
        args += [in_scale.reshape(1, 1, Cin_p), in_shift.reshape(1, 1, Cin_p), mask]

    # TODO(synk): move the ci reduction inside the kernel (pltpu.emit_pipeline) to drop the
    # per-ci accumulator VMEM round trip; loop co in-kernel to avoid re-reading x per co tile.
    grid_spec = pltpu.PrefetchScalarGridSpec(
        num_scalar_prefetch=0,
        grid=(NH, n_co, n_ci),
        in_specs=in_specs,
        out_specs=[
            pl.BlockSpec((1, th, W, tco), lambda nh, co, ci: (nh, 0, 0, co)),
            pl.BlockSpec((1, 2, tco), lambda nh, co, ci: (nh, 0, co)),
        ],
        scratch_shapes=[pltpu.VMEM((th * W, tco), jnp.float32)],
    )
    y, st = pl.pallas_call(
        kernel,
        out_shape=(jax.ShapeDtypeStruct((NH, th, W, Cout_p), jnp.bfloat16),
                   jax.ShapeDtypeStruct((NH, 2, Cout_p), jnp.float32)),
        grid_spec=grid_spec,
        compiler_params=pltpu.CompilerParams(
            dimension_semantics=("parallel", "parallel", "arbitrary"),
            vmem_limit_bytes=_vmem_limit()),
    )(*args)
    return y, st


def affine_relu(y2d, scale, shift):
    """y2d: (M, Cp) bf16 -> f32 ReLU(y*scale + shift), large lane-dense row tiles."""
    M, C = y2d.shape
    tm = _pick_row_tile(M, cap=4096)
    return pl.pallas_call(
        _affine_relu_kernel,
        out_shape=jax.ShapeDtypeStruct((M, C), jnp.float32),
        grid=(M // tm,),
        in_specs=[pl.BlockSpec((tm, C), lambda i: (i, 0)),
                  pl.BlockSpec((1, C), lambda i: (0, 0)),
                  pl.BlockSpec((1, C), lambda i: (0, 0))],
        out_specs=pl.BlockSpec((tm, C), lambda i: (i, 0)),
        compiler_params=pltpu.CompilerParams(
            dimension_semantics=("parallel",),
            vmem_limit_bytes=_vmem_limit()),
    )(y2d, scale.reshape(1, -1), shift.reshape(1, -1))


# ----------------------------------------------------------------------------
# XLA glue: strip/halo assembly, masks, BN finalize (tiny per-channel math)
# ----------------------------------------------------------------------------
def _make_strips(x_halo, th):
    """(N, H+2, Wp, C) halo-padded -> (N*n_h, th+2, Wp, C) overlapping row strips."""
    N, Hp, Wp, C = x_halo.shape
    H = Hp - 2
    n_h = H // th
    idx = jnp.arange(n_h)[:, None] * th + jnp.arange(th + 2)[None, :]
    strips = x_halo[:, idx]                                       # (N, n_h, th+2, Wp, C)
    return strips.reshape(N * n_h, th + 2, Wp, C)


def _make_interior_mask(N, th, H, W):
    n_h = H // th
    rows = jnp.arange(n_h)[:, None] * th + jnp.arange(th + 2)[None, :]
    row_ok = (rows >= 1) & (rows <= H)
    cols = jnp.arange(W + 2)
    col_ok = (cols >= 1) & (cols <= W)
    m = (row_ok[:, :, None] & col_ok[None, None, :]).astype(jnp.float32)[..., None]
    return jnp.tile(m, (N, 1, 1, 1))                              # (N*n_h, th+2, W+2, 1)


def _bn_scale_shift(stats, count, gamma_p, beta_p, eps=1e-5):
    s = jnp.sum(stats, axis=0)                                    # (2, Cp)
    mean = s[0] / count
    var = jnp.maximum(s[1] / count - mean * mean, 0.0)            # biased var (training mode)
    scale = gamma_p * lax.rsqrt(var + eps)
    shift = beta_p - mean * scale
    return scale, shift


# ----------------------------------------------------------------------------
# Module forward (NCHW in/out, f32, to match the PyTorch module)
# ----------------------------------------------------------------------------
def up_block_forward(up_x, down_x, params):
    N, Ciu, Hu, Wu = up_x.shape
    _, Cdown, Hd, Wd = down_x.shape
    Cou = params["up_b"].shape[0]        # up_conv_out_channels
    Cout = params["c1_b"].shape[0]       # out_channels

    # TODO(synk): for genuinely narrow layers (<64 ch) skip the 128-lane padding and pack
    # spatial positions into lanes instead; fine for real ResNet50 decoder widths.
    Cip_u, Cop_u = _rup(Ciu), _rup(Cou)

    # ---- x = self.upsample(up_x): ConvTranspose2d(k=2, s=2) ----
    up_nhwc = jnp.transpose(up_x, (0, 2, 3, 1))
    up_nhwc = jnp.pad(up_nhwc, ((0, 0), (0, 0), (0, 0), (0, Cip_u - Ciu))).astype(jnp.bfloat16)
    wT = jnp.transpose(params["up_w"], (0, 2, 3, 1))              # (Ci, 2, 2, Co)
    wT = jnp.pad(wT, ((0, Cip_u - Ciu), (0, 0), (0, 0), (0, Cop_u - Cou)))
    wT = wT.reshape(Cip_u, 4 * Cop_u).astype(jnp.bfloat16)        # col = (di*2+dj)*Cop + co
    bT = jnp.tile(jnp.pad(params["up_b"], (0, Cop_u - Cou)), 4)   # f32 (4*Cop_u,)
    up_out = conv_transpose_2x2_s2(up_nhwc, wT, bT)               # (N, 2Hu, 2Wu, Cop_u) bf16

    # ---- F.pad (pad or crop, per torch semantics) + channel concat + conv halo pad ----
    Hx, Wx = up_out.shape[1], up_out.shape[2]
    diffY, diffX = Hd - Hx, Wd - Wx
    zero = jnp.zeros((), jnp.bfloat16)
    up_al = lax.pad(up_out[..., :Cou], zero,
                    ((0, 0, 0),
                     (diffY // 2, diffY - diffY // 2, 0),
                     (diffX // 2, diffX - diffX // 2, 0),
                     (0, 0, 0)))
    down_nhwc = jnp.transpose(down_x, (0, 2, 3, 1)).astype(jnp.bfloat16)
    Ccat = Cou + Cdown
    Ccat_p = _rup(Ccat)
    x1 = jnp.concatenate([up_al, down_nhwc], axis=-1)             # [upsampled, down_x]
    x1 = jnp.pad(x1, ((0, 0), (1, 1), (1, 1), (0, Ccat_p - Ccat)))  # halo + channel pad (bf16)

    th = _pick_h_tile(Hd)
    Cop = _rup(Cout)
    M = N * Hd * Wd

    # ---- conv_block_1: conv3x3 + fused BN-stats epilogue ----
    w1 = jnp.transpose(params["c1_w"], (2, 3, 1, 0))              # (kh, kw, Cin, Cout)
    w1 = jnp.pad(w1, ((0, 0), (0, 0), (0, Ccat_p - Ccat), (0, Cop - Cout))).astype(jnp.bfloat16)
    b1 = jnp.pad(params["c1_b"], (0, Cop - Cout)).reshape(1, -1)
    y1, st1 = conv3x3_bn(_make_strips(x1, th), w1, b1, th=th, W=Wd)
    g1 = jnp.pad(params["c1_gamma"], (0, Cop - Cout))
    be1 = jnp.pad(params["c1_beta"], (0, Cop - Cout))
    sc1, sh1 = _bn_scale_shift(st1, M, g1, be1)

    # ---- conv_block_2: BN1 affine+ReLU fused on the input path, conv3x3 + BN2 stats ----
    y1_halo = jnp.pad(y1.reshape(N, Hd, Wd, Cop), ((0, 0), (1, 1), (1, 1), (0, 0)))
    mask = _make_interior_mask(N, th, Hd, Wd)
    w2 = jnp.transpose(params["c2_w"], (2, 3, 1, 0))
    w2 = jnp.pad(w2, ((0, 0), (0, 0), (0, Cop - Cout), (0, Cop - Cout))).astype(jnp.bfloat16)
    b2 = jnp.pad(params["c2_b"], (0, Cop - Cout)).reshape(1, -1)
    y2, st2 = conv3x3_bn(_make_strips(y1_halo, th), w2, b2, th=th, W=Wd,
                         in_scale=sc1, in_shift=sh1, mask=mask)
    g2 = jnp.pad(params["c2_gamma"], (0, Cop - Cout))
    be2 = jnp.pad(params["c2_beta"], (0, Cop - Cout))
    sc2, sh2 = _bn_scale_shift(st2, M, g2, be2)

    # ---- final BN2 affine + ReLU (f32 output, matches the torch module dtype) ----
    out = affine_relu(y2.reshape(M, Cop), sc2, sh2).reshape(N, Hd, Wd, Cop)
    out = out[..., :Cout]
    return jnp.transpose(out, (0, 3, 1, 2))                       # back to NCHW


# ----------------------------------------------------------------------------
# Deterministic parameter init (synthetic; shapes from the module __init__)
# ----------------------------------------------------------------------------
def init_params(key, in_channels, out_channels):
    ks = jax.random.split(key, 6)
    return {
        # nn.ConvTranspose2d(in_channels, out_channels, kernel_size=2, stride=2)
        "up_w": 0.1 * jax.random.normal(ks[0], (in_channels, out_channels, 2, 2), jnp.float32),
        "up_b": 0.1 * jax.random.normal(ks[1], (out_channels,), jnp.float32),
        # ConvBlock(in_channels, out_channels): Conv2d 3x3 pad=1 + BN + ReLU
        "c1_w": 0.1 * jax.random.normal(ks[2], (out_channels, in_channels, 3, 3), jnp.float32),
        "c1_b": 0.1 * jax.random.normal(ks[3], (out_channels,), jnp.float32),
        "c1_gamma": jnp.ones((out_channels,), jnp.float32),
        "c1_beta": jnp.zeros((out_channels,), jnp.float32),
        # ConvBlock(out_channels, out_channels)
        "c2_w": 0.1 * jax.random.normal(ks[4], (out_channels, out_channels, 3, 3), jnp.float32),
        "c2_b": 0.1 * jax.random.normal(ks[5], (out_channels,), jnp.float32),
        "c2_gamma": jnp.ones((out_channels,), jnp.float32),
        "c2_beta": jnp.zeros((out_channels,), jnp.float32),
    }


if __name__ == "__main__":
    # in_channels=8, out_channels=4
    #   up_x:   (2, 8, 8, 8)   NCHW -> upsample -> (2, 4, 16, 16)
    #   down_x: (2, 4, 16, 16) NCHW; concat -> 8 channels == in_channels
    key = jax.random.PRNGKey(0)
    k_up, k_down, k_params = jax.random.split(key, 3)

    in_channels, out_channels = 8, 4
    up_x = jax.random.normal(k_up, (2, in_channels, 8, 8), jnp.float32)
    down_x = jax.random.normal(k_down, (2, in_channels - out_channels, 16, 16), jnp.float32)

    params = init_params(k_params, in_channels, out_channels)

    out = jax.jit(lambda a, b: up_block_forward(a, b, params))(up_x, down_x)
    out = jax.block_until_ready(out)
    assert out.shape == (2, out_channels, 16, 16), out.shape
    assert out.dtype == jnp.float32
    assert bool(jnp.all(jnp.isfinite(out)))
    assert bool(jnp.all(out >= 0.0))  # final ReLU
    print("KERNEL_OK")
</pallas_src>

<mosaic_0001>
module attributes {stable_mosaic.version = 11 : i64} {
  func.func @_convT_kernel(%arg0: i32, %arg1: memref<16x8x128xbf16, #tpu.memory_space<vmem>>, %arg2: memref<128x512xbf16, #tpu.memory_space<vmem>>, %arg3: memref<1x512xf32, #tpu.memory_space<vmem>>, %arg4: memref<16x2x8x256xbf16, #tpu.memory_space<vmem>>) attributes {dimension_semantics = [#tpu.dimension_semantics<parallel>], iteration_bounds = array<i64: 1>, scalar_prefetch = 0 : i64, scratch_operands = 0 : i64, tpu.core_type = #tpu.core_type<tc>, window_params = [{transform_indices = @transform_0, window_bounds = array<i64: 16, 8, 128>}, {pipeline_mode = #tpu.pipeline_mode<synchronous>, transform_indices = @transform_1, window_bounds = array<i64: 128, 512>}, {pipeline_mode = #tpu.pipeline_mode<synchronous>, transform_indices = @transform_2, window_bounds = array<i64: 1, 512>}, {transform_indices = @transform_3, window_bounds = array<i64: 16, 2, 8, 256>}]} {
    %c0 = arith.constant 0 : index
    %c0_0 = arith.constant 0 : index
    %c0_1 = arith.constant 0 : index
    %0 = vector.load %arg1[%c0, %c0_0, %c0_1] : memref<16x8x128xbf16, #tpu.memory_space<vmem>>, vector<16x8x128xbf16>
    %1 = vector.shape_cast %0 : vector<16x8x128xbf16> to vector<128x128xbf16>
    %c0_2 = arith.constant 0 : index
    %c0_3 = arith.constant 0 : index
    %2 = vector.load %arg2[%c0_2, %c0_3] : memref<128x512xbf16, #tpu.memory_space<vmem>>, vector<128x512xbf16>
    %cst = arith.constant dense<0.000000e+00> : vector<128x512xf32>
    %3 = tpu.matmul %1, %2, %cst {dimension_numbers = #tpu.dot_dimension_numbers<[1], [0], [0], [1], [0, 0, 1, 1], [], []>} : vector<128x128xbf16>, vector<128x512xbf16>, vector<128x512xf32> -> vector<128x512xf32>
    %c0_4 = arith.constant 0 : index
    %c0_5 = arith.constant 0 : index
    %4 = vector.load %arg3[%c0_4, %c0_5] : memref<1x512xf32, #tpu.memory_space<vmem>>, vector<1x512xf32>
    %5 = vector.broadcast %4 : vector<1x512xf32> to vector<128x512xf32>
    %6 = arith.addf %3, %5 : vector<128x512xf32>
    %7 = vector.shape_cast %6 : vector<128x512xf32> to vector<16x8x512xf32>
    %8 = vector.extract_strided_slice %7 {offsets = [0, 0, 0], sizes = [16, 8, 256], strides = [1, 1, 1]} : vector<16x8x512xf32> to vector<16x8x256xf32>
    %9 = arith.truncf %8 : vector<16x8x256xf32> to vector<16x8x256xbf16>
    %c0_6 = arith.constant 0 : index
    %c0_7 = arith.constant 0 : index
    %c0_8 = arith.constant 0 : index
    %c0_9 = arith.constant 0 : index
    %10 = vector.load %arg4[%c0_6, %c0_7, %c0_8, %c0_9] : memref<16x2x8x256xbf16, #tpu.memory_space<vmem>>, vector<16x1x8x256xbf16>
    %11 = vector.shape_cast %10 : vector<16x1x8x256xbf16> to vector<16x8x256xbf16>
    %12 = vector.shape_cast %9 : vector<16x8x256xbf16> to vector<16x1x8x256xbf16>
    tpu.vector_store %arg4[%c0_6, %c0_7, %c0_8, %c0_9], %12 {strides = array<i32>} : memref<16x2x8x256xbf16, #tpu.memory_space<vmem>>, vector<16x1x8x256xbf16>,
    %13 = vector.extract_strided_slice %7 {offsets = [0, 0, 256], sizes = [16, 8, 256], strides = [1, 1, 1]} : vector<16x8x512xf32> to vector<16x8x256xf32>
    %14 = arith.truncf %13 : vector<16x8x256xf32> to vector<16x8x256xbf16>
    %c0_10 = arith.constant 0 : index
    %c1 = arith.constant 1 : index
    %c0_11 = arith.constant 0 : index
    %c0_12 = arith.constant 0 : index
    %15 = vector.load %arg4[%c0_10, %c1, %c0_11, %c0_12] : memref<16x2x8x256xbf16, #tpu.memory_space<vmem>>, vector<16x1x8x256xbf16>
    %16 = vector.shape_cast %15 : vector<16x1x8x256xbf16> to vector<16x8x256xbf16>
    %17 = vector.shape_cast %14 : vector<16x8x256xbf16> to vector<16x1x8x256xbf16>
    tpu.vector_store %arg4[%c0_10, %c1, %c0_11, %c0_12], %17 {strides = array<i32>} : memref<16x2x8x256xbf16, #tpu.memory_space<vmem>>, vector<16x1x8x256xbf16>,
    return
  }
  func.func @transform_0(%arg0: i32) -> (i32, i32, i32) {
    %c0_i32 = arith.constant 0 : i32
    %c0_i32_0 = arith.constant 0 : i32
    %c0_i32_1 = arith.constant 0 : i32
    return %arg0, %c0_i32, %c0_i32_0 : i32, i32, i32
  }
  func.func @transform_1(%arg0: i32) -> (i32, i32) {
    %c0_i32 = arith.constant 0 : i32
    %c0_i32_0 = arith.constant 0 : i32
    %c0_i32_1 = arith.constant 0 : i32
    return %c0_i32, %c0_i32_0 : i32, i32
  }
  func.func @transform_2(%arg0: i32) -> (i32, i32) {
    %c0_i32 = arith.constant 0 : i32
    %c0_i32_0 = arith.constant 0 : i32
    %c0_i32_1 = arith.constant 0 : i32
    return %c0_i32, %c0_i32_0 : i32, i32
  }
  func.func @transform_3(%arg0: i32) -> (i32, i32, i32, i32) {
    %c0_i32 = arith.constant 0 : i32
    %c0_i32_0 = arith.constant 0 : i32
    %c0_i32_1 = arith.constant 0 : i32
    %c0_i32_2 = arith.constant 0 : i32
    return %arg0, %c0_i32, %c0_i32_0, %c0_i32_1 : i32, i32, i32, i32
  }
}

module attributes {stable_mosaic.version = 11 : i64} {
  func.func @_conv3x3_kernel(%arg0: i32, %arg1: i32, %arg2: i32, %arg3: memref<1x18x18x128xbf16, #tpu.memory_space<vmem>>, %arg4: memref<3x3x128x128xbf16, #tpu.memory_space<vmem>>, %arg5: memref<1x128xf32, #tpu.memory_space<vmem>>, %arg6: memref<1x16x16x128xbf16, #tpu.memory_space<vmem>>, %arg7: memref<1x2x128xf32, #tpu.memory_space<vmem>>, %arg8: memref<256x128xf32, #tpu.memory_space<vmem>>) attributes {dimension_semantics = [#tpu.dimension_semantics<parallel>, #tpu.dimension_semantics<parallel>, #tpu.dimension_semantics<arbitrary>], iteration_bounds = array<i64: 2, 1, 1>, scalar_prefetch = 0 : i64, scratch_operands = 1 : i64, tpu.core_type = #tpu.core_type<tc>, window_params = [{transform_indices = @transform_0, window_bounds = array<i64: 1, 18, 18, 128>}, {transform_indices = @transform_1, window_bounds = array<i64: 3, 3, 128, 128>}, {transform_indices = @transform_2, window_bounds = array<i64: 1, 128>}, {transform_indices = @transform_3, window_bounds = array<i64: 1, 16, 16, 128>}, {transform_indices = @transform_4, window_bounds = array<i64: 1, 2, 128>}]} {
    %c0_i32 = arith.constant 0 : i32
    %0 = arith.cmpi eq, %arg2, %c0_i32 : i32
    %1 = arith.extui %0 : i1 to i32
    %c0_i32_0 = arith.constant 0 : i32
    %2 = arith.cmpi ne, %1, %c0_i32_0 : i32
    scf.if %2 {
      %cst_23 = arith.constant 0.000000e+00 : f32
      %37 = vector.broadcast %cst_23 : f32 to vector<256x128xf32>
      %c0_24 = arith.constant 0 : index
      %c0_25 = arith.constant 0 : index
      %38 = vector.load %arg8[%c0_24, %c0_25] : memref<256x128xf32, #tpu.memory_space<vmem>>, vector<256x128xf32>
      tpu.vector_store %arg8[%c0_24, %c0_25], %37 {strides = array<i32>} : memref<256x128xf32, #tpu.memory_space<vmem>>, vector<256x128xf32>,
    } else {
    }
    %c0 = arith.constant 0 : index
    %c0_1 = arith.constant 0 : index
    %c0_2 = arith.constant 0 : index
    %c0_3 = arith.constant 0 : index
    %3 = vector.load %arg3[%c0, %c0_1, %c0_2, %c0_3] : memref<1x18x18x128xbf16, #tpu.memory_space<vmem>>, vector<1x18x18x128xbf16>
    %4 = vector.shape_cast %3 : vector<1x18x18x128xbf16> to vector<18x18x128xbf16>
    %5 = vector.extract_strided_slice %4 {offsets = [0, 0, 0], sizes = [18, 16, 128], strides = [1, 1, 1]} : vector<18x18x128xbf16> to vector<18x16x128xbf16>
    %6 = vector.extract_strided_slice %4 {offsets = [0, 1, 0], sizes = [18, 16, 128], strides = [1, 1, 1]} : vector<18x18x128xbf16> to vector<18x16x128xbf16>
    %7 = vector.extract_strided_slice %4 {offsets = [0, 2, 0], sizes = [18, 16, 128], strides = [1, 1, 1]} : vector<18x18x128xbf16> to vector<18x16x128xbf16>
    %8 = tpu.concatenate %5, %6, %7 in 2 : vector<18x16x128xbf16>, vector<18x16x128xbf16>, vector<18x16x128xbf16> -> vector<18x16x384xbf16>
    %9 = vector.shape_cast %8 : vector<18x16x384xbf16> to vector<288x384xbf16>
    %cst = arith.constant 0.000000e+00 : f32
    %10 = vector.broadcast %cst : f32 to vector<256x128xf32>
    %c0_4 = arith.constant 0 : index
    %c0_5 = arith.constant 0 : index
    %c0_6 = arith.constant 0 : index
    %c0_7 = arith.constant 0 : index
    %11 = vector.load %arg4[%c0_4, %c0_5, %c0_6, %c0_7] : memref<3x3x128x128xbf16, #tpu.memory_space<vmem>>, vector<1x3x128x128xbf16>
    %12 = vector.shape_cast %11 : vector<1x3x128x128xbf16> to vector<3x128x128xbf16>
    %13 = vector.shape_cast %12 : vector<3x128x128xbf16> to vector<384x128xbf16>
    %14 = vector.extract_strided_slice %9 {offsets = [0, 0], sizes = [256, 384], strides = [1, 1]} : vector<288x384xbf16> to vector<256x384xbf16>
    %cst_8 = arith.constant dense<0.000000e+00> : vector<256x128xf32>
    %15 = tpu.matmul %14, %13, %cst_8 {dimension_numbers = #tpu.dot_dimension_numbers<[1], [0], [0], [1], [0, 0, 1, 1], [], []>} : vector<256x384xbf16>, vector<384x128xbf16>, vector<256x128xf32> -> vector<256x128xf32>
    %16 = arith.addf %10, %15 : vector<256x128xf32>
    %c1 = arith.constant 1 : index
    %c0_9 = arith.constant 0 : index
    %c0_10 = arith.constant 0 : index
    %c0_11 = arith.constant 0 : index
    %17 = vector.load %arg4[%c1, %c0_9, %c0_10, %c0_11] : memref<3x3x128x128xbf16, #tpu.memory_space<vmem>>, vector<1x3x128x128xbf16>
    %18 = vector.shape_cast %17 : vector<1x3x128x128xbf16> to vector<3x128x128xbf16>
    %19 = vector.shape_cast %18 : vector<3x128x128xbf16> to vector<384x128xbf16>
    %20 = vector.extract_strided_slice %9 {offsets = [16, 0], sizes = [256, 384], strides = [1, 1]} : vector<288x384xbf16> to vector<256x384xbf16>
    %cst_12 = arith.constant dense<0.000000e+00> : vector<256x128xf32>
    %21 = tpu.matmul %20, %19, %cst_12 {dimension_numbers = #tpu.dot_dimension_numbers<[1], [0], [0], [1], [0, 0, 1, 1], [], []>} : vector<256x384xbf16>, vector<384x128xbf16>, vector<256x128xf32> -> vector<256x128xf32>
    %22 = arith.addf %16, %21 : vector<256x128xf32>
    %c2 = arith.constant 2 : index
    %c0_13 = arith.constant 0 : index
    %c0_14 = arith.constant 0 : index
    %c0_15 = arith.constant 0 : index
    %23 = vector.load %arg4[%c2, %c0_13, %c0_14, %c0_15] : memref<3x3x128x128xbf16, #tpu.memory_space<vmem>>, vector<1x3x128x128xbf16>
    %24 = vector.shape_cast %23 : vector<1x3x128x128xbf16> to vector<3x128x128xbf16>
    %25 = vector.shape_cast %24 : vector<3x128x128xbf16> to vector<384x128xbf16>
    %26 = vector.extract_strided_slice %9 {offsets = [32, 0], sizes = [256, 384], strides = [1, 1]} : vector<288x384xbf16> to vector<256x384xbf16>
    %cst_16 = arith.constant dense<0.000000e+00> : vector<256x128xf32>
    %27 = tpu.matmul %26, %25, %cst_16 {dimension_numbers = #tpu.dot_dimension_numbers<[1], [0], [0], [1], [0, 0, 1, 1], [], []>} : vector<256x384xbf16>, vector<384x128xbf16>, vector<256x128xf32> -> vector<256x128xf32>
    %28 = arith.addf %22, %27 : vector<256x128xf32>
    %c0_17 = arith.constant 0 : index
    %c0_18 = arith.constant 0 : index
    %29 = vector.load %arg8[%c0_17, %c0_18] : memref<256x128xf32, #tpu.memory_space<vmem>>, vector<256x128xf32>
    %30 = arith.addf %29, %28 : vector<256x128xf32>
    %c0_i32_19 = arith.constant 0 : i32
    %31 = arith.cmpi slt, %arg2, %c0_i32_19 : i32
    %32 = arith.extui %31 : i1 to i32
    %c0_i32_20 = arith.constant 0 : i32
    %33 = arith.cmpi ne, %32, %c0_i32_20 : i32
    scf.if %33 {
      %c0_23 = arith.constant 0 : index
      %c0_24 = arith.constant 0 : index
      %37 = vector.load %arg8[%c0_23, %c0_24] : memref<256x128xf32, #tpu.memory_space<vmem>>, vector<256x128xf32>
      tpu.vector_store %arg8[%c0_23, %c0_24], %30 {strides = array<i32>} : memref<256x128xf32, #tpu.memory_space<vmem>>, vector<256x128xf32>,
    } else {
    }
    %c0_i32_21 = arith.constant 0 : i32
    %34 = arith.cmpi eq, %arg2, %c0_i32_21 : i32
    %35 = arith.extui %34 : i1 to i32
    %c0_i32_22 = arith.constant 0 : i32
    %36 = arith.cmpi ne, %35, %c0_i32_22 : i32
    scf.if %36 {
      %c0_23 = arith.constant 0 : index
      %c0_24 = arith.constant 0 : index
      %37 = vector.load %arg5[%c0_23, %c0_24] : memref<1x128xf32, #tpu.memory_space<vmem>>, vector<1x128xf32>
      %38 = vector.broadcast %37 : vector<1x128xf32> to vector<256x128xf32>
      %39 = arith.addf %30, %38 : vector<256x128xf32>
      %cst_25 = arith.constant dense<0.000000e+00> : vector<128xf32>
      %40 = vector.multi_reduction <add>, %39, %cst_25 [0] : vector<256x128xf32> to vector<128xf32>
      %41 = vector.shape_cast %40 : vector<128xf32> to vector<1x128xf32>
      %42 = arith.mulf %39, %39 : vector<256x128xf32>
      %cst_26 = arith.constant dense<0.000000e+00> : vector<128xf32>
      %43 = vector.multi_reduction <add>, %42, %cst_26 [0] : vector<256x128xf32> to vector<128xf32>
      %44 = vector.shape_cast %43 : vector<128xf32> to vector<1x128xf32>
      %45 = tpu.concatenate %41, %44 in 0 : vector<1x128xf32>, vector<1x128xf32> -> vector<2x128xf32>
      %c0_27 = arith.constant 0 : index
      %c0_28 = arith.constant 0 : index
      %c0_29 = arith.constant 0 : index
      %46 = vector.load %arg7[%c0_27, %c0_28, %c0_29] : memref<1x2x128xf32, #tpu.memory_space<vmem>>, vector<1x2x128xf32>
      %47 = vector.shape_cast %46 : vector<1x2x128xf32> to vector<2x128xf32>
      %48 = vector.shape_cast %45 : vector<2x128xf32> to vector<1x2x128xf32>
      tpu.vector_store %arg7[%c0_27, %c0_28, %c0_29], %48 {strides = array<i32>} : memref<1x2x128xf32, #tpu.memory_space<vmem>>, vector<1x2x128xf32>,
      %49 = vector.shape_cast %39 : vector<256x128xf32> to vector<16x16x128xf32>
      %50 = arith.truncf %49 : vector<16x16x128xf32> to vector<16x16x128xbf16>
      %c0_30 = arith.constant 0 : index
      %c0_31 = arith.constant 0 : index
      %c0_32 = arith.constant 0 : index
      %c0_33 = arith.constant 0 : index
      %51 = vector.load %arg6[%c0_30, %c0_31, %c0_32, %c0_33] : memref<1x16x16x128xbf16, #tpu.memory_space<vmem>>, vector<1x16x16x128xbf16>
      %52 = vector.shape_cast %51 : vector<1x16x16x128xbf16> to vector<16x16x128xbf16>
      %53 = vector.shape_cast %50 : vector<16x16x128xbf16> to vector<1x16x16x128xbf16>
      tpu.vector_store %arg6[%c0_30, %c0_31, %c0_32, %c0_33], %53 {strides = array<i32>} : memref<1x16x16x128xbf16, #tpu.memory_space<vmem>>, vector<1x16x16x128xbf16>,
    } else {
    }
    return
  }
  func.func @transform_0(%arg0: i32, %arg1: i32, %arg2: i32) -> (i32, i32, i32, i32) {
    %c0_i32 = arith.constant 0 : i32
    %c0_i32_0 = arith.constant 0 : i32
    %c0_i32_1 = arith.constant 0 : i32
    return %arg0, %c0_i32, %c0_i32_0, %arg2 : i32, i32, i32, i32
  }
  func.func @transform_1(%arg0: i32, %arg1: i32, %arg2: i32) -> (i32, i32, i32, i32) {
    %c0_i32 = arith.constant 0 : i32
    %c0_i32_0 = arith.constant 0 : i32
    %c0_i32_1 = arith.constant 0 : i32
    return %c0_i32, %c0_i32_0, %arg2, %arg1 : i32, i32, i32, i32
  }
  func.func @transform_2(%arg0: i32, %arg1: i32, %arg2: i32) -> (i32, i32) {
    %c0_i32 = arith.constant 0 : i32
    %c0_i32_0 = arith.constant 0 : i32
    return %c0_i32, %arg1 : i32, i32
  }
  func.func @transform_3(%arg0: i32, %arg1: i32, %arg2: i32) -> (i32, i32, i32, i32) {
    %c0_i32 = arith.constant 0 : i32
    %c0_i32_0 = arith.constant 0 : i32
    %c0_i32_1 = arith.constant 0 : i32
    return %arg0, %c0_i32, %c0_i32_0, %arg1 : i32, i32, i32, i32
  }
  func.func @transform_4(%arg0: i32, %arg1: i32, %arg2: i32) -> (i32, i32, i32) {
    %c0_i32 = arith.constant 0 : i32
    %c0_i32_0 = arith.constant 0 : i32
    return %arg0, %c0_i32, %arg1 : i32, i32, i32
  }
}

module attributes {stable_mosaic.version = 11 : i64} {
  func.func @_conv3x3_kernel(%arg0: i32, %arg1: i32, %arg2: i32, %arg3: memref<1x18x18x128xbf16, #tpu.memory_space<vmem>>, %arg4: memref<3x3x128x128xbf16, #tpu.memory_space<vmem>>, %arg5: memref<1x128xf32, #tpu.memory_space<vmem>>, %arg6: memref<1x1x128xf32, #tpu.memory_space<vmem>>, %arg7: memref<1x1x128xf32, #tpu.memory_space<vmem>>, %arg8: memref<1x18x18x1xf32, #tpu.memory_space<vmem>>, %arg9: memref<1x16x16x128xbf16, #tpu.memory_space<vmem>>, %arg10: memref<1x2x128xf32, #tpu.memory_space<vmem>>, %arg11: memref<256x128xf32, #tpu.memory_space<vmem>>) attributes {dimension_semantics = [#tpu.dimension_semantics<parallel>, #tpu.dimension_semantics<parallel>, #tpu.dimension_semantics<arbitrary>], iteration_bounds = array<i64: 2, 1, 1>, scalar_prefetch = 0 : i64, scratch_operands = 1 : i64, tpu.core_type = #tpu.core_type<tc>, window_params = [{transform_indices = @transform_0, window_bounds = array<i64: 1, 18, 18, 128>}, {transform_indices = @transform_1, window_bounds = array<i64: 3, 3, 128, 128>}, {transform_indices = @transform_2, window_bounds = array<i64: 1, 128>}, {transform_indices = @transform_3, window_bounds = array<i64: 1, 1, 128>}, {transform_indices = @transform_4, window_bounds = array<i64: 1, 1, 128>}, {transform_indices = @transform_5, window_bounds = array<i64: 1, 18, 18, 1>}, {transform_indices = @transform_6, window_bounds = array<i64: 1, 16, 16, 128>}, {transform_indices = @transform_7, window_bounds = array<i64: 1, 2, 128>}]} {
    %c0_i32 = arith.constant 0 : i32
    %0 = arith.cmpi eq, %arg2, %c0_i32 : i32
    %1 = arith.extui %0 : i1 to i32
    %c0_i32_0 = arith.constant 0 : i32
    %2 = arith.cmpi ne, %1, %c0_i32_0 : i32
    scf.if %2 {
      %cst_34 = arith.constant 0.000000e+00 : f32
      %51 = vector.broadcast %cst_34 : f32 to vector<256x128xf32>
      %c0_35 = arith.constant 0 : index
      %c0_36 = arith.constant 0 : index
      %52 = vector.load %arg11[%c0_35, %c0_36] : memref<256x128xf32, #tpu.memory_space<vmem>>, vector<256x128xf32>
      tpu.vector_store %arg11[%c0_35, %c0_36], %51 {strides = array<i32>} : memref<256x128xf32, #tpu.memory_space<vmem>>, vector<256x128xf32>,
    } else {
    }
    %c0 = arith.constant 0 : index
    %c0_1 = arith.constant 0 : index
    %c0_2 = arith.constant 0 : index
    %c0_3 = arith.constant 0 : index
    %3 = vector.load %arg3[%c0, %c0_1, %c0_2, %c0_3] : memref<1x18x18x128xbf16, #tpu.memory_space<vmem>>, vector<1x18x18x128xbf16>
    %4 = vector.shape_cast %3 : vector<1x18x18x128xbf16> to vector<18x18x128xbf16>
    %5 = arith.extf %4 : vector<18x18x128xbf16> to vector<18x18x128xf32>
    %c0_4 = arith.constant 0 : index
    %c0_5 = arith.constant 0 : index
    %c0_6 = arith.constant 0 : index
    %6 = vector.load %arg6[%c0_4, %c0_5, %c0_6] : memref<1x1x128xf32, #tpu.memory_space<vmem>>, vector<1x1x128xf32>
    %7 = vector.broadcast %6 : vector<1x1x128xf32> to vector<18x18x128xf32>
    %8 = arith.mulf %5, %7 : vector<18x18x128xf32>
    %c0_7 = arith.constant 0 : index
    %c0_8 = arith.constant 0 : index
    %c0_9 = arith.constant 0 : index
    %9 = vector.load %arg7[%c0_7, %c0_8, %c0_9] : memref<1x1x128xf32, #tpu.memory_space<vmem>>, vector<1x1x128xf32>
    %10 = vector.broadcast %9 : vector<1x1x128xf32> to vector<18x18x128xf32>
    %11 = arith.addf %8, %10 : vector<18x18x128xf32>
    %cst = arith.constant 0.000000e+00 : f32
    %12 = vector.broadcast %cst : f32 to vector<18x18x128xf32>
    %13 = arith.maximumf %11, %12 : vector<18x18x128xf32>
    %c0_10 = arith.constant 0 : index
    %c0_11 = arith.constant 0 : index
    %c0_12 = arith.constant 0 : index
    %c0_13 = arith.constant 0 : index
    %14 = vector.load %arg8[%c0_10, %c0_11, %c0_12, %c0_13] : memref<1x18x18x1xf32, #tpu.memory_space<vmem>>, vector<1x18x18x1xf32>
    %15 = vector.shape_cast %14 : vector<1x18x18x1xf32> to vector<18x18x1xf32>
    %16 = vector.broadcast %15 : vector<18x18x1xf32> to vector<18x18x128xf32>
    %17 = arith.mulf %13, %16 : vector<18x18x128xf32>
    %18 = arith.truncf %17 : vector<18x18x128xf32> to vector<18x18x128xbf16>
    %19 = vector.extract_strided_slice %18 {offsets = [0, 0, 0], sizes = [18, 16, 128], strides = [1, 1, 1]} : vector<18x18x128xbf16> to vector<18x16x128xbf16>
    %20 = vector.extract_strided_slice %18 {offsets = [0, 1, 0], sizes = [18, 16, 128], strides = [1, 1, 1]} : vector<18x18x128xbf16> to vector<18x16x128xbf16>
    %21 = vector.extract_strided_slice %18 {offsets = [0, 2, 0], sizes = [18, 16, 128], strides = [1, 1, 1]} : vector<18x18x128xbf16> to vector<18x16x128xbf16>
    %22 = tpu.concatenate %19, %20, %21 in 2 : vector<18x16x128xbf16>, vector<18x16x128xbf16>, vector<18x16x128xbf16> -> vector<18x16x384xbf16>
    %23 = vector.shape_cast %22 : vector<18x16x384xbf16> to vector<288x384xbf16>
    %cst_14 = arith.constant 0.000000e+00 : f32
    %24 = vector.broadcast %cst_14 : f32 to vector<256x128xf32>
    %c0_15 = arith.constant 0 : index
    %c0_16 = arith.constant 0 : index
    %c0_17 = arith.constant 0 : index
    %c0_18 = arith.constant 0 : index
    %25 = vector.load %arg4[%c0_15, %c0_16, %c0_17, %c0_18] : memref<3x3x128x128xbf16, #tpu.memory_space<vmem>>, vector<1x3x128x128xbf16>
    %26 = vector.shape_cast %25 : vector<1x3x128x128xbf16> to vector<3x128x128xbf16>
    %27 = vector.shape_cast %26 : vector<3x128x128xbf16> to vector<384x128xbf16>
    %28 = vector.extract_strided_slice %23 {offsets = [0, 0], sizes = [256, 384], strides = [1, 1]} : vector<288x384xbf16> to vector<256x384xbf16>
    %cst_19 = arith.constant dense<0.000000e+00> : vector<256x128xf32>
    %29 = tpu.matmul %28, %27, %cst_19 {dimension_numbers = #tpu.dot_dimension_numbers<[1], [0], [0], [1], [0, 0, 1, 1], [], []>} : vector<256x384xbf16>, vector<384x128xbf16>, vector<256x128xf32> -> vector<256x128xf32>
    %30 = arith.addf %24, %29 : vector<256x128xf32>
    %c1 = arith.constant 1 : index
    %c0_20 = arith.constant 0 : index
    %c0_21 = arith.constant 0 : index
    %c0_22 = arith.constant 0 : index
    %31 = vector.load %arg4[%c1, %c0_20, %c0_21, %c0_22] : memref<3x3x128x128xbf16, #tpu.memory_space<vmem>>, vector<1x3x128x128xbf16>
    %32 = vector.shape_cast %31 : vector<1x3x128x128xbf16> to vector<3x128x128xbf16>
    %33 = vector.shape_cast %32 : vector<3x128x128xbf16> to vector<384x128xbf16>
    %34 = vector.extract_strided_slice %23 {offsets = [16, 0], sizes = [256, 384], strides = [1, 1]} : vector<288x384xbf16> to vector<256x384xbf16>
    %cst_23 = arith.constant dense<0.000000e+00> : vector<256x128xf32>
    %35 = tpu.matmul %34, %33, %cst_23 {dimension_numbers = #tpu.dot_dimension_numbers<[1], [0], [0], [1], [0, 0, 1, 1], [], []>} : vector<256x384xbf16>, vector<384x128xbf16>, vector<256x128xf32> -> vector<256x128xf32>
    %36 = arith.addf %30, %35 : vector<256x128xf32>
    %c2 = arith.constant 2 : index
    %c0_24 = arith.constant 0 : index
    %c0_25 = arith.constant 0 : index
    %c0_26 = arith.constant 0 : index
    %37 = vector.load %arg4[%c2, %c0_24, %c0_25, %c0_26] : memref<3x3x128x128xbf16, #tpu.memory_space<vmem>>, vector<1x3x128x128xbf16>
    %38 = vector.shape_cast %37 : vector<1x3x128x128xbf16> to vector<3x128x128xbf16>
    %39 = vector.shape_cast %38 : vector<3x128x128xbf16> to vector<384x128xbf16>
    %40 = vector.extract_strided_slice %23 {offsets = [32, 0], sizes = [256, 384], strides = [1, 1]} : vector<288x384xbf16> to vector<256x384xbf16>
    %cst_27 = arith.constant dense<0.000000e+00> : vector<256x128xf32>
    %41 = tpu.matmul %40, %39, %cst_27 {dimension_numbers = #tpu.dot_dimension_numbers<[1], [0], [0], [1], [0, 0, 1, 1], [], []>} : vector<256x384xbf16>, vector<384x128xbf16>, vector<256x128xf32> -> vector<256x128xf32>
    %42 = arith.addf %36, %41 : vector<256x128xf32>
    %c0_28 = arith.constant 0 : index
    %c0_29 = arith.constant 0 : index
    %43 = vector.load %arg11[%c0_28, %c0_29] : memref<256x128xf32, #tpu.memory_space<vmem>>, vector<256x128xf32>
    %44 = arith.addf %43, %42 : vector<256x128xf32>
    %c0_i32_30 = arith.constant 0 : i32
    %45 = arith.cmpi slt, %arg2, %c0_i32_30 : i32
    %46 = arith.extui %45 : i1 to i32
    %c0_i32_31 = arith.constant 0 : i32
    %47 = arith.cmpi ne, %46, %c0_i32_31 : i32
    scf.if %47 {
      %c0_34 = arith.constant 0 : index
      %c0_35 = arith.constant 0 : index
      %51 = vector.load %arg11[%c0_34, %c0_35] : memref<256x128xf32, #tpu.memory_space<vmem>>, vector<256x128xf32>
      tpu.vector_store %arg11[%c0_34, %c0_35], %44 {strides = array<i32>} : memref<256x128xf32, #tpu.memory_space<vmem>>, vector<256x128xf32>,
    } else {
    }
    %c0_i32_32 = arith.constant 0 : i32
    %48 = arith.cmpi eq, %arg2, %c0_i32_32 : i32
    %49 = arith.extui %48 : i1 to i32
    %c0_i32_33 = arith.constant 0 : i32
    %50 = arith.cmpi ne, %49, %c0_i32_33 : i32
    scf.if %50 {
      %c0_34 = arith.constant 0 : index
      %c0_35 = arith.constant 0 : index
      %51 = vector.load %arg5[%c0_34, %c0_35] : memref<1x128xf32, #tpu.memory_space<vmem>>, vector<1x128xf32>
      %52 = vector.broadcast %51 : vector<1x128xf32> to vector<256x128xf32>
      %53 = arith.addf %44, %52 : vector<256x128xf32>
      %cst_36 = arith.constant dense<0.000000e+00> : vector<128xf32>
      %54 = vector.multi_reduction <add>, %53, %cst_36 [0] : vector<256x128xf32> to vector<128xf32>
      %55 = vector.shape_cast %54 : vector<128xf32> to vector<1x128xf32>
      %56 = arith.mulf %53, %53 : vector<256x128xf32>
      %cst_37 = arith.constant dense<0.000000e+00> : vector<128xf32>
      %57 = vector.multi_reduction <add>, %56, %cst_37 [0] : vector<256x128xf32> to vector<128xf32>
      %58 = vector.shape_cast %57 : vector<128xf32> to vector<1x128xf32>
      %59 = tpu.concatenate %55, %58 in 0 : vector<1x128xf32>, vector<1x128xf32> -> vector<2x128xf32>
      %c0_38 = arith.constant 0 : index
      %c0_39 = arith.constant 0 : index
      %c0_40 = arith.constant 0 : index
      %60 = vector.load %arg10[%c0_38, %c0_39, %c0_40] : memref<1x2x128xf32, #tpu.memory_space<vmem>>, vector<1x2x128xf32>
      %61 = vector.shape_cast %60 : vector<1x2x128xf32> to vector<2x128xf32>
      %62 = vector.shape_cast %59 : vector<2x128xf32> to vector<1x2x128xf32>
      tpu.vector_store %arg10[%c0_38, %c0_39, %c0_40], %62 {strides = array<i32>} : memref<1x2x128xf32, #tpu.memory_space<vmem>>, vector<1x2x128xf32>,
      %63 = vector.shape_cast %53 : vector<256x128xf32> to vector<16x16x128xf32>
      %64 = arith.truncf %63 : vector<16x16x128xf32> to vector<16x16x128xbf16>
      %c0_41 = arith.constant 0 : index
      %c0_42 = arith.constant 0 : index
      %c0_43 = arith.constant 0 : index
      %c0_44 = arith.constant 0 : index
      %65 = vector.load %arg9[%c0_41, %c0_42, %c0_43, %c0_44] : memref<1x16x16x128xbf16, #tpu.memory_space<vmem>>, vector<1x16x16x128xbf16>
      %66 = vector.shape_cast %65 : vector<1x16x16x128xbf16> to vector<16x16x128xbf16>
      %67 = vector.shape_cast %64 : vector<16x16x128xbf16> to vector<1x16x16x128xbf16>
      tpu.vector_store %arg9[%c0_41, %c0_42, %c0_43, %c0_44], %67 {strides = array<i32>} : memref<1x16x16x128xbf16, #tpu.memory_space<vmem>>, vector<1x16x16x128xbf16>,
    } else {
    }
    return
  }
  func.func @transform_0(%arg0: i32, %arg1: i32, %arg2: i32) -> (i32, i32, i32, i32) {
    %c0_i32 = arith.constant 0 : i32
    %c0_i32_0 = arith.constant 0 : i32
    %c0_i32_1 = arith.constant 0 : i32
    return %arg0, %c0_i32, %c0_i32_0, %arg2 : i32, i32, i32, i32
  }
  func.func @transform_1(%arg0: i32, %arg1: i32, %arg2: i32) -> (i32, i32, i32, i32) {
    %c0_i32 = arith.constant 0 : i32
    %c0_i32_0 = arith.constant 0 : i32
    %c0_i32_1 = arith.constant 0 : i32
    return %c0_i32, %c0_i32_0, %arg2, %arg1 : i32, i32, i32, i32
  }
  func.func @transform_2(%arg0: i32, %arg1: i32, %arg2: i32) -> (i32, i32) {
    %c0_i32 = arith.constant 0 : i32
    %c0_i32_0 = arith.constant 0 : i32
    return %c0_i32, %arg1 : i32, i32
  }
  func.func @transform_3(%arg0: i32, %arg1: i32, %arg2: i32) -> (i32, i32, i32) {
    %c0_i32 = arith.constant 0 : i32
    %c0_i32_0 = arith.constant 0 : i32
    %c0_i32_1 = arith.constant 0 : i32
    return %c0_i32, %c0_i32_0, %arg2 : i32, i32, i32
  }
  func.func @transform_4(%arg0: i32, %arg1: i32, %arg2: i32) -> (i32, i32, i32) {
    %c0_i32 = arith.constant 0 : i32
    %c0_i32_0 = arith.constant 0 : i32
    %c0_i32_1 = arith.constant 0 : i32
    return %c0_i32, %c0_i32_0, %arg2 : i32, i32, i32
  }
  func.func @transform_5(%arg0: i32, %arg1: i32, %arg2: i32) -> (i32, i32, i32, i32) {
    %c0_i32 = arith.constant 0 : i32
    %c0_i32_0 = arith.constant 0 : i32
    %c0_i32_1 = arith.constant 0 : i32
    %c0_i32_2 = arith.constant 0 : i32
    return %arg0, %c0_i32, %c0_i32_0, %c0_i32_1 : i32, i32, i32, i32
  }
  func.func @transform_6(%arg0: i32, %arg1: i32, %arg2: i32) -> (i32, i32, i32, i32) {
    %c0_i32 = arith.constant 0 : i32
    %c0_i32_0 = arith.constant 0 : i32
    %c0_i32_1 = arith.constant 0 : i32
    return %arg0, %c0_i32, %c0_i32_0, %arg1 : i32, i32, i32, i32
  }
  func.func @transform_7(%arg0: i32, %arg1: i32, %arg2: i32) -> (i32, i32, i32) {
    %c0_i32 = arith.constant 0 : i32
    %c0_i32_0 = arith.constant 0 : i32
    return %arg0, %c0_i32, %arg1 : i32, i32, i32
  }
}

module attributes {stable_mosaic.version = 11 : i64} {
  func.func @_affine_relu_kernel(%arg0: i32, %arg1: memref<512x128xbf16, #tpu.memory_space<vmem>>, %arg2: memref<1x128xf32, #tpu.memory_space<vmem>>, %arg3: memref<1x128xf32, #tpu.memory_space<vmem>>, %arg4: memref<512x128xf32, #tpu.memory_space<vmem>>) attributes {dimension_semantics = [#tpu.dimension_semantics<parallel>], iteration_bounds = array<i64: 1>, scalar_prefetch = 0 : i64, scratch_operands = 0 : i64, tpu.core_type = #tpu.core_type<tc>, window_params = [{transform_indices = @transform_0, window_bounds = array<i64: 512, 128>}, {pipeline_mode = #tpu.pipeline_mode<synchronous>, transform_indices = @transform_1, window_bounds = array<i64: 1, 128>}, {pipeline_mode = #tpu.pipeline_mode<synchronous>, transform_indices = @transform_2, window_bounds = array<i64: 1, 128>}, {transform_indices = @transform_3, window_bounds = array<i64: 512, 128>}]} {
    %c0 = arith.constant 0 : index
    %c0_0 = arith.constant 0 : index
    %0 = vector.load %arg1[%c0, %c0_0] : memref<512x128xbf16, #tpu.memory_space<vmem>>, vector<512x128xbf16>
    %1 = arith.extf %0 : vector<512x128xbf16> to vector<512x128xf32>
    %c0_1 = arith.constant 0 : index
    %c0_2 = arith.constant 0 : index
    %2 = vector.load %arg2[%c0_1, %c0_2] : memref<1x128xf32, #tpu.memory_space<vmem>>, vector<1x128xf32>
    %3 = vector.broadcast %2 : vector<1x128xf32> to vector<512x128xf32>
    %4 = arith.mulf %1, %3 : vector<512x128xf32>
    %c0_3 = arith.constant 0 : index
    %c0_4 = arith.constant 0 : index
    %5 = vector.load %arg3[%c0_3, %c0_4] : memref<1x128xf32, #tpu.memory_space<vmem>>, vector<1x128xf32>
    %6 = vector.broadcast %5 : vector<1x128xf32> to vector<512x128xf32>
    %7 = arith.addf %4, %6 : vector<512x128xf32>
    %cst = arith.constant 0.000000e+00 : f32
    %8 = vector.broadcast %cst : f32 to vector<512x128xf32>
    %9 = arith.maximumf %7, %8 : vector<512x128xf32>
    %c0_5 = arith.constant 0 : index
    %c0_6 = arith.constant 0 : index
    %10 = vector.load %arg4[%c0_5, %c0_6] : memref<512x128xf32, #tpu.memory_space<vmem>>, vector<512x128xf32>
    tpu.vector_store %arg4[%c0_5, %c0_6], %9 {strides = array<i32>} : memref<512x128xf32, #tpu.memory_space<vmem>>, vector<512x128xf32>,
    return
  }
  func.func @transform_0(%arg0: i32) -> (i32, i32) {
    %c0_i32 = arith.constant 0 : i32
    %c0_i32_0 = arith.constant 0 : i32
    return %arg0, %c0_i32 : i32, i32
  }
  func.func @transform_1(%arg0: i32) -> (i32, i32) {
    %c0_i32 = arith.constant 0 : i32
    %c0_i32_0 = arith.constant 0 : i32
    %c0_i32_1 = arith.constant 0 : i32
    return %c0_i32, %c0_i32_0 : i32, i32
  }
  func.func @transform_2(%arg0: i32) -> (i32, i32) {
    %c0_i32 = arith.constant 0 : i32
    %c0_i32_0 = arith.constant 0 : i32
    %c0_i32_1 = arith.constant 0 : i32
    return %c0_i32, %c0_i32_0 : i32, i32
  }
  func.func @transform_3(%arg0: i32) -> (i32, i32) {
    %c0_i32 = arith.constant 0 : i32
    %c0_i32_0 = arith.constant 0 : i32
    return %arg0, %c0_i32 : i32, i32
  }
}

</mosaic_0001>

<llo_original>
// kernel: tile.12
$region0: #{tile.12}
  #allocation0 [shape = 's32[1]{0}', space=sflag, size = 0x4, scoped, tag = 'scoped memory for tile.12']
  %s0 = inlined_call_operand.vmem [shape: f32[128], index: 0, kind: input, shape index: {}]
  %s1 = inlined_call_operand.vmem [shape: f32[4,128], index: 1, kind: output, shape index: {}]
  // Predicated region
  $region2: #{tile.12} parent=0 // pred_check
    _
  $region3: #{tile.12} parent=0 // pred_check_branch
    %3 = sbr.rel (0) target = $region5
  $region4: #{tile.12} parent=0 // pred_region
    _
  $region5: #{tile.12} parent=0 // pred_fallthru
    _
  %v4 = vld [vmem:[%s0] ss:$0 sm:$0xff]
  %5 = vst [vmem:[%s1] sm:$0xf] %v4

// kernel: _lambda_.4
$region0: #{_lambda_.4}
  #allocation0 [shape = 'u32[]', space=smem, size = 0x4, offset = 0x4, fixed_abs, tag = 'smem constant byte address 0x4 - core index']
  #allocation1 [shape = 'u32[72,128]{1,0:T(1,128)}', space=vmem, size = 0x9000, scoped, tag = 'internal scratch']
  %s0 = inlined_call_operand.vmem [shape: bf16[16,8,128], index: 0, kind: input, shape index: {}]
  %s1 = inlined_call_operand.vmem [shape: bf16[128,512], index: 1, kind: input, shape index: {}]
  %s2 = inlined_call_operand.vmem [shape: f32[1,512], index: 2, kind: input, shape index: {}]
  %s3 = inlined_call_operand.vmem [shape: bf16[16,2,8,256], index: 3, kind: output, shape index: {}]
  %s4 = sld [smem:[#allocation0]]
  $region22: #{_lambda_.4} parent=0
    _
  %s6 = ssub.s32 1, %s4
  %s7 = scalar_select 0, %s6, %s4
  // Predicated region
  $region2: #{_lambda_.4} parent=0 // pred_check
    _
  $region3: #{_lambda_.4} parent=0 // pred_check_branch
    %9 = sbr.rel (0) target = $region5
  $region4: #{_lambda_.4} parent=0 // pred_region
    _
  $region5: #{_lambda_.4} parent=0 // pred_fallthru
    _
  // Predicated region
  $region6: #{_lambda_.4} parent=0 // pred_check
    _
  $region7: #{_lambda_.4} parent=0 // pred_check_branch
    %11 = sbr.rel (0) target = $region9
  $region8: #{_lambda_.4} parent=0 // pred_region
    _
  $region9: #{_lambda_.4} parent=0 // pred_fallthru
    _
  // Predicated region
  $region10: #{_lambda_.4} parent=0 // pred_check
    _
  $region11: #{_lambda_.4} parent=0 // pred_check_branch
    %13 = sbr.rel (0) target = $region13
  $region12: #{_lambda_.4} parent=0 // pred_region
    _
  $region13: #{_lambda_.4} parent=0 // pred_fallthru
    _
  %v14 = vld [vmem:[%s0] sm:$0xf]
  %v15 = vld [vmem:[%s0 + $0x4] sm:$0xf]
  %v16 = vld [vmem:[%s0 + $0x8] sm:$0xf]
  %v17 = vld [vmem:[%s0 + $0xc] sm:$0xf]
  %v18 = vld [vmem:[%s0 + $0x10] sm:$0xf]
  %v19 = vld [vmem:[%s0 + $0x14] sm:$0xf]
  %v20 = vld [vmem:[%s0 + $0x18] sm:$0xf]
  %v21 = vld [vmem:[%s0 + $0x1c] sm:$0xf]
  %v22 = vld [vmem:[%s0 + $0x20] sm:$0xf]
  %v23 = vld [vmem:[%s0 + $0x24] sm:$0xf]
  %v24 = vld [vmem:[%s0 + $0x28] sm:$0xf]
  %v25 = vld [vmem:[%s0 + $0x2c] sm:$0xf]
  %v26 = vld [vmem:[%s0 + $0x30] sm:$0xf]
  %v27 = vld [vmem:[%s0 + $0x34] sm:$0xf]
  %v28 = vld [vmem:[%s0 + $0x38] sm:$0xf]
  %v29 = vld [vmem:[%s0 + $0x3c] sm:$0xf]
  %v30 = vld [vmem:[%s1] sm:$0xff]
  %v31 = vld [vmem:[%s1 + $0x8] sm:$0xff]
  %v32 = vld [vmem:[%s1 + $0x10] sm:$0xff]
  %v33 = vld [vmem:[%s1 + $0x18] sm:$0xff]
  %v34 = vld [vmem:[%s1 + $0x20] sm:$0xff]
  %v35 = vld [vmem:[%s1 + $0x28] sm:$0xff]
  %v36 = vld [vmem:[%s1 + $0x30] sm:$0xff]
  %v37 = vld [vmem:[%s1 + $0x38] sm:$0xff]
  %v38 = vld [vmem:[%s1 + $0x40] sm:$0xff]
  %v39 = vld [vmem:[%s1 + $0x48] sm:$0xff]
  %v40 = vld [vmem:[%s1 + $0x50] sm:$0xff]
  %v41 = vld [vmem:[%s1 + $0x58] sm:$0xff]
  %v42 = vld [vmem:[%s1 + $0x60] sm:$0xff]
  %v43 = vld [vmem:[%s1 + $0x68] sm:$0xff]
  %v44 = vld [vmem:[%s1 + $0x70] sm:$0xff]
  %v45 = vld [vmem:[%s1 + $0x78] sm:$0xff]
  %v46 = vld [vmem:[%s1 + $0x80] sm:$0xff]
  %v47 = vld [vmem:[%s1 + $0x88] sm:$0xff]
  %v48 = vld [vmem:[%s1 + $0x90] sm:$0xff]
  %v49 = vld [vmem:[%s1 + $0x98] sm:$0xff]
  %v50 = vld [vmem:[%s1 + $0xa0] sm:$0xff]
  %v51 = vld [vmem:[%s1 + $0xa8] sm:$0xff]
  %v52 = vld [vmem:[%s1 + $0xb0] sm:$0xff]
  %v53 = vld [vmem:[%s1 + $0xb8] sm:$0xff]
  %v54 = vld [vmem:[%s1 + $0xc0] sm:$0xff]
  %v55 = vld [vmem:[%s1 + $0xc8] sm:$0xff]
  %v56 = vld [vmem:[%s1 + $0xd0] sm:$0xff]
  %v57 = vld [vmem:[%s1 + $0xd8] sm:$0xff]
  %v58 = vld [vmem:[%s1 + $0xe0] sm:$0xff]
  %v59 = vld [vmem:[%s1 + $0xe8] sm:$0xff]
  %v60 = vld [vmem:[%s1 + $0xf0] sm:$0xff]
  %v61 = vld [vmem:[%s1 + $0xf8] sm:$0xff]
  %v62 = vld [vmem:[%s2] sm:$0xf]
  %v64 = vperm.slane %v62, 0
  %v65 = vperm.slane %v62, 1
  %v66 = vperm.slane %v62, 2
  %v67 = vperm.slane %v62, 3
  %v88 = vunpack.c.l.b16 %v14
  %v89 = vunpack.c.l.b16 %v15
  %v90 = vunpack.c.l.b16 %v16
  %v91 = vunpack.c.l.b16 %v17
  %v92 = vunpack.c.l.b16 %v18
  %v93 = vunpack.c.l.b16 %v19
  %v94 = vunpack.c.l.b16 %v20
  %v95 = vunpack.c.l.b16 %v21
  %v96 = vunpack.c.l.b16 %v22
  %v97 = vunpack.c.l.b16 %v23
  %v98 = vunpack.c.l.b16 %v24
  %v99 = vunpack.c.l.b16 %v25
  %v100 = vunpack.c.l.b16 %v26
  %v101 = vunpack.c.l.b16 %v27
  %v102 = vunpack.c.l.b16 %v28
  %v103 = vunpack.c.l.b16 %v29
  %v104 = vpack.c.b16 %v89, %v88
  %v105 = vpack.c.b16 %v91, %v90
  %v106 = vpack.c.b16 %v93, %v92
  %v107 = vpack.c.b16 %v95, %v94
  %v108 = vpack.c.b16 %v97, %v96
  %v109 = vpack.c.b16 %v99, %v98
  %v110 = vpack.c.b16 %v101, %v100
  %v111 = vpack.c.b16 %v103, %v102
  %v152 = vunpack.c.l.b16 %v30
  %v153 = vunpack.c.h.b16 %v30
  %v154 = vunpack.c.l.b16 %v31
  %v155 = vunpack.c.h.b16 %v31
  %v156 = vunpack.c.l.b16 %v32
  %v157 = vunpack.c.h.b16 %v32
  %v158 = vunpack.c.l.b16 %v33
  %v159 = vunpack.c.h.b16 %v33
  %v160 = vunpack.c.l.b16 %v34
  %v161 = vunpack.c.h.b16 %v34
  %v162 = vunpack.c.l.b16 %v35
  %v163 = vunpack.c.h.b16 %v35
  %v164 = vunpack.c.l.b16 %v36
  %v165 = vunpack.c.h.b16 %v36
  %v166 = vunpack.c.l.b16 %v37
  %v167 = vunpack.c.h.b16 %v37
  %v168 = vunpack.c.l.b16 %v38
  %v169 = vunpack.c.h.b16 %v38
  %v170 = vunpack.c.l.b16 %v39
  %v171 = vunpack.c.h.b16 %v39
  %v172 = vunpack.c.l.b16 %v40
  %v173 = vunpack.c.h.b16 %v40
  %v174 = vunpack.c.l.b16 %v41
  %v175 = vunpack.c.h.b16 %v41
  %v176 = vunpack.c.l.b16 %v42
  %v177 = vunpack.c.h.b16 %v42
  %v178 = vunpack.c.l.b16 %v43
  %v179 = vunpack.c.h.b16 %v43
  %v180 = vunpack.c.l.b16 %v44
  %v181 = vunpack.c.h.b16 %v44
  %v182 = vunpack.c.l.b16 %v45
  %v183 = vunpack.c.h.b16 %v45
  %v184 = vunpack.c.l.b16 %v46
  %v185 = vunpack.c.h.b16 %v46
  %v186 = vunpack.c.l.b16 %v47
  %v187 = vunpack.c.h.b16 %v47
  %v188 = vunpack.c.l.b16 %v48
  %v189 = vunpack.c.h.b16 %v48
  %v190 = vunpack.c.l.b16 %v49
  %v191 = vunpack.c.h.b16 %v49
  %v192 = vunpack.c.l.b16 %v50
  %v193 = vunpack.c.h.b16 %v50
  %v194 = vunpack.c.l.b16 %v51
  %v195 = vunpack.c.h.b16 %v51
  %v196 = vunpack.c.l.b16 %v52
  %v197 = vunpack.c.h.b16 %v52
  %v198 = vunpack.c.l.b16 %v53
  %v199 = vunpack.c.h.b16 %v53
  %v200 = vunpack.c.l.b16 %v54
  %v201 = vunpack.c.h.b16 %v54
  %v202 = vunpack.c.l.b16 %v55
  %v203 = vunpack.c.h.b16 %v55
  %v204 = vunpack.c.l.b16 %v56
  %v205 = vunpack.c.h.b16 %v56
  %v206 = vunpack.c.l.b16 %v57
  %v207 = vunpack.c.h.b16 %v57
  %v208 = vunpack.c.l.b16 %v58
  %v209 = vunpack.c.h.b16 %v58
  %v210 = vunpack.c.l.b16 %v59
  %v211 = vunpack.c.h.b16 %v59
  %v212 = vunpack.c.l.b16 %v60
  %v213 = vunpack.c.h.b16 %v60
  %v214 = vunpack.c.l.b16 %v61
  %v215 = vunpack.c.h.b16 %v61
  %v216 = vpack.c.b16 %v156, %v152
  %v217 = vpack.c.b16 %v157, %v153
  %v218 = vpack.c.b16 %v158, %v154
  %v219 = vpack.c.b16 %v159, %v155
  %v220 = vpack.c.b16 %v164, %v160
  %v221 = vpack.c.b16 %v165, %v161
  %v222 = vpack.c.b16 %v166, %v162
  %v223 = vpack.c.b16 %v167, %v163
  %v224 = vpack.c.b16 %v172, %v168
  %v225 = vpack.c.b16 %v173, %v169
  %v226 = vpack.c.b16 %v174, %v170
  %v227 = vpack.c.b16 %v175, %v171
  %v228 = vpack.c.b16 %v180, %v176
  %v229 = vpack.c.b16 %v181, %v177
  %v230 = vpack.c.b16 %v182, %v178
  %v231 = vpack.c.b16 %v183, %v179
  %v232 = vpack.c.b16 %v188, %v184
  %v233 = vpack.c.b16 %v189, %v185
  %v234 = vpack.c.b16 %v190, %v186
  %v235 = vpack.c.b16 %v191, %v187
  %v236 = vpack.c.b16 %v196, %v192
  %v237 = vpack.c.b16 %v197, %v193
  %v238 = vpack.c.b16 %v198, %v194
  %v239 = vpack.c.b16 %v199, %v195
  %v240 = vpack.c.b16 %v204, %v200
  %v241 = vpack.c.b16 %v205, %v201
  %v242 = vpack.c.b16 %v206, %v202
  %v243 = vpack.c.b16 %v207, %v203
  %v244 = vpack.c.b16 %v212, %v208
  %v245 = vpack.c.b16 %v213, %v209
  %v246 = vpack.c.b16 %v214, %v210
  %v247 = vpack.c.b16 %v215, %v211
  %280 = vmatpush.bf16.msra.mxu0 %v244
  %281 = vmatpush.bf16.msra.mxu0 %v240
  %282 = vmatpush.bf16.msra.mxu0 %v236
  %283 = vmatpush.bf16.msra.mxu0 %v232
  %284 = vmatpush.bf16.msra.mxu0 %v228
  %285 = vmatpush.bf16.msra.mxu0 %v224
  %286 = vmatpush.bf16.msra.mxu0 %v220
  %287 = vmatpush.bf16.msra.mxu0 %v216
  %288 = vmatmul.bf16.gmra.mxu0 %v104
  %v289 = vpop.f32.mrf.mxu0
  %v290 = vadd.f32 %v64, %v289
  %v291 = vpop.f32.mrf.mxu0
  %v292 = vadd.f32 %v64, %v291
  %293 = vmatmul.bf16.gmra.mxu0 %v105
  %v294 = vpop.f32.mrf.mxu0
  %v295 = vadd.f32 %v64, %v294
  %v296 = vpop.f32.mrf.mxu0
  %v297 = vadd.f32 %v64, %v296
  %298 = vmatmul.bf16.gmra.mxu0 %v106
  %v299 = vpop.f32.mrf.mxu0
  %v300 = vadd.f32 %v64, %v299
  %v301 = vpop.f32.mrf.mxu0
  %v302 = vadd.f32 %v64, %v301
  %303 = vmatmul.bf16.gmra.mxu0 %v107
  %v304 = vpop.f32.mrf.mxu0
  %v305 = vadd.f32 %v64, %v304
  %v306 = vpop.f32.mrf.mxu0
  %v307 = vadd.f32 %v64, %v306
  %308 = vmatmul.bf16.gmra.mxu0 %v108
  %v309 = vpop.f32.mrf.mxu0
  %v310 = vadd.f32 %v64, %v309
  %v311 = vpop.f32.mrf.mxu0
  %v312 = vadd.f32 %v64, %v311
  %313 = vmatmul.bf16.gmra.mxu0 %v109
  %v314 = vpop.f32.mrf.mxu0
  %v315 = vadd.f32 %v64, %v314
  %v316 = vpop.f32.mrf.mxu0
  %v317 = vadd.f32 %v64, %v316
  %318 = vmatmul.bf16.gmra.mxu0 %v110
  %v319 = vpop.f32.mrf.mxu0
  %v320 = vadd.f32 %v64, %v319
  %v321 = vpop.f32.mrf.mxu0
  %v322 = vadd.f32 %v64, %v321
  %323 = vmatmul.bf16.gmra.mxu0 %v111
  %v324 = vpop.f32.mrf.mxu0
  %v325 = vadd.f32 %v64, %v324
  %v326 = vpop.f32.mrf.mxu0
  %v327 = vadd.f32 %v64, %v326
  %328 = vdwg.mxu0
  %329 = vmatpush.bf16.msra.mxu0 %v245
  %330 = vmatpush.bf16.msra.mxu0 %v241
  %331 = vmatpush.bf16.msra.mxu0 %v237
  %332 = vmatpush.bf16.msra.mxu0 %v233
  %333 = vmatpush.bf16.msra.mxu0 %v229
  %334 = vmatpush.bf16.msra.mxu0 %v225
  %335 = vmatpush.bf16.msra.mxu0 %v221
  %336 = vmatpush.bf16.msra.mxu0 %v217
  %337 = vmatmul.bf16.gmra.mxu0 %v104
  %v338 = vpop.f32.mrf.mxu0
  %v339 = vadd.f32 %v65, %v338
  %v340 = vpop.f32.mrf.mxu0
  %v341 = vadd.f32 %v65, %v340
  %342 = vmatmul.bf16.gmra.mxu0 %v105
  %v343 = vpop.f32.mrf.mxu0
  %v344 = vadd.f32 %v65, %v343
  %v345 = vpop.f32.mrf.mxu0
  %v346 = vadd.f32 %v65, %v345
  %347 = vmatmul.bf16.gmra.mxu0 %v106
  %v348 = vpop.f32.mrf.mxu0
  %v349 = vadd.f32 %v65, %v348
  %v350 = vpop.f32.mrf.mxu0
  %v351 = vadd.f32 %v65, %v350
  %352 = vmatmul.bf16.gmra.mxu0 %v107
  %v353 = vpop.f32.mrf.mxu0
  %v354 = vadd.f32 %v65, %v353
  %v355 = vpop.f32.mrf.mxu0
  %v356 = vadd.f32 %v65, %v355
  %357 = vmatmul.bf16.gmra.mxu0 %v108
  %v358 = vpop.f32.mrf.mxu0
  %v359 = vadd.f32 %v65, %v358
  %v360 = vpop.f32.mrf.mxu0
  %v361 = vadd.f32 %v65, %v360
  %362 = vmatmul.bf16.gmra.mxu0 %v109
  %v363 = vpop.f32.mrf.mxu0
  %v364 = vadd.f32 %v65, %v363
  %v365 = vpop.f32.mrf.mxu0
  %v366 = vadd.f32 %v65, %v365
  %367 = vmatmul.bf16.gmra.mxu0 %v110
  %v368 = vpop.f32.mrf.mxu0
  %v369 = vadd.f32 %v65, %v368
  %v370 = vpop.f32.mrf.mxu0
  %v371 = vadd.f32 %v65, %v370
  %372 = vmatmul.bf16.gmra.mxu0 %v111
  %v373 = vpop.f32.mrf.mxu0
  %v374 = vadd.f32 %v65, %v373
  %v375 = vpop.f32.mrf.mxu0
  %v376 = vadd.f32 %v65, %v375
  %377 = vdwg.mxu0
  %378 = vmatpush.bf16.msra.mxu0 %v246
  %379 = vmatpush.bf16.msra.mxu0 %v242
  %380 = vmatpush.bf16.msra.mxu0 %v238
  %381 = vmatpush.bf16.msra.mxu0 %v234
  %382 = vmatpush.bf16.msra.mxu0 %v230
  %383 = vmatpush.bf16.msra.mxu0 %v226
  %384 = vmatpush.bf16.msra.mxu0 %v222
  %385 = vmatpush.bf16.msra.mxu0 %v218
  %386 = vmatmul.bf16.gmra.mxu0 %v104
  %v387 = vpop.f32.mrf.mxu0
  %v388 = vadd.f32 %v66, %v387
  %v389 = vpop.f32.mrf.mxu0
  %v390 = vadd.f32 %v66, %v389
  %391 = vmatmul.bf16.gmra.mxu0 %v105
  %v392 = vpop.f32.mrf.mxu0
  %v393 = vadd.f32 %v66, %v392
  %v394 = vpop.f32.mrf.mxu0
  %v395 = vadd.f32 %v66, %v394
  %396 = vmatmul.bf16.gmra.mxu0 %v106
  %v397 = vpop.f32.mrf.mxu0
  %v398 = vadd.f32 %v66, %v397
  %v399 = vpop.f32.mrf.mxu0
  %v400 = vadd.f32 %v66, %v399
  %401 = vmatmul.bf16.gmra.mxu0 %v107
  %v402 = vpop.f32.mrf.mxu0
  %v403 = vadd.f32 %v66, %v402
  %v404 = vpop.f32.mrf.mxu0
  %v405 = vadd.f32 %v66, %v404
  %406 = vmatmul.bf16.gmra.mxu0 %v108
  %v407 = vpop.f32.mrf.mxu0
  %v408 = vadd.f32 %v66, %v407
  %v409 = vpop.f32.mrf.mxu0
  %v410 = vadd.f32 %v66, %v409
  %411 = vmatmul.bf16.gmra.mxu0 %v109
  %v412 = vpop.f32.mrf.mxu0
  %v413 = vadd.f32 %v66, %v412
  %v414 = vpop.f32.mrf.mxu0
  %v415 = vadd.f32 %v66, %v414
  %416 = vmatmul.bf16.gmra.mxu0 %v110
  %v417 = vpop.f32.mrf.mxu0
  %v418 = vadd.f32 %v66, %v417
  %v419 = vpop.f32.mrf.mxu0
  %v420 = vadd.f32 %v66, %v419
  %421 = vmatmul.bf16.gmra.mxu0 %v111
  %v422 = vpop.f32.mrf.mxu0
  %v423 = vadd.f32 %v66, %v422
  %v424 = vpop.f32.mrf.mxu0
  %v425 = vadd.f32 %v66, %v424
  %426 = vdwg.mxu0
  %427 = vmatpush.bf16.msra.mxu0 %v247
  %428 = vmatpush.bf16.msra.mxu0 %v243
  %429 = vmatpush.bf16.msra.mxu0 %v239
  %430 = vmatpush.bf16.msra.mxu0 %v235
  %431 = vmatpush.bf16.msra.mxu0 %v231
  %432 = vmatpush.bf16.msra.mxu0 %v227
  %433 = vmatpush.bf16.msra.mxu0 %v223
  %434 = vmatpush.bf16.msra.mxu0 %v219
  %435 = vmatmul.bf16.gmra.mxu0 %v104
  %v436 = vpop.f32.mrf.mxu0
  %v437 = vadd.f32 %v67, %v436
  %v438 = vpop.f32.mrf.mxu0
  %v439 = vadd.f32 %v67, %v438
  %440 = vmatmul.bf16.gmra.mxu0 %v105
  %v441 = vpop.f32.mrf.mxu0
  %v442 = vadd.f32 %v67, %v441
  %v443 = vpop.f32.mrf.mxu0
  %v444 = vadd.f32 %v67, %v443
  %445 = vmatmul.bf16.gmra.mxu0 %v106
  %v446 = vpop.f32.mrf.mxu0
  %v447 = vadd.f32 %v67, %v446
  %v448 = vpop.f32.mrf.mxu0
  %v449 = vadd.f32 %v67, %v448
  %450 = vmatmul.bf16.gmra.mxu0 %v107
  %v451 = vpop.f32.mrf.mxu0
  %v452 = vadd.f32 %v67, %v451
  %v453 = vpop.f32.mrf.mxu0
  %v454 = vadd.f32 %v67, %v453
  %455 = vmatmul.bf16.gmra.mxu0 %v108
  %v456 = vpop.f32.mrf.mxu0
  %v457 = vadd.f32 %v67, %v456
  %v458 = vpop.f32.mrf.mxu0
  %v459 = vadd.f32 %v67, %v458
  %460 = vmatmul.bf16.gmra.mxu0 %v109
  %v461 = vpop.f32.mrf.mxu0
  %v462 = vadd.f32 %v67, %v461
  %v463 = vpop.f32.mrf.mxu0
  %v464 = vadd.f32 %v67, %v463
  %465 = vmatmul.bf16.gmra.mxu0 %v110
  %v466 = vpop.f32.mrf.mxu0
  %v467 = vadd.f32 %v67, %v466
  %v468 = vpop.f32.mrf.mxu0
  %v469 = vadd.f32 %v67, %v468
  %470 = vmatmul.bf16.gmra.mxu0 %v111
  %v471 = vpop.f32.mrf.mxu0
  %v472 = vadd.f32 %v67, %v471
  %v473 = vpop.f32.mrf.mxu0
  %v474 = vadd.f32 %v67, %v473
  %475 = vdwg.mxu0
  %v476 = vpack.c.bf16 %v339, %v290
  %v477 = vpack.c.bf16 %v341, %v292
  %v478 = vpack.c.bf16 %v344, %v295
  %v479 = vpack.c.bf16 %v346, %v297
  %v480 = vpack.c.bf16 %v349, %v300
  %v481 = vpack.c.bf16 %v351, %v302
  %v482 = vpack.c.bf16 %v354, %v305
  %v483 = vpack.c.bf16 %v356, %v307
  %v484 = vpack.c.bf16 %v359, %v310
  %v485 = vpack.c.bf16 %v361, %v312
  %v486 = vpack.c.bf16 %v364, %v315
  %v487 = vpack.c.bf16 %v366, %v317
  %v488 = vpack.c.bf16 %v369, %v320
  %v489 = vpack.c.bf16 %v371, %v322
  %v490 = vpack.c.bf16 %v374, %v325
  %v491 = vpack.c.bf16 %v376, %v327
  %492 = vst [vmem:[%s3] sm:$0xff] %v476
  %493 = vst [vmem:[%s3 + $0x10] sm:$0xff] %v477
  %494 = vst [vmem:[%s3 + $0x20] sm:$0xff] %v478
  %495 = vst [vmem:[%s3 + $0x30] sm:$0xff] %v479
  %496 = vst [vmem:[%s3 + $0x40] sm:$0xff] %v480
  %497 = vst [vmem:[%s3 + $0x50] sm:$0xff] %v481
  %498 = vst [vmem:[%s3 + $0x60] sm:$0xff] %v482
  %499 = vst [vmem:[%s3 + $0x70] sm:$0xff] %v483
  %500 = vst [vmem:[%s3 + $0x80] sm:$0xff] %v484
  %501 = vst [vmem:[%s3 + $0x90] sm:$0xff] %v485
  %502 = vst [vmem:[%s3 + $0xa0] sm:$0xff] %v486
  %503 = vst [vmem:[%s3 + $0xb0] sm:$0xff] %v487
  %504 = vst [vmem:[%s3 + $0xc0] sm:$0xff] %v488
  %505 = vst [vmem:[%s3 + $0xd0] sm:$0xff] %v489
  %506 = vst [vmem:[%s3 + $0xe0] sm:$0xff] %v490
  %507 = vst [vmem:[%s3 + $0xf0] sm:$0xff] %v491
  %v508 = vpack.c.bf16 %v437, %v388
  %v509 = vpack.c.bf16 %v439, %v390
  %v510 = vpack.c.bf16 %v442, %v393
  %v511 = vpack.c.bf16 %v444, %v395
  %v512 = vpack.c.bf16 %v447, %v398
  %v513 = vpack.c.bf16 %v449, %v400
  %v514 = vpack.c.bf16 %v452, %v403
  %v515 = vpack.c.bf16 %v454, %v405
  %v516 = vpack.c.bf16 %v457, %v408
  %v517 = vpack.c.bf16 %v459, %v410
  %v518 = vpack.c.bf16 %v462, %v413
  %v519 = vpack.c.bf16 %v464, %v415
  %v520 = vpack.c.bf16 %v467, %v418
  %v521 = vpack.c.bf16 %v469, %v420
  %v522 = vpack.c.bf16 %v472, %v423
  %v523 = vpack.c.bf16 %v474, %v425
  %s524 = scalar_lea.vmem %s3, 8
  %525 = vst [vmem:[%s524] sm:$0xff] %v508
  %526 = vst [vmem:[%s524 + $0x10] sm:$0xff] %v509
  %527 = vst [vmem:[%s524 + $0x20] sm:$0xff] %v510
  %528 = vst [vmem:[%s524 + $0x30] sm:$0xff] %v511
  %529 = vst [vmem:[%s524 + $0x40] sm:$0xff] %v512
  %530 = vst [vmem:[%s524 + $0x50] sm:$0xff] %v513
  %531 = vst [vmem:[%s524 + $0x60] sm:$0xff] %v514
  %532 = vst [vmem:[%s524 + $0x70] sm:$0xff] %v515
  %533 = vst [vmem:[%s524 + $0x80] sm:$0xff] %v516
  %534 = vst [vmem:[%s524 + $0x90] sm:$0xff] %v517
  %535 = vst [vmem:[%s524 + $0xa0] sm:$0xff] %v518
  %536 = vst [vmem:[%s524 + $0xb0] sm:$0xff] %v519
  %537 = vst [vmem:[%s524 + $0xc0] sm:$0xff] %v520
  %538 = vst [vmem:[%s524 + $0xd0] sm:$0xff] %v521
  %539 = vst [vmem:[%s524 + $0xe0] sm:$0xff] %v522
  %540 = vst [vmem:[%s524 + $0xf0] sm:$0xff] %v523
  // Predicated region
  $region14: #{_lambda_.4} parent=0 // pred_check
    _
  $region15: #{_lambda_.4} parent=0 // pred_check_branch
    %542 = sbr.rel (0) target = $region17
  $region16: #{_lambda_.4} parent=0 // pred_region
    _
  $region17: #{_lambda_.4} parent=0 // pred_fallthru
    _
  // Predicated region
  $region18: #{_lambda_.4} parent=0 // pred_check
    _
  $region19: #{_lambda_.4} parent=0 // pred_check_branch
    %544 = sbr.rel (0) target = $region21
  $region20: #{_lambda_.4} parent=0 // pred_region
    _
  $region21: #{_lambda_.4} parent=0 // pred_fallthru
    _

// kernel: _lambda_.5
$region0: #{_lambda_.5}
  #allocation0 [shape = 'u32[]', space=smem, size = 0x4, offset = 0x4, fixed_abs, tag = 'smem constant byte address 0x4 - core index']
  #allocation1 [shape = 'u32[72,128]{1,0:T(1,128)}', space=vmem, size = 0x9000, scoped, tag = 'internal scratch']
  #allocation2 [shape = 'f32[256,128]{1,0:T(8,128)}', space=vmem, size = 0x20000, scoped, tag = 'scratch operand']
  %s0 = inlined_call_operand.vmem [shape: bf16[2,18,18,128], index: 0, kind: input, shape index: {}]
  %s1 = inlined_call_operand.vmem [shape: bf16[3,3,128,128], index: 1, kind: input, shape index: {}]
  %s2 = inlined_call_operand.vmem [shape: f32[1,128], index: 2, kind: input, shape index: {}]
  %s3 = inlined_call_operand.vmem [shape: bf16[2,16,16,128], index: 3, kind: output, shape index: {0}]
  %s4 = inlined_call_operand.vmem [shape: f32[2,2,128], index: 4, kind: output, shape index: {1}]
  %5 = xla_tuple %s3, %s4
  %s6 = sld [smem:[#allocation0]]
  $region65: #{_lambda_.5} parent=0
    _
  %s8 = ssub.s32 1, %s6
  %s9 = scalar_select 0, %s8, %s6
  loop: start=0, step=1, limit=4
  $region2: #{_lambda_.5} parent=0 // loop_pre_header
    _
  $region3: #{_lambda_.5} parent=0 // loop_header
    %s11 = sphi 0, %s15
    %p12 = scmp.ge.s32.totalorder %s11, 4
    %s18 = sphi 0, %s37
    %s19 = sphi 0, %s33
    %s20 = sphi 0, %s29
    %s21 = sphi 0, %s18
    %s22 = sphi 0, %s19
    %s23 = sphi 0, %s20
    %s24 = sphi 0, %s21
    %s25 = sphi 0, %s22
    %s26 = sphi 0, %s23
    %s42 = sphi 0, %s44
    %s45 = sphi 0, %s42
    %s46 = sphi 0, %s45
    %s62 = sphi 0, %s46
    %s70 = sphi 0, %s72
    %s73 = sphi 0, %s70
    %s74 = sphi 0, %s73
    %s90 = sphi 0, %s74
    %s96 = sphi 0, %s98
    %s99 = sphi 0, %s96
    %s100 = sphi 0, %s99
    %s116 = sphi 0, %s100
    %s124 = sphi 0, %s126
    %s127 = sphi 0, %s124
    %s128 = sphi 0, %s127
    %s144 = sphi 0, %s128
    %s152 = sphi 0, %s154
    %s155 = sphi 0, %s152
    %s156 = sphi 0, %s155
    %s172 = sphi 0, %s156
  $region4: #{_lambda_.5} parent=0 // loop_header_branch
    %14 = sbr.rel (%p12) target = $region8
  $region5: #{_lambda_.5} parent=0 // loop_body
    %s16 = ssub.s32 %s11, 1
    %s17 = ssub.s32 %s11, 2
    %s27 = sadd.s32 1, %s20
    %p28 = scmp.ge.s32.totalorder %s27, 1
    %s29 = scalar_select %p28, 0, %s27
    %s30 = sadd.s32 1, %s19
    %s31 = scalar_select %p28, %s30, %s19
    %p32 = scmp.ge.s32.totalorder %s31, 1
    %s33 = scalar_select %p32, 0, %s31
    %s34 = sadd.s32 1, %s18
    %s35 = scalar_select %p32, %s34, %s18
    %p36 = scmp.ge.s32.totalorder %s35, 2
    %s37 = scalar_select %p36, 0, %s35
    %s38 = ssub.s32 %s18, %s37
    %s39 = ssub.s32 %s20, %s29
    %s40 = sor.u32 %s38, %s39
    %p41 = scmp.eq.s32.totalorder %s40, 0
    %s43 = sadd.s32 %s42, 1
    %s44 = scalar_select %p41, %s42, %s43
    %p47 = pneg %p41
    %p48 = scmp.eq.s32.totalorder %s11, 1
    %p49 = por %p47, %p48
    %p50 = scmp.ne.s32.totalorder %s42, %s45
    %p51 = scmp.eq.s32.totalorder %s11, 0
    %p52 = por %p50, %p51
    %p53 = scmp.ne.s32.totalorder %s42, %s45
    %p54 = scmp.eq.s32.totalorder %s16, 1
    %p55 = por %p53, %p54
    %p56 = scmp.ne.s32.totalorder %s45, %s46
    %p57 = scmp.eq.s32.totalorder %s16, 0
    %p58 = por %p56, %p57
    %p59 = scmp.ne.s32.totalorder %s45, %s46
    %p60 = scmp.eq.s32.totalorder %s17, 1
    %p61 = por %p59, %p60
    %p63 = scmp.ne.s32.totalorder %s46, %s62
    %p64 = scmp.eq.s32.totalorder %s17, 0
    %p65 = por %p63, %p64
    %s66 = ssub.s32 %s20, %s29
    %s67 = ssub.s32 %s19, %s33
    %s68 = sor.u32 %s66, %s67
    %p69 = scmp.eq.s32.totalorder %s68, 0
    %s71 = sadd.s32 %s70, 1
    %s72 = scalar_select %p69, %s70, %s71
    %p75 = pneg %p69
    %p76 = scmp.eq.s32.totalorder %s11, 1
    %p77 = por %p75, %p76
    %p78 = scmp.ne.s32.totalorder %s70, %s73
    %p79 = scmp.eq.s32.totalorder %s11, 0
    %p80 = por %p78, %p79
    %p81 = scmp.ne.s32.totalorder %s70, %s73
    %p82 = scmp.eq.s32.totalorder %s16, 1
    %p83 = por %p81, %p82
    %p84 = scmp.ne.s32.totalorder %s73, %s74
    %p85 = scmp.eq.s32.totalorder %s16, 0
    %p86 = por %p84, %p85
    %p87 = scmp.ne.s32.totalorder %s73, %s74
    %p88 = scmp.eq.s32.totalorder %s17, 1
    %p89 = por %p87, %p88
    %p91 = scmp.ne.s32.totalorder %s74, %s90
    %p92 = scmp.eq.s32.totalorder %s17, 0
    %p93 = por %p91, %p92
    %s94 = ssub.s32 %s19, %s33
    %p95 = scmp.eq.s32.totalorder %s94, 0
    %s97 = sadd.s32 %s96, 1
    %s98 = scalar_select %p95, %s96, %s97
    %p101 = pneg %p95
    %p102 = scmp.eq.s32.totalorder %s11, 1
    %p103 = por %p101, %p102
    %p104 = scmp.ne.s32.totalorder %s96, %s99
    %p105 = scmp.eq.s32.totalorder %s11, 0
    %p106 = por %p104, %p105
    %p107 = scmp.ne.s32.totalorder %s96, %s99
    %p108 = scmp.eq.s32.totalorder %s16, 1
    %p109 = por %p107, %p108
    %p110 = scmp.ne.s32.totalorder %s99, %s100
    %p111 = scmp.eq.s32.totalorder %s16, 0
    %p112 = por %p110, %p111
    %p113 = scmp.ne.s32.totalorder %s99, %s100
    %p114 = scmp.eq.s32.totalorder %s17, 1
    %p115 = por %p113, %p114
    %p117 = scmp.ne.s32.totalorder %s100, %s116
    %p118 = scmp.eq.s32.totalorder %s17, 0
    %p119 = por %p117, %p118
    %s120 = ssub.s32 %s18, %s37
    %s121 = ssub.s32 %s19, %s33
    %s122 = sor.u32 %s120, %s121
    %p123 = scmp.eq.s32.totalorder %s122, 0
    %s125 = sadd.s32 %s124, 1
    %s126 = scalar_select %p123, %s124, %s125
    %p129 = pneg %p123
    %p130 = scmp.eq.s32.totalorder %s11, 1
    %p131 = por %p129, %p130
    %p132 = scmp.ne.s32.totalorder %s124, %s127
    %p133 = scmp.eq.s32.totalorder %s11, 0
    %p134 = por %p132, %p133
    %p135 = scmp.ne.s32.totalorder %s124, %s127
    %p136 = scmp.eq.s32.totalorder %s16, 1
    %p137 = por %p135, %p136
    %p138 = scmp.ne.s32.totalorder %s127, %s128
    %p139 = scmp.eq.s32.totalorder %s16, 0
    %p140 = por %p138, %p139
    %p141 = scmp.ne.s32.totalorder %s127, %s128
    %p142 = scmp.eq.s32.totalorder %s17, 1
    %p143 = por %p141, %p142
    %p145 = scmp.ne.s32.totalorder %s128, %s144
    %p146 = scmp.eq.s32.totalorder %s17, 0
    %p147 = por %p145, %p146
    %s148 = ssub.s32 %s18, %s37
    %s149 = ssub.s32 %s19, %s33
    %s150 = sor.u32 %s148, %s149
    %p151 = scmp.eq.s32.totalorder %s150, 0
    %s153 = sadd.s32 %s152, 1
    %s154 = scalar_select %p151, %s152, %s153
    %p157 = pneg %p151
    %p158 = scmp.eq.s32.totalorder %s11, 1
    %p159 = por %p157, %p158
    %p160 = scmp.ne.s32.totalorder %s152, %s155
    %p161 = scmp.eq.s32.totalorder %s11, 0
    %p162 = por %p160, %p161
    %p163 = scmp.ne.s32.totalorder %s152, %s155
    %p164 = scmp.eq.s32.totalorder %s16, 1
    %p165 = por %p163, %p164
    %p166 = scmp.ne.s32.totalorder %s155, %s156
    %p167 = scmp.eq.s32.totalorder %s16, 0
    %p168 = por %p166, %p167
    %p169 = scmp.ne.s32.totalorder %s155, %s156
    %p170 = scmp.eq.s32.totalorder %s17, 1
    %p171 = por %p169, %p170
    %p173 = scmp.ne.s32.totalorder %s156, %s172
    %p174 = scmp.eq.s32.totalorder %s17, 0
    %p175 = por %p173, %p174
    %p176 = scmp.le.s32.totalorder 1, %s11
    %p177 = scmp.lt.s32.totalorder %s11, 3
    %p178 = pnand %p176, %p177
    %p179 = pneg %p178
    // Predicated region
    $region9: #{_lambda_.5} parent=5 // pred_check
      _
    $region10: #{_lambda_.5} parent=5 // pred_check_branch
      %181 = sbr.rel (%p178) target = $region12
    $region11: #{_lambda_.5} parent=5 // pred_region
      %s182 = ssub.s32 %s11, 1
      // Predicated region
      $region13: #{_lambda_.5} parent=11 // pred_check
        %p183 = pneg %p86
      $region14: #{_lambda_.5} parent=11 // pred_check_branch
        %185 = sbr.rel (%p183) target = $region16
      $region15: #{_lambda_.5} parent=11 // pred_region
        %s186 = smul.u32 16, %s23
        %p187 = scmp.lt.s32.totalorder %s186, 15
        %s188 = scalar_select %p187, %s186, 15
        %p189 = scmp.lt.s32.totalorder %s22, 0
        %s190 = scalar_select %p189, %s22, 0
        %s191 = sadd.s32 %s190, %s188
        %s192 = smul.addr %s191, 4
        %s193 = scalar_lea.vmem %s1, %s192
        %s194 = smul.u32 16, %s23
      $region16: #{_lambda_.5} parent=11 // pred_fallthru
        _
      // Predicated region
      $region17: #{_lambda_.5} parent=11 // pred_check
        %p195 = pneg %p112
      $region18: #{_lambda_.5} parent=11 // pred_check_branch
        %197 = sbr.rel (%p195) target = $region20
      $region19: #{_lambda_.5} parent=11 // pred_region
        %p198 = scmp.lt.s32.totalorder %s22, 0
        %s199 = scalar_select %p198, %s22, 0
        %s200 = scalar_lea.vmem %s2, %s199
      $region20: #{_lambda_.5} parent=11 // pred_fallthru
        _
    $region12: #{_lambda_.5} parent=5 // pred_fallthru
      _
    %p201 = scmp.lt.s32.totalorder %s11, 2
    // Predicated region
    $region21: #{_lambda_.5} parent=5 // pred_check
      %p202 = pneg %p201
    $region22: #{_lambda_.5} parent=5 // pred_check_branch
      %204 = sbr.rel (%p202) target = $region24
    $region23: #{_lambda_.5} parent=5 // pred_region
      // Predicated region
      $region25: #{_lambda_.5} parent=23 // pred_check
        %p205 = pneg %p52
      $region26: #{_lambda_.5} parent=23 // pred_check_branch
        %207 = sbr.rel (%p205) target = $region28
      $region27: #{_lambda_.5} parent=23 // pred_region
        %p208 = scmp.lt.s32.totalorder %s18, 1
        %s209 = scalar_select %p208, %s18, 1
        %p210 = scmp.lt.s32.totalorder %s20, 0
        %s211 = scalar_select %p210, %s20, 0
        %s212 = smul.addr %s209, 54
        %s213 = sadd.s32 %s211, %s212
        %s214 = smul.addr %s213, 4
        %s215 = scalar_lea.vmem %s0, %s214
      $region28: #{_lambda_.5} parent=23 // pred_fallthru
        _
    $region24: #{_lambda_.5} parent=5 // pred_fallthru
      _
    %p216 = scmp.le.s32.totalorder 1, %s11
    %p217 = scmp.lt.s32.totalorder %s11, 3
    %p218 = pnand %p216, %p217
    %p219 = pneg %p218
    // Predicated region
    $region29: #{_lambda_.5} parent=5 // pred_check
      _
    $region30: #{_lambda_.5} parent=5 // pred_check_branch
      %221 = sbr.rel (%p218) target = $region32
    $region31: #{_lambda_.5} parent=5 // pred_region
      %s222 = ssub.s32 %s11, 1
      %p223 = scmp.lt.s32.totalorder %s21, 1
      %s224 = scalar_select %p223, %s21, 1
      %p225 = scmp.lt.s32.totalorder %s23, 0
      %s226 = scalar_select %p225, %s23, 0
      %s227 = smul.addr %s224, 54
      %s228 = sadd.s32 %s226, %s227
      %s229 = smul.addr %s228, 4
      %s230 = scalar_lea.vmem %s0, %s229
      %p231 = pneg %p58
      %p232 = pneg %p55
      %s233 = smul.u32 16, %s23
      %p234 = scmp.lt.s32.totalorder %s233, 15
      %s235 = scalar_select %p234, %s233, 15
      %p236 = scmp.lt.s32.totalorder %s22, 0
      %s237 = scalar_select %p236, %s22, 0
      %s238 = sadd.s32 %s237, %s235
      %s239 = smul.addr %s238, 4
      %s240 = scalar_lea.vmem %s1, %s239
      %p241 = pneg %p86
      %p242 = pneg %p83
      %p243 = scmp.lt.s32.totalorder %s22, 0
      %s244 = scalar_select %p243, %s22, 0
      %s245 = scalar_lea.vmem %s2, %s244
      %p246 = pneg %p112
      %p247 = pneg %p109
      %p248 = pneg %p140
      %p249 = pneg %p137
      %p250 = scmp.lt.s32.totalorder %s21, 1
      %s251 = scalar_select %p250, %s21, 1
      %p252 = scmp.lt.s32.totalorder %s22, 0
      %s253 = scalar_select %p252, %s22, 0
      %s254 = smul.addr %s251, 32
      %s255 = sadd.s32 %s253, %s254
      %s256 = smul.addr %s255, 4
      %s257 = scalar_lea.vmem %s3, %s256
      %p258 = pneg %p168
      %p259 = pneg %p165
      %p260 = scmp.lt.s32.totalorder %s21, 1
      %s261 = scalar_select %p260, %s21, 1
      %p262 = scmp.lt.s32.totalorder %s22, 0
      %s263 = scalar_select %p262, %s22, 0
      %s264 = sadd.s32 %s263, %s261
      %s265 = smul.addr %s264, 2
      %s266 = scalar_lea.vmem %s4, %s265
      %p267 = scmp.lt.s32.totalorder %s21, 1
      %s268 = scalar_select %p267, %s21, 1
      %p269 = scmp.lt.s32.totalorder %s23, 0
      %s270 = scalar_select %p269, %s23, 0
      %s271 = smul.addr %s268, 54
      %s272 = sadd.s32 %s270, %s271
      %s273 = smul.addr %s272, 4
      %s274 = scalar_lea.vmem %s0, %s273
      %s275 = smul.u32 16, %s23
      %p276 = scmp.lt.s32.totalorder %s275, 15
      %s277 = scalar_select %p276, %s275, 15
      %p278 = scmp.lt.s32.totalorder %s22, 0
      %s279 = scalar_select %p278, %s22, 0
      %s280 = sadd.s32 %s279, %s277
      %s281 = smul.addr %s280, 4
      %s282 = scalar_lea.vmem %s1, %s281
      %s283 = smul.u32 16, %s23
      %p284 = scmp.lt.s32.totalorder %s22, 0
      %s285 = scalar_select %p284, %s22, 0
      %s286 = scalar_lea.vmem %s2, %s285
      %p287 = scmp.lt.s32.totalorder %s21, 1
      %s288 = scalar_select %p287, %s21, 1
      %p289 = scmp.lt.s32.totalorder %s22, 0
      %s290 = scalar_select %p289, %s22, 0
      %s291 = smul.addr %s288, 32
      %s292 = sadd.s32 %s290, %s291
      %s293 = smul.addr %s292, 4
      %s294 = scalar_lea.vmem %s3, %s293
      %p295 = scmp.lt.s32.totalorder %s21, 1
      %s296 = scalar_select %p295, %s21, 1
      %p297 = scmp.lt.s32.totalorder %s22, 0
      %s298 = scalar_select %p297, %s22, 0
      %s299 = sadd.s32 %s298, %s296
      %s300 = smul.addr %s299, 2
      %s301 = scalar_lea.vmem %s4, %s300
      %p302 = scmp.eq.s32.totalorder %s23, 0
      // Predicated region
      $region33: #{_lambda_.5} parent=31 // pred_check
        %p303 = pneg %p302
      $region34: #{_lambda_.5} parent=31 // pred_check_branch
        %305 = sbr.rel (%p303) target = $region36
      $region35: #{_lambda_.5} parent=31 // pred_region
        %306 = vst [vmem:[#allocation2] sm:$0xff] 0.0
        %307 = vst [vmem:[#allocation2 + $0x8] sm:$0xff] 0.0
        %308 = vst [vmem:[#allocation2 + $0x10] sm:$0xff] 0.0
        %309 = vst [vmem:[#allocation2 + $0x18] sm:$0xff] 0.0
        %310 = vst [vmem:[#allocation2 + $0x20] sm:$0xff] 0.0
        %311 = vst [vmem:[#allocation2 + $0x28] sm:$0xff] 0.0
        %312 = vst [vmem:[#allocation2 + $0x30] sm:$0xff] 0.0
        %313 = vst [vmem:[#allocation2 + $0x38] sm:$0xff] 0.0
        %314 = vst [vmem:[#allocation2 + $0x40] sm:$0xff] 0.0
        %315 = vst [vmem:[#allocation2 + $0x48] sm:$0xff] 0.0
        %316 = vst [vmem:[#allocation2 + $0x50] sm:$0xff] 0.0
        %317 = vst [vmem:[#allocation2 + $0x58] sm:$0xff] 0.0
        %318 = vst [vmem:[#allocation2 + $0x60] sm:$0xff] 0.0
        %319 = vst [vmem:[#allocation2 + $0x68] sm:$0xff] 0.0
        %320 = vst [vmem:[#allocation2 + $0x70] sm:$0xff] 0.0
        %321 = vst [vmem:[#allocation2 + $0x78] sm:$0xff] 0.0
        %322 = vst [vmem:[#allocation2 + $0x80] sm:$0xff] 0.0
        %323 = vst [vmem:[#allocation2 + $0x88] sm:$0xff] 0.0
        %324 = vst [vmem:[#allocation2 + $0x90] sm:$0xff] 0.0
        %325 = vst [vmem:[#allocation2 + $0x98] sm:$0xff] 0.0
        %326 = vst [vmem:[#allocation2 + $0xa0] sm:$0xff] 0.0
        %327 = vst [vmem:[#allocation2 + $0xa8] sm:$0xff] 0.0
        %328 = vst [vmem:[#allocation2 + $0xb0] sm:$0xff] 0.0
        %329 = vst [vmem:[#allocation2 + $0xb8] sm:$0xff] 0.0
        %330 = vst [vmem:[#allocation2 + $0xc0] sm:$0xff] 0.0
        %331 = vst [vmem:[#allocation2 + $0xc8] sm:$0xff] 0.0
        %332 = vst [vmem:[#allocation2 + $0xd0] sm:$0xff] 0.0
        %333 = vst [vmem:[#allocation2 + $0xd8] sm:$0xff] 0.0
        %334 = vst [vmem:[#allocation2 + $0xe0] sm:$0xff] 0.0
        %335 = vst [vmem:[#allocation2 + $0xe8] sm:$0xff] 0.0
        %336 = vst [vmem:[#allocation2 + $0xf0] sm:$0xff] 0.0
        %337 = vst [vmem:[#allocation2 + $0xf8] sm:$0xff] 0.0
      $region36: #{_lambda_.5} parent=31 // pred_fallthru
        _
      %v338 = vld [vmem:[%s274] sm:$0xf]
      %v339 = vld [vmem:[%s274 + $0x4] sm:$0xf]
      %v340 = vld [vmem:[%s274 + $0x8] sm:$0x1]
      %v341 = vld [vmem:[%s274 + $0xc] sm:$0xf]
      %v342 = vld [vmem:[%s274 + $0x10] sm:$0xf]
      %v343 = vld [vmem:[%s274 + $0x14] sm:$0x1]
      %v344 = vld [vmem:[%s274 + $0x18] sm:$0xf]
      %v345 = vld [vmem:[%s274 + $0x1c] sm:$0xf]
      %v346 = vld [vmem:[%s274 + $0x20] sm:$0x1]
      %v347 = vld [vmem:[%s274 + $0x24] sm:$0xf]
      %v348 = vld [vmem:[%s274 + $0x28] sm:$0xf]
      %v349 = vld [vmem:[%s274 + $0x2c] sm:$0x1]
      %v350 = vld [vmem:[%s274 + $0x30] sm:$0xf]
      %v351 = vld [vmem:[%s274 + $0x34] sm:$0xf]
      %v352 = vld [vmem:[%s274 + $0x38] sm:$0x1]
      %v353 = vld [vmem:[%s274 + $0x3c] sm:$0xf]
      %v354 = vld [vmem:[%s274 + $0x40] sm:$0xf]
      %v355 = vld [vmem:[%s274 + $0x44] sm:$0x1]
      %v356 = vld [vmem:[%s274 + $0x48] sm:$0xf]
      %v357 = vld [vmem:[%s274 + $0x4c] sm:$0xf]
      %v358 = vld [vmem:[%s274 + $0x50] sm:$0x1]
      %v359 = vld [vmem:[%s274 + $0x54] sm:$0xf]
      %v360 = vld [vmem:[%s274 + $0x58] sm:$0xf]
      %v361 = vld [vmem:[%s274 + $0x5c] sm:$0x1]
      %v362 = vld [vmem:[%s274 + $0x60] sm:$0xf]
      %v363 = vld [vmem:[%s274 + $0x64] sm:$0xf]
      %v364 = vld [vmem:[%s274 + $0x68] sm:$0x1]
      %v365 = vld [vmem:[%s274 + $0x6c] sm:$0xf]
      %v366 = vld [vmem:[%s274 + $0x70] sm:$0xf]
      %v367 = vld [vmem:[%s274 + $0x74] sm:$0x1]
      %v368 = vld [vmem:[%s274 + $0x78] sm:$0xf]
      %v369 = vld [vmem:[%s274 + $0x7c] sm:$0xf]
      %v370 = vld [vmem:[%s274 + $0x80] sm:$0x1]
      %v371 = vld [vmem:[%s274 + $0x84] sm:$0xf]
      %v372 = vld [vmem:[%s274 + $0x88] sm:$0xf]
      %v373 = vld [vmem:[%s274 + $0x8c] sm:$0x1]
      %v374 = vld [vmem:[%s274 + $0x90] sm:$0xf]
      %v375 = vld [vmem:[%s274 + $0x94] sm:$0xf]
      %v376 = vld [vmem:[%s274 + $0x98] sm:$0x1]
      %v377 = vld [vmem:[%s274 + $0x9c] sm:$0xf]
      %v378 = vld [vmem:[%s274 + $0xa0] sm:$0xf]
      %v379 = vld [vmem:[%s274 + $0xa4] sm:$0x1]
      %v380 = vld [vmem:[%s274 + $0xa8] sm:$0xf]
      %v381 = vld [vmem:[%s274 + $0xac] sm:$0xf]
      %v382 = vld [vmem:[%s274 + $0xb0] sm:$0x1]
      %v383 = vld [vmem:[%s274 + $0xb4] sm:$0xf]
      %v384 = vld [vmem:[%s274 + $0xb8] sm:$0xf]
      %v385 = vld [vmem:[%s274 + $0xbc] sm:$0x1]
      %v386 = vld [vmem:[%s274 + $0xc0] sm:$0xf]
      %v387 = vld [vmem:[%s274 + $0xc4] sm:$0xf]
      %v388 = vld [vmem:[%s274 + $0xc8] sm:$0x1]
      %v389 = vld [vmem:[%s274 + $0xcc] sm:$0xf]
      %v390 = vld [vmem:[%s274 + $0xd0] sm:$0xf]
      %v391 = vld [vmem:[%s274 + $0xd4] sm:$0x1]
      %v428 = vunpack.c.l.b16 %v338
      %v429 = vunpack.c.l.b16 %v339
      %v430 = vunpack.c.l.b16 %v341
      %v431 = vunpack.c.l.b16 %v342
      %v432 = vunpack.c.l.b16 %v344
      %v433 = vunpack.c.l.b16 %v345
      %v434 = vunpack.c.l.b16 %v347
      %v435 = vunpack.c.l.b16 %v348
      %v436 = vunpack.c.l.b16 %v350
      %v437 = vunpack.c.l.b16 %v351
      %v438 = vunpack.c.l.b16 %v353
      %v439 = vunpack.c.l.b16 %v354
      %v440 = vunpack.c.l.b16 %v356
      %v441 = vunpack.c.l.b16 %v357
      %v442 = vunpack.c.l.b16 %v359
      %v443 = vunpack.c.l.b16 %v360
      %v444 = vunpack.c.l.b16 %v362
      %v445 = vunpack.c.l.b16 %v363
      %v446 = vunpack.c.l.b16 %v365
      %v447 = vunpack.c.l.b16 %v366
      %v448 = vunpack.c.l.b16 %v368
      %v449 = vunpack.c.l.b16 %v369
      %v450 = vunpack.c.l.b16 %v371
      %v451 = vunpack.c.l.b16 %v372
      %v452 = vunpack.c.l.b16 %v374
      %v453 = vunpack.c.l.b16 %v375
      %v454 = vunpack.c.l.b16 %v377
      %v455 = vunpack.c.l.b16 %v378
      %v456 = vunpack.c.l.b16 %v380
      %v457 = vunpack.c.l.b16 %v381
      %v458 = vunpack.c.l.b16 %v383
      %v459 = vunpack.c.l.b16 %v384
      %v460 = vunpack.c.l.b16 %v386
      %v461 = vunpack.c.l.b16 %v387
      %v462 = vunpack.c.l.b16 %v389
      %v463 = vunpack.c.l.b16 %v390
      %v464 = vpack.c.b16 %v429, %v428
      %v465 = vpack.c.b16 %v431, %v430
      %v466 = vpack.c.b16 %v433, %v432
      %v467 = vpack.c.b16 %v435, %v434
      %v468 = vpack.c.b16 %v437, %v436
      %v469 = vpack.c.b16 %v439, %v438
      %v470 = vpack.c.b16 %v441, %v440
      %v471 = vpack.c.b16 %v443, %v442
      %v472 = vpack.c.b16 %v445, %v444
      %v473 = vpack.c.b16 %v447, %v446
      %v474 = vpack.c.b16 %v449, %v448
      %v475 = vpack.c.b16 %v451, %v450
      %v476 = vpack.c.b16 %v453, %v452
      %v477 = vpack.c.b16 %v455, %v454
      %v478 = vpack.c.b16 %v457, %v456
      %v479 = vpack.c.b16 %v459, %v458
      %v480 = vpack.c.b16 %v461, %v460
      %v481 = vpack.c.b16 %v463, %v462
      %v518 = vunpack.c.l.b16 %v340
      %v519 = vunpack.c.l.b16 %v343
      %v520 = vunpack.c.l.b16 %v346
      %v521 = vunpack.c.l.b16 %v349
      %v522 = vunpack.c.l.b16 %v352
      %v523 = vunpack.c.l.b16 %v355
      %v524 = vunpack.c.l.b16 %v358
      %v525 = vunpack.c.l.b16 %v361
      %v526 = vunpack.c.l.b16 %v364
      %v527 = vunpack.c.l.b16 %v367
      %v528 = vunpack.c.l.b16 %v370
      %v529 = vunpack.c.l.b16 %v373
      %v530 = vunpack.c.l.b16 %v376
      %v531 = vunpack.c.l.b16 %v379
      %v532 = vunpack.c.l.b16 %v382
      %v533 = vunpack.c.l.b16 %v385
      %v534 = vunpack.c.l.b16 %v388
      %v535 = vunpack.c.l.b16 %v391
      %v536 = vpack.c.b16 %v518, %v518
      %v537 = vpack.c.b16 %v519, %v519
      %v538 = vpack.c.b16 %v520, %v520
      %v539 = vpack.c.b16 %v521, %v521
      %v540 = vpack.c.b16 %v522, %v522
      %v541 = vpack.c.b16 %v523, %v523
      %v542 = vpack.c.b16 %v524, %v524
      %v543 = vpack.c.b16 %v525, %v525
      %v544 = vpack.c.b16 %v526, %v526
      %v545 = vpack.c.b16 %v527, %v527
      %v546 = vpack.c.b16 %v528, %v528
      %v547 = vpack.c.b16 %v529, %v529
      %v548 = vpack.c.b16 %v530, %v530
      %v549 = vpack.c.b16 %v531, %v531
      %v550 = vpack.c.b16 %v532, %v532
      %v551 = vpack.c.b16 %v533, %v533
      %v552 = vpack.c.b16 %v534, %v534
      %v553 = vpack.c.b16 %v535, %v535
      %vm554 = vsmask.f32 7424
      %v556 = vshrl.u32 %v464, 16
      %v558 = vshll.u32 %v464, 16
      %v560 = vrot.slane %v558, 1
      %v561 = vor.u32 %v556, %v560
      %v563 = vshll.u32 %v536, 16
      %v565 = vrot.slane %v563, 1
      %v566 = vsel %vm554, %v561, %v565
      %v568 = vshrl.u32 %v465, 16
      %v570 = vshll.u32 %v465, 16
      %v572 = vrot.slane %v570, 1
      %v573 = vor.u32 %v568, %v572
      %v575 = vshll.u32 %v537, 16
      %v577 = vrot.slane %v575, 1
      %v578 = vsel %vm554, %v573, %v577
      %v580 = vshrl.u32 %v466, 16
      %v582 = vshll.u32 %v466, 16
      %v584 = vrot.slane %v582, 1
      %v585 = vor.u32 %v580, %v584
      %v587 = vshll.u32 %v538, 16
      %v589 = vrot.slane %v587, 1
      %v590 = vsel %vm554, %v585, %v589
      %v592 = vshrl.u32 %v467, 16
      %v594 = vshll.u32 %v467, 16
      %v596 = vrot.slane %v594, 1
      %v597 = vor.u32 %v592, %v596
      %v599 = vshll.u32 %v539, 16
      %v601 = vrot.slane %v599, 1
      %v602 = vsel %vm554, %v597, %v601
      %v604 = vshrl.u32 %v468, 16
      %v606 = vshll.u32 %v468, 16
      %v608 = vrot.slane %v606, 1
      %v609 = vor.u32 %v604, %v608
      %v611 = vshll.u32 %v540, 16
      %v613 = vrot.slane %v611, 1
      %v614 = vsel %vm554, %v609, %v613
      %v616 = vshrl.u32 %v469, 16
      %v618 = vshll.u32 %v469, 16
      %v620 = vrot.slane %v618, 1
      %v621 = vor.u32 %v616, %v620
      %v623 = vshll.u32 %v541, 16
      %v625 = vrot.slane %v623, 1
      %v626 = vsel %vm554, %v621, %v625
      %v628 = vshrl.u32 %v470, 16
      %v630 = vshll.u32 %v470, 16
      %v632 = vrot.slane %v630, 1
      %v633 = vor.u32 %v628, %v632
      %v635 = vshll.u32 %v542, 16
      %v637 = vrot.slane %v635, 1
      %v638 = vsel %vm554, %v633, %v637
      %v640 = vshrl.u32 %v471, 16
      %v642 = vshll.u32 %v471, 16
      %v644 = vrot.slane %v642, 1
      %v645 = vor.u32 %v640, %v644
      %v647 = vshll.u32 %v543, 16
      %v649 = vrot.slane %v647, 1
      %v650 = vsel %vm554, %v645, %v649
      %v652 = vshrl.u32 %v472, 16
      %v654 = vshll.u32 %v472, 16
      %v656 = vrot.slane %v654, 1
      %v657 = vor.u32 %v652, %v656
      %v659 = vshll.u32 %v544, 16
      %v661 = vrot.slane %v659, 1
      %v662 = vsel %vm554, %v657, %v661
      %v664 = vshrl.u32 %v473, 16
      %v666 = vshll.u32 %v473, 16
      %v668 = vrot.slane %v666, 1
      %v669 = vor.u32 %v664, %v668
      %v671 = vshll.u32 %v545, 16
      %v673 = vrot.slane %v671, 1
      %v674 = vsel %vm554, %v669, %v673
      %v676 = vshrl.u32 %v474, 16
      %v678 = vshll.u32 %v474, 16
      %v680 = vrot.slane %v678, 1
      %v681 = vor.u32 %v676, %v680
      %v683 = vshll.u32 %v546, 16
      %v685 = vrot.slane %v683, 1
      %v686 = vsel %vm554, %v681, %v685
      %v688 = vshrl.u32 %v475, 16
      %v690 = vshll.u32 %v475, 16
      %v692 = vrot.slane %v690, 1
      %v693 = vor.u32 %v688, %v692
      %v695 = vshll.u32 %v547, 16
      %v697 = vrot.slane %v695, 1
      %v698 = vsel %vm554, %v693, %v697
      %v700 = vshrl.u32 %v476, 16
      %v702 = vshll.u32 %v476, 16
      %v704 = vrot.slane %v702, 1
      %v705 = vor.u32 %v700, %v704
      %v707 = vshll.u32 %v548, 16
      %v709 = vrot.slane %v707, 1
      %v710 = vsel %vm554, %v705, %v709
      %v712 = vshrl.u32 %v477, 16
      %v714 = vshll.u32 %v477, 16
      %v716 = vrot.slane %v714, 1
      %v717 = vor.u32 %v712, %v716
      %v719 = vshll.u32 %v549, 16
      %v721 = vrot.slane %v719, 1
      %v722 = vsel %vm554, %v717, %v721
      %v724 = vshrl.u32 %v478, 16
      %v726 = vshll.u32 %v478, 16
      %v728 = vrot.slane %v726, 1
      %v729 = vor.u32 %v724, %v728
      %v731 = vshll.u32 %v550, 16
      %v733 = vrot.slane %v731, 1
      %v734 = vsel %vm554, %v729, %v733
      %v736 = vshrl.u32 %v479, 16
      %v738 = vshll.u32 %v479, 16
      %v740 = vrot.slane %v738, 1
      %v741 = vor.u32 %v736, %v740
      %v743 = vshll.u32 %v551, 16
      %v745 = vrot.slane %v743, 1
      %v746 = vsel %vm554, %v741, %v745
      %v748 = vshrl.u32 %v480, 16
      %v750 = vshll.u32 %v480, 16
      %v752 = vrot.slane %v750, 1
      %v753 = vor.u32 %v748, %v752
      %v755 = vshll.u32 %v552, 16
      %v757 = vrot.slane %v755, 1
      %v758 = vsel %vm554, %v753, %v757
      %v760 = vshrl.u32 %v481, 16
      %v762 = vshll.u32 %v481, 16
      %v764 = vrot.slane %v762, 1
      %v765 = vor.u32 %v760, %v764
      %v767 = vshll.u32 %v553, 16
      %v769 = vrot.slane %v767, 1
      %v770 = vsel %vm554, %v765, %v769
      %vm789 = vcmask 1046528
      %v790 = vrot.slane %v464, 1
      %v791 = vrot.slane %v536, 1
      %v792 = vsel %vm789, %v790, %v791
      %v793 = vrot.slane %v465, 1
      %v794 = vrot.slane %v537, 1
      %v795 = vsel %vm789, %v793, %v794
      %v796 = vrot.slane %v466, 1
      %v797 = vrot.slane %v538, 1
      %v798 = vsel %vm789, %v796, %v797
      %v799 = vrot.slane %v467, 1
      %v800 = vrot.slane %v539, 1
      %v801 = vsel %vm789, %v799, %v800
      %v802 = vrot.slane %v468, 1
      %v803 = vrot.slane %v540, 1
      %v804 = vsel %vm789, %v802, %v803
      %v805 = vrot.slane %v469, 1
      %v806 = vrot.slane %v541, 1
      %v807 = vsel %vm789, %v805, %v806
      %v808 = vrot.slane %v470, 1
      %v809 = vrot.slane %v542, 1
      %v810 = vsel %vm789, %v808, %v809
      %v811 = vrot.slane %v471, 1
      %v812 = vrot.slane %v543, 1
      %v813 = vsel %vm789, %v811, %v812
      %v814 = vrot.slane %v472, 1
      %v815 = vrot.slane %v544, 1
      %v816 = vsel %vm789, %v814, %v815
      %v817 = vrot.slane %v473, 1
      %v818 = vrot.slane %v545, 1
      %v819 = vsel %vm789, %v817, %v818
      %v820 = vrot.slane %v474, 1
      %v821 = vrot.slane %v546, 1
      %v822 = vsel %vm789, %v820, %v821
      %v823 = vrot.slane %v475, 1
      %v824 = vrot.slane %v547, 1
      %v825 = vsel %vm789, %v823, %v824
      %v826 = vrot.slane %v476, 1
      %v827 = vrot.slane %v548, 1
      %v828 = vsel %vm789, %v826, %v827
      %v829 = vrot.slane %v477, 1
      %v830 = vrot.slane %v549, 1
      %v831 = vsel %vm789, %v829, %v830
      %v832 = vrot.slane %v478, 1
      %v833 = vrot.slane %v550, 1
      %v834 = vsel %vm789, %v832, %v833
      %v835 = vrot.slane %v479, 1
      %v836 = vrot.slane %v551, 1
      %v837 = vsel %vm789, %v835, %v836
      %v838 = vrot.slane %v480, 1
      %v839 = vrot.slane %v552, 1
      %v840 = vsel %vm789, %v838, %v839
      %v841 = vrot.slane %v481, 1
      %v842 = vrot.slane %v553, 1
      %v843 = vsel %vm789, %v841, %v842
      %v862 = vld [vmem:[%s282] sm:$0xf]
      %v863 = vld [vmem:[%s282 + $0x4] sm:$0xf]
      %v864 = vld [vmem:[%s282 + $0x8] sm:$0xf]
      %v865 = vld [vmem:[%s282 + $0xc] sm:$0xf]
      %v866 = vld [vmem:[%s282 + $0x10] sm:$0xf]
      %v867 = vld [vmem:[%s282 + $0x14] sm:$0xf]
      %v868 = vld [vmem:[%s282 + $0x18] sm:$0xf]
      %v869 = vld [vmem:[%s282 + $0x1c] sm:$0xf]
      %v870 = vld [vmem:[%s282 + $0x20] sm:$0xf]
      %v871 = vld [vmem:[%s282 + $0x24] sm:$0xf]
      %v872 = vld [vmem:[%s282 + $0x28] sm:$0xf]
      %v873 = vld [vmem:[%s282 + $0x2c] sm:$0xf]
      %v874 = vld [vmem:[%s282 + $0x30] sm:$0xf]
      %v875 = vld [vmem:[%s282 + $0x34] sm:$0xf]
      %v876 = vld [vmem:[%s282 + $0x38] sm:$0xf]
      %v877 = vld [vmem:[%s282 + $0x3c] sm:$0xf]
      %v878 = vld [vmem:[%s282 + $0x40] sm:$0xf]
      %v879 = vld [vmem:[%s282 + $0x44] sm:$0xf]
      %v880 = vld [vmem:[%s282 + $0x48] sm:$0xf]
      %v881 = vld [vmem:[%s282 + $0x4c] sm:$0xf]
      %v882 = vld [vmem:[%s282 + $0x50] sm:$0xf]
      %v883 = vld [vmem:[%s282 + $0x54] sm:$0xf]
      %v884 = vld [vmem:[%s282 + $0x58] sm:$0xf]
      %v885 = vld [vmem:[%s282 + $0x5c] sm:$0xf]
      %v886 = vld [vmem:[%s282 + $0x60] sm:$0xf]
      %v887 = vld [vmem:[%s282 + $0x64] sm:$0xf]
      %v888 = vld [vmem:[%s282 + $0x68] sm:$0xf]
      %v889 = vld [vmem:[%s282 + $0x6c] sm:$0xf]
      %v890 = vld [vmem:[%s282 + $0x70] sm:$0xf]
      %v891 = vld [vmem:[%s282 + $0x74] sm:$0xf]
      %v892 = vld [vmem:[%s282 + $0x78] sm:$0xf]
      %v893 = vld [vmem:[%s282 + $0x7c] sm:$0xf]
      %v894 = vld [vmem:[%s282 + $0x80] sm:$0xf]
      %v895 = vld [vmem:[%s282 + $0x84] sm:$0xf]
      %v896 = vld [vmem:[%s282 + $0x88] sm:$0xf]
      %v897 = vld [vmem:[%s282 + $0x8c] sm:$0xf]
      %v898 = vld [vmem:[%s282 + $0x90] sm:$0xf]
      %v899 = vld [vmem:[%s282 + $0x94] sm:$0xf]
      %v900 = vld [vmem:[%s282 + $0x98] sm:$0xf]
      %v901 = vld [vmem:[%s282 + $0x9c] sm:$0xf]
      %v902 = vld [vmem:[%s282 + $0xa0] sm:$0xf]
      %v903 = vld [vmem:[%s282 + $0xa4] sm:$0xf]
      %v904 = vld [vmem:[%s282 + $0xa8] sm:$0xf]
      %v905 = vld [vmem:[%s282 + $0xac] sm:$0xf]
      %v906 = vld [vmem:[%s282 + $0xb0] sm:$0xf]
      %v907 = vld [vmem:[%s282 + $0xb4] sm:$0xf]
      %v908 = vld [vmem:[%s282 + $0xb8] sm:$0xf]
      %v909 = vld [vmem:[%s282 + $0xbc] sm:$0xf]
      %s910 = scalar_lea.vmem %s282, 192
      %v911 = vld [vmem:[%s910] sm:$0xf]
      %v912 = vld [vmem:[%s910 + $0x4] sm:$0xf]
      %v913 = vld [vmem:[%s910 + $0x8] sm:$0xf]
      %v914 = vld [vmem:[%s910 + $0xc] sm:$0xf]
      %v915 = vld [vmem:[%s910 + $0x10] sm:$0xf]
      %v916 = vld [vmem:[%s910 + $0x14] sm:$0xf]
      %v917 = vld [vmem:[%s910 + $0x18] sm:$0xf]
      %v918 = vld [vmem:[%s910 + $0x1c] sm:$0xf]
      %v919 = vld [vmem:[%s910 + $0x20] sm:$0xf]
      %v920 = vld [vmem:[%s910 + $0x24] sm:$0xf]
      %v921 = vld [vmem:[%s910 + $0x28] sm:$0xf]
      %v922 = vld [vmem:[%s910 + $0x2c] sm:$0xf]
      %v923 = vld [vmem:[%s910 + $0x30] sm:$0xf]
      %v924 = vld [vmem:[%s910 + $0x34] sm:$0xf]
      %v925 = vld [vmem:[%s910 + $0x38] sm:$0xf]
      %v926 = vld [vmem:[%s910 + $0x3c] sm:$0xf]
      %v927 = vld [vmem:[%s910 + $0x40] sm:$0xf]
      %v928 = vld [vmem:[%s910 + $0x44] sm:$0xf]
      %v929 = vld [vmem:[%s910 + $0x48] sm:$0xf]
      %v930 = vld [vmem:[%s910 + $0x4c] sm:$0xf]
      %v931 = vld [vmem:[%s910 + $0x50] sm:$0xf]
      %v932 = vld [vmem:[%s910 + $0x54] sm:$0xf]
      %v933 = vld [vmem:[%s910 + $0x58] sm:$0xf]
      %v934 = vld [vmem:[%s910 + $0x5c] sm:$0xf]
      %v935 = vld [vmem:[%s910 + $0x60] sm:$0xf]
      %v936 = vld [vmem:[%s910 + $0x64] sm:$0xf]
      %v937 = vld [vmem:[%s910 + $0x68] sm:$0xf]
      %v938 = vld [vmem:[%s910 + $0x6c] sm:$0xf]
      %v939 = vld [vmem:[%s910 + $0x70] sm:$0xf]
      %v940 = vld [vmem:[%s910 + $0x74] sm:$0xf]
      %v941 = vld [vmem:[%s910 + $0x78] sm:$0xf]
      %v942 = vld [vmem:[%s910 + $0x7c] sm:$0xf]
      %v943 = vld [vmem:[%s910 + $0x80] sm:$0xf]
      %v944 = vld [vmem:[%s910 + $0x84] sm:$0xf]
      %v945 = vld [vmem:[%s910 + $0x88] sm:$0xf]
      %v946 = vld [vmem:[%s910 + $0x8c] sm:$0xf]
      %v947 = vld [vmem:[%s910 + $0x90] sm:$0xf]
      %v948 = vld [vmem:[%s910 + $0x94] sm:$0xf]
      %v949 = vld [vmem:[%s910 + $0x98] sm:$0xf]
      %v950 = vld [vmem:[%s910 + $0x9c] sm:$0xf]
      %v951 = vld [vmem:[%s910 + $0xa0] sm:$0xf]
      %v952 = vld [vmem:[%s910 + $0xa4] sm:$0xf]
      %v953 = vld [vmem:[%s910 + $0xa8] sm:$0xf]
      %v954 = vld [vmem:[%s910 + $0xac] sm:$0xf]
      %v955 = vld [vmem:[%s910 + $0xb0] sm:$0xf]
      %v956 = vld [vmem:[%s910 + $0xb4] sm:$0xf]
      %v957 = vld [vmem:[%s910 + $0xb8] sm:$0xf]
      %v958 = vld [vmem:[%s910 + $0xbc] sm:$0xf]
      %v1007 = vunpack.c.l.b16 %v911
      %v1008 = vunpack.c.l.b16 %v912
      %v1009 = vunpack.c.l.b16 %v913
      %v1010 = vunpack.c.l.b16 %v914
      %v1011 = vunpack.c.l.b16 %v915
      %v1012 = vunpack.c.l.b16 %v916
      %v1013 = vunpack.c.l.b16 %v917
      %v1014 = vunpack.c.l.b16 %v918
      %v1015 = vunpack.c.l.b16 %v919
      %v1016 = vunpack.c.l.b16 %v920
      %v1017 = vunpack.c.l.b16 %v921
      %v1018 = vunpack.c.l.b16 %v922
      %v1019 = vunpack.c.l.b16 %v923
      %v1020 = vunpack.c.l.b16 %v924
      %v1021 = vunpack.c.l.b16 %v925
      %v1022 = vunpack.c.l.b16 %v926
      %v1023 = vunpack.c.l.b16 %v927
      %v1024 = vunpack.c.l.b16 %v928
      %v1025 = vunpack.c.l.b16 %v929
      %v1026 = vunpack.c.l.b16 %v930
      %v1027 = vunpack.c.l.b16 %v931
      %v1028 = vunpack.c.l.b16 %v932
      %v1029 = vunpack.c.l.b16 %v933
      %v1030 = vunpack.c.l.b16 %v934
      %v1031 = vunpack.c.l.b16 %v935
      %v1032 = vunpack.c.l.b16 %v936
      %v1033 = vunpack.c.l.b16 %v937
      %v1034 = vunpack.c.l.b16 %v938
      %v1035 = vunpack.c.l.b16 %v939
      %v1036 = vunpack.c.l.b16 %v940
      %v1037 = vunpack.c.l.b16 %v941
      %v1038 = vunpack.c.l.b16 %v942
      %v1039 = vunpack.c.l.b16 %v943
      %v1040 = vunpack.c.l.b16 %v944
      %v1041 = vunpack.c.l.b16 %v945
      %v1042 = vunpack.c.l.b16 %v946
      %v1043 = vunpack.c.l.b16 %v947
      %v1044 = vunpack.c.l.b16 %v948
      %v1045 = vunpack.c.l.b16 %v949
      %v1046 = vunpack.c.l.b16 %v950
      %v1047 = vunpack.c.l.b16 %v951
      %v1048 = vunpack.c.l.b16 %v952
      %v1049 = vunpack.c.l.b16 %v953
      %v1050 = vunpack.c.l.b16 %v954
      %v1051 = vunpack.c.l.b16 %v955
      %v1052 = vunpack.c.l.b16 %v956
      %v1053 = vunpack.c.l.b16 %v957
      %v1054 = vunpack.c.l.b16 %v958
      %v1055 = vpack.c.b16 %v1008, %v1007
      %v1056 = vpack.c.b16 %v1010, %v1009
      %v1057 = vpack.c.b16 %v1012, %v1011
      %v1058 = vpack.c.b16 %v1014, %v1013
      %v1059 = vpack.c.b16 %v1016, %v1015
      %v1060 = vpack.c.b16 %v1018, %v1017
      %v1061 = vpack.c.b16 %v1020, %v1019
      %v1062 = vpack.c.b16 %v1022, %v1021
      %v1063 = vpack.c.b16 %v1024, %v1023
      %v1064 = vpack.c.b16 %v1026, %v1025
      %v1065 = vpack.c.b16 %v1028, %v1027
      %v1066 = vpack.c.b16 %v1030, %v1029
      %v1067 = vpack.c.b16 %v1032, %v1031
      %v1068 = vpack.c.b16 %v1034, %v1033
      %v1069 = vpack.c.b16 %v1036, %v1035
      %v1070 = vpack.c.b16 %v1038, %v1037
      %v1071 = vpack.c.b16 %v1040, %v1039
      %v1072 = vpack.c.b16 %v1042, %v1041
      %v1073 = vpack.c.b16 %v1044, %v1043
      %v1074 = vpack.c.b16 %v1046, %v1045
      %v1075 = vpack.c.b16 %v1048, %v1047
      %v1076 = vpack.c.b16 %v1050, %v1049
      %v1077 = vpack.c.b16 %v1052, %v1051
      %v1078 = vpack.c.b16 %v1054, %v1053
      %1103 = vmatpush.bf16.msra.mxu0 %v1062
      %1104 = vmatpush.bf16.msra.mxu0 %v1061
      %1105 = vmatpush.bf16.msra.mxu0 %v1060
      %1106 = vmatpush.bf16.msra.mxu0 %v1059
      %1107 = vmatpush.bf16.msra.mxu0 %v1058
      %1108 = vmatpush.bf16.msra.mxu0 %v1057
      %1109 = vmatpush.bf16.msra.mxu0 %v1056
      %1110 = vmatpush.bf16.msra.mxu0 %v1055
      %1111 = vmatmul.bf16.gmra.mxu0 %v465
      %v1112 = vpop.f32.mrf.mxu0
      %v1113 = vadd.f32 0.0, %v1112
      %v1114 = vpop.f32.mrf.mxu0
      %v1115 = vadd.f32 0.0, %v1114
      %1116 = vmatmul.bf16.gmra.mxu0 %v466
      %v1117 = vpop.f32.mrf.mxu0
      %v1118 = vadd.f32 0.0, %v1117
      %v1119 = vpop.f32.mrf.mxu0
      %v1120 = vadd.f32 0.0, %v1119
      %1121 = vmatmul.bf16.gmra.mxu0 %v467
      %v1122 = vpop.f32.mrf.mxu0
      %v1123 = vadd.f32 0.0, %v1122
      %v1124 = vpop.f32.mrf.mxu0
      %v1125 = vadd.f32 0.0, %v1124
      %1126 = vmatmul.bf16.gmra.mxu0 %v468
      %v1127 = vpop.f32.mrf.mxu0
      %v1128 = vadd.f32 0.0, %v1127
      %v1129 = vpop.f32.mrf.mxu0
      %v1130 = vadd.f32 0.0, %v1129
      %1131 = vmatmul.bf16.gmra.mxu0 %v469
      %v1132 = vpop.f32.mrf.mxu0
      %v1133 = vadd.f32 0.0, %v1132
      %v1134 = vpop.f32.mrf.mxu0
      %v1135 = vadd.f32 0.0, %v1134
      %1136 = vmatmul.bf16.gmra.mxu0 %v470
      %v1137 = vpop.f32.mrf.mxu0
      %v1138 = vadd.f32 0.0, %v1137
      %v1139 = vpop.f32.mrf.mxu0
      %v1140 = vadd.f32 0.0, %v1139
      %1141 = vmatmul.bf16.gmra.mxu0 %v471
      %v1142 = vpop.f32.mrf.mxu0
      %v1143 = vadd.f32 0.0, %v1142
      %v1144 = vpop.f32.mrf.mxu0
      %v1145 = vadd.f32 0.0, %v1144
      %1146 = vmatmul.bf16.gmra.mxu0 %v472
      %v1147 = vpop.f32.mrf.mxu0
      %v1148 = vadd.f32 0.0, %v1147
      %v1149 = vpop.f32.mrf.mxu0
      %v1150 = vadd.f32 0.0, %v1149
      %1151 = vmatmul.bf16.gmra.mxu0 %v473
      %v1152 = vpop.f32.mrf.mxu0
      %v1153 = vadd.f32 0.0, %v1152
      %v1154 = vpop.f32.mrf.mxu0
      %v1155 = vadd.f32 0.0, %v1154
      %1156 = vmatmul.bf16.gmra.mxu0 %v474
      %v1157 = vpop.f32.mrf.mxu0
      %v1158 = vadd.f32 0.0, %v1157
      %v1159 = vpop.f32.mrf.mxu0
      %v1160 = vadd.f32 0.0, %v1159
      %1161 = vmatmul.bf16.gmra.mxu0 %v475
      %v1162 = vpop.f32.mrf.mxu0
      %v1163 = vadd.f32 0.0, %v1162
      %v1164 = vpop.f32.mrf.mxu0
      %v1165 = vadd.f32 0.0, %v1164
      %1166 = vmatmul.bf16.gmra.mxu0 %v476
      %v1167 = vpop.f32.mrf.mxu0
      %v1168 = vadd.f32 0.0, %v1167
      %v1169 = vpop.f32.mrf.mxu0
      %v1170 = vadd.f32 0.0, %v1169
      %1171 = vmatmul.bf16.gmra.mxu0 %v477
      %v1172 = vpop.f32.mrf.mxu0
      %v1173 = vadd.f32 0.0, %v1172
      %v1174 = vpop.f32.mrf.mxu0
      %v1175 = vadd.f32 0.0, %v1174
      %1176 = vmatmul.bf16.gmra.mxu0 %v478
      %v1177 = vpop.f32.mrf.mxu0
      %v1178 = vadd.f32 0.0, %v1177
      %v1179 = vpop.f32.mrf.mxu0
      %v1180 = vadd.f32 0.0, %v1179
      %1181 = vmatmul.bf16.gmra.mxu0 %v479
      %v1182 = vpop.f32.mrf.mxu0
      %v1183 = vadd.f32 0.0, %v1182
      %v1184 = vpop.f32.mrf.mxu0
      %v1185 = vadd.f32 0.0, %v1184
      %1186 = vmatmul.bf16.gmra.mxu0 %v480
      %v1187 = vpop.f32.mrf.mxu0
      %v1188 = vadd.f32 0.0, %v1187
      %v1189 = vpop.f32.mrf.mxu0
      %v1190 = vadd.f32 0.0, %v1189
      %1191 = vdwg.mxu0
      %1192 = vmatpush.bf16.msra.mxu0 %v1070
      %1193 = vmatpush.bf16.msra.mxu0 %v1069
      %1194 = vmatpush.bf16.msra.mxu0 %v1068
      %1195 = vmatpush.bf16.msra.mxu0 %v1067
      %1196 = vmatpush.bf16.msra.mxu0 %v1066
      %1197 = vmatpush.bf16.msra.mxu0 %v1065
      %1198 = vmatpush.bf16.msra.mxu0 %v1064
      %1199 = vmatpush.bf16.msra.mxu0 %v1063
      %1200 = vmatmul.bf16.gmra.mxu0 %v578
      %v1201 = vpop.f32.mrf.mxu0
      %v1202 = vadd.f32 %v1113, %v1201
      %v1203 = vpop.f32.mrf.mxu0
      %v1204 = vadd.f32 %v1115, %v1203
      %1205 = vmatmul.bf16.gmra.mxu0 %v590
      %v1206 = vpop.f32.mrf.mxu0
      %v1207 = vadd.f32 %v1118, %v1206
      %v1208 = vpop.f32.mrf.mxu0
      %v1209 = vadd.f32 %v1120, %v1208
      %1210 = vmatmul.bf16.gmra.mxu0 %v602
      %v1211 = vpop.f32.mrf.mxu0
      %v1212 = vadd.f32 %v1123, %v1211
      %v1213 = vpop.f32.mrf.mxu0
      %v1214 = vadd.f32 %v1125, %v1213
      %1215 = vmatmul.bf16.gmra.mxu0 %v614
      %v1216 = vpop.f32.mrf.mxu0
      %v1217 = vadd.f32 %v1128, %v1216
      %v1218 = vpop.f32.mrf.mxu0
      %v1219 = vadd.f32 %v1130, %v1218
      %1220 = vmatmul.bf16.gmra.mxu0 %v626
      %v1221 = vpop.f32.mrf.mxu0
      %v1222 = vadd.f32 %v1133, %v1221
      %v1223 = vpop.f32.mrf.mxu0
      %v1224 = vadd.f32 %v1135, %v1223
      %1225 = vmatmul.bf16.gmra.mxu0 %v638
      %v1226 = vpop.f32.mrf.mxu0
      %v1227 = vadd.f32 %v1138, %v1226
      %v1228 = vpop.f32.mrf.mxu0
      %v1229 = vadd.f32 %v1140, %v1228
      %1230 = vmatmul.bf16.gmra.mxu0 %v650
      %v1231 = vpop.f32.mrf.mxu0
      %v1232 = vadd.f32 %v1143, %v1231
      %v1233 = vpop.f32.mrf.mxu0
      %v1234 = vadd.f32 %v1145, %v1233
      %1235 = vmatmul.bf16.gmra.mxu0 %v662
      %v1236 = vpop.f32.mrf.mxu0
      %v1237 = vadd.f32 %v1148, %v1236
      %v1238 = vpop.f32.mrf.mxu0
      %v1239 = vadd.f32 %v1150, %v1238
      %1240 = vmatmul.bf16.gmra.mxu0 %v674
      %v1241 = vpop.f32.mrf.mxu0
      %v1242 = vadd.f32 %v1153, %v1241
      %v1243 = vpop.f32.mrf.mxu0
      %v1244 = vadd.f32 %v1155, %v1243
      %1245 = vmatmul.bf16.gmra.mxu0 %v686
      %v1246 = vpop.f32.mrf.mxu0
      %v1247 = vadd.f32 %v1158, %v1246
      %v1248 = vpop.f32.mrf.mxu0
      %v1249 = vadd.f32 %v1160, %v1248
      %1250 = vmatmul.bf16.gmra.mxu0 %v698
      %v1251 = vpop.f32.mrf.mxu0
      %v1252 = vadd.f32 %v1163, %v1251
      %v1253 = vpop.f32.mrf.mxu0
      %v1254 = vadd.f32 %v1165, %v1253
      %1255 = vmatmul.bf16.gmra.mxu0 %v710
      %v1256 = vpop.f32.mrf.mxu0
      %v1257 = vadd.f32 %v1168, %v1256
      %v1258 = vpop.f32.mrf.mxu0
      %v1259 = vadd.f32 %v1170, %v1258
      %1260 = vmatmul.bf16.gmra.mxu0 %v722
      %v1261 = vpop.f32.mrf.mxu0
      %v1262 = vadd.f32 %v1173, %v1261
      %v1263 = vpop.f32.mrf.mxu0
      %v1264 = vadd.f32 %v1175, %v1263
      %1265 = vmatmul.bf16.gmra.mxu0 %v734
      %v1266 = vpop.f32.mrf.mxu0
      %v1267 = vadd.f32 %v1178, %v1266
      %v1268 = vpop.f32.mrf.mxu0
      %v1269 = vadd.f32 %v1180, %v1268
      %1270 = vmatmul.bf16.gmra.mxu0 %v746
      %v1271 = vpop.f32.mrf.mxu0
      %v1272 = vadd.f32 %v1183, %v1271
      %v1273 = vpop.f32.mrf.mxu0
      %v1274 = vadd.f32 %v1185, %v1273
      %1275 = vmatmul.bf16.gmra.mxu0 %v758
      %v1276 = vpop.f32.mrf.mxu0
      %v1277 = vadd.f32 %v1188, %v1276
      %v1278 = vpop.f32.mrf.mxu0
      %v1279 = vadd.f32 %v1190, %v1278
      %1280 = vdwg.mxu0
      %1281 = vmatpush.bf16.msra.mxu0 %v1078
      %1282 = vmatpush.bf16.msra.mxu0 %v1077
      %1283 = vmatpush.bf16.msra.mxu0 %v1076
      %1284 = vmatpush.bf16.msra.mxu0 %v1075
      %1285 = vmatpush.bf16.msra.mxu0 %v1074
      %1286 = vmatpush.bf16.msra.mxu0 %v1073
      %1287 = vmatpush.bf16.msra.mxu0 %v1072
      %1288 = vmatpush.bf16.msra.mxu0 %v1071
      %1289 = vmatmul.bf16.gmra.mxu0 %v795
      %v1290 = vpop.f32.mrf.mxu0
      %v1291 = vadd.f32 %v1202, %v1290
      %v1292 = vpop.f32.mrf.mxu0
      %v1293 = vadd.f32 %v1204, %v1292
      %1294 = vmatmul.bf16.gmra.mxu0 %v798
      %v1295 = vpop.f32.mrf.mxu0
      %v1296 = vadd.f32 %v1207, %v1295
      %v1297 = vpop.f32.mrf.mxu0
      %v1298 = vadd.f32 %v1209, %v1297
      %1299 = vmatmul.bf16.gmra.mxu0 %v801
      %v1300 = vpop.f32.mrf.mxu0
      %v1301 = vadd.f32 %v1212, %v1300
      %v1302 = vpop.f32.mrf.mxu0
      %v1303 = vadd.f32 %v1214, %v1302
      %1304 = vmatmul.bf16.gmra.mxu0 %v804
      %v1305 = vpop.f32.mrf.mxu0
      %v1306 = vadd.f32 %v1217, %v1305
      %v1307 = vpop.f32.mrf.mxu0
      %v1308 = vadd.f32 %v1219, %v1307
      %1309 = vmatmul.bf16.gmra.mxu0 %v807
      %v1310 = vpop.f32.mrf.mxu0
      %v1311 = vadd.f32 %v1222, %v1310
      %v1312 = vpop.f32.mrf.mxu0
      %v1313 = vadd.f32 %v1224, %v1312
      %1314 = vmatmul.bf16.gmra.mxu0 %v810
      %v1315 = vpop.f32.mrf.mxu0
      %v1316 = vadd.f32 %v1227, %v1315
      %v1317 = vpop.f32.mrf.mxu0
      %v1318 = vadd.f32 %v1229, %v1317
      %1319 = vmatmul.bf16.gmra.mxu0 %v813
      %v1320 = vpop.f32.mrf.mxu0
      %v1321 = vadd.f32 %v1232, %v1320
      %v1322 = vpop.f32.mrf.mxu0
      %v1323 = vadd.f32 %v1234, %v1322
      %1324 = vmatmul.bf16.gmra.mxu0 %v816
      %v1325 = vpop.f32.mrf.mxu0
      %v1326 = vadd.f32 %v1237, %v1325
      %v1327 = vpop.f32.mrf.mxu0
      %v1328 = vadd.f32 %v1239, %v1327
      %1329 = vmatmul.bf16.gmra.mxu0 %v819
      %v1330 = vpop.f32.mrf.mxu0
      %v1331 = vadd.f32 %v1242, %v1330
      %v1332 = vpop.f32.mrf.mxu0
      %v1333 = vadd.f32 %v1244, %v1332
      %1334 = vmatmul.bf16.gmra.mxu0 %v822
      %v1335 = vpop.f32.mrf.mxu0
      %v1336 = vadd.f32 %v1247, %v1335
      %v1337 = vpop.f32.mrf.mxu0
      %v1338 = vadd.f32 %v1249, %v1337
      %1339 = vmatmul.bf16.gmra.mxu0 %v825
      %v1340 = vpop.f32.mrf.mxu0
      %v1341 = vadd.f32 %v1252, %v1340
      %v1342 = vpop.f32.mrf.mxu0
      %v1343 = vadd.f32 %v1254, %v1342
      %1344 = vmatmul.bf16.gmra.mxu0 %v828
      %v1345 = vpop.f32.mrf.mxu0
      %v1346 = vadd.f32 %v1257, %v1345
      %v1347 = vpop.f32.mrf.mxu0
      %v1348 = vadd.f32 %v1259, %v1347
      %1349 = vmatmul.bf16.gmra.mxu0 %v831
      %v1350 = vpop.f32.mrf.mxu0
      %v1351 = vadd.f32 %v1262, %v1350
      %v1352 = vpop.f32.mrf.mxu0
      %v1353 = vadd.f32 %v1264, %v1352
      %1354 = vmatmul.bf16.gmra.mxu0 %v834
      %v1355 = vpop.f32.mrf.mxu0
      %v1356 = vadd.f32 %v1267, %v1355
      %v1357 = vpop.f32.mrf.mxu0
      %v1358 = vadd.f32 %v1269, %v1357
      %1359 = vmatmul.bf16.gmra.mxu0 %v837
      %v1360 = vpop.f32.mrf.mxu0
      %v1361 = vadd.f32 %v1272, %v1360
      %v1362 = vpop.f32.mrf.mxu0
      %v1363 = vadd.f32 %v1274, %v1362
      %1364 = vmatmul.bf16.gmra.mxu0 %v840
      %v1365 = vpop.f32.mrf.mxu0
      %v1366 = vadd.f32 %v1277, %v1365
      %v1367 = vpop.f32.mrf.mxu0
      %v1368 = vadd.f32 %v1279, %v1367
      %1369 = vdwg.mxu0
      %v1418 = vunpack.c.l.b16 %v862
      %v1419 = vunpack.c.l.b16 %v863
      %v1420 = vunpack.c.l.b16 %v864
      %v1421 = vunpack.c.l.b16 %v865
      %v1422 = vunpack.c.l.b16 %v866
      %v1423 = vunpack.c.l.b16 %v867
      %v1424 = vunpack.c.l.b16 %v868
      %v1425 = vunpack.c.l.b16 %v869
      %v1426 = vunpack.c.l.b16 %v870
      %v1427 = vunpack.c.l.b16 %v871
      %v1428 = vunpack.c.l.b16 %v872
      %v1429 = vunpack.c.l.b16 %v873
      %v1430 = vunpack.c.l.b16 %v874
      %v1431 = vunpack.c.l.b16 %v875
      %v1432 = vunpack.c.l.b16 %v876
      %v1433 = vunpack.c.l.b16 %v877
      %v1434 = vunpack.c.l.b16 %v878
      %v1435 = vunpack.c.l.b16 %v879
      %v1436 = vunpack.c.l.b16 %v880
      %v1437 = vunpack.c.l.b16 %v881
      %v1438 = vunpack.c.l.b16 %v882
      %v1439 = vunpack.c.l.b16 %v883
      %v1440 = vunpack.c.l.b16 %v884
      %v1441 = vunpack.c.l.b16 %v885
      %v1442 = vunpack.c.l.b16 %v886
      %v1443 = vunpack.c.l.b16 %v887
      %v1444 = vunpack.c.l.b16 %v888
      %v1445 = vunpack.c.l.b16 %v889
      %v1446 = vunpack.c.l.b16 %v890
      %v1447 = vunpack.c.l.b16 %v891
      %v1448 = vunpack.c.l.b16 %v892
      %v1449 = vunpack.c.l.b16 %v893
      %v1450 = vunpack.c.l.b16 %v894
      %v1451 = vunpack.c.l.b16 %v895
      %v1452 = vunpack.c.l.b16 %v896
      %v1453 = vunpack.c.l.b16 %v897
      %v1454 = vunpack.c.l.b16 %v898
      %v1455 = vunpack.c.l.b16 %v899
      %v1456 = vunpack.c.l.b16 %v900
      %v1457 = vunpack.c.l.b16 %v901
      %v1458 = vunpack.c.l.b16 %v902
      %v1459 = vunpack.c.l.b16 %v903
      %v1460 = vunpack.c.l.b16 %v904
      %v1461 = vunpack.c.l.b16 %v905
      %v1462 = vunpack.c.l.b16 %v906
      %v1463 = vunpack.c.l.b16 %v907
      %v1464 = vunpack.c.l.b16 %v908
      %v1465 = vunpack.c.l.b16 %v909
      %v1466 = vpack.c.b16 %v1419, %v1418
      %v1467 = vpack.c.b16 %v1421, %v1420
      %v1468 = vpack.c.b16 %v1423, %v1422
      %v1469 = vpack.c.b16 %v1425, %v1424
      %v1470 = vpack.c.b16 %v1427, %v1426
      %v1471 = vpack.c.b16 %v1429, %v1428
      %v1472 = vpack.c.b16 %v1431, %v1430
      %v1473 = vpack.c.b16 %v1433, %v1432
      %v1474 = vpack.c.b16 %v1435, %v1434
      %v1475 = vpack.c.b16 %v1437, %v1436
      %v1476 = vpack.c.b16 %v1439, %v1438
      %v1477 = vpack.c.b16 %v1441, %v1440
      %v1478 = vpack.c.b16 %v1443, %v1442
      %v1479 = vpack.c.b16 %v1445, %v1444
      %v1480 = vpack.c.b16 %v1447, %v1446
      %v1481 = vpack.c.b16 %v1449, %v1448
      %v1482 = vpack.c.b16 %v1451, %v1450
      %v1483 = vpack.c.b16 %v1453, %v1452
      %v1484 = vpack.c.b16 %v1455, %v1454
      %v1485 = vpack.c.b16 %v1457, %v1456
      %v1486 = vpack.c.b16 %v1459, %v1458
      %v1487 = vpack.c.b16 %v1461, %v1460
      %v1488 = vpack.c.b16 %v1463, %v1462
      %v1489 = vpack.c.b16 %v1465, %v1464
      %1514 = vmatpush.bf16.msra.mxu0 %v1473
      %1515 = vmatpush.bf16.msra.mxu0 %v1472
      %1516 = vmatpush.bf16.msra.mxu0 %v1471
      %1517 = vmatpush.bf16.msra.mxu0 %v1470
      %1518 = vmatpush.bf16.msra.mxu0 %v1469
      %1519 = vmatpush.bf16.msra.mxu0 %v1468
      %1520 = vmatpush.bf16.msra.mxu0 %v1467
      %1521 = vmatpush.bf16.msra.mxu0 %v1466
      %1522 = vmatmul.bf16.gmra.mxu0 %v464
      %v1523 = vpop.f32.mrf.mxu0
      %v1524 = vadd.f32 %v1291, %v1523
      %v1525 = vpop.f32.mrf.mxu0
      %v1526 = vadd.f32 %v1293, %v1525
      %1527 = vmatmul.bf16.gmra.mxu0 %v465
      %v1528 = vpop.f32.mrf.mxu0
      %v1529 = vadd.f32 %v1296, %v1528
      %v1530 = vpop.f32.mrf.mxu0
      %v1531 = vadd.f32 %v1298, %v1530
      %1532 = vmatmul.bf16.gmra.mxu0 %v466
      %v1533 = vpop.f32.mrf.mxu0
      %v1534 = vadd.f32 %v1301, %v1533
      %v1535 = vpop.f32.mrf.mxu0
      %v1536 = vadd.f32 %v1303, %v1535
      %1537 = vmatmul.bf16.gmra.mxu0 %v467
      %v1538 = vpop.f32.mrf.mxu0
      %v1539 = vadd.f32 %v1306, %v1538
      %v1540 = vpop.f32.mrf.mxu0
      %v1541 = vadd.f32 %v1308, %v1540
      %1542 = vmatmul.bf16.gmra.mxu0 %v468
      %v1543 = vpop.f32.mrf.mxu0
      %v1544 = vadd.f32 %v1311, %v1543
      %v1545 = vpop.f32.mrf.mxu0
      %v1546 = vadd.f32 %v1313, %v1545
      %1547 = vmatmul.bf16.gmra.mxu0 %v469
      %v1548 = vpop.f32.mrf.mxu0
      %v1549 = vadd.f32 %v1316, %v1548
      %v1550 = vpop.f32.mrf.mxu0
      %v1551 = vadd.f32 %v1318, %v1550
      %1552 = vmatmul.bf16.gmra.mxu0 %v470
      %v1553 = vpop.f32.mrf.mxu0
      %v1554 = vadd.f32 %v1321, %v1553
      %v1555 = vpop.f32.mrf.mxu0
      %v1556 = vadd.f32 %v1323, %v1555
      %1557 = vmatmul.bf16.gmra.mxu0 %v471
      %v1558 = vpop.f32.mrf.mxu0
      %v1559 = vadd.f32 %v1326, %v1558
      %v1560 = vpop.f32.mrf.mxu0
      %v1561 = vadd.f32 %v1328, %v1560
      %1562 = vmatmul.bf16.gmra.mxu0 %v472
      %v1563 = vpop.f32.mrf.mxu0
      %v1564 = vadd.f32 %v1331, %v1563
      %v1565 = vpop.f32.mrf.mxu0
      %v1566 = vadd.f32 %v1333, %v1565
      %1567 = vmatmul.bf16.gmra.mxu0 %v473
      %v1568 = vpop.f32.mrf.mxu0
      %v1569 = vadd.f32 %v1336, %v1568
      %v1570 = vpop.f32.mrf.mxu0
      %v1571 = vadd.f32 %v1338, %v1570
      %1572 = vmatmul.bf16.gmra.mxu0 %v474
      %v1573 = vpop.f32.mrf.mxu0
      %v1574 = vadd.f32 %v1341, %v1573
      %v1575 = vpop.f32.mrf.mxu0
      %v1576 = vadd.f32 %v1343, %v1575
      %1577 = vmatmul.bf16.gmra.mxu0 %v475
      %v1578 = vpop.f32.mrf.mxu0
      %v1579 = vadd.f32 %v1346, %v1578
      %v1580 = vpop.f32.mrf.mxu0
      %v1581 = vadd.f32 %v1348, %v1580
      %1582 = vmatmul.bf16.gmra.mxu0 %v476
      %v1583 = vpop.f32.mrf.mxu0
      %v1584 = vadd.f32 %v1351, %v1583
      %v1585 = vpop.f32.mrf.mxu0
      %v1586 = vadd.f32 %v1353, %v1585
      %1587 = vmatmul.bf16.gmra.mxu0 %v477
      %v1588 = vpop.f32.mrf.mxu0
      %v1589 = vadd.f32 %v1356, %v1588
      %v1590 = vpop.f32.mrf.mxu0
      %v1591 = vadd.f32 %v1358, %v1590
      %1592 = vmatmul.bf16.gmra.mxu0 %v478
      %v1593 = vpop.f32.mrf.mxu0
      %v1594 = vadd.f32 %v1361, %v1593
      %v1595 = vpop.f32.mrf.mxu0
      %v1596 = vadd.f32 %v1363, %v1595
      %1597 = vmatmul.bf16.gmra.mxu0 %v479
      %v1598 = vpop.f32.mrf.mxu0
      %v1599 = vadd.f32 %v1366, %v1598
      %v1600 = vpop.f32.mrf.mxu0
      %v1601 = vadd.f32 %v1368, %v1600
      %1602 = vdwg.mxu0
      %1603 = vmatpush.bf16.msra.mxu0 %v1481
      %1604 = vmatpush.bf16.msra.mxu0 %v1480
      %1605 = vmatpush.bf16.msra.mxu0 %v1479
      %1606 = vmatpush.bf16.msra.mxu0 %v1478
      %1607 = vmatpush.bf16.msra.mxu0 %v1477
      %1608 = vmatpush.bf16.msra.mxu0 %v1476
      %1609 = vmatpush.bf16.msra.mxu0 %v1475
      %1610 = vmatpush.bf16.msra.mxu0 %v1474
      %1611 = vmatmul.bf16.gmra.mxu0 %v566
      %v1612 = vpop.f32.mrf.mxu0
      %v1613 = vadd.f32 %v1524, %v1612
      %v1614 = vpop.f32.mrf.mxu0
      %v1615 = vadd.f32 %v1526, %v1614
      %1616 = vmatmul.bf16.gmra.mxu0 %v578
      %v1617 = vpop.f32.mrf.mxu0
      %v1618 = vadd.f32 %v1529, %v1617
      %v1619 = vpop.f32.mrf.mxu0
      %v1620 = vadd.f32 %v1531, %v1619
      %1621 = vmatmul.bf16.gmra.mxu0 %v590
      %v1622 = vpop.f32.mrf.mxu0
      %v1623 = vadd.f32 %v1534, %v1622
      %v1624 = vpop.f32.mrf.mxu0
      %v1625 = vadd.f32 %v1536, %v1624
      %1626 = vmatmul.bf16.gmra.mxu0 %v602
      %v1627 = vpop.f32.mrf.mxu0
      %v1628 = vadd.f32 %v1539, %v1627
      %v1629 = vpop.f32.mrf.mxu0
      %v1630 = vadd.f32 %v1541, %v1629
      %1631 = vmatmul.bf16.gmra.mxu0 %v614
      %v1632 = vpop.f32.mrf.mxu0
      %v1633 = vadd.f32 %v1544, %v1632
      %v1634 = vpop.f32.mrf.mxu0
      %v1635 = vadd.f32 %v1546, %v1634
      %1636 = vmatmul.bf16.gmra.mxu0 %v626
      %v1637 = vpop.f32.mrf.mxu0
      %v1638 = vadd.f32 %v1549, %v1637
      %v1639 = vpop.f32.mrf.mxu0
      %v1640 = vadd.f32 %v1551, %v1639
      %1641 = vmatmul.bf16.gmra.mxu0 %v638
      %v1642 = vpop.f32.mrf.mxu0
      %v1643 = vadd.f32 %v1554, %v1642
      %v1644 = vpop.f32.mrf.mxu0
      %v1645 = vadd.f32 %v1556, %v1644
      %1646 = vmatmul.bf16.gmra.mxu0 %v650
      %v1647 = vpop.f32.mrf.mxu0
      %v1648 = vadd.f32 %v1559, %v1647
      %v1649 = vpop.f32.mrf.mxu0
      %v1650 = vadd.f32 %v1561, %v1649
      %1651 = vmatmul.bf16.gmra.mxu0 %v662
      %v1652 = vpop.f32.mrf.mxu0
      %v1653 = vadd.f32 %v1564, %v1652
      %v1654 = vpop.f32.mrf.mxu0
      %v1655 = vadd.f32 %v1566, %v1654
      %1656 = vmatmul.bf16.gmra.mxu0 %v674
      %v1657 = vpop.f32.mrf.mxu0
      %v1658 = vadd.f32 %v1569, %v1657
      %v1659 = vpop.f32.mrf.mxu0
      %v1660 = vadd.f32 %v1571, %v1659
      %1661 = vmatmul.bf16.gmra.mxu0 %v686
      %v1662 = vpop.f32.mrf.mxu0
      %v1663 = vadd.f32 %v1574, %v1662
      %v1664 = vpop.f32.mrf.mxu0
      %v1665 = vadd.f32 %v1576, %v1664
      %1666 = vmatmul.bf16.gmra.mxu0 %v698
      %v1667 = vpop.f32.mrf.mxu0
      %v1668 = vadd.f32 %v1579, %v1667
      %v1669 = vpop.f32.mrf.mxu0
      %v1670 = vadd.f32 %v1581, %v1669
      %1671 = vmatmul.bf16.gmra.mxu0 %v710
      %v1672 = vpop.f32.mrf.mxu0
      %v1673 = vadd.f32 %v1584, %v1672
      %v1674 = vpop.f32.mrf.mxu0
      %v1675 = vadd.f32 %v1586, %v1674
      %1676 = vmatmul.bf16.gmra.mxu0 %v722
      %v1677 = vpop.f32.mrf.mxu0
      %v1678 = vadd.f32 %v1589, %v1677
      %v1679 = vpop.f32.mrf.mxu0
      %v1680 = vadd.f32 %v1591, %v1679
      %1681 = vmatmul.bf16.gmra.mxu0 %v734
      %v1682 = vpop.f32.mrf.mxu0
      %v1683 = vadd.f32 %v1594, %v1682
      %v1684 = vpop.f32.mrf.mxu0
      %v1685 = vadd.f32 %v1596, %v1684
      %1686 = vmatmul.bf16.gmra.mxu0 %v746
      %v1687 = vpop.f32.mrf.mxu0
      %v1688 = vadd.f32 %v1599, %v1687
      %v1689 = vpop.f32.mrf.mxu0
      %v1690 = vadd.f32 %v1601, %v1689
      %1691 = vdwg.mxu0
      %1692 = vmatpush.bf16.msra.mxu0 %v1489
      %1693 = vmatpush.bf16.msra.mxu0 %v1488
      %1694 = vmatpush.bf16.msra.mxu0 %v1487
      %1695 = vmatpush.bf16.msra.mxu0 %v1486
      %1696 = vmatpush.bf16.msra.mxu0 %v1485
      %1697 = vmatpush.bf16.msra.mxu0 %v1484
      %1698 = vmatpush.bf16.msra.mxu0 %v1483
      %1699 = vmatpush.bf16.msra.mxu0 %v1482
      %1700 = vmatmul.bf16.gmra.mxu0 %v792
      %v1701 = vpop.f32.mrf.mxu0
      %v1702 = vadd.f32 %v1613, %v1701
      %v1703 = vpop.f32.mrf.mxu0
      %v1704 = vadd.f32 %v1615, %v1703
      %1705 = vmatmul.bf16.gmra.mxu0 %v795
      %v1706 = vpop.f32.mrf.mxu0
      %v1707 = vadd.f32 %v1618, %v1706
      %v1708 = vpop.f32.mrf.mxu0
      %v1709 = vadd.f32 %v1620, %v1708
      %1710 = vmatmul.bf16.gmra.mxu0 %v798
      %v1711 = vpop.f32.mrf.mxu0
      %v1712 = vadd.f32 %v1623, %v1711
      %v1713 = vpop.f32.mrf.mxu0
      %v1714 = vadd.f32 %v1625, %v1713
      %1715 = vmatmul.bf16.gmra.mxu0 %v801
      %v1716 = vpop.f32.mrf.mxu0
      %v1717 = vadd.f32 %v1628, %v1716
      %v1718 = vpop.f32.mrf.mxu0
      %v1719 = vadd.f32 %v1630, %v1718
      %1720 = vmatmul.bf16.gmra.mxu0 %v804
      %v1721 = vpop.f32.mrf.mxu0
      %v1722 = vadd.f32 %v1633, %v1721
      %v1723 = vpop.f32.mrf.mxu0
      %v1724 = vadd.f32 %v1635, %v1723
      %1725 = vmatmul.bf16.gmra.mxu0 %v807
      %v1726 = vpop.f32.mrf.mxu0
      %v1727 = vadd.f32 %v1638, %v1726
      %v1728 = vpop.f32.mrf.mxu0
      %v1729 = vadd.f32 %v1640, %v1728
      %1730 = vmatmul.bf16.gmra.mxu0 %v810
      %v1731 = vpop.f32.mrf.mxu0
      %v1732 = vadd.f32 %v1643, %v1731
      %v1733 = vpop.f32.mrf.mxu0
      %v1734 = vadd.f32 %v1645, %v1733
      %1735 = vmatmul.bf16.gmra.mxu0 %v813
      %v1736 = vpop.f32.mrf.mxu0
      %v1737 = vadd.f32 %v1648, %v1736
      %v1738 = vpop.f32.mrf.mxu0
      %v1739 = vadd.f32 %v1650, %v1738
      %1740 = vmatmul.bf16.gmra.mxu0 %v816
      %v1741 = vpop.f32.mrf.mxu0
      %v1742 = vadd.f32 %v1653, %v1741
      %v1743 = vpop.f32.mrf.mxu0
      %v1744 = vadd.f32 %v1655, %v1743
      %1745 = vmatmul.bf16.gmra.mxu0 %v819
      %v1746 = vpop.f32.mrf.mxu0
      %v1747 = vadd.f32 %v1658, %v1746
      %v1748 = vpop.f32.mrf.mxu0
      %v1749 = vadd.f32 %v1660, %v1748
      %1750 = vmatmul.bf16.gmra.mxu0 %v822
      %v1751 = vpop.f32.mrf.mxu0
      %v1752 = vadd.f32 %v1663, %v1751
      %v1753 = vpop.f32.mrf.mxu0
      %v1754 = vadd.f32 %v1665, %v1753
      %1755 = vmatmul.bf16.gmra.mxu0 %v825
      %v1756 = vpop.f32.mrf.mxu0
      %v1757 = vadd.f32 %v1668, %v1756
      %v1758 = vpop.f32.mrf.mxu0
      %v1759 = vadd.f32 %v1670, %v1758
      %1760 = vmatmul.bf16.gmra.mxu0 %v828
      %v1761 = vpop.f32.mrf.mxu0
      %v1762 = vadd.f32 %v1673, %v1761
      %v1763 = vpop.f32.mrf.mxu0
      %v1764 = vadd.f32 %v1675, %v1763
      %1765 = vmatmul.bf16.gmra.mxu0 %v831
      %v1766 = vpop.f32.mrf.mxu0
      %v1767 = vadd.f32 %v1678, %v1766
      %v1768 = vpop.f32.mrf.mxu0
      %v1769 = vadd.f32 %v1680, %v1768
      %1770 = vmatmul.bf16.gmra.mxu0 %v834
      %v1771 = vpop.f32.mrf.mxu0
      %v1772 = vadd.f32 %v1683, %v1771
      %v1773 = vpop.f32.mrf.mxu0
      %v1774 = vadd.f32 %v1685, %v1773
      %1775 = vmatmul.bf16.gmra.mxu0 %v837
      %v1776 = vpop.f32.mrf.mxu0
      %v1777 = vadd.f32 %v1688, %v1776
      %v1778 = vpop.f32.mrf.mxu0
      %v1779 = vadd.f32 %v1690, %v1778
      %1780 = vdwg.mxu0
      %s1781 = scalar_lea.vmem %s282, 384
      %v1782 = vld [vmem:[%s1781] sm:$0xf]
      %v1783 = vld [vmem:[%s1781 + $0x4] sm:$0xf]
      %v1784 = vld [vmem:[%s1781 + $0x8] sm:$0xf]
      %v1785 = vld [vmem:[%s1781 + $0xc] sm:$0xf]
      %v1786 = vld [vmem:[%s1781 + $0x10] sm:$0xf]
      %v1787 = vld [vmem:[%s1781 + $0x14] sm:$0xf]
      %v1788 = vld [vmem:[%s1781 + $0x18] sm:$0xf]
      %v1789 = vld [vmem:[%s1781 + $0x1c] sm:$0xf]
      %v1790 = vld [vmem:[%s1781 + $0x20] sm:$0xf]
      %v1791 = vld [vmem:[%s1781 + $0x24] sm:$0xf]
      %v1792 = vld [vmem:[%s1781 + $0x28] sm:$0xf]
      %v1793 = vld [vmem:[%s1781 + $0x2c] sm:$0xf]
      %v1794 = vld [vmem:[%s1781 + $0x30] sm:$0xf]
      %v1795 = vld [vmem:[%s1781 + $0x34] sm:$0xf]
      %v1796 = vld [vmem:[%s1781 + $0x38] sm:$0xf]
      %v1797 = vld [vmem:[%s1781 + $0x3c] sm:$0xf]
      %v1798 = vld [vmem:[%s1781 + $0x40] sm:$0xf]
      %v1799 = vld [vmem:[%s1781 + $0x44] sm:$0xf]
      %v1800 = vld [vmem:[%s1781 + $0x48] sm:$0xf]
      %v1801 = vld [vmem:[%s1781 + $0x4c] sm:$0xf]
      %v1802 = vld [vmem:[%s1781 + $0x50] sm:$0xf]
      %v1803 = vld [vmem:[%s1781 + $0x54] sm:$0xf]
      %v1804 = vld [vmem:[%s1781 + $0x58] sm:$0xf]
      %v1805 = vld [vmem:[%s1781 + $0x5c] sm:$0xf]
      %v1806 = vld [vmem:[%s1781 + $0x60] sm:$0xf]
      %v1807 = vld [vmem:[%s1781 + $0x64] sm:$0xf]
      %v1808 = vld [vmem:[%s1781 + $0x68] sm:$0xf]
      %v1809 = vld [vmem:[%s1781 + $0x6c] sm:$0xf]
      %v1810 = vld [vmem:[%s1781 + $0x70] sm:$0xf]
      %v1811 = vld [vmem:[%s1781 + $0x74] sm:$0xf]
      %v1812 = vld [vmem:[%s1781 + $0x78] sm:$0xf]
      %v1813 = vld [vmem:[%s1781 + $0x7c] sm:$0xf]
      %v1814 = vld [vmem:[%s1781 + $0x80] sm:$0xf]
      %v1815 = vld [vmem:[%s1781 + $0x84] sm:$0xf]
      %v1816 = vld [vmem:[%s1781 + $0x88] sm:$0xf]
      %v1817 = vld [vmem:[%s1781 + $0x8c] sm:$0xf]
      %v1818 = vld [vmem:[%s1781 + $0x90] sm:$0xf]
      %v1819 = vld [vmem:[%s1781 + $0x94] sm:$0xf]
      %v1820 = vld [vmem:[%s1781 + $0x98] sm:$0xf]
      %v1821 = vld [vmem:[%s1781 + $0x9c] sm:$0xf]
      %v1822 = vld [vmem:[%s1781 + $0xa0] sm:$0xf]
      %v1823 = vld [vmem:[%s1781 + $0xa4] sm:$0xf]
      %v1824 = vld [vmem:[%s1781 + $0xa8] sm:$0xf]
      %v1825 = vld [vmem:[%s1781 + $0xac] sm:$0xf]
      %v1826 = vld [vmem:[%s1781 + $0xb0] sm:$0xf]
      %v1827 = vld [vmem:[%s1781 + $0xb4] sm:$0xf]
      %v1828 = vld [vmem:[%s1781 + $0xb8] sm:$0xf]
      %v1829 = vld [vmem:[%s1781 + $0xbc] sm:$0xf]
      %v1878 = vunpack.c.l.b16 %v1782
      %v1879 = vunpack.c.l.b16 %v1783
      %v1880 = vunpack.c.l.b16 %v1784
      %v1881 = vunpack.c.l.b16 %v1785
      %v1882 = vunpack.c.l.b16 %v1786
      %v1883 = vunpack.c.l.b16 %v1787
      %v1884 = vunpack.c.l.b16 %v1788
      %v1885 = vunpack.c.l.b16 %v1789
      %v1886 = vunpack.c.l.b16 %v1790
      %v1887 = vunpack.c.l.b16 %v1791
      %v1888 = vunpack.c.l.b16 %v1792
      %v1889 = vunpack.c.l.b16 %v1793
      %v1890 = vunpack.c.l.b16 %v1794
      %v1891 = vunpack.c.l.b16 %v1795
      %v1892 = vunpack.c.l.b16 %v1796
      %v1893 = vunpack.c.l.b16 %v1797
      %v1894 = vunpack.c.l.b16 %v1798
      %v1895 = vunpack.c.l.b16 %v1799
      %v1896 = vunpack.c.l.b16 %v1800
      %v1897 = vunpack.c.l.b16 %v1801
      %v1898 = vunpack.c.l.b16 %v1802
      %v1899 = vunpack.c.l.b16 %v1803
      %v1900 = vunpack.c.l.b16 %v1804
      %v1901 = vunpack.c.l.b16 %v1805
      %v1902 = vunpack.c.l.b16 %v1806
      %v1903 = vunpack.c.l.b16 %v1807
      %v1904 = vunpack.c.l.b16 %v1808
      %v1905 = vunpack.c.l.b16 %v1809
      %v1906 = vunpack.c.l.b16 %v1810
      %v1907 = vunpack.c.l.b16 %v1811
      %v1908 = vunpack.c.l.b16 %v1812
      %v1909 = vunpack.c.l.b16 %v1813
      %v1910 = vunpack.c.l.b16 %v1814
      %v1911 = vunpack.c.l.b16 %v1815
      %v1912 = vunpack.c.l.b16 %v1816
      %v1913 = vunpack.c.l.b16 %v1817
      %v1914 = vunpack.c.l.b16 %v1818
      %v1915 = vunpack.c.l.b16 %v1819
      %v1916 = vunpack.c.l.b16 %v1820
      %v1917 = vunpack.c.l.b16 %v1821
      %v1918 = vunpack.c.l.b16 %v1822
      %v1919 = vunpack.c.l.b16 %v1823
      %v1920 = vunpack.c.l.b16 %v1824
      %v1921 = vunpack.c.l.b16 %v1825
      %v1922 = vunpack.c.l.b16 %v1826
      %v1923 = vunpack.c.l.b16 %v1827
      %v1924 = vunpack.c.l.b16 %v1828
      %v1925 = vunpack.c.l.b16 %v1829
      %v1926 = vpack.c.b16 %v1879, %v1878
      %v1927 = vpack.c.b16 %v1881, %v1880
      %v1928 = vpack.c.b16 %v1883, %v1882
      %v1929 = vpack.c.b16 %v1885, %v1884
      %v1930 = vpack.c.b16 %v1887, %v1886
      %v1931 = vpack.c.b16 %v1889, %v1888
      %v1932 = vpack.c.b16 %v1891, %v1890
      %v1933 = vpack.c.b16 %v1893, %v1892
      %v1934 = vpack.c.b16 %v1895, %v1894
      %v1935 = vpack.c.b16 %v1897, %v1896
      %v1936 = vpack.c.b16 %v1899, %v1898
      %v1937 = vpack.c.b16 %v1901, %v1900
      %v1938 = vpack.c.b16 %v1903, %v1902
      %v1939 = vpack.c.b16 %v1905, %v1904
      %v1940 = vpack.c.b16 %v1907, %v1906
      %v1941 = vpack.c.b16 %v1909, %v1908
      %v1942 = vpack.c.b16 %v1911, %v1910
      %v1943 = vpack.c.b16 %v1913, %v1912
      %v1944 = vpack.c.b16 %v1915, %v1914
      %v1945 = vpack.c.b16 %v1917, %v1916
      %v1946 = vpack.c.b16 %v1919, %v1918
      %v1947 = vpack.c.b16 %v1921, %v1920
      %v1948 = vpack.c.b16 %v1923, %v1922
      %v1949 = vpack.c.b16 %v1925, %v1924
      %1974 = vmatpush.bf16.msra.mxu0 %v1933
      %1975 = vmatpush.bf16.msra.mxu0 %v1932
      %1976 = vmatpush.bf16.msra.mxu0 %v1931
      %1977 = vmatpush.bf16.msra.mxu0 %v1930
      %1978 = vmatpush.bf16.msra.mxu0 %v1929
      %1979 = vmatpush.bf16.msra.mxu0 %v1928
      %1980 = vmatpush.bf16.msra.mxu0 %v1927
      %1981 = vmatpush.bf16.msra.mxu0 %v1926
      %1982 = vmatmul.bf16.gmra.mxu0 %v466
      %v1983 = vpop.f32.mrf.mxu0
      %v1984 = vadd.f32 0.0, %v1983
      %v1985 = vpop.f32.mrf.mxu0
      %v1986 = vadd.f32 0.0, %v1985
      %1987 = vmatmul.bf16.gmra.mxu0 %v467
      %v1988 = vpop.f32.mrf.mxu0
      %v1989 = vadd.f32 0.0, %v1988
      %v1990 = vpop.f32.mrf.mxu0
      %v1991 = vadd.f32 0.0, %v1990
      %1992 = vmatmul.bf16.gmra.mxu0 %v468
      %v1993 = vpop.f32.mrf.mxu0
      %v1994 = vadd.f32 0.0, %v1993
      %v1995 = vpop.f32.mrf.mxu0
      %v1996 = vadd.f32 0.0, %v1995
      %1997 = vmatmul.bf16.gmra.mxu0 %v469
      %v1998 = vpop.f32.mrf.mxu0
      %v1999 = vadd.f32 0.0, %v1998
      %v2000 = vpop.f32.mrf.mxu0
      %v2001 = vadd.f32 0.0, %v2000
      %2002 = vmatmul.bf16.gmra.mxu0 %v470
      %v2003 = vpop.f32.mrf.mxu0
      %v2004 = vadd.f32 0.0, %v2003
      %v2005 = vpop.f32.mrf.mxu0
      %v2006 = vadd.f32 0.0, %v2005
      %2007 = vmatmul.bf16.gmra.mxu0 %v471
      %v2008 = vpop.f32.mrf.mxu0
      %v2009 = vadd.f32 0.0, %v2008
      %v2010 = vpop.f32.mrf.mxu0
      %v2011 = vadd.f32 0.0, %v2010
      %2012 = vmatmul.bf16.gmra.mxu0 %v472
      %v2013 = vpop.f32.mrf.mxu0
      %v2014 = vadd.f32 0.0, %v2013
      %v2015 = vpop.f32.mrf.mxu0
      %v2016 = vadd.f32 0.0, %v2015
      %2017 = vmatmul.bf16.gmra.mxu0 %v473
      %v2018 = vpop.f32.mrf.mxu0
      %v2019 = vadd.f32 0.0, %v2018
      %v2020 = vpop.f32.mrf.mxu0
      %v2021 = vadd.f32 0.0, %v2020
      %2022 = vmatmul.bf16.gmra.mxu0 %v474
      %v2023 = vpop.f32.mrf.mxu0
      %v2024 = vadd.f32 0.0, %v2023
      %v2025 = vpop.f32.mrf.mxu0
      %v2026 = vadd.f32 0.0, %v2025
      %2027 = vmatmul.bf16.gmra.mxu0 %v475
      %v2028 = vpop.f32.mrf.mxu0
      %v2029 = vadd.f32 0.0, %v2028
      %v2030 = vpop.f32.mrf.mxu0
      %v2031 = vadd.f32 0.0, %v2030
      %2032 = vmatmul.bf16.gmra.mxu0 %v476
      %v2033 = vpop.f32.mrf.mxu0
      %v2034 = vadd.f32 0.0, %v2033
      %v2035 = vpop.f32.mrf.mxu0
      %v2036 = vadd.f32 0.0, %v2035
      %2037 = vmatmul.bf16.gmra.mxu0 %v477
      %v2038 = vpop.f32.mrf.mxu0
      %v2039 = vadd.f32 0.0, %v2038
      %v2040 = vpop.f32.mrf.mxu0
      %v2041 = vadd.f32 0.0, %v2040
      %2042 = vmatmul.bf16.gmra.mxu0 %v478
      %v2043 = vpop.f32.mrf.mxu0
      %v2044 = vadd.f32 0.0, %v2043
      %v2045 = vpop.f32.mrf.mxu0
      %v2046 = vadd.f32 0.0, %v2045
      %2047 = vmatmul.bf16.gmra.mxu0 %v479
      %v2048 = vpop.f32.mrf.mxu0
      %v2049 = vadd.f32 0.0, %v2048
      %v2050 = vpop.f32.mrf.mxu0
      %v2051 = vadd.f32 0.0, %v2050
      %2052 = vmatmul.bf16.gmra.mxu0 %v480
      %v2053 = vpop.f32.mrf.mxu0
      %v2054 = vadd.f32 0.0, %v2053
      %v2055 = vpop.f32.mrf.mxu0
      %v2056 = vadd.f32 0.0, %v2055
      %2057 = vmatmul.bf16.gmra.mxu0 %v481
      %v2058 = vpop.f32.mrf.mxu0
      %v2059 = vadd.f32 0.0, %v2058
      %v2060 = vpop.f32.mrf.mxu0
      %v2061 = vadd.f32 0.0, %v2060
      %2062 = vdwg.mxu0
      %2063 = vmatpush.bf16.msra.mxu0 %v1941
      %2064 = vmatpush.bf16.msra.mxu0 %v1940
      %2065 = vmatpush.bf16.msra.mxu0 %v1939
      %2066 = vmatpush.bf16.msra.mxu0 %v1938
      %2067 = vmatpush.bf16.msra.mxu0 %v1937
      %2068 = vmatpush.bf16.msra.mxu0 %v1936
      %2069 = vmatpush.bf16.msra.mxu0 %v1935
      %2070 = vmatpush.bf16.msra.mxu0 %v1934
      %2071 = vmatmul.bf16.gmra.mxu0 %v590
      %v2072 = vpop.f32.mrf.mxu0
      %v2073 = vadd.f32 %v1984, %v2072
      %v2074 = vpop.f32.mrf.mxu0
      %v2075 = vadd.f32 %v1986, %v2074
      %2076 = vmatmul.bf16.gmra.mxu0 %v602
      %v2077 = vpop.f32.mrf.mxu0
      %v2078 = vadd.f32 %v1989, %v2077
      %v2079 = vpop.f32.mrf.mxu0
      %v2080 = vadd.f32 %v1991, %v2079
      %2081 = vmatmul.bf16.gmra.mxu0 %v614
      %v2082 = vpop.f32.mrf.mxu0
      %v2083 = vadd.f32 %v1994, %v2082
      %v2084 = vpop.f32.mrf.mxu0
      %v2085 = vadd.f32 %v1996, %v2084
      %2086 = vmatmul.bf16.gmra.mxu0 %v626
      %v2087 = vpop.f32.mrf.mxu0
      %v2088 = vadd.f32 %v1999, %v2087
      %v2089 = vpop.f32.mrf.mxu0
      %v2090 = vadd.f32 %v2001, %v2089
      %2091 = vmatmul.bf16.gmra.mxu0 %v638
      %v2092 = vpop.f32.mrf.mxu0
      %v2093 = vadd.f32 %v2004, %v2092
      %v2094 = vpop.f32.mrf.mxu0
      %v2095 = vadd.f32 %v2006, %v2094
      %2096 = vmatmul.bf16.gmra.mxu0 %v650
      %v2097 = vpop.f32.mrf.mxu0
      %v2098 = vadd.f32 %v2009, %v2097
      %v2099 = vpop.f32.mrf.mxu0
      %v2100 = vadd.f32 %v2011, %v2099
      %2101 = vmatmul.bf16.gmra.mxu0 %v662
      %v2102 = vpop.f32.mrf.mxu0
      %v2103 = vadd.f32 %v2014, %v2102
      %v2104 = vpop.f32.mrf.mxu0
      %v2105 = vadd.f32 %v2016, %v2104
      %2106 = vmatmul.bf16.gmra.mxu0 %v674
      %v2107 = vpop.f32.mrf.mxu0
      %v2108 = vadd.f32 %v2019, %v2107
      %v2109 = vpop.f32.mrf.mxu0
      %v2110 = vadd.f32 %v2021, %v2109
      %2111 = vmatmul.bf16.gmra.mxu0 %v686
      %v2112 = vpop.f32.mrf.mxu0
      %v2113 = vadd.f32 %v2024, %v2112
      %v2114 = vpop.f32.mrf.mxu0
      %v2115 = vadd.f32 %v2026, %v2114
      %2116 = vmatmul.bf16.gmra.mxu0 %v698
      %v2117 = vpop.f32.mrf.mxu0
      %v2118 = vadd.f32 %v2029, %v2117
      %v2119 = vpop.f32.mrf.mxu0
      %v2120 = vadd.f32 %v2031, %v2119
      %2121 = vmatmul.bf16.gmra.mxu0 %v710
      %v2122 = vpop.f32.mrf.mxu0
      %v2123 = vadd.f32 %v2034, %v2122
      %v2124 = vpop.f32.mrf.mxu0
      %v2125 = vadd.f32 %v2036, %v2124
      %2126 = vmatmul.bf16.gmra.mxu0 %v722
      %v2127 = vpop.f32.mrf.mxu0
      %v2128 = vadd.f32 %v2039, %v2127
      %v2129 = vpop.f32.mrf.mxu0
      %v2130 = vadd.f32 %v2041, %v2129
      %2131 = vmatmul.bf16.gmra.mxu0 %v734
      %v2132 = vpop.f32.mrf.mxu0
      %v2133 = vadd.f32 %v2044, %v2132
      %v2134 = vpop.f32.mrf.mxu0
      %v2135 = vadd.f32 %v2046, %v2134
      %2136 = vmatmul.bf16.gmra.mxu0 %v746
      %v2137 = vpop.f32.mrf.mxu0
      %v2138 = vadd.f32 %v2049, %v2137
      %v2139 = vpop.f32.mrf.mxu0
      %v2140 = vadd.f32 %v2051, %v2139
      %2141 = vmatmul.bf16.gmra.mxu0 %v758
      %v2142 = vpop.f32.mrf.mxu0
      %v2143 = vadd.f32 %v2054, %v2142
      %v2144 = vpop.f32.mrf.mxu0
      %v2145 = vadd.f32 %v2056, %v2144
      %2146 = vmatmul.bf16.gmra.mxu0 %v770
      %v2147 = vpop.f32.mrf.mxu0
      %v2148 = vadd.f32 %v2059, %v2147
      %v2149 = vpop.f32.mrf.mxu0
      %v2150 = vadd.f32 %v2061, %v2149
      %2151 = vdwg.mxu0
      %2152 = vmatpush.bf16.msra.mxu0 %v1949
      %2153 = vmatpush.bf16.msra.mxu0 %v1948
      %2154 = vmatpush.bf16.msra.mxu0 %v1947
      %2155 = vmatpush.bf16.msra.mxu0 %v1946
      %2156 = vmatpush.bf16.msra.mxu0 %v1945
      %2157 = vmatpush.bf16.msra.mxu0 %v1944
      %2158 = vmatpush.bf16.msra.mxu0 %v1943
      %2159 = vmatpush.bf16.msra.mxu0 %v1942
      %2160 = vmatmul.bf16.gmra.mxu0 %v798
      %v2161 = vpop.f32.mrf.mxu0
      %v2162 = vadd.f32 %v2073, %v2161
      %v2163 = vpop.f32.mrf.mxu0
      %v2164 = vadd.f32 %v2075, %v2163
      %2165 = vmatmul.bf16.gmra.mxu0 %v801
      %v2166 = vpop.f32.mrf.mxu0
      %v2167 = vadd.f32 %v2078, %v2166
      %v2168 = vpop.f32.mrf.mxu0
      %v2169 = vadd.f32 %v2080, %v2168
      %2170 = vmatmul.bf16.gmra.mxu0 %v804
      %v2171 = vpop.f32.mrf.mxu0
      %v2172 = vadd.f32 %v2083, %v2171
      %v2173 = vpop.f32.mrf.mxu0
      %v2174 = vadd.f32 %v2085, %v2173
      %2175 = vmatmul.bf16.gmra.mxu0 %v807
      %v2176 = vpop.f32.mrf.mxu0
      %v2177 = vadd.f32 %v2088, %v2176
      %v2178 = vpop.f32.mrf.mxu0
      %v2179 = vadd.f32 %v2090, %v2178
      %2180 = vmatmul.bf16.gmra.mxu0 %v810
      %v2181 = vpop.f32.mrf.mxu0
      %v2182 = vadd.f32 %v2093, %v2181
      %v2183 = vpop.f32.mrf.mxu0
      %v2184 = vadd.f32 %v2095, %v2183
      %2185 = vmatmul.bf16.gmra.mxu0 %v813
      %v2186 = vpop.f32.mrf.mxu0
      %v2187 = vadd.f32 %v2098, %v2186
      %v2188 = vpop.f32.mrf.mxu0
      %v2189 = vadd.f32 %v2100, %v2188
      %2190 = vmatmul.bf16.gmra.mxu0 %v816
      %v2191 = vpop.f32.mrf.mxu0
      %v2192 = vadd.f32 %v2103, %v2191
      %v2193 = vpop.f32.mrf.mxu0
      %v2194 = vadd.f32 %v2105, %v2193
      %2195 = vmatmul.bf16.gmra.mxu0 %v819
      %v2196 = vpop.f32.mrf.mxu0
      %v2197 = vadd.f32 %v2108, %v2196
      %v2198 = vpop.f32.mrf.mxu0
      %v2199 = vadd.f32 %v2110, %v2198
      %2200 = vmatmul.bf16.gmra.mxu0 %v822
      %v2201 = vpop.f32.mrf.mxu0
      %v2202 = vadd.f32 %v2113, %v2201
      %v2203 = vpop.f32.mrf.mxu0
      %v2204 = vadd.f32 %v2115, %v2203
      %2205 = vmatmul.bf16.gmra.mxu0 %v825
      %v2206 = vpop.f32.mrf.mxu0
      %v2207 = vadd.f32 %v2118, %v2206
      %v2208 = vpop.f32.mrf.mxu0
      %v2209 = vadd.f32 %v2120, %v2208
      %2210 = vmatmul.bf16.gmra.mxu0 %v828
      %v2211 = vpop.f32.mrf.mxu0
      %v2212 = vadd.f32 %v2123, %v2211
      %v2213 = vpop.f32.mrf.mxu0
      %v2214 = vadd.f32 %v2125, %v2213
      %2215 = vmatmul.bf16.gmra.mxu0 %v831
      %v2216 = vpop.f32.mrf.mxu0
      %v2217 = vadd.f32 %v2128, %v2216
      %v2218 = vpop.f32.mrf.mxu0
      %v2219 = vadd.f32 %v2130, %v2218
      %2220 = vmatmul.bf16.gmra.mxu0 %v834
      %v2221 = vpop.f32.mrf.mxu0
      %v2222 = vadd.f32 %v2133, %v2221
      %v2223 = vpop.f32.mrf.mxu0
      %v2224 = vadd.f32 %v2135, %v2223
      %2225 = vmatmul.bf16.gmra.mxu0 %v837
      %v2226 = vpop.f32.mrf.mxu0
      %v2227 = vadd.f32 %v2138, %v2226
      %v2228 = vpop.f32.mrf.mxu0
      %v2229 = vadd.f32 %v2140, %v2228
      %2230 = vmatmul.bf16.gmra.mxu0 %v840
      %v2231 = vpop.f32.mrf.mxu0
      %v2232 = vadd.f32 %v2143, %v2231
      %v2233 = vpop.f32.mrf.mxu0
      %v2234 = vadd.f32 %v2145, %v2233
      %2235 = vmatmul.bf16.gmra.mxu0 %v843
      %v2236 = vpop.f32.mrf.mxu0
      %v2237 = vadd.f32 %v2148, %v2236
      %v2238 = vpop.f32.mrf.mxu0
      %v2239 = vadd.f32 %v2150, %v2238
      %2240 = vdwg.mxu0
      %v2241 = vadd.f32 %v1702, %v2162
      %v2242 = vadd.f32 %v1704, %v2164
      %v2243 = vadd.f32 %v1707, %v2167
      %v2244 = vadd.f32 %v1709, %v2169
      %v2245 = vadd.f32 %v1712, %v2172
      %v2246 = vadd.f32 %v1714, %v2174
      %v2247 = vadd.f32 %v1717, %v2177
      %v2248 = vadd.f32 %v1719, %v2179
      %v2249 = vadd.f32 %v1722, %v2182
      %v2250 = vadd.f32 %v1724, %v2184
      %v2251 = vadd.f32 %v1727, %v2187
      %v2252 = vadd.f32 %v1729, %v2189
      %v2253 = vadd.f32 %v1732, %v2192
      %v2254 = vadd.f32 %v1734, %v2194
      %v2255 = vadd.f32 %v1737, %v2197
      %v2256 = vadd.f32 %v1739, %v2199
      %v2257 = vadd.f32 %v1742, %v2202
      %v2258 = vadd.f32 %v1744, %v2204
      %v2259 = vadd.f32 %v1747, %v2207
      %v2260 = vadd.f32 %v1749, %v2209
      %v2261 = vadd.f32 %v1752, %v2212
      %v2262 = vadd.f32 %v1754, %v2214
      %v2263 = vadd.f32 %v1757, %v2217
      %v2264 = vadd.f32 %v1759, %v2219
      %v2265 = vadd.f32 %v1762, %v2222
      %v2266 = vadd.f32 %v1764, %v2224
      %v2267 = vadd.f32 %v1767, %v2227
      %v2268 = vadd.f32 %v1769, %v2229
      %v2269 = vadd.f32 %v1772, %v2232
      %v2270 = vadd.f32 %v1774, %v2234
      %v2271 = vadd.f32 %v1777, %v2237
      %v2272 = vadd.f32 %v1779, %v2239
      %v2273 = vld [vmem:[#allocation2] sm:$0xff]
      %v2274 = vld [vmem:[#allocation2 + $0x8] sm:$0xff]
      %v2275 = vld [vmem:[#allocation2 + $0x10] sm:$0xff]
      %v2276 = vld [vmem:[#allocation2 + $0x18] sm:$0xff]
      %v2277 = vld [vmem:[#allocation2 + $0x20] sm:$0xff]
      %v2278 = vld [vmem:[#allocation2 + $0x28] sm:$0xff]
      %v2279 = vld [vmem:[#allocation2 + $0x30] sm:$0xff]
      %v2280 = vld [vmem:[#allocation2 + $0x38] sm:$0xff]
      %v2281 = vld [vmem:[#allocation2 + $0x40] sm:$0xff]
      %v2282 = vld [vmem:[#allocation2 + $0x48] sm:$0xff]
      %v2283 = vld [vmem:[#allocation2 + $0x50] sm:$0xff]
      %v2284 = vld [vmem:[#allocation2 + $0x58] sm:$0xff]
      %v2285 = vld [vmem:[#allocation2 + $0x60] sm:$0xff]
      %v2286 = vld [vmem:[#allocation2 + $0x68] sm:$0xff]
      %v2287 = vld [vmem:[#allocation2 + $0x70] sm:$0xff]
      %v2288 = vld [vmem:[#allocation2 + $0x78] sm:$0xff]
      %v2289 = vld [vmem:[#allocation2 + $0x80] sm:$0xff]
      %v2290 = vld [vmem:[#allocation2 + $0x88] sm:$0xff]
      %v2291 = vld [vmem:[#allocation2 + $0x90] sm:$0xff]
      %v2292 = vld [vmem:[#allocation2 + $0x98] sm:$0xff]
      %v2293 = vld [vmem:[#allocation2 + $0xa0] sm:$0xff]
      %v2294 = vld [vmem:[#allocation2 + $0xa8] sm:$0xff]
      %v2295 = vld [vmem:[#allocation2 + $0xb0] sm:$0xff]
      %v2296 = vld [vmem:[#allocation2 + $0xb8] sm:$0xff]
      %v2297 = vld [vmem:[#allocation2 + $0xc0] sm:$0xff]
      %v2298 = vld [vmem:[#allocation2 + $0xc8] sm:$0xff]
      %v2299 = vld [vmem:[#allocation2 + $0xd0] sm:$0xff]
      %v2300 = vld [vmem:[#allocation2 + $0xd8] sm:$0xff]
      %v2301 = vld [vmem:[#allocation2 + $0xe0] sm:$0xff]
      %v2302 = vld [vmem:[#allocation2 + $0xe8] sm:$0xff]
      %v2303 = vld [vmem:[#allocation2 + $0xf0] sm:$0xff]
      %v2304 = vld [vmem:[#allocation2 + $0xf8] sm:$0xff]
      %v2305 = vadd.f32 %v2273, %v2241
      %v2306 = vadd.f32 %v2274, %v2242
      %v2307 = vadd.f32 %v2275, %v2243
      %v2308 = vadd.f32 %v2276, %v2244
      %v2309 = vadd.f32 %v2277, %v2245
      %v2310 = vadd.f32 %v2278, %v2246
      %v2311 = vadd.f32 %v2279, %v2247
      %v2312 = vadd.f32 %v2280, %v2248
      %v2313 = vadd.f32 %v2281, %v2249
      %v2314 = vadd.f32 %v2282, %v2250
      %v2315 = vadd.f32 %v2283, %v2251
      %v2316 = vadd.f32 %v2284, %v2252
      %v2317 = vadd.f32 %v2285, %v2253
      %v2318 = vadd.f32 %v2286, %v2254
      %v2319 = vadd.f32 %v2287, %v2255
      %v2320 = vadd.f32 %v2288, %v2256
      %v2321 = vadd.f32 %v2289, %v2257
      %v2322 = vadd.f32 %v2290, %v2258
      %v2323 = vadd.f32 %v2291, %v2259
      %v2324 = vadd.f32 %v2292, %v2260
      %v2325 = vadd.f32 %v2293, %v2261
      %v2326 = vadd.f32 %v2294, %v2262
      %v2327 = vadd.f32 %v2295, %v2263
      %v2328 = vadd.f32 %v2296, %v2264
      %v2329 = vadd.f32 %v2297, %v2265
      %v2330 = vadd.f32 %v2298, %v2266
      %v2331 = vadd.f32 %v2299, %v2267
      %v2332 = vadd.f32 %v2300, %v2268
      %v2333 = vadd.f32 %v2301, %v2269
      %v2334 = vadd.f32 %v2302, %v2270
      %v2335 = vadd.f32 %v2303, %v2271
      %v2336 = vadd.f32 %v2304, %v2272
      %p2337 = scmp.lt.s32.totalorder %s23, 0
      // Predicated region
      $region37: #{_lambda_.5} parent=31 // pred_check
        %p2338 = pneg %p2337
      $region38: #{_lambda_.5} parent=31 // pred_check_branch
        %2340 = sbr.rel (%p2338) target = $region40
      $region39: #{_lambda_.5} parent=31 // pred_region
        %2341 = vst [vmem:[#allocation2] sm:$0xff] %v2305
        %2342 = vst [vmem:[#allocation2 + $0x8] sm:$0xff] %v2306
        %2343 = vst [vmem:[#allocation2 + $0x10] sm:$0xff] %v2307
        %2344 = vst [vmem:[#allocation2 + $0x18] sm:$0xff] %v2308
        %2345 = vst [vmem:[#allocation2 + $0x20] sm:$0xff] %v2309
        %2346 = vst [vmem:[#allocation2 + $0x28] sm:$0xff] %v2310
        %2347 = vst [vmem:[#allocation2 + $0x30] sm:$0xff] %v2311
        %2348 = vst [vmem:[#allocation2 + $0x38] sm:$0xff] %v2312
        %2349 = vst [vmem:[#allocation2 + $0x40] sm:$0xff] %v2313
        %2350 = vst [vmem:[#allocation2 + $0x48] sm:$0xff] %v2314
        %2351 = vst [vmem:[#allocation2 + $0x50] sm:$0xff] %v2315
        %2352 = vst [vmem:[#allocation2 + $0x58] sm:$0xff] %v2316
        %2353 = vst [vmem:[#allocation2 + $0x60] sm:$0xff] %v2317
        %2354 = vst [vmem:[#allocation2 + $0x68] sm:$0xff] %v2318
        %2355 = vst [vmem:[#allocation2 + $0x70] sm:$0xff] %v2319
        %2356 = vst [vmem:[#allocation2 + $0x78] sm:$0xff] %v2320
        %2357 = vst [vmem:[#allocation2 + $0x80] sm:$0xff] %v2321
        %2358 = vst [vmem:[#allocation2 + $0x88] sm:$0xff] %v2322
        %2359 = vst [vmem:[#allocation2 + $0x90] sm:$0xff] %v2323
        %2360 = vst [vmem:[#allocation2 + $0x98] sm:$0xff] %v2324
        %2361 = vst [vmem:[#allocation2 + $0xa0] sm:$0xff] %v2325
        %2362 = vst [vmem:[#allocation2 + $0xa8] sm:$0xff] %v2326
        %2363 = vst [vmem:[#allocation2 + $0xb0] sm:$0xff] %v2327
        %2364 = vst [vmem:[#allocation2 + $0xb8] sm:$0xff] %v2328
        %2365 = vst [vmem:[#allocation2 + $0xc0] sm:$0xff] %v2329
        %2366 = vst [vmem:[#allocation2 + $0xc8] sm:$0xff] %v2330
        %2367 = vst [vmem:[#allocation2 + $0xd0] sm:$0xff] %v2331
        %2368 = vst [vmem:[#allocation2 + $0xd8] sm:$0xff] %v2332
        %2369 = vst [vmem:[#allocation2 + $0xe0] sm:$0xff] %v2333
        %2370 = vst [vmem:[#allocation2 + $0xe8] sm:$0xff] %v2334
        %2371 = vst [vmem:[#allocation2 + $0xf0] sm:$0xff] %v2335
        %2372 = vst [vmem:[#allocation2 + $0xf8] sm:$0xff] %v2336
      $region40: #{_lambda_.5} parent=31 // pred_fallthru
        _
      // Predicated region
      $region41: #{_lambda_.5} parent=31 // pred_check
        %p2373 = pneg %p302
      $region42: #{_lambda_.5} parent=31 // pred_check_branch
        %2375 = sbr.rel (%p2373) target = $region44
      $region43: #{_lambda_.5} parent=31 // pred_region
        %v2376 = vld [vmem:[%s286] sm:$0x1]
        %v2378 = vperm.slane %v2376, 0
        %v2380 = vadd.f32 %v2305, %v2378
        %v2381 = vadd.f32 %v2306, %v2378
        %v2382 = vadd.f32 %v2307, %v2378
        %v2383 = vadd.f32 %v2308, %v2378
        %v2384 = vadd.f32 %v2309, %v2378
        %v2385 = vadd.f32 %v2310, %v2378
        %v2386 = vadd.f32 %v2311, %v2378
        %v2387 = vadd.f32 %v2312, %v2378
        %v2388 = vadd.f32 %v2313, %v2378
        %v2389 = vadd.f32 %v2314, %v2378
        %v2390 = vadd.f32 %v2315, %v2378
        %v2391 = vadd.f32 %v2316, %v2378
        %v2392 = vadd.f32 %v2317, %v2378
        %v2393 = vadd.f32 %v2318, %v2378
        %v2394 = vadd.f32 %v2319, %v2378
        %v2395 = vadd.f32 %v2320, %v2378
        %v2396 = vadd.f32 %v2321, %v2378
        %v2397 = vadd.f32 %v2322, %v2378
        %v2398 = vadd.f32 %v2323, %v2378
        %v2399 = vadd.f32 %v2324, %v2378
        %v2400 = vadd.f32 %v2325, %v2378
        %v2401 = vadd.f32 %v2326, %v2378
        %v2402 = vadd.f32 %v2327, %v2378
        %v2403 = vadd.f32 %v2328, %v2378
        %v2404 = vadd.f32 %v2329, %v2378
        %v2405 = vadd.f32 %v2330, %v2378
        %v2406 = vadd.f32 %v2331, %v2378
        %v2407 = vadd.f32 %v2332, %v2378
        %v2408 = vadd.f32 %v2333, %v2378
        %v2409 = vadd.f32 %v2334, %v2378
        %v2410 = vadd.f32 %v2335, %v2378
        %v2411 = vadd.f32 %v2336, %v2378
        %v2412 = vadd.f32 %v2380, %v2381
        %v2413 = vadd.f32 %v2412, %v2382
        %v2414 = vadd.f32 %v2413, %v2383
        %v2415 = vadd.f32 %v2414, %v2384
        %v2416 = vadd.f32 %v2415, %v2385
        %v2417 = vadd.f32 %v2416, %v2386
        %v2418 = vadd.f32 %v2417, %v2387
        %v2419 = vadd.f32 %v2418, %v2388
        %v2420 = vadd.f32 %v2419, %v2389
        %v2421 = vadd.f32 %v2420, %v2390
        %v2422 = vadd.f32 %v2421, %v2391
        %v2423 = vadd.f32 %v2422, %v2392
        %v2424 = vadd.f32 %v2423, %v2393
        %v2425 = vadd.f32 %v2424, %v2394
        %v2426 = vadd.f32 %v2425, %v2395
        %v2427 = vadd.f32 %v2426, %v2396
        %v2428 = vadd.f32 %v2427, %v2397
        %v2429 = vadd.f32 %v2428, %v2398
        %v2430 = vadd.f32 %v2429, %v2399
        %v2431 = vadd.f32 %v2430, %v2400
        %v2432 = vadd.f32 %v2431, %v2401
        %v2433 = vadd.f32 %v2432, %v2402
        %v2434 = vadd.f32 %v2433, %v2403
        %v2435 = vadd.f32 %v2434, %v2404
        %v2436 = vadd.f32 %v2435, %v2405
        %v2437 = vadd.f32 %v2436, %v2406
        %v2438 = vadd.f32 %v2437, %v2407
        %v2439 = vadd.f32 %v2438, %v2408
        %v2440 = vadd.f32 %v2439, %v2409
        %v2441 = vadd.f32 %v2440, %v2410
        %v2442 = vadd.f32 %v2441, %v2411
        %v2443 = vrot.slane %v2442, 4
        %v2444 = vadd.f32 %v2442, %v2443
        %v2445 = vrot.slane %v2444, 2
        %v2446 = vadd.f32 %v2444, %v2445
        %v2447 = vrot.slane %v2446, 1
        %v2448 = vadd.f32 %v2446, %v2447
        %v2449 = vmul.f32 %v2380, %v2380
        %v2450 = vmul.f32 %v2381, %v2381
        %v2451 = vmul.f32 %v2382, %v2382
        %v2452 = vmul.f32 %v2383, %v2383
        %v2453 = vmul.f32 %v2384, %v2384
        %v2454 = vmul.f32 %v2385, %v2385
        %v2455 = vmul.f32 %v2386, %v2386
        %v2456 = vmul.f32 %v2387, %v2387
        %v2457 = vmul.f32 %v2388, %v2388
        %v2458 = vmul.f32 %v2389, %v2389
        %v2459 = vmul.f32 %v2390, %v2390
        %v2460 = vmul.f32 %v2391, %v2391
        %v2461 = vmul.f32 %v2392, %v2392
        %v2462 = vmul.f32 %v2393, %v2393
        %v2463 = vmul.f32 %v2394, %v2394
        %v2464 = vmul.f32 %v2395, %v2395
        %v2465 = vmul.f32 %v2396, %v2396
        %v2466 = vmul.f32 %v2397, %v2397
        %v2467 = vmul.f32 %v2398, %v2398
        %v2468 = vmul.f32 %v2399, %v2399
        %v2469 = vmul.f32 %v2400, %v2400
        %v2470 = vmul.f32 %v2401, %v2401
        %v2471 = vmul.f32 %v2402, %v2402
        %v2472 = vmul.f32 %v2403, %v2403
        %v2473 = vmul.f32 %v2404, %v2404
        %v2474 = vmul.f32 %v2405, %v2405
        %v2475 = vmul.f32 %v2406, %v2406
        %v2476 = vmul.f32 %v2407, %v2407
        %v2477 = vmul.f32 %v2408, %v2408
        %v2478 = vmul.f32 %v2409, %v2409
        %v2479 = vmul.f32 %v2410, %v2410
        %v2480 = vmul.f32 %v2411, %v2411
        %v2481 = vadd.f32 %v2449, %v2450
        %v2482 = vadd.f32 %v2481, %v2451
        %v2483 = vadd.f32 %v2482, %v2452
        %v2484 = vadd.f32 %v2483, %v2453
        %v2485 = vadd.f32 %v2484, %v2454
        %v2486 = vadd.f32 %v2485, %v2455
        %v2487 = vadd.f32 %v2486, %v2456
        %v2488 = vadd.f32 %v2487, %v2457
        %v2489 = vadd.f32 %v2488, %v2458
        %v2490 = vadd.f32 %v2489, %v2459
        %v2491 = vadd.f32 %v2490, %v2460
        %v2492 = vadd.f32 %v2491, %v2461
        %v2493 = vadd.f32 %v2492, %v2462
        %v2494 = vadd.f32 %v2493, %v2463
        %v2495 = vadd.f32 %v2494, %v2464
        %v2496 = vadd.f32 %v2495, %v2465
        %v2497 = vadd.f32 %v2496, %v2466
        %v2498 = vadd.f32 %v2497, %v2467
        %v2499 = vadd.f32 %v2498, %v2468
        %v2500 = vadd.f32 %v2499, %v2469
        %v2501 = vadd.f32 %v2500, %v2470
        %v2502 = vadd.f32 %v2501, %v2471
        %v2503 = vadd.f32 %v2502, %v2472
        %v2504 = vadd.f32 %v2503, %v2473
        %v2505 = vadd.f32 %v2504, %v2474
        %v2506 = vadd.f32 %v2505, %v2475
        %v2507 = vadd.f32 %v2506, %v2476
        %v2508 = vadd.f32 %v2507, %v2477
        %v2509 = vadd.f32 %v2508, %v2478
        %v2510 = vadd.f32 %v2509, %v2479
        %v2511 = vadd.f32 %v2510, %v2480
        %v2512 = vrot.slane %v2511, 4
        %v2513 = vadd.f32 %v2511, %v2512
        %v2514 = vrot.slane %v2513, 2
        %v2515 = vadd.f32 %v2513, %v2514
        %v2516 = vrot.slane %v2515, 1
        %v2517 = vadd.f32 %v2515, %v2516
        %vm2518 = vcmask 1040384
        %v2519 = vsel %vm2518, %v2448, %v2517
        %2520 = vst [vmem:[%s301] sm:$0x3] %v2519
        %v2521 = vpack.c.bf16 %v2380, %v2380
        %v2522 = vpack.c.bf16 %v2381, %v2381
        %v2523 = vpack.c.bf16 %v2382, %v2382
        %v2524 = vpack.c.bf16 %v2383, %v2383
        %v2525 = vpack.c.bf16 %v2384, %v2384
        %v2526 = vpack.c.bf16 %v2385, %v2385
        %v2527 = vpack.c.bf16 %v2386, %v2386
        %v2528 = vpack.c.bf16 %v2387, %v2387
        %v2529 = vpack.c.bf16 %v2388, %v2388
        %v2530 = vpack.c.bf16 %v2389, %v2389
        %v2531 = vpack.c.bf16 %v2390, %v2390
        %v2532 = vpack.c.bf16 %v2391, %v2391
        %v2533 = vpack.c.bf16 %v2392, %v2392
        %v2534 = vpack.c.bf16 %v2393, %v2393
        %v2535 = vpack.c.bf16 %v2394, %v2394
        %v2536 = vpack.c.bf16 %v2395, %v2395
        %v2537 = vpack.c.bf16 %v2396, %v2396
        %v2538 = vpack.c.bf16 %v2397, %v2397
        %v2539 = vpack.c.bf16 %v2398, %v2398
        %v2540 = vpack.c.bf16 %v2399, %v2399
        %v2541 = vpack.c.bf16 %v2400, %v2400
        %v2542 = vpack.c.bf16 %v2401, %v2401
        %v2543 = vpack.c.bf16 %v2402, %v2402
        %v2544 = vpack.c.bf16 %v2403, %v2403
        %v2545 = vpack.c.bf16 %v2404, %v2404
        %v2546 = vpack.c.bf16 %v2405, %v2405
        %v2547 = vpack.c.bf16 %v2406, %v2406
        %v2548 = vpack.c.bf16 %v2407, %v2407
        %v2549 = vpack.c.bf16 %v2408, %v2408
        %v2550 = vpack.c.bf16 %v2409, %v2409
        %v2551 = vpack.c.bf16 %v2410, %v2410
        %v2552 = vpack.c.bf16 %v2411, %v2411
        %2553 = vst [vmem:[%s294] sm:$0xf] %v2521
        %2554 = vst [vmem:[%s294 + $0x4] sm:$0xf] %v2522
        %2555 = vst [vmem:[%s294 + $0x8] sm:$0xf] %v2523
        %2556 = vst [vmem:[%s294 + $0xc] sm:$0xf] %v2524
        %2557 = vst [vmem:[%s294 + $0x10] sm:$0xf] %v2525
        %2558 = vst [vmem:[%s294 + $0x14] sm:$0xf] %v2526
        %2559 = vst [vmem:[%s294 + $0x18] sm:$0xf] %v2527
        %2560 = vst [vmem:[%s294 + $0x1c] sm:$0xf] %v2528
        %2561 = vst [vmem:[%s294 + $0x20] sm:$0xf] %v2529
        %2562 = vst [vmem:[%s294 + $0x24] sm:$0xf] %v2530
        %2563 = vst [vmem:[%s294 + $0x28] sm:$0xf] %v2531
        %2564 = vst [vmem:[%s294 + $0x2c] sm:$0xf] %v2532
        %2565 = vst [vmem:[%s294 + $0x30] sm:$0xf] %v2533
        %2566 = vst [vmem:[%s294 + $0x34] sm:$0xf] %v2534
        %2567 = vst [vmem:[%s294 + $0x38] sm:$0xf] %v2535
        %2568 = vst [vmem:[%s294 + $0x3c] sm:$0xf] %v2536
        %2569 = vst [vmem:[%s294 + $0x40] sm:$0xf] %v2537
        %2570 = vst [vmem:[%s294 + $0x44] sm:$0xf] %v2538
        %2571 = vst [vmem:[%s294 + $0x48] sm:$0xf] %v2539
        %2572 = vst [vmem:[%s294 + $0x4c] sm:$0xf] %v2540
        %2573 = vst [vmem:[%s294 + $0x50] sm:$0xf] %v2541
        %2574 = vst [vmem:[%s294 + $0x54] sm:$0xf] %v2542
        %2575 = vst [vmem:[%s294 + $0x58] sm:$0xf] %v2543
        %2576 = vst [vmem:[%s294 + $0x5c] sm:$0xf] %v2544
        %2577 = vst [vmem:[%s294 + $0x60] sm:$0xf] %v2545
        %2578 = vst [vmem:[%s294 + $0x64] sm:$0xf] %v2546
        %2579 = vst [vmem:[%s294 + $0x68] sm:$0xf] %v2547
        %2580 = vst [vmem:[%s294 + $0x6c] sm:$0xf] %v2548
        %2581 = vst [vmem:[%s294 + $0x70] sm:$0xf] %v2549
        %2582 = vst [vmem:[%s294 + $0x74] sm:$0xf] %v2550
        %2583 = vst [vmem:[%s294 + $0x78] sm:$0xf] %v2551
        %2584 = vst [vmem:[%s294 + $0x7c] sm:$0xf] %v2552
      $region44: #{_lambda_.5} parent=31 // pred_fallthru
        _
      %p2585 = scmp.lt.s32.totalorder %s21, 1
      %s2586 = scalar_select %p2585, %s21, 1
      %p2587 = scmp.lt.s32.totalorder %s22, 0
      %s2588 = scalar_select %p2587, %s22, 0
      %s2589 = smul.addr %s2586, 32
      %s2590 = sadd.s32 %s2588, %s2589
      %s2591 = smul.addr %s2590, 4
      %s2592 = scalar_lea.vmem %s3, %s2591
      %p2593 = scmp.lt.s32.totalorder %s21, 1
      %s2594 = scalar_select %p2593, %s21, 1
      %p2595 = scmp.lt.s32.totalorder %s22, 0
      %s2596 = scalar_select %p2595, %s22, 0
      %s2597 = sadd.s32 %s2596, %s2594
      %s2598 = smul.addr %s2597, 2
      %s2599 = scalar_lea.vmem %s4, %s2598
      // Predicated region
      $region45: #{_lambda_.5} parent=31 // pred_check
        %p2600 = pneg %p137
      $region46: #{_lambda_.5} parent=31 // pred_check_branch
        %2602 = sbr.rel (%p2600) target = $region48
      $region47: #{_lambda_.5} parent=31 // pred_region
        _
      $region48: #{_lambda_.5} parent=31 // pred_fallthru
        _
      // Predicated region
      $region49: #{_lambda_.5} parent=31 // pred_check
        %p2603 = pneg %p165
      $region50: #{_lambda_.5} parent=31 // pred_check_branch
        %2605 = sbr.rel (%p2603) target = $region52
      $region51: #{_lambda_.5} parent=31 // pred_region
        _
      $region52: #{_lambda_.5} parent=31 // pred_fallthru
        _
    $region32: #{_lambda_.5} parent=5 // pred_fallthru
      _
    %p2606 = scmp.le.s32.totalorder 2, %s11
    // Predicated region
    $region53: #{_lambda_.5} parent=5 // pred_check
      %p2607 = pneg %p2606
    $region54: #{_lambda_.5} parent=5 // pred_check_branch
      %2609 = sbr.rel (%p2607) target = $region56
    $region55: #{_lambda_.5} parent=5 // pred_region
      %s2610 = ssub.s32 %s11, 2
      // Predicated region
      $region57: #{_lambda_.5} parent=55 // pred_check
        %p2611 = pneg %p143
      $region58: #{_lambda_.5} parent=55 // pred_check_branch
        %2613 = sbr.rel (%p2611) target = $region60
      $region59: #{_lambda_.5} parent=55 // pred_region
        %p2614 = scmp.lt.s32.totalorder %s24, 1
        %s2615 = scalar_select %p2614, %s24, 1
        %p2616 = scmp.lt.s32.totalorder %s25, 0
        %s2617 = scalar_select %p2616, %s25, 0
        %s2618 = smul.addr %s2615, 32
        %s2619 = sadd.s32 %s2617, %s2618
        %s2620 = smul.addr %s2619, 4
        %s2621 = scalar_lea.vmem %s3, %s2620
      $region60: #{_lambda_.5} parent=55 // pred_fallthru
        _
      // Predicated region
      $region61: #{_lambda_.5} parent=55 // pred_check
        %p2622 = pneg %p171
      $region62: #{_lambda_.5} parent=55 // pred_check_branch
        %2624 = sbr.rel (%p2622) target = $region64
      $region63: #{_lambda_.5} parent=55 // pred_region
        %p2625 = scmp.lt.s32.totalorder %s24, 1
        %s2626 = scalar_select %p2625, %s24, 1
        %p2627 = scmp.lt.s32.totalorder %s25, 0
        %s2628 = scalar_select %p2627, %s25, 0
        %s2629 = sadd.s32 %s2628, %s2626
        %s2630 = smul.addr %s2629, 2
        %s2631 = scalar_lea.vmem %s4, %s2630
      $region64: #{_lambda_.5} parent=55 // pred_fallthru
        _
    $region56: #{_lambda_.5} parent=5 // pred_fallthru
      _
  $region6: #{_lambda_.5} parent=0 // loop_footer
    %s15 = sadd.s32 1, %s11
  $region7: #{_lambda_.5} parent=0 // loop_footer_branch
    %10 = sbr.rel target = $region3
  $region8: #{_lambda_.5} parent=0 // loop_exit
    _

// kernel: _lambda_.7
$region0: #{_lambda_.7}
  #allocation0 [shape = 'u32[]', space=smem, size = 0x4, offset = 0x4, fixed_abs, tag = 'smem constant byte address 0x4 - core index']
  #allocation1 [shape = 'u32[72,128]{1,0:T(1,128)}', space=vmem, size = 0x9000, scoped, tag = 'internal scratch']
  %s0 = inlined_call_operand.vmem [shape: bf16[512,128], index: 0, kind: input, shape index: {}]
  %s1 = inlined_call_operand.vmem [shape: f32[1,128], index: 1, kind: input, shape index: {}]
  %s2 = inlined_call_operand.vmem [shape: f32[1,128], index: 2, kind: input, shape index: {}]
  %s3 = inlined_call_operand.vmem [shape: f32[512,128], index: 3, kind: output, shape index: {}]
  %s4 = sld [smem:[#allocation0]]
  $region22: #{_lambda_.7} parent=0
    _
  %s6 = ssub.s32 1, %s4
  %s7 = scalar_select 0, %s6, %s4
  // Predicated region
  $region2: #{_lambda_.7} parent=0 // pred_check
    _
  $region3: #{_lambda_.7} parent=0 // pred_check_branch
    %9 = sbr.rel (0) target = $region5
  $region4: #{_lambda_.7} parent=0 // pred_region
    _
  $region5: #{_lambda_.7} parent=0 // pred_fallthru
    _
  // Predicated region
  $region6: #{_lambda_.7} parent=0 // pred_check
    _
  $region7: #{_lambda_.7} parent=0 // pred_check_branch
    %11 = sbr.rel (0) target = $region9
  $region8: #{_lambda_.7} parent=0 // pred_region
    _
  $region9: #{_lambda_.7} parent=0 // pred_fallthru
    _
  // Predicated region
  $region10: #{_lambda_.7} parent=0 // pred_check
    _
  $region11: #{_lambda_.7} parent=0 // pred_check_branch
    %13 = sbr.rel (0) target = $region13
  $region12: #{_lambda_.7} parent=0 // pred_region
    _
  $region13: #{_lambda_.7} parent=0 // pred_fallthru
    _
  %v14 = vld [vmem:[%s0] sm:$0xf]
  %v15 = vld [vmem:[%s0 + $0x4] sm:$0xf]
  %v16 = vld [vmem:[%s0 + $0x8] sm:$0xf]
  %v17 = vld [vmem:[%s0 + $0xc] sm:$0xf]
  %v18 = vld [vmem:[%s0 + $0x10] sm:$0xf]
  %v19 = vld [vmem:[%s0 + $0x14] sm:$0xf]
  %v20 = vld [vmem:[%s0 + $0x18] sm:$0xf]
  %v21 = vld [vmem:[%s0 + $0x1c] sm:$0xf]
  %v22 = vld [vmem:[%s0 + $0x20] sm:$0xf]
  %v23 = vld [vmem:[%s0 + $0x24] sm:$0xf]
  %v24 = vld [vmem:[%s0 + $0x28] sm:$0xf]
  %v25 = vld [vmem:[%s0 + $0x2c] sm:$0xf]
  %v26 = vld [vmem:[%s0 + $0x30] sm:$0xf]
  %v27 = vld [vmem:[%s0 + $0x34] sm:$0xf]
  %v28 = vld [vmem:[%s0 + $0x38] sm:$0xf]
  %v29 = vld [vmem:[%s0 + $0x3c] sm:$0xf]
  %v30 = vld [vmem:[%s0 + $0x40] sm:$0xf]
  %v31 = vld [vmem:[%s0 + $0x44] sm:$0xf]
  %v32 = vld [vmem:[%s0 + $0x48] sm:$0xf]
  %v33 = vld [vmem:[%s0 + $0x4c] sm:$0xf]
  %v34 = vld [vmem:[%s0 + $0x50] sm:$0xf]
  %v35 = vld [vmem:[%s0 + $0x54] sm:$0xf]
  %v36 = vld [vmem:[%s0 + $0x58] sm:$0xf]
  %v37 = vld [vmem:[%s0 + $0x5c] sm:$0xf]
  %v38 = vld [vmem:[%s0 + $0x60] sm:$0xf]
  %v39 = vld [vmem:[%s0 + $0x64] sm:$0xf]
  %v40 = vld [vmem:[%s0 + $0x68] sm:$0xf]
  %v41 = vld [vmem:[%s0 + $0x6c] sm:$0xf]
  %v42 = vld [vmem:[%s0 + $0x70] sm:$0xf]
  %v43 = vld [vmem:[%s0 + $0x74] sm:$0xf]
  %v44 = vld [vmem:[%s0 + $0x78] sm:$0xf]
  %v45 = vld [vmem:[%s0 + $0x7c] sm:$0xf]
  %v46 = vld [vmem:[%s0 + $0x80] sm:$0xf]
  %v47 = vld [vmem:[%s0 + $0x84] sm:$0xf]
  %v48 = vld [vmem:[%s0 + $0x88] sm:$0xf]
  %v49 = vld [vmem:[%s0 + $0x8c] sm:$0xf]
  %v50 = vld [vmem:[%s0 + $0x90] sm:$0xf]
  %v51 = vld [vmem:[%s0 + $0x94] sm:$0xf]
  %v52 = vld [vmem:[%s0 + $0x98] sm:$0xf]
  %v53 = vld [vmem:[%s0 + $0x9c] sm:$0xf]
  %v54 = vld [vmem:[%s0 + $0xa0] sm:$0xf]
  %v55 = vld [vmem:[%s0 + $0xa4] sm:$0xf]
  %v56 = vld [vmem:[%s0 + $0xa8] sm:$0xf]
  %v57 = vld [vmem:[%s0 + $0xac] sm:$0xf]
  %v58 = vld [vmem:[%s0 + $0xb0] sm:$0xf]
  %v59 = vld [vmem:[%s0 + $0xb4] sm:$0xf]
  %v60 = vld [vmem:[%s0 + $0xb8] sm:$0xf]
  %v61 = vld [vmem:[%s0 + $0xbc] sm:$0xf]
  %v62 = vld [vmem:[%s0 + $0xc0] sm:$0xf]
  %v63 = vld [vmem:[%s0 + $0xc4] sm:$0xf]
  %v64 = vld [vmem:[%s0 + $0xc8] sm:$0xf]
  %v65 = vld [vmem:[%s0 + $0xcc] sm:$0xf]
  %v66 = vld [vmem:[%s0 + $0xd0] sm:$0xf]
  %v67 = vld [vmem:[%s0 + $0xd4] sm:$0xf]
  %v68 = vld [vmem:[%s0 + $0xd8] sm:$0xf]
  %v69 = vld [vmem:[%s0 + $0xdc] sm:$0xf]
  %v70 = vld [vmem:[%s0 + $0xe0] sm:$0xf]
  %v71 = vld [vmem:[%s0 + $0xe4] sm:$0xf]
  %v72 = vld [vmem:[%s0 + $0xe8] sm:$0xf]
  %v73 = vld [vmem:[%s0 + $0xec] sm:$0xf]
  %v74 = vld [vmem:[%s0 + $0xf0] sm:$0xf]
  %v75 = vld [vmem:[%s0 + $0xf4] sm:$0xf]
  %v76 = vld [vmem:[%s0 + $0xf8] sm:$0xf]
  %v77 = vld [vmem:[%s0 + $0xfc] sm:$0xf]
  %v78 = vunpack.c.l.bf16 %v14
  %v79 = vunpack.c.l.bf16 %v15
  %v80 = vunpack.c.l.bf16 %v16
  %v81 = vunpack.c.l.bf16 %v17
  %v82 = vunpack.c.l.bf16 %v18
  %v83 = vunpack.c.l.bf16 %v19
  %v84 = vunpack.c.l.bf16 %v20
  %v85 = vunpack.c.l.bf16 %v21
  %v86 = vunpack.c.l.bf16 %v22
  %v87 = vunpack.c.l.bf16 %v23
  %v88 = vunpack.c.l.bf16 %v24
  %v89 = vunpack.c.l.bf16 %v25
  %v90 = vunpack.c.l.bf16 %v26
  %v91 = vunpack.c.l.bf16 %v27
  %v92 = vunpack.c.l.bf16 %v28
  %v93 = vunpack.c.l.bf16 %v29
  %v94 = vunpack.c.l.bf16 %v30
  %v95 = vunpack.c.l.bf16 %v31
  %v96 = vunpack.c.l.bf16 %v32
  %v97 = vunpack.c.l.bf16 %v33
  %v98 = vunpack.c.l.bf16 %v34
  %v99 = vunpack.c.l.bf16 %v35
  %v100 = vunpack.c.l.bf16 %v36
  %v101 = vunpack.c.l.bf16 %v37
  %v102 = vunpack.c.l.bf16 %v38
  %v103 = vunpack.c.l.bf16 %v39
  %v104 = vunpack.c.l.bf16 %v40
  %v105 = vunpack.c.l.bf16 %v41
  %v106 = vunpack.c.l.bf16 %v42
  %v107 = vunpack.c.l.bf16 %v43
  %v108 = vunpack.c.l.bf16 %v44
  %v109 = vunpack.c.l.bf16 %v45
  %v110 = vunpack.c.l.bf16 %v46
  %v111 = vunpack.c.l.bf16 %v47
  %v112 = vunpack.c.l.bf16 %v48
  %v113 = vunpack.c.l.bf16 %v49
  %v114 = vunpack.c.l.bf16 %v50
  %v115 = vunpack.c.l.bf16 %v51
  %v116 = vunpack.c.l.bf16 %v52
  %v117 = vunpack.c.l.bf16 %v53
  %v118 = vunpack.c.l.bf16 %v54
  %v119 = vunpack.c.l.bf16 %v55
  %v120 = vunpack.c.l.bf16 %v56
  %v121 = vunpack.c.l.bf16 %v57
  %v122 = vunpack.c.l.bf16 %v58
  %v123 = vunpack.c.l.bf16 %v59
  %v124 = vunpack.c.l.bf16 %v60
  %v125 = vunpack.c.l.bf16 %v61
  %v126 = vunpack.c.l.bf16 %v62
  %v127 = vunpack.c.l.bf16 %v63
  %v128 = vunpack.c.l.bf16 %v64
  %v129 = vunpack.c.l.bf16 %v65
  %v130 = vunpack.c.l.bf16 %v66
  %v131 = vunpack.c.l.bf16 %v67
  %v132 = vunpack.c.l.bf16 %v68
  %v133 = vunpack.c.l.bf16 %v69
  %v134 = vunpack.c.l.bf16 %v70
  %v135 = vunpack.c.l.bf16 %v71
  %v136 = vunpack.c.l.bf16 %v72
  %v137 = vunpack.c.l.bf16 %v73
  %v138 = vunpack.c.l.bf16 %v74
  %v139 = vunpack.c.l.bf16 %v75
  %v140 = vunpack.c.l.bf16 %v76
  %v141 = vunpack.c.l.bf16 %v77
  %v142 = vld [vmem:[%s1] sm:$0x1]
  %v144 = vperm.slane %v142, 0
  %v146 = vmul.f32 %v78, %v144
  %v147 = vmul.f32 %v79, %v144
  %v148 = vmul.f32 %v80, %v144
  %v149 = vmul.f32 %v81, %v144
  %v150 = vmul.f32 %v82, %v144
  %v151 = vmul.f32 %v83, %v144
  %v152 = vmul.f32 %v84, %v144
  %v153 = vmul.f32 %v85, %v144
  %v154 = vmul.f32 %v86, %v144
  %v155 = vmul.f32 %v87, %v144
  %v156 = vmul.f32 %v88, %v144
  %v157 = vmul.f32 %v89, %v144
  %v158 = vmul.f32 %v90, %v144
  %v159 = vmul.f32 %v91, %v144
  %v160 = vmul.f32 %v92, %v144
  %v161 = vmul.f32 %v93, %v144
  %v162 = vmul.f32 %v94, %v144
  %v163 = vmul.f32 %v95, %v144
  %v164 = vmul.f32 %v96, %v144
  %v165 = vmul.f32 %v97, %v144
  %v166 = vmul.f32 %v98, %v144
  %v167 = vmul.f32 %v99, %v144
  %v168 = vmul.f32 %v100, %v144
  %v169 = vmul.f32 %v101, %v144
  %v170 = vmul.f32 %v102, %v144
  %v171 = vmul.f32 %v103, %v144
  %v172 = vmul.f32 %v104, %v144
  %v173 = vmul.f32 %v105, %v144
  %v174 = vmul.f32 %v106, %v144
  %v175 = vmul.f32 %v107, %v144
  %v176 = vmul.f32 %v108, %v144
  %v177 = vmul.f32 %v109, %v144
  %v178 = vmul.f32 %v110, %v144
  %v179 = vmul.f32 %v111, %v144
  %v180 = vmul.f32 %v112, %v144
  %v181 = vmul.f32 %v113, %v144
  %v182 = vmul.f32 %v114, %v144
  %v183 = vmul.f32 %v115, %v144
  %v184 = vmul.f32 %v116, %v144
  %v185 = vmul.f32 %v117, %v144
  %v186 = vmul.f32 %v118, %v144
  %v187 = vmul.f32 %v119, %v144
  %v188 = vmul.f32 %v120, %v144
  %v189 = vmul.f32 %v121, %v144
  %v190 = vmul.f32 %v122, %v144
  %v191 = vmul.f32 %v123, %v144
  %v192 = vmul.f32 %v124, %v144
  %v193 = vmul.f32 %v125, %v144
  %v194 = vmul.f32 %v126, %v144
  %v195 = vmul.f32 %v127, %v144
  %v196 = vmul.f32 %v128, %v144
  %v197 = vmul.f32 %v129, %v144
  %v198 = vmul.f32 %v130, %v144
  %v199 = vmul.f32 %v131, %v144
  %v200 = vmul.f32 %v132, %v144
  %v201 = vmul.f32 %v133, %v144
  %v202 = vmul.f32 %v134, %v144
  %v203 = vmul.f32 %v135, %v144
  %v204 = vmul.f32 %v136, %v144
  %v205 = vmul.f32 %v137, %v144
  %v206 = vmul.f32 %v138, %v144
  %v207 = vmul.f32 %v139, %v144
  %v208 = vmul.f32 %v140, %v144
  %v209 = vmul.f32 %v141, %v144
  %v210 = vld [vmem:[%s2] sm:$0x1]
  %v212 = vperm.slane %v210, 0
  %v214 = vadd.f32 %v146, %v212
  %v215 = vadd.f32 %v147, %v212
  %v216 = vadd.f32 %v148, %v212
  %v217 = vadd.f32 %v149, %v212
  %v218 = vadd.f32 %v150, %v212
  %v219 = vadd.f32 %v151, %v212
  %v220 = vadd.f32 %v152, %v212
  %v221 = vadd.f32 %v153, %v212
  %v222 = vadd.f32 %v154, %v212
  %v223 = vadd.f32 %v155, %v212
  %v224 = vadd.f32 %v156, %v212
  %v225 = vadd.f32 %v157, %v212
  %v226 = vadd.f32 %v158, %v212
  %v227 = vadd.f32 %v159, %v212
  %v228 = vadd.f32 %v160, %v212
  %v229 = vadd.f32 %v161, %v212
  %v230 = vadd.f32 %v162, %v212
  %v231 = vadd.f32 %v163, %v212
  %v232 = vadd.f32 %v164, %v212
  %v233 = vadd.f32 %v165, %v212
  %v234 = vadd.f32 %v166, %v212
  %v235 = vadd.f32 %v167, %v212
  %v236 = vadd.f32 %v168, %v212
  %v237 = vadd.f32 %v169, %v212
  %v238 = vadd.f32 %v170, %v212
  %v239 = vadd.f32 %v171, %v212
  %v240 = vadd.f32 %v172, %v212
  %v241 = vadd.f32 %v173, %v212
  %v242 = vadd.f32 %v174, %v212
  %v243 = vadd.f32 %v175, %v212
  %v244 = vadd.f32 %v176, %v212
  %v245 = vadd.f32 %v177, %v212
  %v246 = vadd.f32 %v178, %v212
  %v247 = vadd.f32 %v179, %v212
  %v248 = vadd.f32 %v180, %v212
  %v249 = vadd.f32 %v181, %v212
  %v250 = vadd.f32 %v182, %v212
  %v251 = vadd.f32 %v183, %v212
  %v252 = vadd.f32 %v184, %v212
  %v253 = vadd.f32 %v185, %v212
  %v254 = vadd.f32 %v186, %v212
  %v255 = vadd.f32 %v187, %v212
  %v256 = vadd.f32 %v188, %v212
  %v257 = vadd.f32 %v189, %v212
  %v258 = vadd.f32 %v190, %v212
  %v259 = vadd.f32 %v191, %v212
  %v260 = vadd.f32 %v192, %v212
  %v261 = vadd.f32 %v193, %v212
  %v262 = vadd.f32 %v194, %v212
  %v263 = vadd.f32 %v195, %v212
  %v264 = vadd.f32 %v196, %v212
  %v265 = vadd.f32 %v197, %v212
  %v266 = vadd.f32 %v198, %v212
  %v267 = vadd.f32 %v199, %v212
  %v268 = vadd.f32 %v200, %v212
  %v269 = vadd.f32 %v201, %v212
  %v270 = vadd.f32 %v202, %v212
  %v271 = vadd.f32 %v203, %v212
  %v272 = vadd.f32 %v204, %v212
  %v273 = vadd.f32 %v205, %v212
  %v274 = vadd.f32 %v206, %v212
  %v275 = vadd.f32 %v207, %v212
  %v276 = vadd.f32 %v208, %v212
  %v277 = vadd.f32 %v209, %v212
  %v278 = vmax.f32 %v214, 0.0
  %v279 = vmax.f32 %v215, 0.0
  %v280 = vmax.f32 %v216, 0.0
  %v281 = vmax.f32 %v217, 0.0
  %v282 = vmax.f32 %v218, 0.0
  %v283 = vmax.f32 %v219, 0.0
  %v284 = vmax.f32 %v220, 0.0
  %v285 = vmax.f32 %v221, 0.0
  %v286 = vmax.f32 %v222, 0.0
  %v287 = vmax.f32 %v223, 0.0
  %v288 = vmax.f32 %v224, 0.0
  %v289 = vmax.f32 %v225, 0.0
  %v290 = vmax.f32 %v226, 0.0
  %v291 = vmax.f32 %v227, 0.0
  %v292 = vmax.f32 %v228, 0.0
  %v293 = vmax.f32 %v229, 0.0
  %v294 = vmax.f32 %v230, 0.0
  %v295 = vmax.f32 %v231, 0.0
  %v296 = vmax.f32 %v232, 0.0
  %v297 = vmax.f32 %v233, 0.0
  %v298 = vmax.f32 %v234, 0.0
  %v299 = vmax.f32 %v235, 0.0
  %v300 = vmax.f32 %v236, 0.0
  %v301 = vmax.f32 %v237, 0.0
  %v302 = vmax.f32 %v238, 0.0
  %v303 = vmax.f32 %v239, 0.0
  %v304 = vmax.f32 %v240, 0.0
  %v305 = vmax.f32 %v241, 0.0
  %v306 = vmax.f32 %v242, 0.0
  %v307 = vmax.f32 %v243, 0.0
  %v308 = vmax.f32 %v244, 0.0
  %v309 = vmax.f32 %v245, 0.0
  %v310 = vmax.f32 %v246, 0.0
  %v311 = vmax.f32 %v247, 0.0
  %v312 = vmax.f32 %v248, 0.0
  %v313 = vmax.f32 %v249, 0.0
  %v314 = vmax.f32 %v250, 0.0
  %v315 = vmax.f32 %v251, 0.0
  %v316 = vmax.f32 %v252, 0.0
  %v317 = vmax.f32 %v253, 0.0
  %v318 = vmax.f32 %v254, 0.0
  %v319 = vmax.f32 %v255, 0.0
  %v320 = vmax.f32 %v256, 0.0
  %v321 = vmax.f32 %v257, 0.0
  %v322 = vmax.f32 %v258, 0.0
  %v323 = vmax.f32 %v259, 0.0
  %v324 = vmax.f32 %v260, 0.0
  %v325 = vmax.f32 %v261, 0.0
  %v326 = vmax.f32 %v262, 0.0
  %v327 = vmax.f32 %v263, 0.0
  %v328 = vmax.f32 %v264, 0.0
  %v329 = vmax.f32 %v265, 0.0
  %v330 = vmax.f32 %v266, 0.0
  %v331 = vmax.f32 %v267, 0.0
  %v332 = vmax.f32 %v268, 0.0
  %v333 = vmax.f32 %v269, 0.0
  %v334 = vmax.f32 %v270, 0.0
  %v335 = vmax.f32 %v271, 0.0
  %v336 = vmax.f32 %v272, 0.0
  %v337 = vmax.f32 %v273, 0.0
  %v338 = vmax.f32 %v274, 0.0
  %v339 = vmax.f32 %v275, 0.0
  %v340 = vmax.f32 %v276, 0.0
  %v341 = vmax.f32 %v277, 0.0
  %342 = vst [vmem:[%s3] sm:$0xff] %v278
  %343 = vst [vmem:[%s3 + $0x8] sm:$0xff] %v279
  %344 = vst [vmem:[%s3 + $0x10] sm:$0xff] %v280
  %345 = vst [vmem:[%s3 + $0x18] sm:$0xff] %v281
  %346 = vst [vmem:[%s3 + $0x20] sm:$0xff] %v282
  %347 = vst [vmem:[%s3 + $0x28] sm:$0xff] %v283
  %348 = vst [vmem:[%s3 + $0x30] sm:$0xff] %v284
  %349 = vst [vmem:[%s3 + $0x38] sm:$0xff] %v285
  %350 = vst [vmem:[%s3 + $0x40] sm:$0xff] %v286
  %351 = vst [vmem:[%s3 + $0x48] sm:$0xff] %v287
  %352 = vst [vmem:[%s3 + $0x50] sm:$0xff] %v288
  %353 = vst [vmem:[%s3 + $0x58] sm:$0xff] %v289
  %354 = vst [vmem:[%s3 + $0x60] sm:$0xff] %v290
  %355 = vst [vmem:[%s3 + $0x68] sm:$0xff] %v291
  %356 = vst [vmem:[%s3 + $0x70] sm:$0xff] %v292
  %357 = vst [vmem:[%s3 + $0x78] sm:$0xff] %v293
  %358 = vst [vmem:[%s3 + $0x80] sm:$0xff] %v294
  %359 = vst [vmem:[%s3 + $0x88] sm:$0xff] %v295
  %360 = vst [vmem:[%s3 + $0x90] sm:$0xff] %v296
  %361 = vst [vmem:[%s3 + $0x98] sm:$0xff] %v297
  %362 = vst [vmem:[%s3 + $0xa0] sm:$0xff] %v298
  %363 = vst [vmem:[%s3 + $0xa8] sm:$0xff] %v299
  %364 = vst [vmem:[%s3 + $0xb0] sm:$0xff] %v300
  %365 = vst [vmem:[%s3 + $0xb8] sm:$0xff] %v301
  %366 = vst [vmem:[%s3 + $0xc0] sm:$0xff] %v302
  %367 = vst [vmem:[%s3 + $0xc8] sm:$0xff] %v303
  %368 = vst [vmem:[%s3 + $0xd0] sm:$0xff] %v304
  %369 = vst [vmem:[%s3 + $0xd8] sm:$0xff] %v305
  %370 = vst [vmem:[%s3 + $0xe0] sm:$0xff] %v306
  %371 = vst [vmem:[%s3 + $0xe8] sm:$0xff] %v307
  %372 = vst [vmem:[%s3 + $0xf0] sm:$0xff] %v308
  %373 = vst [vmem:[%s3 + $0xf8] sm:$0xff] %v309
  %374 = vst [vmem:[%s3 + $0x100] sm:$0xff] %v310
  %375 = vst [vmem:[%s3 + $0x108] sm:$0xff] %v311
  %376 = vst [vmem:[%s3 + $0x110] sm:$0xff] %v312
  %377 = vst [vmem:[%s3 + $0x118] sm:$0xff] %v313
  %378 = vst [vmem:[%s3 + $0x120] sm:$0xff] %v314
  %379 = vst [vmem:[%s3 + $0x128] sm:$0xff] %v315
  %380 = vst [vmem:[%s3 + $0x130] sm:$0xff] %v316
  %381 = vst [vmem:[%s3 + $0x138] sm:$0xff] %v317
  %382 = vst [vmem:[%s3 + $0x140] sm:$0xff] %v318
  %383 = vst [vmem:[%s3 + $0x148] sm:$0xff] %v319
  %384 = vst [vmem:[%s3 + $0x150] sm:$0xff] %v320
  %385 = vst [vmem:[%s3 + $0x158] sm:$0xff] %v321
  %386 = vst [vmem:[%s3 + $0x160] sm:$0xff] %v322
  %387 = vst [vmem:[%s3 + $0x168] sm:$0xff] %v323
  %388 = vst [vmem:[%s3 + $0x170] sm:$0xff] %v324
  %389 = vst [vmem:[%s3 + $0x178] sm:$0xff] %v325
  %390 = vst [vmem:[%s3 + $0x180] sm:$0xff] %v326
  %391 = vst [vmem:[%s3 + $0x188] sm:$0xff] %v327
  %392 = vst [vmem:[%s3 + $0x190] sm:$0xff] %v328
  %393 = vst [vmem:[%s3 + $0x198] sm:$0xff] %v329
  %394 = vst [vmem:[%s3 + $0x1a0] sm:$0xff] %v330
  %395 = vst [vmem:[%s3 + $0x1a8] sm:$0xff] %v331
  %396 = vst [vmem:[%s3 + $0x1b0] sm:$0xff] %v332
  %397 = vst [vmem:[%s3 + $0x1b8] sm:$0xff] %v333
  %398 = vst [vmem:[%s3 + $0x1c0] sm:$0xff] %v334
  %399 = vst [vmem:[%s3 + $0x1c8] sm:$0xff] %v335
  %400 = vst [vmem:[%s3 + $0x1d0] sm:$0xff] %v336
  %401 = vst [vmem:[%s3 + $0x1d8] sm:$0xff] %v337
  %402 = vst [vmem:[%s3 + $0x1e0] sm:$0xff] %v338
  %403 = vst [vmem:[%s3 + $0x1e8] sm:$0xff] %v339
  %404 = vst [vmem:[%s3 + $0x1f0] sm:$0xff] %v340
  %405 = vst [vmem:[%s3 + $0x1f8] sm:$0xff] %v341
  // Predicated region
  $region14: #{_lambda_.7} parent=0 // pred_check
    _
  $region15: #{_lambda_.7} parent=0 // pred_check_branch
    %407 = sbr.rel (0) target = $region17
  $region16: #{_lambda_.7} parent=0 // pred_region
    _
  $region17: #{_lambda_.7} parent=0 // pred_fallthru
    _
  // Predicated region
  $region18: #{_lambda_.7} parent=0 // pred_check
    _
  $region19: #{_lambda_.7} parent=0 // pred_check_branch
    %409 = sbr.rel (0) target = $region21
  $region20: #{_lambda_.7} parent=0 // pred_region
    _
  $region21: #{_lambda_.7} parent=0 // pred_fallthru
    _

// kernel: _lambda_.6
$region0: #{_lambda_.6}
  #allocation0 [shape = 'u32[]', space=smem, size = 0x4, offset = 0x4, fixed_abs, tag = 'smem constant byte address 0x4 - core index']
  #allocation1 [shape = 'u32[72,128]{1,0:T(1,128)}', space=vmem, size = 0x9000, scoped, tag = 'internal scratch']
  #allocation2 [shape = 'f32[256,128]{1,0:T(8,128)}', space=vmem, size = 0x20000, scoped, tag = 'scratch operand']
  %s0 = inlined_call_operand.vmem [shape: bf16[2,18,18,128], index: 0, kind: input, shape index: {}]
  %s1 = inlined_call_operand.vmem [shape: bf16[3,3,128,128], index: 1, kind: input, shape index: {}]
  %s2 = inlined_call_operand.vmem [shape: f32[1,128], index: 2, kind: input, shape index: {}]
  %s3 = inlined_call_operand.vmem [shape: f32[1,1,128], index: 3, kind: input, shape index: {}]
  %s4 = inlined_call_operand.vmem [shape: f32[1,1,128], index: 4, kind: input, shape index: {}]
  %s5 = inlined_call_operand.vmem [shape: f32[2,18,18,1], index: 5, kind: input, shape index: {}]
  %s6 = inlined_call_operand.vmem [shape: bf16[2,16,16,128], index: 6, kind: output, shape index: {0}]
  %s7 = inlined_call_operand.vmem [shape: f32[2,2,128], index: 7, kind: output, shape index: {1}]
  %8 = xla_tuple %s6, %s7
  %s9 = sld [smem:[#allocation0]]
  $region77: #{_lambda_.6} parent=0
    _
  %s11 = ssub.s32 1, %s9
  %s12 = scalar_select 0, %s11, %s9
  loop: start=0, step=1, limit=4
  $region2: #{_lambda_.6} parent=0 // loop_pre_header
    _
  $region3: #{_lambda_.6} parent=0 // loop_header
    %s14 = sphi 0, %s18
    %p15 = scmp.ge.s32.totalorder %s14, 4
    %s21 = sphi 0, %s40
    %s22 = sphi 0, %s36
    %s23 = sphi 0, %s32
    %s24 = sphi 0, %s21
    %s25 = sphi 0, %s22
    %s26 = sphi 0, %s23
    %s27 = sphi 0, %s24
    %s28 = sphi 0, %s25
    %s29 = sphi 0, %s26
    %s45 = sphi 0, %s47
    %s48 = sphi 0, %s45
    %s49 = sphi 0, %s48
    %s65 = sphi 0, %s49
    %s73 = sphi 0, %s75
    %s76 = sphi 0, %s73
    %s77 = sphi 0, %s76
    %s93 = sphi 0, %s77
    %s99 = sphi 0, %s101
    %s102 = sphi 0, %s99
    %s103 = sphi 0, %s102
    %s119 = sphi 0, %s103
    %s125 = sphi 0, %s127
    %s128 = sphi 0, %s125
    %s129 = sphi 0, %s128
    %s145 = sphi 0, %s129
    %s151 = sphi 0, %s153
    %s154 = sphi 0, %s151
    %s155 = sphi 0, %s154
    %s171 = sphi 0, %s155
    %s177 = sphi 0, %s179
    %s180 = sphi 0, %s177
    %s181 = sphi 0, %s180
    %s197 = sphi 0, %s181
    %s205 = sphi 0, %s207
    %s208 = sphi 0, %s205
    %s209 = sphi 0, %s208
    %s225 = sphi 0, %s209
    %s233 = sphi 0, %s235
    %s236 = sphi 0, %s233
    %s237 = sphi 0, %s236
    %s253 = sphi 0, %s237
  $region4: #{_lambda_.6} parent=0 // loop_header_branch
    %17 = sbr.rel (%p15) target = $region8
  $region5: #{_lambda_.6} parent=0 // loop_body
    %s19 = ssub.s32 %s14, 1
    %s20 = ssub.s32 %s14, 2
    %s30 = sadd.s32 1, %s23
    %p31 = scmp.ge.s32.totalorder %s30, 1
    %s32 = scalar_select %p31, 0, %s30
    %s33 = sadd.s32 1, %s22
    %s34 = scalar_select %p31, %s33, %s22
    %p35 = scmp.ge.s32.totalorder %s34, 1
    %s36 = scalar_select %p35, 0, %s34
    %s37 = sadd.s32 1, %s21
    %s38 = scalar_select %p35, %s37, %s21
    %p39 = scmp.ge.s32.totalorder %s38, 2
    %s40 = scalar_select %p39, 0, %s38
    %s41 = ssub.s32 %s21, %s40
    %s42 = ssub.s32 %s23, %s32
    %s43 = sor.u32 %s41, %s42
    %p44 = scmp.eq.s32.totalorder %s43, 0
    %s46 = sadd.s32 %s45, 1
    %s47 = scalar_select %p44, %s45, %s46
    %p50 = pneg %p44
    %p51 = scmp.eq.s32.totalorder %s14, 1
    %p52 = por %p50, %p51
    %p53 = scmp.ne.s32.totalorder %s45, %s48
    %p54 = scmp.eq.s32.totalorder %s14, 0
    %p55 = por %p53, %p54
    %p56 = scmp.ne.s32.totalorder %s45, %s48
    %p57 = scmp.eq.s32.totalorder %s19, 1
    %p58 = por %p56, %p57
    %p59 = scmp.ne.s32.totalorder %s48, %s49
    %p60 = scmp.eq.s32.totalorder %s19, 0
    %p61 = por %p59, %p60
    %p62 = scmp.ne.s32.totalorder %s48, %s49
    %p63 = scmp.eq.s32.totalorder %s20, 1
    %p64 = por %p62, %p63
    %p66 = scmp.ne.s32.totalorder %s49, %s65
    %p67 = scmp.eq.s32.totalorder %s20, 0
    %p68 = por %p66, %p67
    %s69 = ssub.s32 %s23, %s32
    %s70 = ssub.s32 %s22, %s36
    %s71 = sor.u32 %s69, %s70
    %p72 = scmp.eq.s32.totalorder %s71, 0
    %s74 = sadd.s32 %s73, 1
    %s75 = scalar_select %p72, %s73, %s74
    %p78 = pneg %p72
    %p79 = scmp.eq.s32.totalorder %s14, 1
    %p80 = por %p78, %p79
    %p81 = scmp.ne.s32.totalorder %s73, %s76
    %p82 = scmp.eq.s32.totalorder %s14, 0
    %p83 = por %p81, %p82
    %p84 = scmp.ne.s32.totalorder %s73, %s76
    %p85 = scmp.eq.s32.totalorder %s19, 1
    %p86 = por %p84, %p85
    %p87 = scmp.ne.s32.totalorder %s76, %s77
    %p88 = scmp.eq.s32.totalorder %s19, 0
    %p89 = por %p87, %p88
    %p90 = scmp.ne.s32.totalorder %s76, %s77
    %p91 = scmp.eq.s32.totalorder %s20, 1
    %p92 = por %p90, %p91
    %p94 = scmp.ne.s32.totalorder %s77, %s93
    %p95 = scmp.eq.s32.totalorder %s20, 0
    %p96 = por %p94, %p95
    %s97 = ssub.s32 %s22, %s36
    %p98 = scmp.eq.s32.totalorder %s97, 0
    %s100 = sadd.s32 %s99, 1
    %s101 = scalar_select %p98, %s99, %s100
    %p104 = pneg %p98
    %p105 = scmp.eq.s32.totalorder %s14, 1
    %p106 = por %p104, %p105
    %p107 = scmp.ne.s32.totalorder %s99, %s102
    %p108 = scmp.eq.s32.totalorder %s14, 0
    %p109 = por %p107, %p108
    %p110 = scmp.ne.s32.totalorder %s99, %s102
    %p111 = scmp.eq.s32.totalorder %s19, 1
    %p112 = por %p110, %p111
    %p113 = scmp.ne.s32.totalorder %s102, %s103
    %p114 = scmp.eq.s32.totalorder %s19, 0
    %p115 = por %p113, %p114
    %p116 = scmp.ne.s32.totalorder %s102, %s103
    %p117 = scmp.eq.s32.totalorder %s20, 1
    %p118 = por %p116, %p117
    %p120 = scmp.ne.s32.totalorder %s103, %s119
    %p121 = scmp.eq.s32.totalorder %s20, 0
    %p122 = por %p120, %p121
    %s123 = ssub.s32 %s23, %s32
    %p124 = scmp.eq.s32.totalorder %s123, 0
    %s126 = sadd.s32 %s125, 1
    %s127 = scalar_select %p124, %s125, %s126
    %p130 = pneg %p124
    %p131 = scmp.eq.s32.totalorder %s14, 1
    %p132 = por %p130, %p131
    %p133 = scmp.ne.s32.totalorder %s125, %s128
    %p134 = scmp.eq.s32.totalorder %s14, 0
    %p135 = por %p133, %p134
    %p136 = scmp.ne.s32.totalorder %s125, %s128
    %p137 = scmp.eq.s32.totalorder %s19, 1
    %p138 = por %p136, %p137
    %p139 = scmp.ne.s32.totalorder %s128, %s129
    %p140 = scmp.eq.s32.totalorder %s19, 0
    %p141 = por %p139, %p140
    %p142 = scmp.ne.s32.totalorder %s128, %s129
    %p143 = scmp.eq.s32.totalorder %s20, 1
    %p144 = por %p142, %p143
    %p146 = scmp.ne.s32.totalorder %s129, %s145
    %p147 = scmp.eq.s32.totalorder %s20, 0
    %p148 = por %p146, %p147
    %s149 = ssub.s32 %s23, %s32
    %p150 = scmp.eq.s32.totalorder %s149, 0
    %s152 = sadd.s32 %s151, 1
    %s153 = scalar_select %p150, %s151, %s152
    %p156 = pneg %p150
    %p157 = scmp.eq.s32.totalorder %s14, 1
    %p158 = por %p156, %p157
    %p159 = scmp.ne.s32.totalorder %s151, %s154
    %p160 = scmp.eq.s32.totalorder %s14, 0
    %p161 = por %p159, %p160
    %p162 = scmp.ne.s32.totalorder %s151, %s154
    %p163 = scmp.eq.s32.totalorder %s19, 1
    %p164 = por %p162, %p163
    %p165 = scmp.ne.s32.totalorder %s154, %s155
    %p166 = scmp.eq.s32.totalorder %s19, 0
    %p167 = por %p165, %p166
    %p168 = scmp.ne.s32.totalorder %s154, %s155
    %p169 = scmp.eq.s32.totalorder %s20, 1
    %p170 = por %p168, %p169
    %p172 = scmp.ne.s32.totalorder %s155, %s171
    %p173 = scmp.eq.s32.totalorder %s20, 0
    %p174 = por %p172, %p173
    %s175 = ssub.s32 %s21, %s40
    %p176 = scmp.eq.s32.totalorder %s175, 0
    %s178 = sadd.s32 %s177, 1
    %s179 = scalar_select %p176, %s177, %s178
    %p182 = pneg %p176
    %p183 = scmp.eq.s32.totalorder %s14, 1
    %p184 = por %p182, %p183
    %p185 = scmp.ne.s32.totalorder %s177, %s180
    %p186 = scmp.eq.s32.totalorder %s14, 0
    %p187 = por %p185, %p186
    %p188 = scmp.ne.s32.totalorder %s177, %s180
    %p189 = scmp.eq.s32.totalorder %s19, 1
    %p190 = por %p188, %p189
    %p191 = scmp.ne.s32.totalorder %s180, %s181
    %p192 = scmp.eq.s32.totalorder %s19, 0
    %p193 = por %p191, %p192
    %p194 = scmp.ne.s32.totalorder %s180, %s181
    %p195 = scmp.eq.s32.totalorder %s20, 1
    %p196 = por %p194, %p195
    %p198 = scmp.ne.s32.totalorder %s181, %s197
    %p199 = scmp.eq.s32.totalorder %s20, 0
    %p200 = por %p198, %p199
    %s201 = ssub.s32 %s21, %s40
    %s202 = ssub.s32 %s22, %s36
    %s203 = sor.u32 %s201, %s202
    %p204 = scmp.eq.s32.totalorder %s203, 0
    %s206 = sadd.s32 %s205, 1
    %s207 = scalar_select %p204, %s205, %s206
    %p210 = pneg %p204
    %p211 = scmp.eq.s32.totalorder %s14, 1
    %p212 = por %p210, %p211
    %p213 = scmp.ne.s32.totalorder %s205, %s208
    %p214 = scmp.eq.s32.totalorder %s14, 0
    %p215 = por %p213, %p214
    %p216 = scmp.ne.s32.totalorder %s205, %s208
    %p217 = scmp.eq.s32.totalorder %s19, 1
    %p218 = por %p216, %p217
    %p219 = scmp.ne.s32.totalorder %s208, %s209
    %p220 = scmp.eq.s32.totalorder %s19, 0
    %p221 = por %p219, %p220
    %p222 = scmp.ne.s32.totalorder %s208, %s209
    %p223 = scmp.eq.s32.totalorder %s20, 1
    %p224 = por %p222, %p223
    %p226 = scmp.ne.s32.totalorder %s209, %s225
    %p227 = scmp.eq.s32.totalorder %s20, 0
    %p228 = por %p226, %p227
    %s229 = ssub.s32 %s21, %s40
    %s230 = ssub.s32 %s22, %s36
    %s231 = sor.u32 %s229, %s230
    %p232 = scmp.eq.s32.totalorder %s231, 0
    %s234 = sadd.s32 %s233, 1
    %s235 = scalar_select %p232, %s233, %s234
    %p238 = pneg %p232
    %p239 = scmp.eq.s32.totalorder %s14, 1
    %p240 = por %p238, %p239
    %p241 = scmp.ne.s32.totalorder %s233, %s236
    %p242 = scmp.eq.s32.totalorder %s14, 0
    %p243 = por %p241, %p242
    %p244 = scmp.ne.s32.totalorder %s233, %s236
    %p245 = scmp.eq.s32.totalorder %s19, 1
    %p246 = por %p244, %p245
    %p247 = scmp.ne.s32.totalorder %s236, %s237
    %p248 = scmp.eq.s32.totalorder %s19, 0
    %p249 = por %p247, %p248
    %p250 = scmp.ne.s32.totalorder %s236, %s237
    %p251 = scmp.eq.s32.totalorder %s20, 1
    %p252 = por %p250, %p251
    %p254 = scmp.ne.s32.totalorder %s237, %s253
    %p255 = scmp.eq.s32.totalorder %s20, 0
    %p256 = por %p254, %p255
    %p257 = scmp.le.s32.totalorder 1, %s14
    %p258 = scmp.lt.s32.totalorder %s14, 3
    %p259 = pnand %p257, %p258
    %p260 = pneg %p259
    // Predicated region
    $region9: #{_lambda_.6} parent=5 // pred_check
      _
    $region10: #{_lambda_.6} parent=5 // pred_check_branch
      %262 = sbr.rel (%p259) target = $region12
    $region11: #{_lambda_.6} parent=5 // pred_region
      %s263 = ssub.s32 %s14, 1
      // Predicated region
      $region13: #{_lambda_.6} parent=11 // pred_check
        %p264 = pneg %p89
      $region14: #{_lambda_.6} parent=11 // pred_check_branch
        %266 = sbr.rel (%p264) target = $region16
      $region15: #{_lambda_.6} parent=11 // pred_region
        %s267 = smul.u32 16, %s26
        %p268 = scmp.lt.s32.totalorder %s267, 15
        %s269 = scalar_select %p268, %s267, 15
        %p270 = scmp.lt.s32.totalorder %s25, 0
        %s271 = scalar_select %p270, %s25, 0
        %s272 = sadd.s32 %s271, %s269
        %s273 = smul.addr %s272, 4
        %s274 = scalar_lea.vmem %s1, %s273
        %s275 = smul.u32 16, %s26
      $region16: #{_lambda_.6} parent=11 // pred_fallthru
        _
      // Predicated region
      $region17: #{_lambda_.6} parent=11 // pred_check
        %p276 = pneg %p115
      $region18: #{_lambda_.6} parent=11 // pred_check_branch
        %278 = sbr.rel (%p276) target = $region20
      $region19: #{_lambda_.6} parent=11 // pred_region
        %p279 = scmp.lt.s32.totalorder %s25, 0
        %s280 = scalar_select %p279, %s25, 0
        %s281 = scalar_lea.vmem %s2, %s280
      $region20: #{_lambda_.6} parent=11 // pred_fallthru
        _
      // Predicated region
      $region21: #{_lambda_.6} parent=11 // pred_check
        %p282 = pneg %p141
      $region22: #{_lambda_.6} parent=11 // pred_check_branch
        %284 = sbr.rel (%p282) target = $region24
      $region23: #{_lambda_.6} parent=11 // pred_region
        %p285 = scmp.lt.s32.totalorder %s26, 0
        %s286 = scalar_select %p285, %s26, 0
        %s287 = scalar_lea.vmem %s3, %s286
      $region24: #{_lambda_.6} parent=11 // pred_fallthru
        _
      // Predicated region
      $region25: #{_lambda_.6} parent=11 // pred_check
        %p288 = pneg %p167
      $region26: #{_lambda_.6} parent=11 // pred_check_branch
        %290 = sbr.rel (%p288) target = $region28
      $region27: #{_lambda_.6} parent=11 // pred_region
        %p291 = scmp.lt.s32.totalorder %s26, 0
        %s292 = scalar_select %p291, %s26, 0
        %s293 = scalar_lea.vmem %s4, %s292
      $region28: #{_lambda_.6} parent=11 // pred_fallthru
        _
    $region12: #{_lambda_.6} parent=5 // pred_fallthru
      _
    %p294 = scmp.lt.s32.totalorder %s14, 2
    // Predicated region
    $region29: #{_lambda_.6} parent=5 // pred_check
      %p295 = pneg %p294
    $region30: #{_lambda_.6} parent=5 // pred_check_branch
      %297 = sbr.rel (%p295) target = $region32
    $region31: #{_lambda_.6} parent=5 // pred_region
      // Predicated region
      $region33: #{_lambda_.6} parent=31 // pred_check
        %p298 = pneg %p55
      $region34: #{_lambda_.6} parent=31 // pred_check_branch
        %300 = sbr.rel (%p298) target = $region36
      $region35: #{_lambda_.6} parent=31 // pred_region
        %p301 = scmp.lt.s32.totalorder %s21, 1
        %s302 = scalar_select %p301, %s21, 1
        %p303 = scmp.lt.s32.totalorder %s23, 0
        %s304 = scalar_select %p303, %s23, 0
        %s305 = smul.addr %s302, 54
        %s306 = sadd.s32 %s304, %s305
        %s307 = smul.addr %s306, 4
        %s308 = scalar_lea.vmem %s0, %s307
      $region36: #{_lambda_.6} parent=31 // pred_fallthru
        _
      // Predicated region
      $region37: #{_lambda_.6} parent=31 // pred_check
        %p309 = pneg %p187
      $region38: #{_lambda_.6} parent=31 // pred_check_branch
        %311 = sbr.rel (%p309) target = $region40
      $region39: #{_lambda_.6} parent=31 // pred_region
        %p312 = scmp.lt.s32.totalorder %s21, 1
        %s313 = scalar_select %p312, %s21, 1
        %s314 = smul.addr %s313, 54
        %s315 = smul.addr %s314, 8
        %s316 = scalar_lea.vmem %s5, %s315
      $region40: #{_lambda_.6} parent=31 // pred_fallthru
        _
    $region32: #{_lambda_.6} parent=5 // pred_fallthru
      _
    %p317 = scmp.le.s32.totalorder 1, %s14
    %p318 = scmp.lt.s32.totalorder %s14, 3
    %p319 = pnand %p317, %p318
    %p320 = pneg %p319
    // Predicated region
    $region41: #{_lambda_.6} parent=5 // pred_check
      _
    $region42: #{_lambda_.6} parent=5 // pred_check_branch
      %322 = sbr.rel (%p319) target = $region44
    $region43: #{_lambda_.6} parent=5 // pred_region
      %s323 = ssub.s32 %s14, 1
      %p324 = scmp.lt.s32.totalorder %s24, 1
      %s325 = scalar_select %p324, %s24, 1
      %p326 = scmp.lt.s32.totalorder %s26, 0
      %s327 = scalar_select %p326, %s26, 0
      %s328 = smul.addr %s325, 54
      %s329 = sadd.s32 %s327, %s328
      %s330 = smul.addr %s329, 4
      %s331 = scalar_lea.vmem %s0, %s330
      %p332 = pneg %p61
      %p333 = pneg %p58
      %s334 = smul.u32 16, %s26
      %p335 = scmp.lt.s32.totalorder %s334, 15
      %s336 = scalar_select %p335, %s334, 15
      %p337 = scmp.lt.s32.totalorder %s25, 0
      %s338 = scalar_select %p337, %s25, 0
      %s339 = sadd.s32 %s338, %s336
      %s340 = smul.addr %s339, 4
      %s341 = scalar_lea.vmem %s1, %s340
      %p342 = pneg %p89
      %p343 = pneg %p86
      %p344 = scmp.lt.s32.totalorder %s25, 0
      %s345 = scalar_select %p344, %s25, 0
      %s346 = scalar_lea.vmem %s2, %s345
      %p347 = pneg %p115
      %p348 = pneg %p112
      %p349 = scmp.lt.s32.totalorder %s26, 0
      %s350 = scalar_select %p349, %s26, 0
      %s351 = scalar_lea.vmem %s3, %s350
      %p352 = pneg %p141
      %p353 = pneg %p138
      %p354 = scmp.lt.s32.totalorder %s26, 0
      %s355 = scalar_select %p354, %s26, 0
      %s356 = scalar_lea.vmem %s4, %s355
      %p357 = pneg %p167
      %p358 = pneg %p164
      %p359 = scmp.lt.s32.totalorder %s24, 1
      %s360 = scalar_select %p359, %s24, 1
      %s361 = smul.addr %s360, 54
      %s362 = smul.addr %s361, 8
      %s363 = scalar_lea.vmem %s5, %s362
      %p364 = pneg %p193
      %p365 = pneg %p190
      %p366 = pneg %p221
      %p367 = pneg %p218
      %p368 = scmp.lt.s32.totalorder %s24, 1
      %s369 = scalar_select %p368, %s24, 1
      %p370 = scmp.lt.s32.totalorder %s25, 0
      %s371 = scalar_select %p370, %s25, 0
      %s372 = smul.addr %s369, 32
      %s373 = sadd.s32 %s371, %s372
      %s374 = smul.addr %s373, 4
      %s375 = scalar_lea.vmem %s6, %s374
      %p376 = pneg %p249
      %p377 = pneg %p246
      %p378 = scmp.lt.s32.totalorder %s24, 1
      %s379 = scalar_select %p378, %s24, 1
      %p380 = scmp.lt.s32.totalorder %s25, 0
      %s381 = scalar_select %p380, %s25, 0
      %s382 = sadd.s32 %s381, %s379
      %s383 = smul.addr %s382, 2
      %s384 = scalar_lea.vmem %s7, %s383
      %p385 = scmp.lt.s32.totalorder %s24, 1
      %s386 = scalar_select %p385, %s24, 1
      %p387 = scmp.lt.s32.totalorder %s26, 0
      %s388 = scalar_select %p387, %s26, 0
      %s389 = smul.addr %s386, 54
      %s390 = sadd.s32 %s388, %s389
      %s391 = smul.addr %s390, 4
      %s392 = scalar_lea.vmem %s0, %s391
      %s393 = smul.u32 16, %s26
      %p394 = scmp.lt.s32.totalorder %s393, 15
      %s395 = scalar_select %p394, %s393, 15
      %p396 = scmp.lt.s32.totalorder %s25, 0
      %s397 = scalar_select %p396, %s25, 0
      %s398 = sadd.s32 %s397, %s395
      %s399 = smul.addr %s398, 4
      %s400 = scalar_lea.vmem %s1, %s399
      %s401 = smul.u32 16, %s26
      %p402 = scmp.lt.s32.totalorder %s25, 0
      %s403 = scalar_select %p402, %s25, 0
      %s404 = scalar_lea.vmem %s2, %s403
      %p405 = scmp.lt.s32.totalorder %s26, 0
      %s406 = scalar_select %p405, %s26, 0
      %s407 = scalar_lea.vmem %s3, %s406
      %p408 = scmp.lt.s32.totalorder %s26, 0
      %s409 = scalar_select %p408, %s26, 0
      %s410 = scalar_lea.vmem %s4, %s409
      %p411 = scmp.lt.s32.totalorder %s24, 1
      %s412 = scalar_select %p411, %s24, 1
      %s413 = smul.addr %s412, 54
      %s414 = smul.addr %s413, 8
      %s415 = scalar_lea.vmem %s5, %s414
      %p416 = scmp.lt.s32.totalorder %s24, 1
      %s417 = scalar_select %p416, %s24, 1
      %p418 = scmp.lt.s32.totalorder %s25, 0
      %s419 = scalar_select %p418, %s25, 0
      %s420 = smul.addr %s417, 32
      %s421 = sadd.s32 %s419, %s420
      %s422 = smul.addr %s421, 4
      %s423 = scalar_lea.vmem %s6, %s422
      %p424 = scmp.lt.s32.totalorder %s24, 1
      %s425 = scalar_select %p424, %s24, 1
      %p426 = scmp.lt.s32.totalorder %s25, 0
      %s427 = scalar_select %p426, %s25, 0
      %s428 = sadd.s32 %s427, %s425
      %s429 = smul.addr %s428, 2
      %s430 = scalar_lea.vmem %s7, %s429
      %p431 = scmp.eq.s32.totalorder %s26, 0
      // Predicated region
      $region45: #{_lambda_.6} parent=43 // pred_check
        %p432 = pneg %p431
      $region46: #{_lambda_.6} parent=43 // pred_check_branch
        %434 = sbr.rel (%p432) target = $region48
      $region47: #{_lambda_.6} parent=43 // pred_region
        %435 = vst [vmem:[#allocation2] sm:$0xff] 0.0
        %436 = vst [vmem:[#allocation2 + $0x8] sm:$0xff] 0.0
        %437 = vst [vmem:[#allocation2 + $0x10] sm:$0xff] 0.0
        %438 = vst [vmem:[#allocation2 + $0x18] sm:$0xff] 0.0
        %439 = vst [vmem:[#allocation2 + $0x20] sm:$0xff] 0.0
        %440 = vst [vmem:[#allocation2 + $0x28] sm:$0xff] 0.0
        %441 = vst [vmem:[#allocation2 + $0x30] sm:$0xff] 0.0
        %442 = vst [vmem:[#allocation2 + $0x38] sm:$0xff] 0.0
        %443 = vst [vmem:[#allocation2 + $0x40] sm:$0xff] 0.0
        %444 = vst [vmem:[#allocation2 + $0x48] sm:$0xff] 0.0
        %445 = vst [vmem:[#allocation2 + $0x50] sm:$0xff] 0.0
        %446 = vst [vmem:[#allocation2 + $0x58] sm:$0xff] 0.0
        %447 = vst [vmem:[#allocation2 + $0x60] sm:$0xff] 0.0
        %448 = vst [vmem:[#allocation2 + $0x68] sm:$0xff] 0.0
        %449 = vst [vmem:[#allocation2 + $0x70] sm:$0xff] 0.0
        %450 = vst [vmem:[#allocation2 + $0x78] sm:$0xff] 0.0
        %451 = vst [vmem:[#allocation2 + $0x80] sm:$0xff] 0.0
        %452 = vst [vmem:[#allocation2 + $0x88] sm:$0xff] 0.0
        %453 = vst [vmem:[#allocation2 + $0x90] sm:$0xff] 0.0
        %454 = vst [vmem:[#allocation2 + $0x98] sm:$0xff] 0.0
        %455 = vst [vmem:[#allocation2 + $0xa0] sm:$0xff] 0.0
        %456 = vst [vmem:[#allocation2 + $0xa8] sm:$0xff] 0.0
        %457 = vst [vmem:[#allocation2 + $0xb0] sm:$0xff] 0.0
        %458 = vst [vmem:[#allocation2 + $0xb8] sm:$0xff] 0.0
        %459 = vst [vmem:[#allocation2 + $0xc0] sm:$0xff] 0.0
        %460 = vst [vmem:[#allocation2 + $0xc8] sm:$0xff] 0.0
        %461 = vst [vmem:[#allocation2 + $0xd0] sm:$0xff] 0.0
        %462 = vst [vmem:[#allocation2 + $0xd8] sm:$0xff] 0.0
        %463 = vst [vmem:[#allocation2 + $0xe0] sm:$0xff] 0.0
        %464 = vst [vmem:[#allocation2 + $0xe8] sm:$0xff] 0.0
        %465 = vst [vmem:[#allocation2 + $0xf0] sm:$0xff] 0.0
        %466 = vst [vmem:[#allocation2 + $0xf8] sm:$0xff] 0.0
      $region48: #{_lambda_.6} parent=43 // pred_fallthru
        _
      %v467 = vld [vmem:[%s392] sm:$0xf]
      %v468 = vld [vmem:[%s392 + $0x4] sm:$0xf]
      %v469 = vld [vmem:[%s392 + $0x8] sm:$0x1]
      %v470 = vld [vmem:[%s392 + $0xc] sm:$0xf]
      %v471 = vld [vmem:[%s392 + $0x10] sm:$0xf]
      %v472 = vld [vmem:[%s392 + $0x14] sm:$0x1]
      %v473 = vld [vmem:[%s392 + $0x18] sm:$0xf]
      %v474 = vld [vmem:[%s392 + $0x1c] sm:$0xf]
      %v475 = vld [vmem:[%s392 + $0x20] sm:$0x1]
      %v476 = vld [vmem:[%s392 + $0x24] sm:$0xf]
      %v477 = vld [vmem:[%s392 + $0x28] sm:$0xf]
      %v478 = vld [vmem:[%s392 + $0x2c] sm:$0x1]
      %v479 = vld [vmem:[%s392 + $0x30] sm:$0xf]
      %v480 = vld [vmem:[%s392 + $0x34] sm:$0xf]
      %v481 = vld [vmem:[%s392 + $0x38] sm:$0x1]
      %v482 = vld [vmem:[%s392 + $0x3c] sm:$0xf]
      %v483 = vld [vmem:[%s392 + $0x40] sm:$0xf]
      %v484 = vld [vmem:[%s392 + $0x44] sm:$0x1]
      %v485 = vld [vmem:[%s392 + $0x48] sm:$0xf]
      %v486 = vld [vmem:[%s392 + $0x4c] sm:$0xf]
      %v487 = vld [vmem:[%s392 + $0x50] sm:$0x1]
      %v488 = vld [vmem:[%s392 + $0x54] sm:$0xf]
      %v489 = vld [vmem:[%s392 + $0x58] sm:$0xf]
      %v490 = vld [vmem:[%s392 + $0x5c] sm:$0x1]
      %v491 = vld [vmem:[%s392 + $0x60] sm:$0xf]
      %v492 = vld [vmem:[%s392 + $0x64] sm:$0xf]
      %v493 = vld [vmem:[%s392 + $0x68] sm:$0x1]
      %v494 = vld [vmem:[%s392 + $0x6c] sm:$0xf]
      %v495 = vld [vmem:[%s392 + $0x70] sm:$0xf]
      %v496 = vld [vmem:[%s392 + $0x74] sm:$0x1]
      %v497 = vld [vmem:[%s392 + $0x78] sm:$0xf]
      %v498 = vld [vmem:[%s392 + $0x7c] sm:$0xf]
      %v499 = vld [vmem:[%s392 + $0x80] sm:$0x1]
      %v500 = vld [vmem:[%s392 + $0x84] sm:$0xf]
      %v501 = vld [vmem:[%s392 + $0x88] sm:$0xf]
      %v502 = vld [vmem:[%s392 + $0x8c] sm:$0x1]
      %v503 = vld [vmem:[%s392 + $0x90] sm:$0xf]
      %v504 = vld [vmem:[%s392 + $0x94] sm:$0xf]
      %v505 = vld [vmem:[%s392 + $0x98] sm:$0x1]
      %v506 = vld [vmem:[%s392 + $0x9c] sm:$0xf]
      %v507 = vld [vmem:[%s392 + $0xa0] sm:$0xf]
      %v508 = vld [vmem:[%s392 + $0xa4] sm:$0x1]
      %v509 = vld [vmem:[%s392 + $0xa8] sm:$0xf]
      %v510 = vld [vmem:[%s392 + $0xac] sm:$0xf]
      %v511 = vld [vmem:[%s392 + $0xb0] sm:$0x1]
      %v512 = vld [vmem:[%s392 + $0xb4] sm:$0xf]
      %v513 = vld [vmem:[%s392 + $0xb8] sm:$0xf]
      %v514 = vld [vmem:[%s392 + $0xbc] sm:$0x1]
      %v515 = vld [vmem:[%s392 + $0xc0] sm:$0xf]
      %v516 = vld [vmem:[%s392 + $0xc4] sm:$0xf]
      %v517 = vld [vmem:[%s392 + $0xc8] sm:$0x1]
      %v518 = vld [vmem:[%s392 + $0xcc] sm:$0xf]
      %v519 = vld [vmem:[%s392 + $0xd0] sm:$0xf]
      %v520 = vld [vmem:[%s392 + $0xd4] sm:$0x1]
      %v521 = vunpack.c.l.bf16 %v467
      %v522 = vunpack.c.l.bf16 %v468
      %v523 = vunpack.c.l.bf16 %v469
      %v524 = vunpack.c.l.bf16 %v470
      %v525 = vunpack.c.l.bf16 %v471
      %v526 = vunpack.c.l.bf16 %v472
      %v527 = vunpack.c.l.bf16 %v473
      %v528 = vunpack.c.l.bf16 %v474
      %v529 = vunpack.c.l.bf16 %v475
      %v530 = vunpack.c.l.bf16 %v476
      %v531 = vunpack.c.l.bf16 %v477
      %v532 = vunpack.c.l.bf16 %v478
      %v533 = vunpack.c.l.bf16 %v479
      %v534 = vunpack.c.l.bf16 %v480
      %v535 = vunpack.c.l.bf16 %v481
      %v536 = vunpack.c.l.bf16 %v482
      %v537 = vunpack.c.l.bf16 %v483
      %v538 = vunpack.c.l.bf16 %v484
      %v539 = vunpack.c.l.bf16 %v485
      %v540 = vunpack.c.l.bf16 %v486
      %v541 = vunpack.c.l.bf16 %v487
      %v542 = vunpack.c.l.bf16 %v488
      %v543 = vunpack.c.l.bf16 %v489
      %v544 = vunpack.c.l.bf16 %v490
      %v545 = vunpack.c.l.bf16 %v491
      %v546 = vunpack.c.l.bf16 %v492
      %v547 = vunpack.c.l.bf16 %v493
      %v548 = vunpack.c.l.bf16 %v494
      %v549 = vunpack.c.l.bf16 %v495
      %v550 = vunpack.c.l.bf16 %v496
      %v551 = vunpack.c.l.bf16 %v497
      %v552 = vunpack.c.l.bf16 %v498
      %v553 = vunpack.c.l.bf16 %v499
      %v554 = vunpack.c.l.bf16 %v500
      %v555 = vunpack.c.l.bf16 %v501
      %v556 = vunpack.c.l.bf16 %v502
      %v557 = vunpack.c.l.bf16 %v503
      %v558 = vunpack.c.l.bf16 %v504
      %v559 = vunpack.c.l.bf16 %v505
      %v560 = vunpack.c.l.bf16 %v506
      %v561 = vunpack.c.l.bf16 %v507
      %v562 = vunpack.c.l.bf16 %v508
      %v563 = vunpack.c.l.bf16 %v509
      %v564 = vunpack.c.l.bf16 %v510
      %v565 = vunpack.c.l.bf16 %v511
      %v566 = vunpack.c.l.bf16 %v512
      %v567 = vunpack.c.l.bf16 %v513
      %v568 = vunpack.c.l.bf16 %v514
      %v569 = vunpack.c.l.bf16 %v515
      %v570 = vunpack.c.l.bf16 %v516
      %v571 = vunpack.c.l.bf16 %v517
      %v572 = vunpack.c.l.bf16 %v518
      %v573 = vunpack.c.l.bf16 %v519
      %v574 = vunpack.c.l.bf16 %v520
      %v575 = vld [vmem:[%s407] sm:$0x1]
      %v577 = vperm.slane %v575, 0
      %v579 = vmul.f32 %v521, %v577
      %v580 = vmul.f32 %v522, %v577
      %v581 = vmul.f32 %v523, %v577
      %v582 = vmul.f32 %v524, %v577
      %v583 = vmul.f32 %v525, %v577
      %v584 = vmul.f32 %v526, %v577
      %v585 = vmul.f32 %v527, %v577
      %v586 = vmul.f32 %v528, %v577
      %v587 = vmul.f32 %v529, %v577
      %v588 = vmul.f32 %v530, %v577
      %v589 = vmul.f32 %v531, %v577
      %v590 = vmul.f32 %v532, %v577
      %v591 = vmul.f32 %v533, %v577
      %v592 = vmul.f32 %v534, %v577
      %v593 = vmul.f32 %v535, %v577
      %v594 = vmul.f32 %v536, %v577
      %v595 = vmul.f32 %v537, %v577
      %v596 = vmul.f32 %v538, %v577
      %v597 = vmul.f32 %v539, %v577
      %v598 = vmul.f32 %v540, %v577
      %v599 = vmul.f32 %v541, %v577
      %v600 = vmul.f32 %v542, %v577
      %v601 = vmul.f32 %v543, %v577
      %v602 = vmul.f32 %v544, %v577
      %v603 = vmul.f32 %v545, %v577
      %v604 = vmul.f32 %v546, %v577
      %v605 = vmul.f32 %v547, %v577
      %v606 = vmul.f32 %v548, %v577
      %v607 = vmul.f32 %v549, %v577
      %v608 = vmul.f32 %v550, %v577
      %v609 = vmul.f32 %v551, %v577
      %v610 = vmul.f32 %v552, %v577
      %v611 = vmul.f32 %v553, %v577
      %v612 = vmul.f32 %v554, %v577
      %v613 = vmul.f32 %v555, %v577
      %v614 = vmul.f32 %v556, %v577
      %v615 = vmul.f32 %v557, %v577
      %v616 = vmul.f32 %v558, %v577
      %v617 = vmul.f32 %v559, %v577
      %v618 = vmul.f32 %v560, %v577
      %v619 = vmul.f32 %v561, %v577
      %v620 = vmul.f32 %v562, %v577
      %v621 = vmul.f32 %v563, %v577
      %v622 = vmul.f32 %v564, %v577
      %v623 = vmul.f32 %v565, %v577
      %v624 = vmul.f32 %v566, %v577
      %v625 = vmul.f32 %v567, %v577
      %v626 = vmul.f32 %v568, %v577
      %v627 = vmul.f32 %v569, %v577
      %v628 = vmul.f32 %v570, %v577
      %v629 = vmul.f32 %v571, %v577
      %v630 = vmul.f32 %v572, %v577
      %v631 = vmul.f32 %v573, %v577
      %v632 = vmul.f32 %v574, %v577
      %v633 = vld [vmem:[%s410] sm:$0x1]
      %v635 = vperm.slane %v633, 0
      %v637 = vadd.f32 %v579, %v635
      %v638 = vadd.f32 %v580, %v635
      %v639 = vadd.f32 %v581, %v635
      %v640 = vadd.f32 %v582, %v635
      %v641 = vadd.f32 %v583, %v635
      %v642 = vadd.f32 %v584, %v635
      %v643 = vadd.f32 %v585, %v635
      %v644 = vadd.f32 %v586, %v635
      %v645 = vadd.f32 %v587, %v635
      %v646 = vadd.f32 %v588, %v635
      %v647 = vadd.f32 %v589, %v635
      %v648 = vadd.f32 %v590, %v635
      %v649 = vadd.f32 %v591, %v635
      %v650 = vadd.f32 %v592, %v635
      %v651 = vadd.f32 %v593, %v635
      %v652 = vadd.f32 %v594, %v635
      %v653 = vadd.f32 %v595, %v635
      %v654 = vadd.f32 %v596, %v635
      %v655 = vadd.f32 %v597, %v635
      %v656 = vadd.f32 %v598, %v635
      %v657 = vadd.f32 %v599, %v635
      %v658 = vadd.f32 %v600, %v635
      %v659 = vadd.f32 %v601, %v635
      %v660 = vadd.f32 %v602, %v635
      %v661 = vadd.f32 %v603, %v635
      %v662 = vadd.f32 %v604, %v635
      %v663 = vadd.f32 %v605, %v635
      %v664 = vadd.f32 %v606, %v635
      %v665 = vadd.f32 %v607, %v635
      %v666 = vadd.f32 %v608, %v635
      %v667 = vadd.f32 %v609, %v635
      %v668 = vadd.f32 %v610, %v635
      %v669 = vadd.f32 %v611, %v635
      %v670 = vadd.f32 %v612, %v635
      %v671 = vadd.f32 %v613, %v635
      %v672 = vadd.f32 %v614, %v635
      %v673 = vadd.f32 %v615, %v635
      %v674 = vadd.f32 %v616, %v635
      %v675 = vadd.f32 %v617, %v635
      %v676 = vadd.f32 %v618, %v635
      %v677 = vadd.f32 %v619, %v635
      %v678 = vadd.f32 %v620, %v635
      %v679 = vadd.f32 %v621, %v635
      %v680 = vadd.f32 %v622, %v635
      %v681 = vadd.f32 %v623, %v635
      %v682 = vadd.f32 %v624, %v635
      %v683 = vadd.f32 %v625, %v635
      %v684 = vadd.f32 %v626, %v635
      %v685 = vadd.f32 %v627, %v635
      %v686 = vadd.f32 %v628, %v635
      %v687 = vadd.f32 %v629, %v635
      %v688 = vadd.f32 %v630, %v635
      %v689 = vadd.f32 %v631, %v635
      %v690 = vadd.f32 %v632, %v635
      %v691 = vmax.f32 %v637, 0.0
      %v692 = vmax.f32 %v638, 0.0
      %v693 = vmax.f32 %v639, 0.0
      %v694 = vmax.f32 %v640, 0.0
      %v695 = vmax.f32 %v641, 0.0
      %v696 = vmax.f32 %v642, 0.0
      %v697 = vmax.f32 %v643, 0.0
      %v698 = vmax.f32 %v644, 0.0
      %v699 = vmax.f32 %v645, 0.0
      %v700 = vmax.f32 %v646, 0.0
      %v701 = vmax.f32 %v647, 0.0
      %v702 = vmax.f32 %v648, 0.0
      %v703 = vmax.f32 %v649, 0.0
      %v704 = vmax.f32 %v650, 0.0
      %v705 = vmax.f32 %v651, 0.0
      %v706 = vmax.f32 %v652, 0.0
      %v707 = vmax.f32 %v653, 0.0
      %v708 = vmax.f32 %v654, 0.0
      %v709 = vmax.f32 %v655, 0.0
      %v710 = vmax.f32 %v656, 0.0
      %v711 = vmax.f32 %v657, 0.0
      %v712 = vmax.f32 %v658, 0.0
      %v713 = vmax.f32 %v659, 0.0
      %v714 = vmax.f32 %v660, 0.0
      %v715 = vmax.f32 %v661, 0.0
      %v716 = vmax.f32 %v662, 0.0
      %v717 = vmax.f32 %v663, 0.0
      %v718 = vmax.f32 %v664, 0.0
      %v719 = vmax.f32 %v665, 0.0
      %v720 = vmax.f32 %v666, 0.0
      %v721 = vmax.f32 %v667, 0.0
      %v722 = vmax.f32 %v668, 0.0
      %v723 = vmax.f32 %v669, 0.0
      %v724 = vmax.f32 %v670, 0.0
      %v725 = vmax.f32 %v671, 0.0
      %v726 = vmax.f32 %v672, 0.0
      %v727 = vmax.f32 %v673, 0.0
      %v728 = vmax.f32 %v674, 0.0
      %v729 = vmax.f32 %v675, 0.0
      %v730 = vmax.f32 %v676, 0.0
      %v731 = vmax.f32 %v677, 0.0
      %v732 = vmax.f32 %v678, 0.0
      %v733 = vmax.f32 %v679, 0.0
      %v734 = vmax.f32 %v680, 0.0
      %v735 = vmax.f32 %v681, 0.0
      %v736 = vmax.f32 %v682, 0.0
      %v737 = vmax.f32 %v683, 0.0
      %v738 = vmax.f32 %v684, 0.0
      %v739 = vmax.f32 %v685, 0.0
      %v740 = vmax.f32 %v686, 0.0
      %v741 = vmax.f32 %v687, 0.0
      %v742 = vmax.f32 %v688, 0.0
      %v743 = vmax.f32 %v689, 0.0
      %v744 = vmax.f32 %v690, 0.0
      %v745 = vld [vmem:[%s415] sm:$0xff]
      %v746 = vld [vmem:[%s415 + $0x8] sm:$0xff]
      %v747 = vld [vmem:[%s415 + $0x10] sm:$0x3]
      %v748 = vld [vmem:[%s415 + $0x18] sm:$0xff]
      %v749 = vld [vmem:[%s415 + $0x20] sm:$0xff]
      %v750 = vld [vmem:[%s415 + $0x28] sm:$0x3]
      %v751 = vld [vmem:[%s415 + $0x30] sm:$0xff]
      %v752 = vld [vmem:[%s415 + $0x38] sm:$0xff]
      %v753 = vld [vmem:[%s415 + $0x40] sm:$0x3]
      %v754 = vld [vmem:[%s415 + $0x48] sm:$0xff]
      %v755 = vld [vmem:[%s415 + $0x50] sm:$0xff]
      %v756 = vld [vmem:[%s415 + $0x58] sm:$0x3]
      %v757 = vld [vmem:[%s415 + $0x60] sm:$0xff]
      %v758 = vld [vmem:[%s415 + $0x68] sm:$0xff]
      %v759 = vld [vmem:[%s415 + $0x70] sm:$0x3]
      %v760 = vld [vmem:[%s415 + $0x78] sm:$0xff]
      %v761 = vld [vmem:[%s415 + $0x80] sm:$0xff]
      %v762 = vld [vmem:[%s415 + $0x88] sm:$0x3]
      %v763 = vld [vmem:[%s415 + $0x90] sm:$0xff]
      %v764 = vld [vmem:[%s415 + $0x98] sm:$0xff]
      %v765 = vld [vmem:[%s415 + $0xa0] sm:$0x3]
      %v766 = vld [vmem:[%s415 + $0xa8] sm:$0xff]
      %v767 = vld [vmem:[%s415 + $0xb0] sm:$0xff]
      %v768 = vld [vmem:[%s415 + $0xb8] sm:$0x3]
      %v769 = vld [vmem:[%s415 + $0xc0] sm:$0xff]
      %v770 = vld [vmem:[%s415 + $0xc8] sm:$0xff]
      %v771 = vld [vmem:[%s415 + $0xd0] sm:$0x3]
      %v772 = vld [vmem:[%s415 + $0xd8] sm:$0xff]
      %v773 = vld [vmem:[%s415 + $0xe0] sm:$0xff]
      %v774 = vld [vmem:[%s415 + $0xe8] sm:$0x3]
      %v775 = vld [vmem:[%s415 + $0xf0] sm:$0xff]
      %v776 = vld [vmem:[%s415 + $0xf8] sm:$0xff]
      %v777 = vld [vmem:[%s415 + $0x100] sm:$0x3]
      %v778 = vld [vmem:[%s415 + $0x108] sm:$0xff]
      %v779 = vld [vmem:[%s415 + $0x110] sm:$0xff]
      %v780 = vld [vmem:[%s415 + $0x118] sm:$0x3]
      %v781 = vld [vmem:[%s415 + $0x120] sm:$0xff]
      %v782 = vld [vmem:[%s415 + $0x128] sm:$0xff]
      %v783 = vld [vmem:[%s415 + $0x130] sm:$0x3]
      %v784 = vld [vmem:[%s415 + $0x138] sm:$0xff]
      %v785 = vld [vmem:[%s415 + $0x140] sm:$0xff]
      %v786 = vld [vmem:[%s415 + $0x148] sm:$0x3]
      %v787 = vld [vmem:[%s415 + $0x150] sm:$0xff]
      %v788 = vld [vmem:[%s415 + $0x158] sm:$0xff]
      %v789 = vld [vmem:[%s415 + $0x160] sm:$0x3]
      %v790 = vld [vmem:[%s415 + $0x168] sm:$0xff]
      %v791 = vld [vmem:[%s415 + $0x170] sm:$0xff]
      %v792 = vld [vmem:[%s415 + $0x178] sm:$0x3]
      %v793 = vld [vmem:[%s415 + $0x180] sm:$0xff]
      %v794 = vld [vmem:[%s415 + $0x188] sm:$0xff]
      %v795 = vld [vmem:[%s415 + $0x190] sm:$0x3]
      %v796 = vld [vmem:[%s415 + $0x198] sm:$0xff]
      %v797 = vld [vmem:[%s415 + $0x1a0] sm:$0xff]
      %v798 = vld [vmem:[%s415 + $0x1a8] sm:$0x3]
      %800 = vset.pattern.permute.xlu0 0
      %801 = vperm.xlu0 %800, %v745
      %v802 = vpop.permute.xlu0 %801
      %805 = vset.pattern.permute.xlu0 0
      %806 = vperm.xlu0 %805, %v746
      %v807 = vpop.permute.xlu0 %806
      %810 = vset.pattern.permute.xlu0 0
      %811 = vperm.xlu0 %810, %v747
      %v812 = vpop.permute.xlu0 %811
      %815 = vset.pattern.permute.xlu0 0
      %816 = vperm.xlu0 %815, %v748
      %v817 = vpop.permute.xlu0 %816
      %820 = vset.pattern.permute.xlu0 0
      %821 = vperm.xlu0 %820, %v749
      %v822 = vpop.permute.xlu0 %821
      %825 = vset.pattern.permute.xlu0 0
      %826 = vperm.xlu0 %825, %v750
      %v827 = vpop.permute.xlu0 %826
      %830 = vset.pattern.permute.xlu0 0
      %831 = vperm.xlu0 %830, %v751
      %v832 = vpop.permute.xlu0 %831
      %835 = vset.pattern.permute.xlu0 0
      %836 = vperm.xlu0 %835, %v752
      %v837 = vpop.permute.xlu0 %836
      %840 = vset.pattern.permute.xlu0 0
      %841 = vperm.xlu0 %840, %v753
      %v842 = vpop.permute.xlu0 %841
      %845 = vset.pattern.permute.xlu0 0
      %846 = vperm.xlu0 %845, %v754
      %v847 = vpop.permute.xlu0 %846
      %850 = vset.pattern.permute.xlu0 0
      %851 = vperm.xlu0 %850, %v755
      %v852 = vpop.permute.xlu0 %851
      %855 = vset.pattern.permute.xlu0 0
      %856 = vperm.xlu0 %855, %v756
      %v857 = vpop.permute.xlu0 %856
      %860 = vset.pattern.permute.xlu0 0
      %861 = vperm.xlu0 %860, %v757
      %v862 = vpop.permute.xlu0 %861
      %865 = vset.pattern.permute.xlu0 0
      %866 = vperm.xlu0 %865, %v758
      %v867 = vpop.permute.xlu0 %866
      %870 = vset.pattern.permute.xlu0 0
      %871 = vperm.xlu0 %870, %v759
      %v872 = vpop.permute.xlu0 %871
      %875 = vset.pattern.permute.xlu0 0
      %876 = vperm.xlu0 %875, %v760
      %v877 = vpop.permute.xlu0 %876
      %880 = vset.pattern.permute.xlu0 0
      %881 = vperm.xlu0 %880, %v761
      %v882 = vpop.permute.xlu0 %881
      %885 = vset.pattern.permute.xlu0 0
      %886 = vperm.xlu0 %885, %v762
      %v887 = vpop.permute.xlu0 %886
      %890 = vset.pattern.permute.xlu0 0
      %891 = vperm.xlu0 %890, %v763
      %v892 = vpop.permute.xlu0 %891
      %895 = vset.pattern.permute.xlu0 0
      %896 = vperm.xlu0 %895, %v764
      %v897 = vpop.permute.xlu0 %896
      %900 = vset.pattern.permute.xlu0 0
      %901 = vperm.xlu0 %900, %v765
      %v902 = vpop.permute.xlu0 %901
      %905 = vset.pattern.permute.xlu0 0
      %906 = vperm.xlu0 %905, %v766
      %v907 = vpop.permute.xlu0 %906
      %910 = vset.pattern.permute.xlu0 0
      %911 = vperm.xlu0 %910, %v767
      %v912 = vpop.permute.xlu0 %911
      %915 = vset.pattern.permute.xlu0 0
      %916 = vperm.xlu0 %915, %v768
      %v917 = vpop.permute.xlu0 %916
      %920 = vset.pattern.permute.xlu0 0
      %921 = vperm.xlu0 %920, %v769
      %v922 = vpop.permute.xlu0 %921
      %925 = vset.pattern.permute.xlu0 0
      %926 = vperm.xlu0 %925, %v770
      %v927 = vpop.permute.xlu0 %926
      %930 = vset.pattern.permute.xlu0 0
      %931 = vperm.xlu0 %930, %v771
      %v932 = vpop.permute.xlu0 %931
      %935 = vset.pattern.permute.xlu0 0
      %936 = vperm.xlu0 %935, %v772
      %v937 = vpop.permute.xlu0 %936
      %940 = vset.pattern.permute.xlu0 0
      %941 = vperm.xlu0 %940, %v773
      %v942 = vpop.permute.xlu0 %941
      %945 = vset.pattern.permute.xlu0 0
      %946 = vperm.xlu0 %945, %v774
      %v947 = vpop.permute.xlu0 %946
      %950 = vset.pattern.permute.xlu0 0
      %951 = vperm.xlu0 %950, %v775
      %v952 = vpop.permute.xlu0 %951
      %955 = vset.pattern.permute.xlu0 0
      %956 = vperm.xlu0 %955, %v776
      %v957 = vpop.permute.xlu0 %956
      %960 = vset.pattern.permute.xlu0 0
      %961 = vperm.xlu0 %960, %v777
      %v962 = vpop.permute.xlu0 %961
      %965 = vset.pattern.permute.xlu0 0
      %966 = vperm.xlu0 %965, %v778
      %v967 = vpop.permute.xlu0 %966
      %970 = vset.pattern.permute.xlu0 0
      %971 = vperm.xlu0 %970, %v779
      %v972 = vpop.permute.xlu0 %971
      %975 = vset.pattern.permute.xlu0 0
      %976 = vperm.xlu0 %975, %v780
      %v977 = vpop.permute.xlu0 %976
      %980 = vset.pattern.permute.xlu0 0
      %981 = vperm.xlu0 %980, %v781
      %v982 = vpop.permute.xlu0 %981
      %985 = vset.pattern.permute.xlu0 0
      %986 = vperm.xlu0 %985, %v782
      %v987 = vpop.permute.xlu0 %986
      %990 = vset.pattern.permute.xlu0 0
      %991 = vperm.xlu0 %990, %v783
      %v992 = vpop.permute.xlu0 %991
      %995 = vset.pattern.permute.xlu0 0
      %996 = vperm.xlu0 %995, %v784
      %v997 = vpop.permute.xlu0 %996
      %1000 = vset.pattern.permute.xlu0 0
      %1001 = vperm.xlu0 %1000, %v785
      %v1002 = vpop.permute.xlu0 %1001
      %1005 = vset.pattern.permute.xlu0 0
      %1006 = vperm.xlu0 %1005, %v786
      %v1007 = vpop.permute.xlu0 %1006
      %1010 = vset.pattern.permute.xlu0 0
      %1011 = vperm.xlu0 %1010, %v787
      %v1012 = vpop.permute.xlu0 %1011
      %1015 = vset.pattern.permute.xlu0 0
      %1016 = vperm.xlu0 %1015, %v788
      %v1017 = vpop.permute.xlu0 %1016
      %1020 = vset.pattern.permute.xlu0 0
      %1021 = vperm.xlu0 %1020, %v789
      %v1022 = vpop.permute.xlu0 %1021
      %1025 = vset.pattern.permute.xlu0 0
      %1026 = vperm.xlu0 %1025, %v790
      %v1027 = vpop.permute.xlu0 %1026
      %1030 = vset.pattern.permute.xlu0 0
      %1031 = vperm.xlu0 %1030, %v791
      %v1032 = vpop.permute.xlu0 %1031
      %1035 = vset.pattern.permute.xlu0 0
      %1036 = vperm.xlu0 %1035, %v792
      %v1037 = vpop.permute.xlu0 %1036
      %1040 = vset.pattern.permute.xlu0 0
      %1041 = vperm.xlu0 %1040, %v793
      %v1042 = vpop.permute.xlu0 %1041
      %1045 = vset.pattern.permute.xlu0 0
      %1046 = vperm.xlu0 %1045, %v794
      %v1047 = vpop.permute.xlu0 %1046
      %1050 = vset.pattern.permute.xlu0 0
      %1051 = vperm.xlu0 %1050, %v795
      %v1052 = vpop.permute.xlu0 %1051
      %1055 = vset.pattern.permute.xlu0 0
      %1056 = vperm.xlu0 %1055, %v796
      %v1057 = vpop.permute.xlu0 %1056
      %1060 = vset.pattern.permute.xlu0 0
      %1061 = vperm.xlu0 %1060, %v797
      %v1062 = vpop.permute.xlu0 %1061
      %1065 = vset.pattern.permute.xlu0 0
      %1066 = vperm.xlu0 %1065, %v798
      %v1067 = vpop.permute.xlu0 %1066
      %v1069 = vmul.f32 %v691, %v802
      %v1070 = vmul.f32 %v692, %v807
      %v1071 = vmul.f32 %v693, %v812
      %v1072 = vmul.f32 %v694, %v817
      %v1073 = vmul.f32 %v695, %v822
      %v1074 = vmul.f32 %v696, %v827
      %v1075 = vmul.f32 %v697, %v832
      %v1076 = vmul.f32 %v698, %v837
      %v1077 = vmul.f32 %v699, %v842
      %v1078 = vmul.f32 %v700, %v847
      %v1079 = vmul.f32 %v701, %v852
      %v1080 = vmul.f32 %v702, %v857
      %v1081 = vmul.f32 %v703, %v862
      %v1082 = vmul.f32 %v704, %v867
      %v1083 = vmul.f32 %v705, %v872
      %v1084 = vmul.f32 %v706, %v877
      %v1085 = vmul.f32 %v707, %v882
      %v1086 = vmul.f32 %v708, %v887
      %v1087 = vmul.f32 %v709, %v892
      %v1088 = vmul.f32 %v710, %v897
      %v1089 = vmul.f32 %v711, %v902
      %v1090 = vmul.f32 %v712, %v907
      %v1091 = vmul.f32 %v713, %v912
      %v1092 = vmul.f32 %v714, %v917
      %v1093 = vmul.f32 %v715, %v922
      %v1094 = vmul.f32 %v716, %v927
      %v1095 = vmul.f32 %v717, %v932
      %v1096 = vmul.f32 %v718, %v937
      %v1097 = vmul.f32 %v719, %v942
      %v1098 = vmul.f32 %v720, %v947
      %v1099 = vmul.f32 %v721, %v952
      %v1100 = vmul.f32 %v722, %v957
      %v1101 = vmul.f32 %v723, %v962
      %v1102 = vmul.f32 %v724, %v967
      %v1103 = vmul.f32 %v725, %v972
      %v1104 = vmul.f32 %v726, %v977
      %v1105 = vmul.f32 %v727, %v982
      %v1106 = vmul.f32 %v728, %v987
      %v1107 = vmul.f32 %v729, %v992
      %v1108 = vmul.f32 %v730, %v997
      %v1109 = vmul.f32 %v731, %v1002
      %v1110 = vmul.f32 %v732, %v1007
      %v1111 = vmul.f32 %v733, %v1012
      %v1112 = vmul.f32 %v734, %v1017
      %v1113 = vmul.f32 %v735, %v1022
      %v1114 = vmul.f32 %v736, %v1027
      %v1115 = vmul.f32 %v737, %v1032
      %v1116 = vmul.f32 %v738, %v1037
      %v1117 = vmul.f32 %v739, %v1042
      %v1118 = vmul.f32 %v740, %v1047
      %v1119 = vmul.f32 %v741, %v1052
      %v1120 = vmul.f32 %v742, %v1057
      %v1121 = vmul.f32 %v743, %v1062
      %v1122 = vmul.f32 %v744, %v1067
      %v1123 = vpack.c.bf16 %v1069, %v1069
      %v1124 = vpack.c.bf16 %v1070, %v1070
      %v1125 = vpack.c.bf16 %v1071, %v1071
      %v1126 = vpack.c.bf16 %v1072, %v1072
      %v1127 = vpack.c.bf16 %v1073, %v1073
      %v1128 = vpack.c.bf16 %v1074, %v1074
      %v1129 = vpack.c.bf16 %v1075, %v1075
      %v1130 = vpack.c.bf16 %v1076, %v1076
      %v1131 = vpack.c.bf16 %v1077, %v1077
      %v1132 = vpack.c.bf16 %v1078, %v1078
      %v1133 = vpack.c.bf16 %v1079, %v1079
      %v1134 = vpack.c.bf16 %v1080, %v1080
      %v1135 = vpack.c.bf16 %v1081, %v1081
      %v1136 = vpack.c.bf16 %v1082, %v1082
      %v1137 = vpack.c.bf16 %v1083, %v1083
      %v1138 = vpack.c.bf16 %v1084, %v1084
      %v1139 = vpack.c.bf16 %v1085, %v1085
      %v1140 = vpack.c.bf16 %v1086, %v1086
      %v1141 = vpack.c.bf16 %v1087, %v1087
      %v1142 = vpack.c.bf16 %v1088, %v1088
      %v1143 = vpack.c.bf16 %v1089, %v1089
      %v1144 = vpack.c.bf16 %v1090, %v1090
      %v1145 = vpack.c.bf16 %v1091, %v1091
      %v1146 = vpack.c.bf16 %v1092, %v1092
      %v1147 = vpack.c.bf16 %v1093, %v1093
      %v1148 = vpack.c.bf16 %v1094, %v1094
      %v1149 = vpack.c.bf16 %v1095, %v1095
      %v1150 = vpack.c.bf16 %v1096, %v1096
      %v1151 = vpack.c.bf16 %v1097, %v1097
      %v1152 = vpack.c.bf16 %v1098, %v1098
      %v1153 = vpack.c.bf16 %v1099, %v1099
      %v1154 = vpack.c.bf16 %v1100, %v1100
      %v1155 = vpack.c.bf16 %v1101, %v1101
      %v1156 = vpack.c.bf16 %v1102, %v1102
      %v1157 = vpack.c.bf16 %v1103, %v1103
      %v1158 = vpack.c.bf16 %v1104, %v1104
      %v1159 = vpack.c.bf16 %v1105, %v1105
      %v1160 = vpack.c.bf16 %v1106, %v1106
      %v1161 = vpack.c.bf16 %v1107, %v1107
      %v1162 = vpack.c.bf16 %v1108, %v1108
      %v1163 = vpack.c.bf16 %v1109, %v1109
      %v1164 = vpack.c.bf16 %v1110, %v1110
      %v1165 = vpack.c.bf16 %v1111, %v1111
      %v1166 = vpack.c.bf16 %v1112, %v1112
      %v1167 = vpack.c.bf16 %v1113, %v1113
      %v1168 = vpack.c.bf16 %v1114, %v1114
      %v1169 = vpack.c.bf16 %v1115, %v1115
      %v1170 = vpack.c.bf16 %v1116, %v1116
      %v1171 = vpack.c.bf16 %v1117, %v1117
      %v1172 = vpack.c.bf16 %v1118, %v1118
      %v1173 = vpack.c.bf16 %v1119, %v1119
      %v1174 = vpack.c.bf16 %v1120, %v1120
      %v1175 = vpack.c.bf16 %v1121, %v1121
      %v1176 = vpack.c.bf16 %v1122, %v1122
      %v1213 = vunpack.c.l.b16 %v1123
      %v1214 = vunpack.c.l.b16 %v1124
      %v1215 = vunpack.c.l.b16 %v1126
      %v1216 = vunpack.c.l.b16 %v1127
      %v1217 = vunpack.c.l.b16 %v1129
      %v1218 = vunpack.c.l.b16 %v1130
      %v1219 = vunpack.c.l.b16 %v1132
      %v1220 = vunpack.c.l.b16 %v1133
      %v1221 = vunpack.c.l.b16 %v1135
      %v1222 = vunpack.c.l.b16 %v1136
      %v1223 = vunpack.c.l.b16 %v1138
      %v1224 = vunpack.c.l.b16 %v1139
      %v1225 = vunpack.c.l.b16 %v1141
      %v1226 = vunpack.c.l.b16 %v1142
      %v1227 = vunpack.c.l.b16 %v1144
      %v1228 = vunpack.c.l.b16 %v1145
      %v1229 = vunpack.c.l.b16 %v1147
      %v1230 = vunpack.c.l.b16 %v1148
      %v1231 = vunpack.c.l.b16 %v1150
      %v1232 = vunpack.c.l.b16 %v1151
      %v1233 = vunpack.c.l.b16 %v1153
      %v1234 = vunpack.c.l.b16 %v1154
      %v1235 = vunpack.c.l.b16 %v1156
      %v1236 = vunpack.c.l.b16 %v1157
      %v1237 = vunpack.c.l.b16 %v1159
      %v1238 = vunpack.c.l.b16 %v1160
      %v1239 = vunpack.c.l.b16 %v1162
      %v1240 = vunpack.c.l.b16 %v1163
      %v1241 = vunpack.c.l.b16 %v1165
      %v1242 = vunpack.c.l.b16 %v1166
      %v1243 = vunpack.c.l.b16 %v1168
      %v1244 = vunpack.c.l.b16 %v1169
      %v1245 = vunpack.c.l.b16 %v1171
      %v1246 = vunpack.c.l.b16 %v1172
      %v1247 = vunpack.c.l.b16 %v1174
      %v1248 = vunpack.c.l.b16 %v1175
      %v1249 = vpack.c.b16 %v1214, %v1213
      %v1250 = vpack.c.b16 %v1216, %v1215
      %v1251 = vpack.c.b16 %v1218, %v1217
      %v1252 = vpack.c.b16 %v1220, %v1219
      %v1253 = vpack.c.b16 %v1222, %v1221
      %v1254 = vpack.c.b16 %v1224, %v1223
      %v1255 = vpack.c.b16 %v1226, %v1225
      %v1256 = vpack.c.b16 %v1228, %v1227
      %v1257 = vpack.c.b16 %v1230, %v1229
      %v1258 = vpack.c.b16 %v1232, %v1231
      %v1259 = vpack.c.b16 %v1234, %v1233
      %v1260 = vpack.c.b16 %v1236, %v1235
      %v1261 = vpack.c.b16 %v1238, %v1237
      %v1262 = vpack.c.b16 %v1240, %v1239
      %v1263 = vpack.c.b16 %v1242, %v1241
      %v1264 = vpack.c.b16 %v1244, %v1243
      %v1265 = vpack.c.b16 %v1246, %v1245
      %v1266 = vpack.c.b16 %v1248, %v1247
      %v1303 = vunpack.c.l.b16 %v1125
      %v1304 = vunpack.c.l.b16 %v1128
      %v1305 = vunpack.c.l.b16 %v1131
      %v1306 = vunpack.c.l.b16 %v1134
      %v1307 = vunpack.c.l.b16 %v1137
      %v1308 = vunpack.c.l.b16 %v1140
      %v1309 = vunpack.c.l.b16 %v1143
      %v1310 = vunpack.c.l.b16 %v1146
      %v1311 = vunpack.c.l.b16 %v1149
      %v1312 = vunpack.c.l.b16 %v1152
      %v1313 = vunpack.c.l.b16 %v1155
      %v1314 = vunpack.c.l.b16 %v1158
      %v1315 = vunpack.c.l.b16 %v1161
      %v1316 = vunpack.c.l.b16 %v1164
      %v1317 = vunpack.c.l.b16 %v1167
      %v1318 = vunpack.c.l.b16 %v1170
      %v1319 = vunpack.c.l.b16 %v1173
      %v1320 = vunpack.c.l.b16 %v1176
      %v1321 = vpack.c.b16 %v1303, %v1303
      %v1322 = vpack.c.b16 %v1304, %v1304
      %v1323 = vpack.c.b16 %v1305, %v1305
      %v1324 = vpack.c.b16 %v1306, %v1306
      %v1325 = vpack.c.b16 %v1307, %v1307
      %v1326 = vpack.c.b16 %v1308, %v1308
      %v1327 = vpack.c.b16 %v1309, %v1309
      %v1328 = vpack.c.b16 %v1310, %v1310
      %v1329 = vpack.c.b16 %v1311, %v1311
      %v1330 = vpack.c.b16 %v1312, %v1312
      %v1331 = vpack.c.b16 %v1313, %v1313
      %v1332 = vpack.c.b16 %v1314, %v1314
      %v1333 = vpack.c.b16 %v1315, %v1315
      %v1334 = vpack.c.b16 %v1316, %v1316
      %v1335 = vpack.c.b16 %v1317, %v1317
      %v1336 = vpack.c.b16 %v1318, %v1318
      %v1337 = vpack.c.b16 %v1319, %v1319
      %v1338 = vpack.c.b16 %v1320, %v1320
      %vm1339 = vsmask.f32 7424
      %v1341 = vshrl.u32 %v1249, 16
      %v1343 = vshll.u32 %v1249, 16
      %v1345 = vrot.slane %v1343, 1
      %v1346 = vor.u32 %v1341, %v1345
      %v1348 = vshll.u32 %v1321, 16
      %v1350 = vrot.slane %v1348, 1
      %v1351 = vsel %vm1339, %v1346, %v1350
      %v1353 = vshrl.u32 %v1250, 16
      %v1355 = vshll.u32 %v1250, 16
      %v1357 = vrot.slane %v1355, 1
      %v1358 = vor.u32 %v1353, %v1357
      %v1360 = vshll.u32 %v1322, 16
      %v1362 = vrot.slane %v1360, 1
      %v1363 = vsel %vm1339, %v1358, %v1362
      %v1365 = vshrl.u32 %v1251, 16
      %v1367 = vshll.u32 %v1251, 16
      %v1369 = vrot.slane %v1367, 1
      %v1370 = vor.u32 %v1365, %v1369
      %v1372 = vshll.u32 %v1323, 16
      %v1374 = vrot.slane %v1372, 1
      %v1375 = vsel %vm1339, %v1370, %v1374
      %v1377 = vshrl.u32 %v1252, 16
      %v1379 = vshll.u32 %v1252, 16
      %v1381 = vrot.slane %v1379, 1
      %v1382 = vor.u32 %v1377, %v1381
      %v1384 = vshll.u32 %v1324, 16
      %v1386 = vrot.slane %v1384, 1
      %v1387 = vsel %vm1339, %v1382, %v1386
      %v1389 = vshrl.u32 %v1253, 16
      %v1391 = vshll.u32 %v1253, 16
      %v1393 = vrot.slane %v1391, 1
      %v1394 = vor.u32 %v1389, %v1393
      %v1396 = vshll.u32 %v1325, 16
      %v1398 = vrot.slane %v1396, 1
      %v1399 = vsel %vm1339, %v1394, %v1398
      %v1401 = vshrl.u32 %v1254, 16
      %v1403 = vshll.u32 %v1254, 16
      %v1405 = vrot.slane %v1403, 1
      %v1406 = vor.u32 %v1401, %v1405
      %v1408 = vshll.u32 %v1326, 16
      %v1410 = vrot.slane %v1408, 1
      %v1411 = vsel %vm1339, %v1406, %v1410
      %v1413 = vshrl.u32 %v1255, 16
      %v1415 = vshll.u32 %v1255, 16
      %v1417 = vrot.slane %v1415, 1
      %v1418 = vor.u32 %v1413, %v1417
      %v1420 = vshll.u32 %v1327, 16
      %v1422 = vrot.slane %v1420, 1
      %v1423 = vsel %vm1339, %v1418, %v1422
      %v1425 = vshrl.u32 %v1256, 16
      %v1427 = vshll.u32 %v1256, 16
      %v1429 = vrot.slane %v1427, 1
      %v1430 = vor.u32 %v1425, %v1429
      %v1432 = vshll.u32 %v1328, 16
      %v1434 = vrot.slane %v1432, 1
      %v1435 = vsel %vm1339, %v1430, %v1434
      %v1437 = vshrl.u32 %v1257, 16
      %v1439 = vshll.u32 %v1257, 16
      %v1441 = vrot.slane %v1439, 1
      %v1442 = vor.u32 %v1437, %v1441
      %v1444 = vshll.u32 %v1329, 16
      %v1446 = vrot.slane %v1444, 1
      %v1447 = vsel %vm1339, %v1442, %v1446
      %v1449 = vshrl.u32 %v1258, 16
      %v1451 = vshll.u32 %v1258, 16
      %v1453 = vrot.slane %v1451, 1
      %v1454 = vor.u32 %v1449, %v1453
      %v1456 = vshll.u32 %v1330, 16
      %v1458 = vrot.slane %v1456, 1
      %v1459 = vsel %vm1339, %v1454, %v1458
      %v1461 = vshrl.u32 %v1259, 16
      %v1463 = vshll.u32 %v1259, 16
      %v1465 = vrot.slane %v1463, 1
      %v1466 = vor.u32 %v1461, %v1465
      %v1468 = vshll.u32 %v1331, 16
      %v1470 = vrot.slane %v1468, 1
      %v1471 = vsel %vm1339, %v1466, %v1470
      %v1473 = vshrl.u32 %v1260, 16
      %v1475 = vshll.u32 %v1260, 16
      %v1477 = vrot.slane %v1475, 1
      %v1478 = vor.u32 %v1473, %v1477
      %v1480 = vshll.u32 %v1332, 16
      %v1482 = vrot.slane %v1480, 1
      %v1483 = vsel %vm1339, %v1478, %v1482
      %v1485 = vshrl.u32 %v1261, 16
      %v1487 = vshll.u32 %v1261, 16
      %v1489 = vrot.slane %v1487, 1
      %v1490 = vor.u32 %v1485, %v1489
      %v1492 = vshll.u32 %v1333, 16
      %v1494 = vrot.slane %v1492, 1
      %v1495 = vsel %vm1339, %v1490, %v1494
      %v1497 = vshrl.u32 %v1262, 16
      %v1499 = vshll.u32 %v1262, 16
      %v1501 = vrot.slane %v1499, 1
      %v1502 = vor.u32 %v1497, %v1501
      %v1504 = vshll.u32 %v1334, 16
      %v1506 = vrot.slane %v1504, 1
      %v1507 = vsel %vm1339, %v1502, %v1506
      %v1509 = vshrl.u32 %v1263, 16
      %v1511 = vshll.u32 %v1263, 16
      %v1513 = vrot.slane %v1511, 1
      %v1514 = vor.u32 %v1509, %v1513
      %v1516 = vshll.u32 %v1335, 16
      %v1518 = vrot.slane %v1516, 1
      %v1519 = vsel %vm1339, %v1514, %v1518
      %v1521 = vshrl.u32 %v1264, 16
      %v1523 = vshll.u32 %v1264, 16
      %v1525 = vrot.slane %v1523, 1
      %v1526 = vor.u32 %v1521, %v1525
      %v1528 = vshll.u32 %v1336, 16
      %v1530 = vrot.slane %v1528, 1
      %v1531 = vsel %vm1339, %v1526, %v1530
      %v1533 = vshrl.u32 %v1265, 16
      %v1535 = vshll.u32 %v1265, 16
      %v1537 = vrot.slane %v1535, 1
      %v1538 = vor.u32 %v1533, %v1537
      %v1540 = vshll.u32 %v1337, 16
      %v1542 = vrot.slane %v1540, 1
      %v1543 = vsel %vm1339, %v1538, %v1542
      %v1545 = vshrl.u32 %v1266, 16
      %v1547 = vshll.u32 %v1266, 16
      %v1549 = vrot.slane %v1547, 1
      %v1550 = vor.u32 %v1545, %v1549
      %v1552 = vshll.u32 %v1338, 16
      %v1554 = vrot.slane %v1552, 1
      %v1555 = vsel %vm1339, %v1550, %v1554
      %vm1574 = vcmask 1046528
      %v1575 = vrot.slane %v1249, 1
      %v1576 = vrot.slane %v1321, 1
      %v1577 = vsel %vm1574, %v1575, %v1576
      %v1578 = vrot.slane %v1250, 1
      %v1579 = vrot.slane %v1322, 1
      %v1580 = vsel %vm1574, %v1578, %v1579
      %v1581 = vrot.slane %v1251, 1
      %v1582 = vrot.slane %v1323, 1
      %v1583 = vsel %vm1574, %v1581, %v1582
      %v1584 = vrot.slane %v1252, 1
      %v1585 = vrot.slane %v1324, 1
      %v1586 = vsel %vm1574, %v1584, %v1585
      %v1587 = vrot.slane %v1253, 1
      %v1588 = vrot.slane %v1325, 1
      %v1589 = vsel %vm1574, %v1587, %v1588
      %v1590 = vrot.slane %v1254, 1
      %v1591 = vrot.slane %v1326, 1
      %v1592 = vsel %vm1574, %v1590, %v1591
      %v1593 = vrot.slane %v1255, 1
      %v1594 = vrot.slane %v1327, 1
      %v1595 = vsel %vm1574, %v1593, %v1594
      %v1596 = vrot.slane %v1256, 1
      %v1597 = vrot.slane %v1328, 1
      %v1598 = vsel %vm1574, %v1596, %v1597
      %v1599 = vrot.slane %v1257, 1
      %v1600 = vrot.slane %v1329, 1
      %v1601 = vsel %vm1574, %v1599, %v1600
      %v1602 = vrot.slane %v1258, 1
      %v1603 = vrot.slane %v1330, 1
      %v1604 = vsel %vm1574, %v1602, %v1603
      %v1605 = vrot.slane %v1259, 1
      %v1606 = vrot.slane %v1331, 1
      %v1607 = vsel %vm1574, %v1605, %v1606
      %v1608 = vrot.slane %v1260, 1
      %v1609 = vrot.slane %v1332, 1
      %v1610 = vsel %vm1574, %v1608, %v1609
      %v1611 = vrot.slane %v1261, 1
      %v1612 = vrot.slane %v1333, 1
      %v1613 = vsel %vm1574, %v1611, %v1612
      %v1614 = vrot.slane %v1262, 1
      %v1615 = vrot.slane %v1334, 1
      %v1616 = vsel %vm1574, %v1614, %v1615
      %v1617 = vrot.slane %v1263, 1
      %v1618 = vrot.slane %v1335, 1
      %v1619 = vsel %vm1574, %v1617, %v1618
      %v1620 = vrot.slane %v1264, 1
      %v1621 = vrot.slane %v1336, 1
      %v1622 = vsel %vm1574, %v1620, %v1621
      %v1623 = vrot.slane %v1265, 1
      %v1624 = vrot.slane %v1337, 1
      %v1625 = vsel %vm1574, %v1623, %v1624
      %v1626 = vrot.slane %v1266, 1
      %v1627 = vrot.slane %v1338, 1
      %v1628 = vsel %vm1574, %v1626, %v1627
      %v1647 = vld [vmem:[%s400] sm:$0xf]
      %v1648 = vld [vmem:[%s400 + $0x4] sm:$0xf]
      %v1649 = vld [vmem:[%s400 + $0x8] sm:$0xf]
      %v1650 = vld [vmem:[%s400 + $0xc] sm:$0xf]
      %v1651 = vld [vmem:[%s400 + $0x10] sm:$0xf]
      %v1652 = vld [vmem:[%s400 + $0x14] sm:$0xf]
      %v1653 = vld [vmem:[%s400 + $0x18] sm:$0xf]
      %v1654 = vld [vmem:[%s400 + $0x1c] sm:$0xf]
      %v1655 = vld [vmem:[%s400 + $0x20] sm:$0xf]
      %v1656 = vld [vmem:[%s400 + $0x24] sm:$0xf]
      %v1657 = vld [vmem:[%s400 + $0x28] sm:$0xf]
      %v1658 = vld [vmem:[%s400 + $0x2c] sm:$0xf]
      %v1659 = vld [vmem:[%s400 + $0x30] sm:$0xf]
      %v1660 = vld [vmem:[%s400 + $0x34] sm:$0xf]
      %v1661 = vld [vmem:[%s400 + $0x38] sm:$0xf]
      %v1662 = vld [vmem:[%s400 + $0x3c] sm:$0xf]
      %v1663 = vld [vmem:[%s400 + $0x40] sm:$0xf]
      %v1664 = vld [vmem:[%s400 + $0x44] sm:$0xf]
      %v1665 = vld [vmem:[%s400 + $0x48] sm:$0xf]
      %v1666 = vld [vmem:[%s400 + $0x4c] sm:$0xf]
      %v1667 = vld [vmem:[%s400 + $0x50] sm:$0xf]
      %v1668 = vld [vmem:[%s400 + $0x54] sm:$0xf]
      %v1669 = vld [vmem:[%s400 + $0x58] sm:$0xf]
      %v1670 = vld [vmem:[%s400 + $0x5c] sm:$0xf]
      %v1671 = vld [vmem:[%s400 + $0x60] sm:$0xf]
      %v1672 = vld [vmem:[%s400 + $0x64] sm:$0xf]
      %v1673 = vld [vmem:[%s400 + $0x68] sm:$0xf]
      %v1674 = vld [vmem:[%s400 + $0x6c] sm:$0xf]
      %v1675 = vld [vmem:[%s400 + $0x70] sm:$0xf]
      %v1676 = vld [vmem:[%s400 + $0x74] sm:$0xf]
      %v1677 = vld [vmem:[%s400 + $0x78] sm:$0xf]
      %v1678 = vld [vmem:[%s400 + $0x7c] sm:$0xf]
      %v1679 = vld [vmem:[%s400 + $0x80] sm:$0xf]
      %v1680 = vld [vmem:[%s400 + $0x84] sm:$0xf]
      %v1681 = vld [vmem:[%s400 + $0x88] sm:$0xf]
      %v1682 = vld [vmem:[%s400 + $0x8c] sm:$0xf]
      %v1683 = vld [vmem:[%s400 + $0x90] sm:$0xf]
      %v1684 = vld [vmem:[%s400 + $0x94] sm:$0xf]
      %v1685 = vld [vmem:[%s400 + $0x98] sm:$0xf]
      %v1686 = vld [vmem:[%s400 + $0x9c] sm:$0xf]
      %v1687 = vld [vmem:[%s400 + $0xa0] sm:$0xf]
      %v1688 = vld [vmem:[%s400 + $0xa4] sm:$0xf]
      %v1689 = vld [vmem:[%s400 + $0xa8] sm:$0xf]
      %v1690 = vld [vmem:[%s400 + $0xac] sm:$0xf]
      %v1691 = vld [vmem:[%s400 + $0xb0] sm:$0xf]
      %v1692 = vld [vmem:[%s400 + $0xb4] sm:$0xf]
      %v1693 = vld [vmem:[%s400 + $0xb8] sm:$0xf]
      %v1694 = vld [vmem:[%s400 + $0xbc] sm:$0xf]
      %s1695 = scalar_lea.vmem %s400, 192
      %v1696 = vld [vmem:[%s1695] sm:$0xf]
      %v1697 = vld [vmem:[%s1695 + $0x4] sm:$0xf]
      %v1698 = vld [vmem:[%s1695 + $0x8] sm:$0xf]
      %v1699 = vld [vmem:[%s1695 + $0xc] sm:$0xf]
      %v1700 = vld [vmem:[%s1695 + $0x10] sm:$0xf]
      %v1701 = vld [vmem:[%s1695 + $0x14] sm:$0xf]
      %v1702 = vld [vmem:[%s1695 + $0x18] sm:$0xf]
      %v1703 = vld [vmem:[%s1695 + $0x1c] sm:$0xf]
      %v1704 = vld [vmem:[%s1695 + $0x20] sm:$0xf]
      %v1705 = vld [vmem:[%s1695 + $0x24] sm:$0xf]
      %v1706 = vld [vmem:[%s1695 + $0x28] sm:$0xf]
      %v1707 = vld [vmem:[%s1695 + $0x2c] sm:$0xf]
      %v1708 = vld [vmem:[%s1695 + $0x30] sm:$0xf]
      %v1709 = vld [vmem:[%s1695 + $0x34] sm:$0xf]
      %v1710 = vld [vmem:[%s1695 + $0x38] sm:$0xf]
      %v1711 = vld [vmem:[%s1695 + $0x3c] sm:$0xf]
      %v1712 = vld [vmem:[%s1695 + $0x40] sm:$0xf]
      %v1713 = vld [vmem:[%s1695 + $0x44] sm:$0xf]
      %v1714 = vld [vmem:[%s1695 + $0x48] sm:$0xf]
      %v1715 = vld [vmem:[%s1695 + $0x4c] sm:$0xf]
      %v1716 = vld [vmem:[%s1695 + $0x50] sm:$0xf]
      %v1717 = vld [vmem:[%s1695 + $0x54] sm:$0xf]
      %v1718 = vld [vmem:[%s1695 + $0x58] sm:$0xf]
      %v1719 = vld [vmem:[%s1695 + $0x5c] sm:$0xf]
      %v1720 = vld [vmem:[%s1695 + $0x60] sm:$0xf]
      %v1721 = vld [vmem:[%s1695 + $0x64] sm:$0xf]
      %v1722 = vld [vmem:[%s1695 + $0x68] sm:$0xf]
      %v1723 = vld [vmem:[%s1695 + $0x6c] sm:$0xf]
      %v1724 = vld [vmem:[%s1695 + $0x70] sm:$0xf]
      %v1725 = vld [vmem:[%s1695 + $0x74] sm:$0xf]
      %v1726 = vld [vmem:[%s1695 + $0x78] sm:$0xf]
      %v1727 = vld [vmem:[%s1695 + $0x7c] sm:$0xf]
      %v1728 = vld [vmem:[%s1695 + $0x80] sm:$0xf]
      %v1729 = vld [vmem:[%s1695 + $0x84] sm:$0xf]
      %v1730 = vld [vmem:[%s1695 + $0x88] sm:$0xf]
      %v1731 = vld [vmem:[%s1695 + $0x8c] sm:$0xf]
      %v1732 = vld [vmem:[%s1695 + $0x90] sm:$0xf]
      %v1733 = vld [vmem:[%s1695 + $0x94] sm:$0xf]
      %v1734 = vld [vmem:[%s1695 + $0x98] sm:$0xf]
      %v1735 = vld [vmem:[%s1695 + $0x9c] sm:$0xf]
      %v1736 = vld [vmem:[%s1695 + $0xa0] sm:$0xf]
      %v1737 = vld [vmem:[%s1695 + $0xa4] sm:$0xf]
      %v1738 = vld [vmem:[%s1695 + $0xa8] sm:$0xf]
      %v1739 = vld [vmem:[%s1695 + $0xac] sm:$0xf]
      %v1740 = vld [vmem:[%s1695 + $0xb0] sm:$0xf]
      %v1741 = vld [vmem:[%s1695 + $0xb4] sm:$0xf]
      %v1742 = vld [vmem:[%s1695 + $0xb8] sm:$0xf]
      %v1743 = vld [vmem:[%s1695 + $0xbc] sm:$0xf]
      %v1792 = vunpack.c.l.b16 %v1696
      %v1793 = vunpack.c.l.b16 %v1697
      %v1794 = vunpack.c.l.b16 %v1698
      %v1795 = vunpack.c.l.b16 %v1699
      %v1796 = vunpack.c.l.b16 %v1700
      %v1797 = vunpack.c.l.b16 %v1701
      %v1798 = vunpack.c.l.b16 %v1702
      %v1799 = vunpack.c.l.b16 %v1703
      %v1800 = vunpack.c.l.b16 %v1704
      %v1801 = vunpack.c.l.b16 %v1705
      %v1802 = vunpack.c.l.b16 %v1706
      %v1803 = vunpack.c.l.b16 %v1707
      %v1804 = vunpack.c.l.b16 %v1708
      %v1805 = vunpack.c.l.b16 %v1709
      %v1806 = vunpack.c.l.b16 %v1710
      %v1807 = vunpack.c.l.b16 %v1711
      %v1808 = vunpack.c.l.b16 %v1712
      %v1809 = vunpack.c.l.b16 %v1713
      %v1810 = vunpack.c.l.b16 %v1714
      %v1811 = vunpack.c.l.b16 %v1715
      %v1812 = vunpack.c.l.b16 %v1716
      %v1813 = vunpack.c.l.b16 %v1717
      %v1814 = vunpack.c.l.b16 %v1718
      %v1815 = vunpack.c.l.b16 %v1719
      %v1816 = vunpack.c.l.b16 %v1720
      %v1817 = vunpack.c.l.b16 %v1721
      %v1818 = vunpack.c.l.b16 %v1722
      %v1819 = vunpack.c.l.b16 %v1723
      %v1820 = vunpack.c.l.b16 %v1724
      %v1821 = vunpack.c.l.b16 %v1725
      %v1822 = vunpack.c.l.b16 %v1726
      %v1823 = vunpack.c.l.b16 %v1727
      %v1824 = vunpack.c.l.b16 %v1728
      %v1825 = vunpack.c.l.b16 %v1729
      %v1826 = vunpack.c.l.b16 %v1730
      %v1827 = vunpack.c.l.b16 %v1731
      %v1828 = vunpack.c.l.b16 %v1732
      %v1829 = vunpack.c.l.b16 %v1733
      %v1830 = vunpack.c.l.b16 %v1734
      %v1831 = vunpack.c.l.b16 %v1735
      %v1832 = vunpack.c.l.b16 %v1736
      %v1833 = vunpack.c.l.b16 %v1737
      %v1834 = vunpack.c.l.b16 %v1738
      %v1835 = vunpack.c.l.b16 %v1739
      %v1836 = vunpack.c.l.b16 %v1740
      %v1837 = vunpack.c.l.b16 %v1741
      %v1838 = vunpack.c.l.b16 %v1742
      %v1839 = vunpack.c.l.b16 %v1743
      %v1840 = vpack.c.b16 %v1793, %v1792
      %v1841 = vpack.c.b16 %v1795, %v1794
      %v1842 = vpack.c.b16 %v1797, %v1796
      %v1843 = vpack.c.b16 %v1799, %v1798
      %v1844 = vpack.c.b16 %v1801, %v1800
      %v1845 = vpack.c.b16 %v1803, %v1802
      %v1846 = vpack.c.b16 %v1805, %v1804
      %v1847 = vpack.c.b16 %v1807, %v1806
      %v1848 = vpack.c.b16 %v1809, %v1808
      %v1849 = vpack.c.b16 %v1811, %v1810
      %v1850 = vpack.c.b16 %v1813, %v1812
      %v1851 = vpack.c.b16 %v1815, %v1814
      %v1852 = vpack.c.b16 %v1817, %v1816
      %v1853 = vpack.c.b16 %v1819, %v1818
      %v1854 = vpack.c.b16 %v1821, %v1820
      %v1855 = vpack.c.b16 %v1823, %v1822
      %v1856 = vpack.c.b16 %v1825, %v1824
      %v1857 = vpack.c.b16 %v1827, %v1826
      %v1858 = vpack.c.b16 %v1829, %v1828
      %v1859 = vpack.c.b16 %v1831, %v1830
      %v1860 = vpack.c.b16 %v1833, %v1832
      %v1861 = vpack.c.b16 %v1835, %v1834
      %v1862 = vpack.c.b16 %v1837, %v1836
      %v1863 = vpack.c.b16 %v1839, %v1838
      %1888 = vmatpush.bf16.msra.mxu0 %v1847
      %1889 = vmatpush.bf16.msra.mxu0 %v1846
      %1890 = vmatpush.bf16.msra.mxu0 %v1845
      %1891 = vmatpush.bf16.msra.mxu0 %v1844
      %1892 = vmatpush.bf16.msra.mxu0 %v1843
      %1893 = vmatpush.bf16.msra.mxu0 %v1842
      %1894 = vmatpush.bf16.msra.mxu0 %v1841
      %1895 = vmatpush.bf16.msra.mxu0 %v1840
      %1896 = vmatmul.bf16.gmra.mxu0 %v1250
      %v1897 = vpop.f32.mrf.mxu0
      %v1898 = vadd.f32 0.0, %v1897
      %v1899 = vpop.f32.mrf.mxu0
      %v1900 = vadd.f32 0.0, %v1899
      %1901 = vmatmul.bf16.gmra.mxu0 %v1251
      %v1902 = vpop.f32.mrf.mxu0
      %v1903 = vadd.f32 0.0, %v1902
      %v1904 = vpop.f32.mrf.mxu0
      %v1905 = vadd.f32 0.0, %v1904
      %1906 = vmatmul.bf16.gmra.mxu0 %v1252
      %v1907 = vpop.f32.mrf.mxu0
      %v1908 = vadd.f32 0.0, %v1907
      %v1909 = vpop.f32.mrf.mxu0
      %v1910 = vadd.f32 0.0, %v1909
      %1911 = vmatmul.bf16.gmra.mxu0 %v1253
      %v1912 = vpop.f32.mrf.mxu0
      %v1913 = vadd.f32 0.0, %v1912
      %v1914 = vpop.f32.mrf.mxu0
      %v1915 = vadd.f32 0.0, %v1914
      %1916 = vmatmul.bf16.gmra.mxu0 %v1254
      %v1917 = vpop.f32.mrf.mxu0
      %v1918 = vadd.f32 0.0, %v1917
      %v1919 = vpop.f32.mrf.mxu0
      %v1920 = vadd.f32 0.0, %v1919
      %1921 = vmatmul.bf16.gmra.mxu0 %v1255
      %v1922 = vpop.f32.mrf.mxu0
      %v1923 = vadd.f32 0.0, %v1922
      %v1924 = vpop.f32.mrf.mxu0
      %v1925 = vadd.f32 0.0, %v1924
      %1926 = vmatmul.bf16.gmra.mxu0 %v1256
      %v1927 = vpop.f32.mrf.mxu0
      %v1928 = vadd.f32 0.0, %v1927
      %v1929 = vpop.f32.mrf.mxu0
      %v1930 = vadd.f32 0.0, %v1929
      %1931 = vmatmul.bf16.gmra.mxu0 %v1257
      %v1932 = vpop.f32.mrf.mxu0
      %v1933 = vadd.f32 0.0, %v1932
      %v1934 = vpop.f32.mrf.mxu0
      %v1935 = vadd.f32 0.0, %v1934
      %1936 = vmatmul.bf16.gmra.mxu0 %v1258
      %v1937 = vpop.f32.mrf.mxu0
      %v1938 = vadd.f32 0.0, %v1937
      %v1939 = vpop.f32.mrf.mxu0
      %v1940 = vadd.f32 0.0, %v1939
      %1941 = vmatmul.bf16.gmra.mxu0 %v1259
      %v1942 = vpop.f32.mrf.mxu0
      %v1943 = vadd.f32 0.0, %v1942
      %v1944 = vpop.f32.mrf.mxu0
      %v1945 = vadd.f32 0.0, %v1944
      %1946 = vmatmul.bf16.gmra.mxu0 %v1260
      %v1947 = vpop.f32.mrf.mxu0
      %v1948 = vadd.f32 0.0, %v1947
      %v1949 = vpop.f32.mrf.mxu0
      %v1950 = vadd.f32 0.0, %v1949
      %1951 = vmatmul.bf16.gmra.mxu0 %v1261
      %v1952 = vpop.f32.mrf.mxu0
      %v1953 = vadd.f32 0.0, %v1952
      %v1954 = vpop.f32.mrf.mxu0
      %v1955 = vadd.f32 0.0, %v1954
      %1956 = vmatmul.bf16.gmra.mxu0 %v1262
      %v1957 = vpop.f32.mrf.mxu0
      %v1958 = vadd.f32 0.0, %v1957
      %v1959 = vpop.f32.mrf.mxu0
      %v1960 = vadd.f32 0.0, %v1959
      %1961 = vmatmul.bf16.gmra.mxu0 %v1263
      %v1962 = vpop.f32.mrf.mxu0
      %v1963 = vadd.f32 0.0, %v1962
      %v1964 = vpop.f32.mrf.mxu0
      %v1965 = vadd.f32 0.0, %v1964
      %1966 = vmatmul.bf16.gmra.mxu0 %v1264
      %v1967 = vpop.f32.mrf.mxu0
      %v1968 = vadd.f32 0.0, %v1967
      %v1969 = vpop.f32.mrf.mxu0
      %v1970 = vadd.f32 0.0, %v1969
      %1971 = vmatmul.bf16.gmra.mxu0 %v1265
      %v1972 = vpop.f32.mrf.mxu0
      %v1973 = vadd.f32 0.0, %v1972
      %v1974 = vpop.f32.mrf.mxu0
      %v1975 = vadd.f32 0.0, %v1974
      %1976 = vdwg.mxu0
      %1977 = vmatpush.bf16.msra.mxu0 %v1855
      %1978 = vmatpush.bf16.msra.mxu0 %v1854
      %1979 = vmatpush.bf16.msra.mxu0 %v1853
      %1980 = vmatpush.bf16.msra.mxu0 %v1852
      %1981 = vmatpush.bf16.msra.mxu0 %v1851
      %1982 = vmatpush.bf16.msra.mxu0 %v1850
      %1983 = vmatpush.bf16.msra.mxu0 %v1849
      %1984 = vmatpush.bf16.msra.mxu0 %v1848
      %1985 = vmatmul.bf16.gmra.mxu0 %v1363
      %v1986 = vpop.f32.mrf.mxu0
      %v1987 = vadd.f32 %v1898, %v1986
      %v1988 = vpop.f32.mrf.mxu0
      %v1989 = vadd.f32 %v1900, %v1988
      %1990 = vmatmul.bf16.gmra.mxu0 %v1375
      %v1991 = vpop.f32.mrf.mxu0
      %v1992 = vadd.f32 %v1903, %v1991
      %v1993 = vpop.f32.mrf.mxu0
      %v1994 = vadd.f32 %v1905, %v1993
      %1995 = vmatmul.bf16.gmra.mxu0 %v1387
      %v1996 = vpop.f32.mrf.mxu0
      %v1997 = vadd.f32 %v1908, %v1996
      %v1998 = vpop.f32.mrf.mxu0
      %v1999 = vadd.f32 %v1910, %v1998
      %2000 = vmatmul.bf16.gmra.mxu0 %v1399
      %v2001 = vpop.f32.mrf.mxu0
      %v2002 = vadd.f32 %v1913, %v2001
      %v2003 = vpop.f32.mrf.mxu0
      %v2004 = vadd.f32 %v1915, %v2003
      %2005 = vmatmul.bf16.gmra.mxu0 %v1411
      %v2006 = vpop.f32.mrf.mxu0
      %v2007 = vadd.f32 %v1918, %v2006
      %v2008 = vpop.f32.mrf.mxu0
      %v2009 = vadd.f32 %v1920, %v2008
      %2010 = vmatmul.bf16.gmra.mxu0 %v1423
      %v2011 = vpop.f32.mrf.mxu0
      %v2012 = vadd.f32 %v1923, %v2011
      %v2013 = vpop.f32.mrf.mxu0
      %v2014 = vadd.f32 %v1925, %v2013
      %2015 = vmatmul.bf16.gmra.mxu0 %v1435
      %v2016 = vpop.f32.mrf.mxu0
      %v2017 = vadd.f32 %v1928, %v2016
      %v2018 = vpop.f32.mrf.mxu0
      %v2019 = vadd.f32 %v1930, %v2018
      %2020 = vmatmul.bf16.gmra.mxu0 %v1447
      %v2021 = vpop.f32.mrf.mxu0
      %v2022 = vadd.f32 %v1933, %v2021
      %v2023 = vpop.f32.mrf.mxu0
      %v2024 = vadd.f32 %v1935, %v2023
      %2025 = vmatmul.bf16.gmra.mxu0 %v1459
      %v2026 = vpop.f32.mrf.mxu0
      %v2027 = vadd.f32 %v1938, %v2026
      %v2028 = vpop.f32.mrf.mxu0
      %v2029 = vadd.f32 %v1940, %v2028
      %2030 = vmatmul.bf16.gmra.mxu0 %v1471
      %v2031 = vpop.f32.mrf.mxu0
      %v2032 = vadd.f32 %v1943, %v2031
      %v2033 = vpop.f32.mrf.mxu0
      %v2034 = vadd.f32 %v1945, %v2033
      %2035 = vmatmul.bf16.gmra.mxu0 %v1483
      %v2036 = vpop.f32.mrf.mxu0
      %v2037 = vadd.f32 %v1948, %v2036
      %v2038 = vpop.f32.mrf.mxu0
      %v2039 = vadd.f32 %v1950, %v2038
      %2040 = vmatmul.bf16.gmra.mxu0 %v1495
      %v2041 = vpop.f32.mrf.mxu0
      %v2042 = vadd.f32 %v1953, %v2041
      %v2043 = vpop.f32.mrf.mxu0
      %v2044 = vadd.f32 %v1955, %v2043
      %2045 = vmatmul.bf16.gmra.mxu0 %v1507
      %v2046 = vpop.f32.mrf.mxu0
      %v2047 = vadd.f32 %v1958, %v2046
      %v2048 = vpop.f32.mrf.mxu0
      %v2049 = vadd.f32 %v1960, %v2048
      %2050 = vmatmul.bf16.gmra.mxu0 %v1519
      %v2051 = vpop.f32.mrf.mxu0
      %v2052 = vadd.f32 %v1963, %v2051
      %v2053 = vpop.f32.mrf.mxu0
      %v2054 = vadd.f32 %v1965, %v2053
      %2055 = vmatmul.bf16.gmra.mxu0 %v1531
      %v2056 = vpop.f32.mrf.mxu0
      %v2057 = vadd.f32 %v1968, %v2056
      %v2058 = vpop.f32.mrf.mxu0
      %v2059 = vadd.f32 %v1970, %v2058
      %2060 = vmatmul.bf16.gmra.mxu0 %v1543
      %v2061 = vpop.f32.mrf.mxu0
      %v2062 = vadd.f32 %v1973, %v2061
      %v2063 = vpop.f32.mrf.mxu0
      %v2064 = vadd.f32 %v1975, %v2063
      %2065 = vdwg.mxu0
      %2066 = vmatpush.bf16.msra.mxu0 %v1863
      %2067 = vmatpush.bf16.msra.mxu0 %v1862
      %2068 = vmatpush.bf16.msra.mxu0 %v1861
      %2069 = vmatpush.bf16.msra.mxu0 %v1860
      %2070 = vmatpush.bf16.msra.mxu0 %v1859
      %2071 = vmatpush.bf16.msra.mxu0 %v1858
      %2072 = vmatpush.bf16.msra.mxu0 %v1857
      %2073 = vmatpush.bf16.msra.mxu0 %v1856
      %2074 = vmatmul.bf16.gmra.mxu0 %v1580
      %v2075 = vpop.f32.mrf.mxu0
      %v2076 = vadd.f32 %v1987, %v2075
      %v2077 = vpop.f32.mrf.mxu0
      %v2078 = vadd.f32 %v1989, %v2077
      %2079 = vmatmul.bf16.gmra.mxu0 %v1583
      %v2080 = vpop.f32.mrf.mxu0
      %v2081 = vadd.f32 %v1992, %v2080
      %v2082 = vpop.f32.mrf.mxu0
      %v2083 = vadd.f32 %v1994, %v2082
      %2084 = vmatmul.bf16.gmra.mxu0 %v1586
      %v2085 = vpop.f32.mrf.mxu0
      %v2086 = vadd.f32 %v1997, %v2085
      %v2087 = vpop.f32.mrf.mxu0
      %v2088 = vadd.f32 %v1999, %v2087
      %2089 = vmatmul.bf16.gmra.mxu0 %v1589
      %v2090 = vpop.f32.mrf.mxu0
      %v2091 = vadd.f32 %v2002, %v2090
      %v2092 = vpop.f32.mrf.mxu0
      %v2093 = vadd.f32 %v2004, %v2092
      %2094 = vmatmul.bf16.gmra.mxu0 %v1592
      %v2095 = vpop.f32.mrf.mxu0
      %v2096 = vadd.f32 %v2007, %v2095
      %v2097 = vpop.f32.mrf.mxu0
      %v2098 = vadd.f32 %v2009, %v2097
      %2099 = vmatmul.bf16.gmra.mxu0 %v1595
      %v2100 = vpop.f32.mrf.mxu0
      %v2101 = vadd.f32 %v2012, %v2100
      %v2102 = vpop.f32.mrf.mxu0
      %v2103 = vadd.f32 %v2014, %v2102
      %2104 = vmatmul.bf16.gmra.mxu0 %v1598
      %v2105 = vpop.f32.mrf.mxu0
      %v2106 = vadd.f32 %v2017, %v2105
      %v2107 = vpop.f32.mrf.mxu0
      %v2108 = vadd.f32 %v2019, %v2107
      %2109 = vmatmul.bf16.gmra.mxu0 %v1601
      %v2110 = vpop.f32.mrf.mxu0
      %v2111 = vadd.f32 %v2022, %v2110
      %v2112 = vpop.f32.mrf.mxu0
      %v2113 = vadd.f32 %v2024, %v2112
      %2114 = vmatmul.bf16.gmra.mxu0 %v1604
      %v2115 = vpop.f32.mrf.mxu0
      %v2116 = vadd.f32 %v2027, %v2115
      %v2117 = vpop.f32.mrf.mxu0
      %v2118 = vadd.f32 %v2029, %v2117
      %2119 = vmatmul.bf16.gmra.mxu0 %v1607
      %v2120 = vpop.f32.mrf.mxu0
      %v2121 = vadd.f32 %v2032, %v2120
      %v2122 = vpop.f32.mrf.mxu0
      %v2123 = vadd.f32 %v2034, %v2122
      %2124 = vmatmul.bf16.gmra.mxu0 %v1610
      %v2125 = vpop.f32.mrf.mxu0
      %v2126 = vadd.f32 %v2037, %v2125
      %v2127 = vpop.f32.mrf.mxu0
      %v2128 = vadd.f32 %v2039, %v2127
      %2129 = vmatmul.bf16.gmra.mxu0 %v1613
      %v2130 = vpop.f32.mrf.mxu0
      %v2131 = vadd.f32 %v2042, %v2130
      %v2132 = vpop.f32.mrf.mxu0
      %v2133 = vadd.f32 %v2044, %v2132
      %2134 = vmatmul.bf16.gmra.mxu0 %v1616
      %v2135 = vpop.f32.mrf.mxu0
      %v2136 = vadd.f32 %v2047, %v2135
      %v2137 = vpop.f32.mrf.mxu0
      %v2138 = vadd.f32 %v2049, %v2137
      %2139 = vmatmul.bf16.gmra.mxu0 %v1619
      %v2140 = vpop.f32.mrf.mxu0
      %v2141 = vadd.f32 %v2052, %v2140
      %v2142 = vpop.f32.mrf.mxu0
      %v2143 = vadd.f32 %v2054, %v2142
      %2144 = vmatmul.bf16.gmra.mxu0 %v1622
      %v2145 = vpop.f32.mrf.mxu0
      %v2146 = vadd.f32 %v2057, %v2145
      %v2147 = vpop.f32.mrf.mxu0
      %v2148 = vadd.f32 %v2059, %v2147
      %2149 = vmatmul.bf16.gmra.mxu0 %v1625
      %v2150 = vpop.f32.mrf.mxu0
      %v2151 = vadd.f32 %v2062, %v2150
      %v2152 = vpop.f32.mrf.mxu0
      %v2153 = vadd.f32 %v2064, %v2152
      %2154 = vdwg.mxu0
      %v2203 = vunpack.c.l.b16 %v1647
      %v2204 = vunpack.c.l.b16 %v1648
      %v2205 = vunpack.c.l.b16 %v1649
      %v2206 = vunpack.c.l.b16 %v1650
      %v2207 = vunpack.c.l.b16 %v1651
      %v2208 = vunpack.c.l.b16 %v1652
      %v2209 = vunpack.c.l.b16 %v1653
      %v2210 = vunpack.c.l.b16 %v1654
      %v2211 = vunpack.c.l.b16 %v1655
      %v2212 = vunpack.c.l.b16 %v1656
      %v2213 = vunpack.c.l.b16 %v1657
      %v2214 = vunpack.c.l.b16 %v1658
      %v2215 = vunpack.c.l.b16 %v1659
      %v2216 = vunpack.c.l.b16 %v1660
      %v2217 = vunpack.c.l.b16 %v1661
      %v2218 = vunpack.c.l.b16 %v1662
      %v2219 = vunpack.c.l.b16 %v1663
      %v2220 = vunpack.c.l.b16 %v1664
      %v2221 = vunpack.c.l.b16 %v1665
      %v2222 = vunpack.c.l.b16 %v1666
      %v2223 = vunpack.c.l.b16 %v1667
      %v2224 = vunpack.c.l.b16 %v1668
      %v2225 = vunpack.c.l.b16 %v1669
      %v2226 = vunpack.c.l.b16 %v1670
      %v2227 = vunpack.c.l.b16 %v1671
      %v2228 = vunpack.c.l.b16 %v1672
      %v2229 = vunpack.c.l.b16 %v1673
      %v2230 = vunpack.c.l.b16 %v1674
      %v2231 = vunpack.c.l.b16 %v1675
      %v2232 = vunpack.c.l.b16 %v1676
      %v2233 = vunpack.c.l.b16 %v1677
      %v2234 = vunpack.c.l.b16 %v1678
      %v2235 = vunpack.c.l.b16 %v1679
      %v2236 = vunpack.c.l.b16 %v1680
      %v2237 = vunpack.c.l.b16 %v1681
      %v2238 = vunpack.c.l.b16 %v1682
      %v2239 = vunpack.c.l.b16 %v1683
      %v2240 = vunpack.c.l.b16 %v1684
      %v2241 = vunpack.c.l.b16 %v1685
      %v2242 = vunpack.c.l.b16 %v1686
      %v2243 = vunpack.c.l.b16 %v1687
      %v2244 = vunpack.c.l.b16 %v1688
      %v2245 = vunpack.c.l.b16 %v1689
      %v2246 = vunpack.c.l.b16 %v1690
      %v2247 = vunpack.c.l.b16 %v1691
      %v2248 = vunpack.c.l.b16 %v1692
      %v2249 = vunpack.c.l.b16 %v1693
      %v2250 = vunpack.c.l.b16 %v1694
      %v2251 = vpack.c.b16 %v2204, %v2203
      %v2252 = vpack.c.b16 %v2206, %v2205
      %v2253 = vpack.c.b16 %v2208, %v2207
      %v2254 = vpack.c.b16 %v2210, %v2209
      %v2255 = vpack.c.b16 %v2212, %v2211
      %v2256 = vpack.c.b16 %v2214, %v2213
      %v2257 = vpack.c.b16 %v2216, %v2215
      %v2258 = vpack.c.b16 %v2218, %v2217
      %v2259 = vpack.c.b16 %v2220, %v2219
      %v2260 = vpack.c.b16 %v2222, %v2221
      %v2261 = vpack.c.b16 %v2224, %v2223
      %v2262 = vpack.c.b16 %v2226, %v2225
      %v2263 = vpack.c.b16 %v2228, %v2227
      %v2264 = vpack.c.b16 %v2230, %v2229
      %v2265 = vpack.c.b16 %v2232, %v2231
      %v2266 = vpack.c.b16 %v2234, %v2233
      %v2267 = vpack.c.b16 %v2236, %v2235
      %v2268 = vpack.c.b16 %v2238, %v2237
      %v2269 = vpack.c.b16 %v2240, %v2239
      %v2270 = vpack.c.b16 %v2242, %v2241
      %v2271 = vpack.c.b16 %v2244, %v2243
      %v2272 = vpack.c.b16 %v2246, %v2245
      %v2273 = vpack.c.b16 %v2248, %v2247
      %v2274 = vpack.c.b16 %v2250, %v2249
      %2299 = vmatpush.bf16.msra.mxu0 %v2258
      %2300 = vmatpush.bf16.msra.mxu0 %v2257
      %2301 = vmatpush.bf16.msra.mxu0 %v2256
      %2302 = vmatpush.bf16.msra.mxu0 %v2255
      %2303 = vmatpush.bf16.msra.mxu0 %v2254
      %2304 = vmatpush.bf16.msra.mxu0 %v2253
      %2305 = vmatpush.bf16.msra.mxu0 %v2252
      %2306 = vmatpush.bf16.msra.mxu0 %v2251
      %2307 = vmatmul.bf16.gmra.mxu0 %v1249
      %v2308 = vpop.f32.mrf.mxu0
      %v2309 = vadd.f32 %v2076, %v2308
      %v2310 = vpop.f32.mrf.mxu0
      %v2311 = vadd.f32 %v2078, %v2310
      %2312 = vmatmul.bf16.gmra.mxu0 %v1250
      %v2313 = vpop.f32.mrf.mxu0
      %v2314 = vadd.f32 %v2081, %v2313
      %v2315 = vpop.f32.mrf.mxu0
      %v2316 = vadd.f32 %v2083, %v2315
      %2317 = vmatmul.bf16.gmra.mxu0 %v1251
      %v2318 = vpop.f32.mrf.mxu0
      %v2319 = vadd.f32 %v2086, %v2318
      %v2320 = vpop.f32.mrf.mxu0
      %v2321 = vadd.f32 %v2088, %v2320
      %2322 = vmatmul.bf16.gmra.mxu0 %v1252
      %v2323 = vpop.f32.mrf.mxu0
      %v2324 = vadd.f32 %v2091, %v2323
      %v2325 = vpop.f32.mrf.mxu0
      %v2326 = vadd.f32 %v2093, %v2325
      %2327 = vmatmul.bf16.gmra.mxu0 %v1253
      %v2328 = vpop.f32.mrf.mxu0
      %v2329 = vadd.f32 %v2096, %v2328
      %v2330 = vpop.f32.mrf.mxu0
      %v2331 = vadd.f32 %v2098, %v2330
      %2332 = vmatmul.bf16.gmra.mxu0 %v1254
      %v2333 = vpop.f32.mrf.mxu0
      %v2334 = vadd.f32 %v2101, %v2333
      %v2335 = vpop.f32.mrf.mxu0
      %v2336 = vadd.f32 %v2103, %v2335
      %2337 = vmatmul.bf16.gmra.mxu0 %v1255
      %v2338 = vpop.f32.mrf.mxu0
      %v2339 = vadd.f32 %v2106, %v2338
      %v2340 = vpop.f32.mrf.mxu0
      %v2341 = vadd.f32 %v2108, %v2340
      %2342 = vmatmul.bf16.gmra.mxu0 %v1256
      %v2343 = vpop.f32.mrf.mxu0
      %v2344 = vadd.f32 %v2111, %v2343
      %v2345 = vpop.f32.mrf.mxu0
      %v2346 = vadd.f32 %v2113, %v2345
      %2347 = vmatmul.bf16.gmra.mxu0 %v1257
      %v2348 = vpop.f32.mrf.mxu0
      %v2349 = vadd.f32 %v2116, %v2348
      %v2350 = vpop.f32.mrf.mxu0
      %v2351 = vadd.f32 %v2118, %v2350
      %2352 = vmatmul.bf16.gmra.mxu0 %v1258
      %v2353 = vpop.f32.mrf.mxu0
      %v2354 = vadd.f32 %v2121, %v2353
      %v2355 = vpop.f32.mrf.mxu0
      %v2356 = vadd.f32 %v2123, %v2355
      %2357 = vmatmul.bf16.gmra.mxu0 %v1259
      %v2358 = vpop.f32.mrf.mxu0
      %v2359 = vadd.f32 %v2126, %v2358
      %v2360 = vpop.f32.mrf.mxu0
      %v2361 = vadd.f32 %v2128, %v2360
      %2362 = vmatmul.bf16.gmra.mxu0 %v1260
      %v2363 = vpop.f32.mrf.mxu0
      %v2364 = vadd.f32 %v2131, %v2363
      %v2365 = vpop.f32.mrf.mxu0
      %v2366 = vadd.f32 %v2133, %v2365
      %2367 = vmatmul.bf16.gmra.mxu0 %v1261
      %v2368 = vpop.f32.mrf.mxu0
      %v2369 = vadd.f32 %v2136, %v2368
      %v2370 = vpop.f32.mrf.mxu0
      %v2371 = vadd.f32 %v2138, %v2370
      %2372 = vmatmul.bf16.gmra.mxu0 %v1262
      %v2373 = vpop.f32.mrf.mxu0
      %v2374 = vadd.f32 %v2141, %v2373
      %v2375 = vpop.f32.mrf.mxu0
      %v2376 = vadd.f32 %v2143, %v2375
      %2377 = vmatmul.bf16.gmra.mxu0 %v1263
      %v2378 = vpop.f32.mrf.mxu0
      %v2379 = vadd.f32 %v2146, %v2378
      %v2380 = vpop.f32.mrf.mxu0
      %v2381 = vadd.f32 %v2148, %v2380
      %2382 = vmatmul.bf16.gmra.mxu0 %v1264
      %v2383 = vpop.f32.mrf.mxu0
      %v2384 = vadd.f32 %v2151, %v2383
      %v2385 = vpop.f32.mrf.mxu0
      %v2386 = vadd.f32 %v2153, %v2385
      %2387 = vdwg.mxu0
      %2388 = vmatpush.bf16.msra.mxu0 %v2266
      %2389 = vmatpush.bf16.msra.mxu0 %v2265
      %2390 = vmatpush.bf16.msra.mxu0 %v2264
      %2391 = vmatpush.bf16.msra.mxu0 %v2263
      %2392 = vmatpush.bf16.msra.mxu0 %v2262
      %2393 = vmatpush.bf16.msra.mxu0 %v2261
      %2394 = vmatpush.bf16.msra.mxu0 %v2260
      %2395 = vmatpush.bf16.msra.mxu0 %v2259
      %2396 = vmatmul.bf16.gmra.mxu0 %v1351
      %v2397 = vpop.f32.mrf.mxu0
      %v2398 = vadd.f32 %v2309, %v2397
      %v2399 = vpop.f32.mrf.mxu0
      %v2400 = vadd.f32 %v2311, %v2399
      %2401 = vmatmul.bf16.gmra.mxu0 %v1363
      %v2402 = vpop.f32.mrf.mxu0
      %v2403 = vadd.f32 %v2314, %v2402
      %v2404 = vpop.f32.mrf.mxu0
      %v2405 = vadd.f32 %v2316, %v2404
      %2406 = vmatmul.bf16.gmra.mxu0 %v1375
      %v2407 = vpop.f32.mrf.mxu0
      %v2408 = vadd.f32 %v2319, %v2407
      %v2409 = vpop.f32.mrf.mxu0
      %v2410 = vadd.f32 %v2321, %v2409
      %2411 = vmatmul.bf16.gmra.mxu0 %v1387
      %v2412 = vpop.f32.mrf.mxu0
      %v2413 = vadd.f32 %v2324, %v2412
      %v2414 = vpop.f32.mrf.mxu0
      %v2415 = vadd.f32 %v2326, %v2414
      %2416 = vmatmul.bf16.gmra.mxu0 %v1399
      %v2417 = vpop.f32.mrf.mxu0
      %v2418 = vadd.f32 %v2329, %v2417
      %v2419 = vpop.f32.mrf.mxu0
      %v2420 = vadd.f32 %v2331, %v2419
      %2421 = vmatmul.bf16.gmra.mxu0 %v1411
      %v2422 = vpop.f32.mrf.mxu0
      %v2423 = vadd.f32 %v2334, %v2422
      %v2424 = vpop.f32.mrf.mxu0
      %v2425 = vadd.f32 %v2336, %v2424
      %2426 = vmatmul.bf16.gmra.mxu0 %v1423
      %v2427 = vpop.f32.mrf.mxu0
      %v2428 = vadd.f32 %v2339, %v2427
      %v2429 = vpop.f32.mrf.mxu0
      %v2430 = vadd.f32 %v2341, %v2429
      %2431 = vmatmul.bf16.gmra.mxu0 %v1435
      %v2432 = vpop.f32.mrf.mxu0
      %v2433 = vadd.f32 %v2344, %v2432
      %v2434 = vpop.f32.mrf.mxu0
      %v2435 = vadd.f32 %v2346, %v2434
      %2436 = vmatmul.bf16.gmra.mxu0 %v1447
      %v2437 = vpop.f32.mrf.mxu0
      %v2438 = vadd.f32 %v2349, %v2437
      %v2439 = vpop.f32.mrf.mxu0
      %v2440 = vadd.f32 %v2351, %v2439
      %2441 = vmatmul.bf16.gmra.mxu0 %v1459
      %v2442 = vpop.f32.mrf.mxu0
      %v2443 = vadd.f32 %v2354, %v2442
      %v2444 = vpop.f32.mrf.mxu0
      %v2445 = vadd.f32 %v2356, %v2444
      %2446 = vmatmul.bf16.gmra.mxu0 %v1471
      %v2447 = vpop.f32.mrf.mxu0
      %v2448 = vadd.f32 %v2359, %v2447
      %v2449 = vpop.f32.mrf.mxu0
      %v2450 = vadd.f32 %v2361, %v2449
      %2451 = vmatmul.bf16.gmra.mxu0 %v1483
      %v2452 = vpop.f32.mrf.mxu0
      %v2453 = vadd.f32 %v2364, %v2452
      %v2454 = vpop.f32.mrf.mxu0
      %v2455 = vadd.f32 %v2366, %v2454
      %2456 = vmatmul.bf16.gmra.mxu0 %v1495
      %v2457 = vpop.f32.mrf.mxu0
      %v2458 = vadd.f32 %v2369, %v2457
      %v2459 = vpop.f32.mrf.mxu0
      %v2460 = vadd.f32 %v2371, %v2459
      %2461 = vmatmul.bf16.gmra.mxu0 %v1507
      %v2462 = vpop.f32.mrf.mxu0
      %v2463 = vadd.f32 %v2374, %v2462
      %v2464 = vpop.f32.mrf.mxu0
      %v2465 = vadd.f32 %v2376, %v2464
      %2466 = vmatmul.bf16.gmra.mxu0 %v1519
      %v2467 = vpop.f32.mrf.mxu0
      %v2468 = vadd.f32 %v2379, %v2467
      %v2469 = vpop.f32.mrf.mxu0
      %v2470 = vadd.f32 %v2381, %v2469
      %2471 = vmatmul.bf16.gmra.mxu0 %v1531
      %v2472 = vpop.f32.mrf.mxu0
      %v2473 = vadd.f32 %v2384, %v2472
      %v2474 = vpop.f32.mrf.mxu0
      %v2475 = vadd.f32 %v2386, %v2474
      %2476 = vdwg.mxu0
      %2477 = vmatpush.bf16.msra.mxu0 %v2274
      %2478 = vmatpush.bf16.msra.mxu0 %v2273
      %2479 = vmatpush.bf16.msra.mxu0 %v2272
      %2480 = vmatpush.bf16.msra.mxu0 %v2271
      %2481 = vmatpush.bf16.msra.mxu0 %v2270
      %2482 = vmatpush.bf16.msra.mxu0 %v2269
      %2483 = vmatpush.bf16.msra.mxu0 %v2268
      %2484 = vmatpush.bf16.msra.mxu0 %v2267
      %2485 = vmatmul.bf16.gmra.mxu0 %v1577
      %v2486 = vpop.f32.mrf.mxu0
      %v2487 = vadd.f32 %v2398, %v2486
      %v2488 = vpop.f32.mrf.mxu0
      %v2489 = vadd.f32 %v2400, %v2488
      %2490 = vmatmul.bf16.gmra.mxu0 %v1580
      %v2491 = vpop.f32.mrf.mxu0
      %v2492 = vadd.f32 %v2403, %v2491
      %v2493 = vpop.f32.mrf.mxu0
      %v2494 = vadd.f32 %v2405, %v2493
      %2495 = vmatmul.bf16.gmra.mxu0 %v1583
      %v2496 = vpop.f32.mrf.mxu0
      %v2497 = vadd.f32 %v2408, %v2496
      %v2498 = vpop.f32.mrf.mxu0
      %v2499 = vadd.f32 %v2410, %v2498
      %2500 = vmatmul.bf16.gmra.mxu0 %v1586
      %v2501 = vpop.f32.mrf.mxu0
      %v2502 = vadd.f32 %v2413, %v2501
      %v2503 = vpop.f32.mrf.mxu0
      %v2504 = vadd.f32 %v2415, %v2503
      %2505 = vmatmul.bf16.gmra.mxu0 %v1589
      %v2506 = vpop.f32.mrf.mxu0
      %v2507 = vadd.f32 %v2418, %v2506
      %v2508 = vpop.f32.mrf.mxu0
      %v2509 = vadd.f32 %v2420, %v2508
      %2510 = vmatmul.bf16.gmra.mxu0 %v1592
      %v2511 = vpop.f32.mrf.mxu0
      %v2512 = vadd.f32 %v2423, %v2511
      %v2513 = vpop.f32.mrf.mxu0
      %v2514 = vadd.f32 %v2425, %v2513
      %2515 = vmatmul.bf16.gmra.mxu0 %v1595
      %v2516 = vpop.f32.mrf.mxu0
      %v2517 = vadd.f32 %v2428, %v2516
      %v2518 = vpop.f32.mrf.mxu0
      %v2519 = vadd.f32 %v2430, %v2518
      %2520 = vmatmul.bf16.gmra.mxu0 %v1598
      %v2521 = vpop.f32.mrf.mxu0
      %v2522 = vadd.f32 %v2433, %v2521
      %v2523 = vpop.f32.mrf.mxu0
      %v2524 = vadd.f32 %v2435, %v2523
      %2525 = vmatmul.bf16.gmra.mxu0 %v1601
      %v2526 = vpop.f32.mrf.mxu0
      %v2527 = vadd.f32 %v2438, %v2526
      %v2528 = vpop.f32.mrf.mxu0
      %v2529 = vadd.f32 %v2440, %v2528
      %2530 = vmatmul.bf16.gmra.mxu0 %v1604
      %v2531 = vpop.f32.mrf.mxu0
      %v2532 = vadd.f32 %v2443, %v2531
      %v2533 = vpop.f32.mrf.mxu0
      %v2534 = vadd.f32 %v2445, %v2533
      %2535 = vmatmul.bf16.gmra.mxu0 %v1607
      %v2536 = vpop.f32.mrf.mxu0
      %v2537 = vadd.f32 %v2448, %v2536
      %v2538 = vpop.f32.mrf.mxu0
      %v2539 = vadd.f32 %v2450, %v2538
      %2540 = vmatmul.bf16.gmra.mxu0 %v1610
      %v2541 = vpop.f32.mrf.mxu0
      %v2542 = vadd.f32 %v2453, %v2541
      %v2543 = vpop.f32.mrf.mxu0
      %v2544 = vadd.f32 %v2455, %v2543
      %2545 = vmatmul.bf16.gmra.mxu0 %v1613
      %v2546 = vpop.f32.mrf.mxu0
      %v2547 = vadd.f32 %v2458, %v2546
      %v2548 = vpop.f32.mrf.mxu0
      %v2549 = vadd.f32 %v2460, %v2548
      %2550 = vmatmul.bf16.gmra.mxu0 %v1616
      %v2551 = vpop.f32.mrf.mxu0
      %v2552 = vadd.f32 %v2463, %v2551
      %v2553 = vpop.f32.mrf.mxu0
      %v2554 = vadd.f32 %v2465, %v2553
      %2555 = vmatmul.bf16.gmra.mxu0 %v1619
      %v2556 = vpop.f32.mrf.mxu0
      %v2557 = vadd.f32 %v2468, %v2556
      %v2558 = vpop.f32.mrf.mxu0
      %v2559 = vadd.f32 %v2470, %v2558
      %2560 = vmatmul.bf16.gmra.mxu0 %v1622
      %v2561 = vpop.f32.mrf.mxu0
      %v2562 = vadd.f32 %v2473, %v2561
      %v2563 = vpop.f32.mrf.mxu0
      %v2564 = vadd.f32 %v2475, %v2563
      %2565 = vdwg.mxu0
      %s2566 = scalar_lea.vmem %s400, 384
      %v2567 = vld [vmem:[%s2566] sm:$0xf]
      %v2568 = vld [vmem:[%s2566 + $0x4] sm:$0xf]
      %v2569 = vld [vmem:[%s2566 + $0x8] sm:$0xf]
      %v2570 = vld [vmem:[%s2566 + $0xc] sm:$0xf]
      %v2571 = vld [vmem:[%s2566 + $0x10] sm:$0xf]
      %v2572 = vld [vmem:[%s2566 + $0x14] sm:$0xf]
      %v2573 = vld [vmem:[%s2566 + $0x18] sm:$0xf]
      %v2574 = vld [vmem:[%s2566 + $0x1c] sm:$0xf]
      %v2575 = vld [vmem:[%s2566 + $0x20] sm:$0xf]
      %v2576 = vld [vmem:[%s2566 + $0x24] sm:$0xf]
      %v2577 = vld [vmem:[%s2566 + $0x28] sm:$0xf]
      %v2578 = vld [vmem:[%s2566 + $0x2c] sm:$0xf]
      %v2579 = vld [vmem:[%s2566 + $0x30] sm:$0xf]
      %v2580 = vld [vmem:[%s2566 + $0x34] sm:$0xf]
      %v2581 = vld [vmem:[%s2566 + $0x38] sm:$0xf]
      %v2582 = vld [vmem:[%s2566 + $0x3c] sm:$0xf]
      %v2583 = vld [vmem:[%s2566 + $0x40] sm:$0xf]
      %v2584 = vld [vmem:[%s2566 + $0x44] sm:$0xf]
      %v2585 = vld [vmem:[%s2566 + $0x48] sm:$0xf]
      %v2586 = vld [vmem:[%s2566 + $0x4c] sm:$0xf]
      %v2587 = vld [vmem:[%s2566 + $0x50] sm:$0xf]
      %v2588 = vld [vmem:[%s2566 + $0x54] sm:$0xf]
      %v2589 = vld [vmem:[%s2566 + $0x58] sm:$0xf]
      %v2590 = vld [vmem:[%s2566 + $0x5c] sm:$0xf]
      %v2591 = vld [vmem:[%s2566 + $0x60] sm:$0xf]
      %v2592 = vld [vmem:[%s2566 + $0x64] sm:$0xf]
      %v2593 = vld [vmem:[%s2566 + $0x68] sm:$0xf]
      %v2594 = vld [vmem:[%s2566 + $0x6c] sm:$0xf]
      %v2595 = vld [vmem:[%s2566 + $0x70] sm:$0xf]
      %v2596 = vld [vmem:[%s2566 + $0x74] sm:$0xf]
      %v2597 = vld [vmem:[%s2566 + $0x78] sm:$0xf]
      %v2598 = vld [vmem:[%s2566 + $0x7c] sm:$0xf]
      %v2599 = vld [vmem:[%s2566 + $0x80] sm:$0xf]
      %v2600 = vld [vmem:[%s2566 + $0x84] sm:$0xf]
      %v2601 = vld [vmem:[%s2566 + $0x88] sm:$0xf]
      %v2602 = vld [vmem:[%s2566 + $0x8c] sm:$0xf]
      %v2603 = vld [vmem:[%s2566 + $0x90] sm:$0xf]
      %v2604 = vld [vmem:[%s2566 + $0x94] sm:$0xf]
      %v2605 = vld [vmem:[%s2566 + $0x98] sm:$0xf]
      %v2606 = vld [vmem:[%s2566 + $0x9c] sm:$0xf]
      %v2607 = vld [vmem:[%s2566 + $0xa0] sm:$0xf]
      %v2608 = vld [vmem:[%s2566 + $0xa4] sm:$0xf]
      %v2609 = vld [vmem:[%s2566 + $0xa8] sm:$0xf]
      %v2610 = vld [vmem:[%s2566 + $0xac] sm:$0xf]
      %v2611 = vld [vmem:[%s2566 + $0xb0] sm:$0xf]
      %v2612 = vld [vmem:[%s2566 + $0xb4] sm:$0xf]
      %v2613 = vld [vmem:[%s2566 + $0xb8] sm:$0xf]
      %v2614 = vld [vmem:[%s2566 + $0xbc] sm:$0xf]
      %v2663 = vunpack.c.l.b16 %v2567
      %v2664 = vunpack.c.l.b16 %v2568
      %v2665 = vunpack.c.l.b16 %v2569
      %v2666 = vunpack.c.l.b16 %v2570
      %v2667 = vunpack.c.l.b16 %v2571
      %v2668 = vunpack.c.l.b16 %v2572
      %v2669 = vunpack.c.l.b16 %v2573
      %v2670 = vunpack.c.l.b16 %v2574
      %v2671 = vunpack.c.l.b16 %v2575
      %v2672 = vunpack.c.l.b16 %v2576
      %v2673 = vunpack.c.l.b16 %v2577
      %v2674 = vunpack.c.l.b16 %v2578
      %v2675 = vunpack.c.l.b16 %v2579
      %v2676 = vunpack.c.l.b16 %v2580
      %v2677 = vunpack.c.l.b16 %v2581
      %v2678 = vunpack.c.l.b16 %v2582
      %v2679 = vunpack.c.l.b16 %v2583
      %v2680 = vunpack.c.l.b16 %v2584
      %v2681 = vunpack.c.l.b16 %v2585
      %v2682 = vunpack.c.l.b16 %v2586
      %v2683 = vunpack.c.l.b16 %v2587
      %v2684 = vunpack.c.l.b16 %v2588
      %v2685 = vunpack.c.l.b16 %v2589
      %v2686 = vunpack.c.l.b16 %v2590
      %v2687 = vunpack.c.l.b16 %v2591
      %v2688 = vunpack.c.l.b16 %v2592
      %v2689 = vunpack.c.l.b16 %v2593
      %v2690 = vunpack.c.l.b16 %v2594
      %v2691 = vunpack.c.l.b16 %v2595
      %v2692 = vunpack.c.l.b16 %v2596
      %v2693 = vunpack.c.l.b16 %v2597
      %v2694 = vunpack.c.l.b16 %v2598
      %v2695 = vunpack.c.l.b16 %v2599
      %v2696 = vunpack.c.l.b16 %v2600
      %v2697 = vunpack.c.l.b16 %v2601
      %v2698 = vunpack.c.l.b16 %v2602
      %v2699 = vunpack.c.l.b16 %v2603
      %v2700 = vunpack.c.l.b16 %v2604
      %v2701 = vunpack.c.l.b16 %v2605
      %v2702 = vunpack.c.l.b16 %v2606
      %v2703 = vunpack.c.l.b16 %v2607
      %v2704 = vunpack.c.l.b16 %v2608
      %v2705 = vunpack.c.l.b16 %v2609
      %v2706 = vunpack.c.l.b16 %v2610
      %v2707 = vunpack.c.l.b16 %v2611
      %v2708 = vunpack.c.l.b16 %v2612
      %v2709 = vunpack.c.l.b16 %v2613
      %v2710 = vunpack.c.l.b16 %v2614
      %v2711 = vpack.c.b16 %v2664, %v2663
      %v2712 = vpack.c.b16 %v2666, %v2665
      %v2713 = vpack.c.b16 %v2668, %v2667
      %v2714 = vpack.c.b16 %v2670, %v2669
      %v2715 = vpack.c.b16 %v2672, %v2671
      %v2716 = vpack.c.b16 %v2674, %v2673
      %v2717 = vpack.c.b16 %v2676, %v2675
      %v2718 = vpack.c.b16 %v2678, %v2677
      %v2719 = vpack.c.b16 %v2680, %v2679
      %v2720 = vpack.c.b16 %v2682, %v2681
      %v2721 = vpack.c.b16 %v2684, %v2683
      %v2722 = vpack.c.b16 %v2686, %v2685
      %v2723 = vpack.c.b16 %v2688, %v2687
      %v2724 = vpack.c.b16 %v2690, %v2689
      %v2725 = vpack.c.b16 %v2692, %v2691
      %v2726 = vpack.c.b16 %v2694, %v2693
      %v2727 = vpack.c.b16 %v2696, %v2695
      %v2728 = vpack.c.b16 %v2698, %v2697
      %v2729 = vpack.c.b16 %v2700, %v2699
      %v2730 = vpack.c.b16 %v2702, %v2701
      %v2731 = vpack.c.b16 %v2704, %v2703
      %v2732 = vpack.c.b16 %v2706, %v2705
      %v2733 = vpack.c.b16 %v2708, %v2707
      %v2734 = vpack.c.b16 %v2710, %v2709
      %2759 = vmatpush.bf16.msra.mxu0 %v2718
      %2760 = vmatpush.bf16.msra.mxu0 %v2717
      %2761 = vmatpush.bf16.msra.mxu0 %v2716
      %2762 = vmatpush.bf16.msra.mxu0 %v2715
      %2763 = vmatpush.bf16.msra.mxu0 %v2714
      %2764 = vmatpush.bf16.msra.mxu0 %v2713
      %2765 = vmatpush.bf16.msra.mxu0 %v2712
      %2766 = vmatpush.bf16.msra.mxu0 %v2711
      %2767 = vmatmul.bf16.gmra.mxu0 %v1251
      %v2768 = vpop.f32.mrf.mxu0
      %v2769 = vadd.f32 0.0, %v2768
      %v2770 = vpop.f32.mrf.mxu0
      %v2771 = vadd.f32 0.0, %v2770
      %2772 = vmatmul.bf16.gmra.mxu0 %v1252
      %v2773 = vpop.f32.mrf.mxu0
      %v2774 = vadd.f32 0.0, %v2773
      %v2775 = vpop.f32.mrf.mxu0
      %v2776 = vadd.f32 0.0, %v2775
      %2777 = vmatmul.bf16.gmra.mxu0 %v1253
      %v2778 = vpop.f32.mrf.mxu0
      %v2779 = vadd.f32 0.0, %v2778
      %v2780 = vpop.f32.mrf.mxu0
      %v2781 = vadd.f32 0.0, %v2780
      %2782 = vmatmul.bf16.gmra.mxu0 %v1254
      %v2783 = vpop.f32.mrf.mxu0
      %v2784 = vadd.f32 0.0, %v2783
      %v2785 = vpop.f32.mrf.mxu0
      %v2786 = vadd.f32 0.0, %v2785
      %2787 = vmatmul.bf16.gmra.mxu0 %v1255
      %v2788 = vpop.f32.mrf.mxu0
      %v2789 = vadd.f32 0.0, %v2788
      %v2790 = vpop.f32.mrf.mxu0
      %v2791 = vadd.f32 0.0, %v2790
      %2792 = vmatmul.bf16.gmra.mxu0 %v1256
      %v2793 = vpop.f32.mrf.mxu0
      %v2794 = vadd.f32 0.0, %v2793
      %v2795 = vpop.f32.mrf.mxu0
      %v2796 = vadd.f32 0.0, %v2795
      %2797 = vmatmul.bf16.gmra.mxu0 %v1257
      %v2798 = vpop.f32.mrf.mxu0
      %v2799 = vadd.f32 0.0, %v2798
      %v2800 = vpop.f32.mrf.mxu0
      %v2801 = vadd.f32 0.0, %v2800
      %2802 = vmatmul.bf16.gmra.mxu0 %v1258
      %v2803 = vpop.f32.mrf.mxu0
      %v2804 = vadd.f32 0.0, %v2803
      %v2805 = vpop.f32.mrf.mxu0
      %v2806 = vadd.f32 0.0, %v2805
      %2807 = vmatmul.bf16.gmra.mxu0 %v1259
      %v2808 = vpop.f32.mrf.mxu0
      %v2809 = vadd.f32 0.0, %v2808
      %v2810 = vpop.f32.mrf.mxu0
      %v2811 = vadd.f32 0.0, %v2810
      %2812 = vmatmul.bf16.gmra.mxu0 %v1260
      %v2813 = vpop.f32.mrf.mxu0
      %v2814 = vadd.f32 0.0, %v2813
      %v2815 = vpop.f32.mrf.mxu0
      %v2816 = vadd.f32 0.0, %v2815
      %2817 = vmatmul.bf16.gmra.mxu0 %v1261
      %v2818 = vpop.f32.mrf.mxu0
      %v2819 = vadd.f32 0.0, %v2818
      %v2820 = vpop.f32.mrf.mxu0
      %v2821 = vadd.f32 0.0, %v2820
      %2822 = vmatmul.bf16.gmra.mxu0 %v1262
      %v2823 = vpop.f32.mrf.mxu0
      %v2824 = vadd.f32 0.0, %v2823
      %v2825 = vpop.f32.mrf.mxu0
      %v2826 = vadd.f32 0.0, %v2825
      %2827 = vmatmul.bf16.gmra.mxu0 %v1263
      %v2828 = vpop.f32.mrf.mxu0
      %v2829 = vadd.f32 0.0, %v2828
      %v2830 = vpop.f32.mrf.mxu0
      %v2831 = vadd.f32 0.0, %v2830
      %2832 = vmatmul.bf16.gmra.mxu0 %v1264
      %v2833 = vpop.f32.mrf.mxu0
      %v2834 = vadd.f32 0.0, %v2833
      %v2835 = vpop.f32.mrf.mxu0
      %v2836 = vadd.f32 0.0, %v2835
      %2837 = vmatmul.bf16.gmra.mxu0 %v1265
      %v2838 = vpop.f32.mrf.mxu0
      %v2839 = vadd.f32 0.0, %v2838
      %v2840 = vpop.f32.mrf.mxu0
      %v2841 = vadd.f32 0.0, %v2840
      %2842 = vmatmul.bf16.gmra.mxu0 %v1266
      %v2843 = vpop.f32.mrf.mxu0
      %v2844 = vadd.f32 0.0, %v2843
      %v2845 = vpop.f32.mrf.mxu0
      %v2846 = vadd.f32 0.0, %v2845
      %2847 = vdwg.mxu0
      %2848 = vmatpush.bf16.msra.mxu0 %v2726
      %2849 = vmatpush.bf16.msra.mxu0 %v2725
      %2850 = vmatpush.bf16.msra.mxu0 %v2724
      %2851 = vmatpush.bf16.msra.mxu0 %v2723
      %2852 = vmatpush.bf16.msra.mxu0 %v2722
      %2853 = vmatpush.bf16.msra.mxu0 %v2721
      %2854 = vmatpush.bf16.msra.mxu0 %v2720
      %2855 = vmatpush.bf16.msra.mxu0 %v2719
      %2856 = vmatmul.bf16.gmra.mxu0 %v1375
      %v2857 = vpop.f32.mrf.mxu0
      %v2858 = vadd.f32 %v2769, %v2857
      %v2859 = vpop.f32.mrf.mxu0
      %v2860 = vadd.f32 %v2771, %v2859
      %2861 = vmatmul.bf16.gmra.mxu0 %v1387
      %v2862 = vpop.f32.mrf.mxu0
      %v2863 = vadd.f32 %v2774, %v2862
      %v2864 = vpop.f32.mrf.mxu0
      %v2865 = vadd.f32 %v2776, %v2864
      %2866 = vmatmul.bf16.gmra.mxu0 %v1399
      %v2867 = vpop.f32.mrf.mxu0
      %v2868 = vadd.f32 %v2779, %v2867
      %v2869 = vpop.f32.mrf.mxu0
      %v2870 = vadd.f32 %v2781, %v2869
      %2871 = vmatmul.bf16.gmra.mxu0 %v1411
      %v2872 = vpop.f32.mrf.mxu0
      %v2873 = vadd.f32 %v2784, %v2872
      %v2874 = vpop.f32.mrf.mxu0
      %v2875 = vadd.f32 %v2786, %v2874
      %2876 = vmatmul.bf16.gmra.mxu0 %v1423
      %v2877 = vpop.f32.mrf.mxu0
      %v2878 = vadd.f32 %v2789, %v2877
      %v2879 = vpop.f32.mrf.mxu0
      %v2880 = vadd.f32 %v2791, %v2879
      %2881 = vmatmul.bf16.gmra.mxu0 %v1435
      %v2882 = vpop.f32.mrf.mxu0
      %v2883 = vadd.f32 %v2794, %v2882
      %v2884 = vpop.f32.mrf.mxu0
      %v2885 = vadd.f32 %v2796, %v2884
      %2886 = vmatmul.bf16.gmra.mxu0 %v1447
      %v2887 = vpop.f32.mrf.mxu0
      %v2888 = vadd.f32 %v2799, %v2887
      %v2889 = vpop.f32.mrf.mxu0
      %v2890 = vadd.f32 %v2801, %v2889
      %2891 = vmatmul.bf16.gmra.mxu0 %v1459
      %v2892 = vpop.f32.mrf.mxu0
      %v2893 = vadd.f32 %v2804, %v2892
      %v2894 = vpop.f32.mrf.mxu0
      %v2895 = vadd.f32 %v2806, %v2894
      %2896 = vmatmul.bf16.gmra.mxu0 %v1471
      %v2897 = vpop.f32.mrf.mxu0
      %v2898 = vadd.f32 %v2809, %v2897
      %v2899 = vpop.f32.mrf.mxu0
      %v2900 = vadd.f32 %v2811, %v2899
      %2901 = vmatmul.bf16.gmra.mxu0 %v1483
      %v2902 = vpop.f32.mrf.mxu0
      %v2903 = vadd.f32 %v2814, %v2902
      %v2904 = vpop.f32.mrf.mxu0
      %v2905 = vadd.f32 %v2816, %v2904
      %2906 = vmatmul.bf16.gmra.mxu0 %v1495
      %v2907 = vpop.f32.mrf.mxu0
      %v2908 = vadd.f32 %v2819, %v2907
      %v2909 = vpop.f32.mrf.mxu0
      %v2910 = vadd.f32 %v2821, %v2909
      %2911 = vmatmul.bf16.gmra.mxu0 %v1507
      %v2912 = vpop.f32.mrf.mxu0
      %v2913 = vadd.f32 %v2824, %v2912
      %v2914 = vpop.f32.mrf.mxu0
      %v2915 = vadd.f32 %v2826, %v2914
      %2916 = vmatmul.bf16.gmra.mxu0 %v1519
      %v2917 = vpop.f32.mrf.mxu0
      %v2918 = vadd.f32 %v2829, %v2917
      %v2919 = vpop.f32.mrf.mxu0
      %v2920 = vadd.f32 %v2831, %v2919
      %2921 = vmatmul.bf16.gmra.mxu0 %v1531
      %v2922 = vpop.f32.mrf.mxu0
      %v2923 = vadd.f32 %v2834, %v2922
      %v2924 = vpop.f32.mrf.mxu0
      %v2925 = vadd.f32 %v2836, %v2924
      %2926 = vmatmul.bf16.gmra.mxu0 %v1543
      %v2927 = vpop.f32.mrf.mxu0
      %v2928 = vadd.f32 %v2839, %v2927
      %v2929 = vpop.f32.mrf.mxu0
      %v2930 = vadd.f32 %v2841, %v2929
      %2931 = vmatmul.bf16.gmra.mxu0 %v1555
      %v2932 = vpop.f32.mrf.mxu0
      %v2933 = vadd.f32 %v2844, %v2932
      %v2934 = vpop.f32.mrf.mxu0
      %v2935 = vadd.f32 %v2846, %v2934
      %2936 = vdwg.mxu0
      %2937 = vmatpush.bf16.msra.mxu0 %v2734
      %2938 = vmatpush.bf16.msra.mxu0 %v2733
      %2939 = vmatpush.bf16.msra.mxu0 %v2732
      %2940 = vmatpush.bf16.msra.mxu0 %v2731
      %2941 = vmatpush.bf16.msra.mxu0 %v2730
      %2942 = vmatpush.bf16.msra.mxu0 %v2729
      %2943 = vmatpush.bf16.msra.mxu0 %v2728
      %2944 = vmatpush.bf16.msra.mxu0 %v2727
      %2945 = vmatmul.bf16.gmra.mxu0 %v1583
      %v2946 = vpop.f32.mrf.mxu0
      %v2947 = vadd.f32 %v2858, %v2946
      %v2948 = vpop.f32.mrf.mxu0
      %v2949 = vadd.f32 %v2860, %v2948
      %2950 = vmatmul.bf16.gmra.mxu0 %v1586
      %v2951 = vpop.f32.mrf.mxu0
      %v2952 = vadd.f32 %v2863, %v2951
      %v2953 = vpop.f32.mrf.mxu0
      %v2954 = vadd.f32 %v2865, %v2953
      %2955 = vmatmul.bf16.gmra.mxu0 %v1589
      %v2956 = vpop.f32.mrf.mxu0
      %v2957 = vadd.f32 %v2868, %v2956
      %v2958 = vpop.f32.mrf.mxu0
      %v2959 = vadd.f32 %v2870, %v2958
      %2960 = vmatmul.bf16.gmra.mxu0 %v1592
      %v2961 = vpop.f32.mrf.mxu0
      %v2962 = vadd.f32 %v2873, %v2961
      %v2963 = vpop.f32.mrf.mxu0
      %v2964 = vadd.f32 %v2875, %v2963
      %2965 = vmatmul.bf16.gmra.mxu0 %v1595
      %v2966 = vpop.f32.mrf.mxu0
      %v2967 = vadd.f32 %v2878, %v2966
      %v2968 = vpop.f32.mrf.mxu0
      %v2969 = vadd.f32 %v2880, %v2968
      %2970 = vmatmul.bf16.gmra.mxu0 %v1598
      %v2971 = vpop.f32.mrf.mxu0
      %v2972 = vadd.f32 %v2883, %v2971
      %v2973 = vpop.f32.mrf.mxu0
      %v2974 = vadd.f32 %v2885, %v2973
      %2975 = vmatmul.bf16.gmra.mxu0 %v1601
      %v2976 = vpop.f32.mrf.mxu0
      %v2977 = vadd.f32 %v2888, %v2976
      %v2978 = vpop.f32.mrf.mxu0
      %v2979 = vadd.f32 %v2890, %v2978
      %2980 = vmatmul.bf16.gmra.mxu0 %v1604
      %v2981 = vpop.f32.mrf.mxu0
      %v2982 = vadd.f32 %v2893, %v2981
      %v2983 = vpop.f32.mrf.mxu0
      %v2984 = vadd.f32 %v2895, %v2983
      %2985 = vmatmul.bf16.gmra.mxu0 %v1607
      %v2986 = vpop.f32.mrf.mxu0
      %v2987 = vadd.f32 %v2898, %v2986
      %v2988 = vpop.f32.mrf.mxu0
      %v2989 = vadd.f32 %v2900, %v2988
      %2990 = vmatmul.bf16.gmra.mxu0 %v1610
      %v2991 = vpop.f32.mrf.mxu0
      %v2992 = vadd.f32 %v2903, %v2991
      %v2993 = vpop.f32.mrf.mxu0
      %v2994 = vadd.f32 %v2905, %v2993
      %2995 = vmatmul.bf16.gmra.mxu0 %v1613
      %v2996 = vpop.f32.mrf.mxu0
      %v2997 = vadd.f32 %v2908, %v2996
      %v2998 = vpop.f32.mrf.mxu0
      %v2999 = vadd.f32 %v2910, %v2998
      %3000 = vmatmul.bf16.gmra.mxu0 %v1616
      %v3001 = vpop.f32.mrf.mxu0
      %v3002 = vadd.f32 %v2913, %v3001
      %v3003 = vpop.f32.mrf.mxu0
      %v3004 = vadd.f32 %v2915, %v3003
      %3005 = vmatmul.bf16.gmra.mxu0 %v1619
      %v3006 = vpop.f32.mrf.mxu0
      %v3007 = vadd.f32 %v2918, %v3006
      %v3008 = vpop.f32.mrf.mxu0
      %v3009 = vadd.f32 %v2920, %v3008
      %3010 = vmatmul.bf16.gmra.mxu0 %v1622
      %v3011 = vpop.f32.mrf.mxu0
      %v3012 = vadd.f32 %v2923, %v3011
      %v3013 = vpop.f32.mrf.mxu0
      %v3014 = vadd.f32 %v2925, %v3013
      %3015 = vmatmul.bf16.gmra.mxu0 %v1625
      %v3016 = vpop.f32.mrf.mxu0
      %v3017 = vadd.f32 %v2928, %v3016
      %v3018 = vpop.f32.mrf.mxu0
      %v3019 = vadd.f32 %v2930, %v3018
      %3020 = vmatmul.bf16.gmra.mxu0 %v1628
      %v3021 = vpop.f32.mrf.mxu0
      %v3022 = vadd.f32 %v2933, %v3021
      %v3023 = vpop.f32.mrf.mxu0
      %v3024 = vadd.f32 %v2935, %v3023
      %3025 = vdwg.mxu0
      %v3026 = vadd.f32 %v2487, %v2947
      %v3027 = vadd.f32 %v2489, %v2949
      %v3028 = vadd.f32 %v2492, %v2952
      %v3029 = vadd.f32 %v2494, %v2954
      %v3030 = vadd.f32 %v2497, %v2957
      %v3031 = vadd.f32 %v2499, %v2959
      %v3032 = vadd.f32 %v2502, %v2962
      %v3033 = vadd.f32 %v2504, %v2964
      %v3034 = vadd.f32 %v2507, %v2967
      %v3035 = vadd.f32 %v2509, %v2969
      %v3036 = vadd.f32 %v2512, %v2972
      %v3037 = vadd.f32 %v2514, %v2974
      %v3038 = vadd.f32 %v2517, %v2977
      %v3039 = vadd.f32 %v2519, %v2979
      %v3040 = vadd.f32 %v2522, %v2982
      %v3041 = vadd.f32 %v2524, %v2984
      %v3042 = vadd.f32 %v2527, %v2987
      %v3043 = vadd.f32 %v2529, %v2989
      %v3044 = vadd.f32 %v2532, %v2992
      %v3045 = vadd.f32 %v2534, %v2994
      %v3046 = vadd.f32 %v2537, %v2997
      %v3047 = vadd.f32 %v2539, %v2999
      %v3048 = vadd.f32 %v2542, %v3002
      %v3049 = vadd.f32 %v2544, %v3004
      %v3050 = vadd.f32 %v2547, %v3007
      %v3051 = vadd.f32 %v2549, %v3009
      %v3052 = vadd.f32 %v2552, %v3012
      %v3053 = vadd.f32 %v2554, %v3014
      %v3054 = vadd.f32 %v2557, %v3017
      %v3055 = vadd.f32 %v2559, %v3019
      %v3056 = vadd.f32 %v2562, %v3022
      %v3057 = vadd.f32 %v2564, %v3024
      %v3058 = vld [vmem:[#allocation2] sm:$0xff]
      %v3059 = vld [vmem:[#allocation2 + $0x8] sm:$0xff]
      %v3060 = vld [vmem:[#allocation2 + $0x10] sm:$0xff]
      %v3061 = vld [vmem:[#allocation2 + $0x18] sm:$0xff]
      %v3062 = vld [vmem:[#allocation2 + $0x20] sm:$0xff]
      %v3063 = vld [vmem:[#allocation2 + $0x28] sm:$0xff]
      %v3064 = vld [vmem:[#allocation2 + $0x30] sm:$0xff]
      %v3065 = vld [vmem:[#allocation2 + $0x38] sm:$0xff]
      %v3066 = vld [vmem:[#allocation2 + $0x40] sm:$0xff]
      %v3067 = vld [vmem:[#allocation2 + $0x48] sm:$0xff]
      %v3068 = vld [vmem:[#allocation2 + $0x50] sm:$0xff]
      %v3069 = vld [vmem:[#allocation2 + $0x58] sm:$0xff]
      %v3070 = vld [vmem:[#allocation2 + $0x60] sm:$0xff]
      %v3071 = vld [vmem:[#allocation2 + $0x68] sm:$0xff]
      %v3072 = vld [vmem:[#allocation2 + $0x70] sm:$0xff]
      %v3073 = vld [vmem:[#allocation2 + $0x78] sm:$0xff]
      %v3074 = vld [vmem:[#allocation2 + $0x80] sm:$0xff]
      %v3075 = vld [vmem:[#allocation2 + $0x88] sm:$0xff]
      %v3076 = vld [vmem:[#allocation2 + $0x90] sm:$0xff]
      %v3077 = vld [vmem:[#allocation2 + $0x98] sm:$0xff]
      %v3078 = vld [vmem:[#allocation2 + $0xa0] sm:$0xff]
      %v3079 = vld [vmem:[#allocation2 + $0xa8] sm:$0xff]
      %v3080 = vld [vmem:[#allocation2 + $0xb0] sm:$0xff]
      %v3081 = vld [vmem:[#allocation2 + $0xb8] sm:$0xff]
      %v3082 = vld [vmem:[#allocation2 + $0xc0] sm:$0xff]
      %v3083 = vld [vmem:[#allocation2 + $0xc8] sm:$0xff]
      %v3084 = vld [vmem:[#allocation2 + $0xd0] sm:$0xff]
      %v3085 = vld [vmem:[#allocation2 + $0xd8] sm:$0xff]
      %v3086 = vld [vmem:[#allocation2 + $0xe0] sm:$0xff]
      %v3087 = vld [vmem:[#allocation2 + $0xe8] sm:$0xff]
      %v3088 = vld [vmem:[#allocation2 + $0xf0] sm:$0xff]
      %v3089 = vld [vmem:[#allocation2 + $0xf8] sm:$0xff]
      %v3090 = vadd.f32 %v3058, %v3026
      %v3091 = vadd.f32 %v3059, %v3027
      %v3092 = vadd.f32 %v3060, %v3028
      %v3093 = vadd.f32 %v3061, %v3029
      %v3094 = vadd.f32 %v3062, %v3030
      %v3095 = vadd.f32 %v3063, %v3031
      %v3096 = vadd.f32 %v3064, %v3032
      %v3097 = vadd.f32 %v3065, %v3033
      %v3098 = vadd.f32 %v3066, %v3034
      %v3099 = vadd.f32 %v3067, %v3035
      %v3100 = vadd.f32 %v3068, %v3036
      %v3101 = vadd.f32 %v3069, %v3037
      %v3102 = vadd.f32 %v3070, %v3038
      %v3103 = vadd.f32 %v3071, %v3039
      %v3104 = vadd.f32 %v3072, %v3040
      %v3105 = vadd.f32 %v3073, %v3041
      %v3106 = vadd.f32 %v3074, %v3042
      %v3107 = vadd.f32 %v3075, %v3043
      %v3108 = vadd.f32 %v3076, %v3044
      %v3109 = vadd.f32 %v3077, %v3045
      %v3110 = vadd.f32 %v3078, %v3046
      %v3111 = vadd.f32 %v3079, %v3047
      %v3112 = vadd.f32 %v3080, %v3048
      %v3113 = vadd.f32 %v3081, %v3049
      %v3114 = vadd.f32 %v3082, %v3050
      %v3115 = vadd.f32 %v3083, %v3051
      %v3116 = vadd.f32 %v3084, %v3052
      %v3117 = vadd.f32 %v3085, %v3053
      %v3118 = vadd.f32 %v3086, %v3054
      %v3119 = vadd.f32 %v3087, %v3055
      %v3120 = vadd.f32 %v3088, %v3056
      %v3121 = vadd.f32 %v3089, %v3057
      %p3122 = scmp.lt.s32.totalorder %s26, 0
      // Predicated region
      $region49: #{_lambda_.6} parent=43 // pred_check
        %p3123 = pneg %p3122
      $region50: #{_lambda_.6} parent=43 // pred_check_branch
        %3125 = sbr.rel (%p3123) target = $region52
      $region51: #{_lambda_.6} parent=43 // pred_region
        %3126 = vst [vmem:[#allocation2] sm:$0xff] %v3090
        %3127 = vst [vmem:[#allocation2 + $0x8] sm:$0xff] %v3091
        %3128 = vst [vmem:[#allocation2 + $0x10] sm:$0xff] %v3092
        %3129 = vst [vmem:[#allocation2 + $0x18] sm:$0xff] %v3093
        %3130 = vst [vmem:[#allocation2 + $0x20] sm:$0xff] %v3094
        %3131 = vst [vmem:[#allocation2 + $0x28] sm:$0xff] %v3095
        %3132 = vst [vmem:[#allocation2 + $0x30] sm:$0xff] %v3096
        %3133 = vst [vmem:[#allocation2 + $0x38] sm:$0xff] %v3097
        %3134 = vst [vmem:[#allocation2 + $0x40] sm:$0xff] %v3098
        %3135 = vst [vmem:[#allocation2 + $0x48] sm:$0xff] %v3099
        %3136 = vst [vmem:[#allocation2 + $0x50] sm:$0xff] %v3100
        %3137 = vst [vmem:[#allocation2 + $0x58] sm:$0xff] %v3101
        %3138 = vst [vmem:[#allocation2 + $0x60] sm:$0xff] %v3102
        %3139 = vst [vmem:[#allocation2 + $0x68] sm:$0xff] %v3103
        %3140 = vst [vmem:[#allocation2 + $0x70] sm:$0xff] %v3104
        %3141 = vst [vmem:[#allocation2 + $0x78] sm:$0xff] %v3105
        %3142 = vst [vmem:[#allocation2 + $0x80] sm:$0xff] %v3106
        %3143 = vst [vmem:[#allocation2 + $0x88] sm:$0xff] %v3107
        %3144 = vst [vmem:[#allocation2 + $0x90] sm:$0xff] %v3108
        %3145 = vst [vmem:[#allocation2 + $0x98] sm:$0xff] %v3109
        %3146 = vst [vmem:[#allocation2 + $0xa0] sm:$0xff] %v3110
        %3147 = vst [vmem:[#allocation2 + $0xa8] sm:$0xff] %v3111
        %3148 = vst [vmem:[#allocation2 + $0xb0] sm:$0xff] %v3112
        %3149 = vst [vmem:[#allocation2 + $0xb8] sm:$0xff] %v3113
        %3150 = vst [vmem:[#allocation2 + $0xc0] sm:$0xff] %v3114
        %3151 = vst [vmem:[#allocation2 + $0xc8] sm:$0xff] %v3115
        %3152 = vst [vmem:[#allocation2 + $0xd0] sm:$0xff] %v3116
        %3153 = vst [vmem:[#allocation2 + $0xd8] sm:$0xff] %v3117
        %3154 = vst [vmem:[#allocation2 + $0xe0] sm:$0xff] %v3118
        %3155 = vst [vmem:[#allocation2 + $0xe8] sm:$0xff] %v3119
        %3156 = vst [vmem:[#allocation2 + $0xf0] sm:$0xff] %v3120
        %3157 = vst [vmem:[#allocation2 + $0xf8] sm:$0xff] %v3121
      $region52: #{_lambda_.6} parent=43 // pred_fallthru
        _
      // Predicated region
      $region53: #{_lambda_.6} parent=43 // pred_check
        %p3158 = pneg %p431
      $region54: #{_lambda_.6} parent=43 // pred_check_branch
        %3160 = sbr.rel (%p3158) target = $region56
      $region55: #{_lambda_.6} parent=43 // pred_region
        %v3161 = vld [vmem:[%s404] sm:$0x1]
        %v3163 = vperm.slane %v3161, 0
        %v3165 = vadd.f32 %v3090, %v3163
        %v3166 = vadd.f32 %v3091, %v3163
        %v3167 = vadd.f32 %v3092, %v3163
        %v3168 = vadd.f32 %v3093, %v3163
        %v3169 = vadd.f32 %v3094, %v3163
        %v3170 = vadd.f32 %v3095, %v3163
        %v3171 = vadd.f32 %v3096, %v3163
        %v3172 = vadd.f32 %v3097, %v3163
        %v3173 = vadd.f32 %v3098, %v3163
        %v3174 = vadd.f32 %v3099, %v3163
        %v3175 = vadd.f32 %v3100, %v3163
        %v3176 = vadd.f32 %v3101, %v3163
        %v3177 = vadd.f32 %v3102, %v3163
        %v3178 = vadd.f32 %v3103, %v3163
        %v3179 = vadd.f32 %v3104, %v3163
        %v3180 = vadd.f32 %v3105, %v3163
        %v3181 = vadd.f32 %v3106, %v3163
        %v3182 = vadd.f32 %v3107, %v3163
        %v3183 = vadd.f32 %v3108, %v3163
        %v3184 = vadd.f32 %v3109, %v3163
        %v3185 = vadd.f32 %v3110, %v3163
        %v3186 = vadd.f32 %v3111, %v3163
        %v3187 = vadd.f32 %v3112, %v3163
        %v3188 = vadd.f32 %v3113, %v3163
        %v3189 = vadd.f32 %v3114, %v3163
        %v3190 = vadd.f32 %v3115, %v3163
        %v3191 = vadd.f32 %v3116, %v3163
        %v3192 = vadd.f32 %v3117, %v3163
        %v3193 = vadd.f32 %v3118, %v3163
        %v3194 = vadd.f32 %v3119, %v3163
        %v3195 = vadd.f32 %v3120, %v3163
        %v3196 = vadd.f32 %v3121, %v3163
        %v3197 = vadd.f32 %v3165, %v3166
        %v3198 = vadd.f32 %v3197, %v3167
        %v3199 = vadd.f32 %v3198, %v3168
        %v3200 = vadd.f32 %v3199, %v3169
        %v3201 = vadd.f32 %v3200, %v3170
        %v3202 = vadd.f32 %v3201, %v3171
        %v3203 = vadd.f32 %v3202, %v3172
        %v3204 = vadd.f32 %v3203, %v3173
        %v3205 = vadd.f32 %v3204, %v3174
        %v3206 = vadd.f32 %v3205, %v3175
        %v3207 = vadd.f32 %v3206, %v3176
        %v3208 = vadd.f32 %v3207, %v3177
        %v3209 = vadd.f32 %v3208, %v3178
        %v3210 = vadd.f32 %v3209, %v3179
        %v3211 = vadd.f32 %v3210, %v3180
        %v3212 = vadd.f32 %v3211, %v3181
        %v3213 = vadd.f32 %v3212, %v3182
        %v3214 = vadd.f32 %v3213, %v3183
        %v3215 = vadd.f32 %v3214, %v3184
        %v3216 = vadd.f32 %v3215, %v3185
        %v3217 = vadd.f32 %v3216, %v3186
        %v3218 = vadd.f32 %v3217, %v3187
        %v3219 = vadd.f32 %v3218, %v3188
        %v3220 = vadd.f32 %v3219, %v3189
        %v3221 = vadd.f32 %v3220, %v3190
        %v3222 = vadd.f32 %v3221, %v3191
        %v3223 = vadd.f32 %v3222, %v3192
        %v3224 = vadd.f32 %v3223, %v3193
        %v3225 = vadd.f32 %v3224, %v3194
        %v3226 = vadd.f32 %v3225, %v3195
        %v3227 = vadd.f32 %v3226, %v3196
        %v3228 = vrot.slane %v3227, 4
        %v3229 = vadd.f32 %v3227, %v3228
        %v3230 = vrot.slane %v3229, 2
        %v3231 = vadd.f32 %v3229, %v3230
        %v3232 = vrot.slane %v3231, 1
        %v3233 = vadd.f32 %v3231, %v3232
        %v3234 = vmul.f32 %v3165, %v3165
        %v3235 = vmul.f32 %v3166, %v3166
        %v3236 = vmul.f32 %v3167, %v3167
        %v3237 = vmul.f32 %v3168, %v3168
        %v3238 = vmul.f32 %v3169, %v3169
        %v3239 = vmul.f32 %v3170, %v3170
        %v3240 = vmul.f32 %v3171, %v3171
        %v3241 = vmul.f32 %v3172, %v3172
        %v3242 = vmul.f32 %v3173, %v3173
        %v3243 = vmul.f32 %v3174, %v3174
        %v3244 = vmul.f32 %v3175, %v3175
        %v3245 = vmul.f32 %v3176, %v3176
        %v3246 = vmul.f32 %v3177, %v3177
        %v3247 = vmul.f32 %v3178, %v3178
        %v3248 = vmul.f32 %v3179, %v3179
        %v3249 = vmul.f32 %v3180, %v3180
        %v3250 = vmul.f32 %v3181, %v3181
        %v3251 = vmul.f32 %v3182, %v3182
        %v3252 = vmul.f32 %v3183, %v3183
        %v3253 = vmul.f32 %v3184, %v3184
        %v3254 = vmul.f32 %v3185, %v3185
        %v3255 = vmul.f32 %v3186, %v3186
        %v3256 = vmul.f32 %v3187, %v3187
        %v3257 = vmul.f32 %v3188, %v3188
        %v3258 = vmul.f32 %v3189, %v3189
        %v3259 = vmul.f32 %v3190, %v3190
        %v3260 = vmul.f32 %v3191, %v3191
        %v3261 = vmul.f32 %v3192, %v3192
        %v3262 = vmul.f32 %v3193, %v3193
        %v3263 = vmul.f32 %v3194, %v3194
        %v3264 = vmul.f32 %v3195, %v3195
        %v3265 = vmul.f32 %v3196, %v3196
        %v3266 = vadd.f32 %v3234, %v3235
        %v3267 = vadd.f32 %v3266, %v3236
        %v3268 = vadd.f32 %v3267, %v3237
        %v3269 = vadd.f32 %v3268, %v3238
        %v3270 = vadd.f32 %v3269, %v3239
        %v3271 = vadd.f32 %v3270, %v3240
        %v3272 = vadd.f32 %v3271, %v3241
        %v3273 = vadd.f32 %v3272, %v3242
        %v3274 = vadd.f32 %v3273, %v3243
        %v3275 = vadd.f32 %v3274, %v3244
        %v3276 = vadd.f32 %v3275, %v3245
        %v3277 = vadd.f32 %v3276, %v3246
        %v3278 = vadd.f32 %v3277, %v3247
        %v3279 = vadd.f32 %v3278, %v3248
        %v3280 = vadd.f32 %v3279, %v3249
        %v3281 = vadd.f32 %v3280, %v3250
        %v3282 = vadd.f32 %v3281, %v3251
        %v3283 = vadd.f32 %v3282, %v3252
        %v3284 = vadd.f32 %v3283, %v3253
        %v3285 = vadd.f32 %v3284, %v3254
        %v3286 = vadd.f32 %v3285, %v3255
        %v3287 = vadd.f32 %v3286, %v3256
        %v3288 = vadd.f32 %v3287, %v3257
        %v3289 = vadd.f32 %v3288, %v3258
        %v3290 = vadd.f32 %v3289, %v3259
        %v3291 = vadd.f32 %v3290, %v3260
        %v3292 = vadd.f32 %v3291, %v3261
        %v3293 = vadd.f32 %v3292, %v3262
        %v3294 = vadd.f32 %v3293, %v3263
        %v3295 = vadd.f32 %v3294, %v3264
        %v3296 = vadd.f32 %v3295, %v3265
        %v3297 = vrot.slane %v3296, 4
        %v3298 = vadd.f32 %v3296, %v3297
        %v3299 = vrot.slane %v3298, 2
        %v3300 = vadd.f32 %v3298, %v3299
        %v3301 = vrot.slane %v3300, 1
        %v3302 = vadd.f32 %v3300, %v3301
        %vm3303 = vcmask 1040384
        %v3304 = vsel %vm3303, %v3233, %v3302
        %3305 = vst [vmem:[%s430] sm:$0x3] %v3304
        %v3306 = vpack.c.bf16 %v3165, %v3165
        %v3307 = vpack.c.bf16 %v3166, %v3166
        %v3308 = vpack.c.bf16 %v3167, %v3167
        %v3309 = vpack.c.bf16 %v3168, %v3168
        %v3310 = vpack.c.bf16 %v3169, %v3169
        %v3311 = vpack.c.bf16 %v3170, %v3170
        %v3312 = vpack.c.bf16 %v3171, %v3171
        %v3313 = vpack.c.bf16 %v3172, %v3172
        %v3314 = vpack.c.bf16 %v3173, %v3173
        %v3315 = vpack.c.bf16 %v3174, %v3174
        %v3316 = vpack.c.bf16 %v3175, %v3175
        %v3317 = vpack.c.bf16 %v3176, %v3176
        %v3318 = vpack.c.bf16 %v3177, %v3177
        %v3319 = vpack.c.bf16 %v3178, %v3178
        %v3320 = vpack.c.bf16 %v3179, %v3179
        %v3321 = vpack.c.bf16 %v3180, %v3180
        %v3322 = vpack.c.bf16 %v3181, %v3181
        %v3323 = vpack.c.bf16 %v3182, %v3182
        %v3324 = vpack.c.bf16 %v3183, %v3183
        %v3325 = vpack.c.bf16 %v3184, %v3184
        %v3326 = vpack.c.bf16 %v3185, %v3185
        %v3327 = vpack.c.bf16 %v3186, %v3186
        %v3328 = vpack.c.bf16 %v3187, %v3187
        %v3329 = vpack.c.bf16 %v3188, %v3188
        %v3330 = vpack.c.bf16 %v3189, %v3189
        %v3331 = vpack.c.bf16 %v3190, %v3190
        %v3332 = vpack.c.bf16 %v3191, %v3191
        %v3333 = vpack.c.bf16 %v3192, %v3192
        %v3334 = vpack.c.bf16 %v3193, %v3193
        %v3335 = vpack.c.bf16 %v3194, %v3194
        %v3336 = vpack.c.bf16 %v3195, %v3195
        %v3337 = vpack.c.bf16 %v3196, %v3196
        %3338 = vst [vmem:[%s423] sm:$0xf] %v3306
        %3339 = vst [vmem:[%s423 + $0x4] sm:$0xf] %v3307
        %3340 = vst [vmem:[%s423 + $0x8] sm:$0xf] %v3308
        %3341 = vst [vmem:[%s423 + $0xc] sm:$0xf] %v3309
        %3342 = vst [vmem:[%s423 + $0x10] sm:$0xf] %v3310
        %3343 = vst [vmem:[%s423 + $0x14] sm:$0xf] %v3311
        %3344 = vst [vmem:[%s423 + $0x18] sm:$0xf] %v3312
        %3345 = vst [vmem:[%s423 + $0x1c] sm:$0xf] %v3313
        %3346 = vst [vmem:[%s423 + $0x20] sm:$0xf] %v3314
        %3347 = vst [vmem:[%s423 + $0x24] sm:$0xf] %v3315
        %3348 = vst [vmem:[%s423 + $0x28] sm:$0xf] %v3316
        %3349 = vst [vmem:[%s423 + $0x2c] sm:$0xf] %v3317
        %3350 = vst [vmem:[%s423 + $0x30] sm:$0xf] %v3318
        %3351 = vst [vmem:[%s423 + $0x34] sm:$0xf] %v3319
        %3352 = vst [vmem:[%s423 + $0x38] sm:$0xf] %v3320
        %3353 = vst [vmem:[%s423 + $0x3c] sm:$0xf] %v3321
        %3354 = vst [vmem:[%s423 + $0x40] sm:$0xf] %v3322
        %3355 = vst [vmem:[%s423 + $0x44] sm:$0xf] %v3323
        %3356 = vst [vmem:[%s423 + $0x48] sm:$0xf] %v3324
        %3357 = vst [vmem:[%s423 + $0x4c] sm:$0xf] %v3325
        %3358 = vst [vmem:[%s423 + $0x50] sm:$0xf] %v3326
        %3359 = vst [vmem:[%s423 + $0x54] sm:$0xf] %v3327
        %3360 = vst [vmem:[%s423 + $0x58] sm:$0xf] %v3328
        %3361 = vst [vmem:[%s423 + $0x5c] sm:$0xf] %v3329
        %3362 = vst [vmem:[%s423 + $0x60] sm:$0xf] %v3330
        %3363 = vst [vmem:[%s423 + $0x64] sm:$0xf] %v3331
        %3364 = vst [vmem:[%s423 + $0x68] sm:$0xf] %v3332
        %3365 = vst [vmem:[%s423 + $0x6c] sm:$0xf] %v3333
        %3366 = vst [vmem:[%s423 + $0x70] sm:$0xf] %v3334
        %3367 = vst [vmem:[%s423 + $0x74] sm:$0xf] %v3335
        %3368 = vst [vmem:[%s423 + $0x78] sm:$0xf] %v3336
        %3369 = vst [vmem:[%s423 + $0x7c] sm:$0xf] %v3337
      $region56: #{_lambda_.6} parent=43 // pred_fallthru
        _
      %p3370 = scmp.lt.s32.totalorder %s24, 1
      %s3371 = scalar_select %p3370, %s24, 1
      %p3372 = scmp.lt.s32.totalorder %s25, 0
      %s3373 = scalar_select %p3372, %s25, 0
      %s3374 = smul.addr %s3371, 32
      %s3375 = sadd.s32 %s3373, %s3374
      %s3376 = smul.addr %s3375, 4
      %s3377 = scalar_lea.vmem %s6, %s3376
      %p3378 = scmp.lt.s32.totalorder %s24, 1
      %s3379 = scalar_select %p3378, %s24, 1
      %p3380 = scmp.lt.s32.totalorder %s25, 0
      %s3381 = scalar_select %p3380, %s25, 0
      %s3382 = sadd.s32 %s3381, %s3379
      %s3383 = smul.addr %s3382, 2
      %s3384 = scalar_lea.vmem %s7, %s3383
      // Predicated region
      $region57: #{_lambda_.6} parent=43 // pred_check
        %p3385 = pneg %p218
      $region58: #{_lambda_.6} parent=43 // pred_check_branch
        %3387 = sbr.rel (%p3385) target = $region60
      $region59: #{_lambda_.6} parent=43 // pred_region
        _
      $region60: #{_lambda_.6} parent=43 // pred_fallthru
        _
      // Predicated region
      $region61: #{_lambda_.6} parent=43 // pred_check
        %p3388 = pneg %p246
      $region62: #{_lambda_.6} parent=43 // pred_check_branch
        %3390 = sbr.rel (%p3388) target = $region64
      $region63: #{_lambda_.6} parent=43 // pred_region
        _
      $region64: #{_lambda_.6} parent=43 // pred_fallthru
        _
    $region44: #{_lambda_.6} parent=5 // pred_fallthru
      _
    %p3391 = scmp.le.s32.totalorder 2, %s14
    // Predicated region
    $region65: #{_lambda_.6} parent=5 // pred_check
      %p3392 = pneg %p3391
    $region66: #{_lambda_.6} parent=5 // pred_check_branch
      %3394 = sbr.rel (%p3392) target = $region68
    $region67: #{_lambda_.6} parent=5 // pred_region
      %s3395 = ssub.s32 %s14, 2
      // Predicated region
      $region69: #{_lambda_.6} parent=67 // pred_check
        %p3396 = pneg %p224
      $region70: #{_lambda_.6} parent=67 // pred_check_branch
        %3398 = sbr.rel (%p3396) target = $region72
      $region71: #{_lambda_.6} parent=67 // pred_region
        %p3399 = scmp.lt.s32.totalorder %s27, 1
        %s3400 = scalar_select %p3399, %s27, 1
        %p3401 = scmp.lt.s32.totalorder %s28, 0
        %s3402 = scalar_select %p3401, %s28, 0
        %s3403 = smul.addr %s3400, 32
        %s3404 = sadd.s32 %s3402, %s3403
        %s3405 = smul.addr %s3404, 4
        %s3406 = scalar_lea.vmem %s6, %s3405
      $region72: #{_lambda_.6} parent=67 // pred_fallthru
        _
      // Predicated region
      $region73: #{_lambda_.6} parent=67 // pred_check
        %p3407 = pneg %p252
      $region74: #{_lambda_.6} parent=67 // pred_check_branch
        %3409 = sbr.rel (%p3407) target = $region76
      $region75: #{_lambda_.6} parent=67 // pred_region
        %p3410 = scmp.lt.s32.totalorder %s27, 1
        %s3411 = scalar_select %p3410, %s27, 1
        %p3412 = scmp.lt.s32.totalorder %s28, 0
        %s3413 = scalar_select %p3412, %s28, 0
        %s3414 = sadd.s32 %s3413, %s3411
        %s3415 = smul.addr %s3414, 2
        %s3416 = scalar_lea.vmem %s7, %s3415
      $region76: #{_lambda_.6} parent=67 // pred_fallthru
        _
    $region68: #{_lambda_.6} parent=5 // pred_fallthru
      _
  $region6: #{_lambda_.6} parent=0 // loop_footer
    %s18 = sadd.s32 1, %s14
  $region7: #{_lambda_.6} parent=0 // loop_footer_branch
    %13 = sbr.rel target = $region3
  $region8: #{_lambda_.6} parent=0 // loop_exit
    _

</llo_original>
